<compile_context>
chip_gen: v6e
topology: v6e:2x2x1
jax: 0.10.0
libtpu: 0.0.40
codegen_flags: <defaults>
</compile_context>

<pallas_src>
import math

import jax
import jax.numpy as jnp
from jax.experimental import pallas as pl
from jax.experimental.pallas import tpu as pltpu

# --- scaled-down config (same structure as the reference BERT module) ---
VOCAB = 64        # vocab_size
DIM = 128         # dim_model
MAXLEN = 16       # maxlen
NSEG = 2          # num_segments
DK = DV = 32      # dim_k / dim_v
NHEADS = 4        # num_heads
HDK = NHEADS * DK           # 128 (lane-aligned q/k/v slice width)
DIM_FF = 256      # dim_ff
NLAYERS = 2       # num_layers
EPS = 1e-5        # nn.LayerNorm default eps
NEG_INF = -1e9    # same constant as masked_fill_ in the reference
NPAD = 128        # lane-dense padded width for narrow outputs (vocab=64, cls=2)


# --------------------------- in-kernel helpers -------------------------------

def _mm(x, w, b=None):
    # bf16 MXU inputs, f32 accumulation.
    y = jnp.dot(x.astype(jnp.bfloat16), w.astype(jnp.bfloat16),
                preferred_element_type=jnp.float32)
    return y if b is None else y + b


def _erf(x):
    # Abramowitz & Stegun 7.1.26 rational approximation (|err| <= 1.5e-7),
    # built from exp (EUP) + VPU ops so the exact-erf GELU fuses in-kernel.
    p = 0.3275911
    a1, a2, a3, a4, a5 = (0.254829592, -0.284496736, 1.421413741,
                          -1.453152027, 1.061405429)
    sgn = jnp.where(x >= 0.0, 1.0, -1.0)
    ax = jnp.abs(x)
    t = 1.0 / (1.0 + p * ax)
    poly = ((((a5 * t + a4) * t + a3) * t + a2) * t + a1) * t
    return sgn * (1.0 - poly * jnp.exp(-ax * ax))


def _gelu(x):
    return x * 0.5 * (1.0 + _erf(x * (1.0 / math.sqrt(2.0))))


def _layernorm(x, g, b):
    mu = jnp.mean(x, axis=-1, keepdims=True)
    var = jnp.mean((x - mu) ** 2, axis=-1, keepdims=True)  # biased var (PyTorch LN)
    return (x - mu) * jax.lax.rsqrt(var + EPS) * g + b


# --------------------------- the fused kernel --------------------------------
# Grid: (B,), "parallel".  Each program handles one sequence of S tokens.

def _bert_kernel(
    ids_ref, segs_ref, mpos_ref,
    tok_ref, tokT_ref, pos_ref, sege_ref, embg_ref, embb_ref,
    wqkv_ref, bqkv_ref, wo_ref, bo_ref, ln1g_ref, ln1b_ref,
    w1_ref, b1_ref, w2_ref, b2_ref,
    fcw_ref, fcb_ref, clsw_ref, clsb_ref,
    linw_ref, linb_ref, normg_ref, normb_ref, decb_ref,
    lm_ref, clsf_ref,
):
    S = ids_ref.shape[1]
    n_pred = mpos_ref.shape[1]
    scale = 1.0 / math.sqrt(DK)

    ids = ids_ref[...].reshape(S, 1)      # (S, 1) int32
    segs = segs_ref[...].reshape(S, 1)    # (S, 1) int32

    # ---- embedding (token one-hot matmul on the MXU + pos + segment) ----
    oh_tok = (ids == jax.lax.broadcasted_iota(jnp.int32, (S, VOCAB), 1)
              ).astype(jnp.bfloat16)                               # (S, VOCAB)
    emb = (_mm(oh_tok, tok_ref[...])                               # (S, DIM)
           + pos_ref[0:S, :]
           + jnp.where(segs == 1, sege_ref[1:2, :], sege_ref[0:1, :]))
    x = _layernorm(emb, embg_ref[...], embb_ref[...])              # (S, DIM) f32

    # additive pad-mask bias over key positions (token id == 0)
    mask_bias = jnp.where(ids.reshape(1, 1, S) == 0, NEG_INF, 0.0)  # (1,1,S)

    # ---- encoder layers (fully unrolled; all weights resident in VMEM) ----
    for l in range(NLAYERS):
        residual = x
        qkv = _mm(x, wqkv_ref[l], bqkv_ref[l])                     # (S, 3*HDK)
        # 128-aligned lane slices only; heads handled as a batched einsum.
        q = qkv[:, 0:HDK].reshape(S, NHEADS, DK).astype(jnp.bfloat16)
        k = qkv[:, HDK:2 * HDK].reshape(S, NHEADS, DK).astype(jnp.bfloat16)
        v = qkv[:, 2 * HDK:3 * HDK].reshape(S, NHEADS, DV).astype(jnp.bfloat16)
        s = jnp.einsum("qhd,khd->hqk", q, k,
                       preferred_element_type=jnp.float32) * scale  # (H,S,S)
        s = s + mask_bias
        m = jnp.max(s, axis=-1, keepdims=True)
        e = jnp.exp(s - m)
        # approx reciprocal runs on the EUP slot; set approx=False for an
        # exact divide if bit-level softmax parity is required.
        attn = e * pl.reciprocal(jnp.sum(e, axis=-1, keepdims=True), approx=True)
        ctx = jnp.einsum("hqk,khd->qhd", attn.astype(jnp.bfloat16), v,
                         preferred_element_type=jnp.float32)        # (S,H,DV)
        # single 128-wide output projection (== concat(heads) @ W_O)
        attn_out = _mm(ctx.reshape(S, NHEADS * DV), wo_ref[l], bo_ref[l])
        x = _layernorm(attn_out + residual, ln1g_ref[l], ln1b_ref[l])
        # PoswiseFeedForwardNet (no residual / LN afterwards, matching reference)
        x = _mm(_gelu(_mm(x, w1_ref[l], b1_ref[l])), w2_ref[l], b2_ref[l])

    # ---- pooler + classifier (lane-padded to 128; sliced in the wrapper) ----
    h_pooled = jnp.tanh(_mm(x[0:1, :], fcw_ref[...], fcb_ref[...]))  # (1, DIM)
    clsf_ref[...] = _mm(h_pooled, clsw_ref[...], clsb_ref[...]).reshape(1, 1, NPAD)

    # ---- masked-LM head (masked_pos gather via exact one-hot matmul) ----
    mpos = mpos_ref[...].reshape(n_pred, 1)
    oh_pred = (mpos == jax.lax.broadcasted_iota(jnp.int32, (n_pred, S), 1)
               ).astype(jnp.bfloat16)                                # (n_pred, S)
    h_masked = _mm(oh_pred, x)                                       # (n_pred, DIM)
    h2 = _layernorm(_gelu(_mm(h_masked, linw_ref[...], linb_ref[...])),
                    normg_ref[...], normb_ref[...])
    # tied decoder: pre-transposed (DIM, 128-padded) table, lane-dense store
    lm_ref[...] = _mm(h2, tokT_ref[...], decb_ref[...]).reshape(1, n_pred, NPAD)


# --------------------------- params & forward --------------------------------

def init_params(key):
    keys = iter(jax.random.split(key, 16))

    def nrm(shape, scale=0.02):
        return (scale * jax.random.normal(next(keys), shape)).astype(jnp.float32)

    zeros = lambda *s: jnp.zeros(s, jnp.float32)
    ones = lambda *s: jnp.ones(s, jnp.float32)

    def pad_cols(w, n=NPAD):
        return jnp.concatenate(
            [w, jnp.zeros((w.shape[0], n - w.shape[1]), w.dtype)], axis=1)

    tok_embed = nrm((VOCAB, DIM))
    cls_w = nrm((DIM, 2))

    return {
        # bf16 MXU weights; tied decoder table pre-transposed + lane-padded.
        "tok_embed": tok_embed.astype(jnp.bfloat16),
        "tok_embed_t": pad_cols(tok_embed.T).astype(jnp.bfloat16),
        "pos_embed": nrm((MAXLEN, DIM)),
        "seg_embed": nrm((NSEG, DIM)),
        "emb_ln_g": ones(1, DIM), "emb_ln_b": zeros(1, DIM),
        # fused QKV weights / biases, stacked over layers
        "wqkv": nrm((NLAYERS, DIM, 3 * HDK)).astype(jnp.bfloat16),
        "bqkv": zeros(NLAYERS, 1, 3 * HDK),
        "wo": nrm((NLAYERS, NHEADS * DV, DIM)).astype(jnp.bfloat16),
        "bo": zeros(NLAYERS, 1, DIM),
        "ln1_g": ones(NLAYERS, 1, DIM), "ln1_b": zeros(NLAYERS, 1, DIM),
        "w1": nrm((NLAYERS, DIM, DIM_FF)).astype(jnp.bfloat16),
        "b1": zeros(NLAYERS, 1, DIM_FF),
        "w2": nrm((NLAYERS, DIM_FF, DIM)).astype(jnp.bfloat16),
        "b2": zeros(NLAYERS, 1, DIM),
        "fc_w": nrm((DIM, DIM)).astype(jnp.bfloat16), "fc_b": zeros(1, DIM),
        "cls_w": pad_cols(cls_w).astype(jnp.bfloat16),
        "cls_b": jnp.zeros((1, NPAD), jnp.float32),
        "lin_w": nrm((DIM, DIM)).astype(jnp.bfloat16), "lin_b": zeros(1, DIM),
        "norm_g": ones(1, DIM), "norm_b": zeros(1, DIM),
        "dec_bias": jnp.zeros((1, NPAD), jnp.float32),
    }


_WEIGHT_KEYS = (
    "tok_embed", "tok_embed_t", "pos_embed", "seg_embed",
    "emb_ln_g", "emb_ln_b",
    "wqkv", "bqkv", "wo", "bo", "ln1_g", "ln1_b",
    "w1", "b1", "w2", "b2",
    "fc_w", "fc_b", "cls_w", "cls_b",
    "lin_w", "lin_b", "norm_g", "norm_b", "dec_bias",
)


def bert_forward(params, input_ids, segment_ids, masked_pos):
    B, S = input_ids.shape
    n_pred = masked_pos.shape[1]

    # Integer inputs reshaped so each per-batch block's trailing two dims
    # equal the full array dims (satisfies the (8,128)/full-dim block rule).
    ids = input_ids.reshape(B, S, 1).astype(jnp.int32)
    segs = segment_ids.reshape(B, S, 1).astype(jnp.int32)
    mpos = masked_pos.reshape(B, n_pred, 1).astype(jnp.int32)

    def batch_spec(shape):
        nrest = len(shape) - 1
        return pl.BlockSpec((1,) + tuple(shape[1:]),
                            lambda b, _n=nrest: (b,) + (0,) * _n)

    def full_spec(shape):
        nd = len(shape)
        return pl.BlockSpec(tuple(shape), lambda b, _n=nd: (0,) * _n)

    weights = [params[k] for k in _WEIGHT_KEYS]
    in_specs = ([batch_spec(ids.shape), batch_spec(segs.shape),
                 batch_spec(mpos.shape)]
                + [full_spec(w.shape) for w in weights])

    lm_pad, clsf_pad = pl.pallas_call(
        _bert_kernel,
        grid=(B,),
        in_specs=in_specs,
        out_specs=(
            pl.BlockSpec((1, n_pred, NPAD), lambda b: (b, 0, 0)),
            pl.BlockSpec((1, 1, NPAD), lambda b: (b, 0, 0)),
        ),
        out_shape=(
            jax.ShapeDtypeStruct((B, n_pred, NPAD), jnp.float32),
            jax.ShapeDtypeStruct((B, 1, NPAD), jnp.float32),
        ),
        compiler_params=pltpu.CompilerParams(
            dimension_semantics=("parallel",),   # batch sharded across TCs on v7x
            vmem_limit_bytes=32 * 1024 * 1024,
        ),
    )(ids, segs, mpos, *weights)

    # Strip the lane padding of the narrow heads outside the kernel.
    logits_lm = lm_pad[:, :, :VOCAB]
    logits_clsf = clsf_pad[:, 0, :2]
    return logits_lm, logits_clsf


if __name__ == "__main__":
    key = jax.random.PRNGKey(0)
    pkey, k1, k2, k3 = jax.random.split(key, 4)
    params = init_params(pkey)

    B, S, NPRED = 2, 8, 2
    input_ids = jax.random.randint(k1, (B, S), 1, VOCAB, dtype=jnp.int32)
    input_ids = input_ids.at[:, -1].set(0)          # one pad token per sequence
    segment_ids = jnp.concatenate(
        [jnp.zeros((B, S // 2), jnp.int32), jnp.ones((B, S // 2), jnp.int32)], axis=1
    )
    masked_pos = jax.random.randint(k3, (B, NPRED), 0, S, dtype=jnp.int32)

    logits_lm, logits_clsf = jax.jit(bert_forward)(
        params, input_ids, segment_ids, masked_pos
    )
    jax.block_until_ready((logits_lm, logits_clsf))

    assert logits_lm.shape == (B, NPRED, VOCAB)
    assert logits_clsf.shape == (B, 2)
    assert bool(jnp.all(jnp.isfinite(logits_lm))) and bool(jnp.all(jnp.isfinite(logits_clsf)))
    print("KERNEL_OK")
</pallas_src>

<mosaic_0001>
module attributes {stable_mosaic.version = 11 : i64} {
  func.func @_bert_kernel(%arg0: i32, %arg1: memref<1x8x1xi32, #tpu.memory_space<vmem>>, %arg2: memref<1x8x1xi32, #tpu.memory_space<vmem>>, %arg3: memref<1x2x1xi32, #tpu.memory_space<vmem>>, %arg4: memref<64x128xbf16, #tpu.memory_space<vmem>>, %arg5: memref<128x128xbf16, #tpu.memory_space<vmem>>, %arg6: memref<16x128xf32, #tpu.memory_space<vmem>>, %arg7: memref<2x128xf32, #tpu.memory_space<vmem>>, %arg8: memref<1x128xf32, #tpu.memory_space<vmem>>, %arg9: memref<1x128xf32, #tpu.memory_space<vmem>>, %arg10: memref<2x128x384xbf16, #tpu.memory_space<vmem>>, %arg11: memref<2x1x384xf32, #tpu.memory_space<vmem>>, %arg12: memref<2x128x128xbf16, #tpu.memory_space<vmem>>, %arg13: memref<2x1x128xf32, #tpu.memory_space<vmem>>, %arg14: memref<2x1x128xf32, #tpu.memory_space<vmem>>, %arg15: memref<2x1x128xf32, #tpu.memory_space<vmem>>, %arg16: memref<2x128x256xbf16, #tpu.memory_space<vmem>>, %arg17: memref<2x1x256xf32, #tpu.memory_space<vmem>>, %arg18: memref<2x256x128xbf16, #tpu.memory_space<vmem>>, %arg19: memref<2x1x128xf32, #tpu.memory_space<vmem>>, %arg20: memref<128x128xbf16, #tpu.memory_space<vmem>>, %arg21: memref<1x128xf32, #tpu.memory_space<vmem>>, %arg22: memref<128x128xbf16, #tpu.memory_space<vmem>>, %arg23: memref<1x128xf32, #tpu.memory_space<vmem>>, %arg24: memref<128x128xbf16, #tpu.memory_space<vmem>>, %arg25: memref<1x128xf32, #tpu.memory_space<vmem>>, %arg26: memref<1x128xf32, #tpu.memory_space<vmem>>, %arg27: memref<1x128xf32, #tpu.memory_space<vmem>>, %arg28: memref<1x128xf32, #tpu.memory_space<vmem>>, %arg29: memref<1x2x128xf32, #tpu.memory_space<vmem>>, %arg30: memref<1x1x128xf32, #tpu.memory_space<vmem>>) attributes {dimension_semantics = [#tpu.dimension_semantics<parallel>], iteration_bounds = array<i64: 2>, scalar_prefetch = 0 : i64, scratch_operands = 0 : i64, tpu.core_type = #tpu.core_type<tc>, window_params = [{transform_indices = @transform_0, window_bounds = array<i64: 1, 8, 1>}, {transform_indices = @transform_1, window_bounds = array<i64: 1, 8, 1>}, {transform_indices = @transform_2, window_bounds = array<i64: 1, 2, 1>}, {pipeline_mode = #tpu.pipeline_mode<synchronous>, transform_indices = @transform_3, window_bounds = array<i64: 64, 128>}, {pipeline_mode = #tpu.pipeline_mode<synchronous>, transform_indices = @transform_4, window_bounds = array<i64: 128, 128>}, {pipeline_mode = #tpu.pipeline_mode<synchronous>, transform_indices = @transform_5, window_bounds = array<i64: 16, 128>}, {pipeline_mode = #tpu.pipeline_mode<synchronous>, transform_indices = @transform_6, window_bounds = array<i64: 2, 128>}, {pipeline_mode = #tpu.pipeline_mode<synchronous>, transform_indices = @transform_7, window_bounds = array<i64: 1, 128>}, {pipeline_mode = #tpu.pipeline_mode<synchronous>, transform_indices = @transform_8, window_bounds = array<i64: 1, 128>}, {pipeline_mode = #tpu.pipeline_mode<synchronous>, transform_indices = @transform_9, window_bounds = array<i64: 2, 128, 384>}, {pipeline_mode = #tpu.pipeline_mode<synchronous>, transform_indices = @transform_10, window_bounds = array<i64: 2, 1, 384>}, {pipeline_mode = #tpu.pipeline_mode<synchronous>, transform_indices = @transform_11, window_bounds = array<i64: 2, 128, 128>}, {pipeline_mode = #tpu.pipeline_mode<synchronous>, transform_indices = @transform_12, window_bounds = array<i64: 2, 1, 128>}, {pipeline_mode = #tpu.pipeline_mode<synchronous>, transform_indices = @transform_13, window_bounds = array<i64: 2, 1, 128>}, {pipeline_mode = #tpu.pipeline_mode<synchronous>, transform_indices = @transform_14, window_bounds = array<i64: 2, 1, 128>}, {pipeline_mode = #tpu.pipeline_mode<synchronous>, transform_indices = @transform_15, window_bounds = array<i64: 2, 128, 256>}, {pipeline_mode = #tpu.pipeline_mode<synchronous>, transform_indices = @transform_16, window_bounds = array<i64: 2, 1, 256>}, {pipeline_mode = #tpu.pipeline_mode<synchronous>, transform_indices = @transform_17, window_bounds = array<i64: 2, 256, 128>}, {pipeline_mode = #tpu.pipeline_mode<synchronous>, transform_indices = @transform_18, window_bounds = array<i64: 2, 1, 128>}, {pipeline_mode = #tpu.pipeline_mode<synchronous>, transform_indices = @transform_19, window_bounds = array<i64: 128, 128>}, {pipeline_mode = #tpu.pipeline_mode<synchronous>, transform_indices = @transform_20, window_bounds = array<i64: 1, 128>}, {pipeline_mode = #tpu.pipeline_mode<synchronous>, transform_indices = @transform_21, window_bounds = array<i64: 128, 128>}, {pipeline_mode = #tpu.pipeline_mode<synchronous>, transform_indices = @transform_22, window_bounds = array<i64: 1, 128>}, {pipeline_mode = #tpu.pipeline_mode<synchronous>, transform_indices = @transform_23, window_bounds = array<i64: 128, 128>}, {pipeline_mode = #tpu.pipeline_mode<synchronous>, transform_indices = @transform_24, window_bounds = array<i64: 1, 128>}, {pipeline_mode = #tpu.pipeline_mode<synchronous>, transform_indices = @transform_25, window_bounds = array<i64: 1, 128>}, {pipeline_mode = #tpu.pipeline_mode<synchronous>, transform_indices = @transform_26, window_bounds = array<i64: 1, 128>}, {pipeline_mode = #tpu.pipeline_mode<synchronous>, transform_indices = @transform_27, window_bounds = array<i64: 1, 128>}, {transform_indices = @transform_28, window_bounds = array<i64: 1, 2, 128>}, {transform_indices = @transform_29, window_bounds = array<i64: 1, 1, 128>}]} {
    %c0 = arith.constant 0 : index
    %c0_0 = arith.constant 0 : index
    %c0_1 = arith.constant 0 : index
    %0 = vector.load %arg1[%c0, %c0_0, %c0_1] : memref<1x8x1xi32, #tpu.memory_space<vmem>>, vector<1x8x1xi32>
    %1 = vector.shape_cast %0 : vector<1x8x1xi32> to vector<8x1xi32>
    %c0_2 = arith.constant 0 : index
    %c0_3 = arith.constant 0 : index
    %c0_4 = arith.constant 0 : index
    %2 = vector.load %arg2[%c0_2, %c0_3, %c0_4] : memref<1x8x1xi32, #tpu.memory_space<vmem>>, vector<1x8x1xi32>
    %3 = vector.shape_cast %2 : vector<1x8x1xi32> to vector<8x1xi32>
    %4 = tpu.iota {dimensions = array<i32: 1>} : vector<8x64xi32>
    %5 = vector.broadcast %1 : vector<8x1xi32> to vector<8x64xi32>
    %6 = arith.cmpi eq, %5, %4 : vector<8x64xi32>
    %7 = arith.extui %6 : vector<8x64xi1> to vector<8x64xi32>
    %8 = arith.sitofp %7 : vector<8x64xi32> to vector<8x64xf32>
    %9 = arith.truncf %8 : vector<8x64xf32> to vector<8x64xbf16>
    %c0_5 = arith.constant 0 : index
    %c0_6 = arith.constant 0 : index
    %10 = vector.load %arg4[%c0_5, %c0_6] : memref<64x128xbf16, #tpu.memory_space<vmem>>, vector<64x128xbf16>
    %cst = arith.constant dense<0.000000e+00> : vector<8x128xf32>
    %11 = tpu.matmul %9, %10, %cst {dimension_numbers = #tpu.dot_dimension_numbers<[1], [0], [0], [1], [0, 0, 1, 1], [], []>} : vector<8x64xbf16>, vector<64x128xbf16>, vector<8x128xf32> -> vector<8x128xf32>
    %c0_7 = arith.constant 0 : index
    %c0_8 = arith.constant 0 : index
    %12 = vector.load %arg6[%c0_7, %c0_8] : memref<16x128xf32, #tpu.memory_space<vmem>>, vector<8x128xf32>
    %13 = arith.addf %11, %12 : vector<8x128xf32>
    %c1_i32 = arith.constant 1 : i32
    %14 = vector.broadcast %c1_i32 : i32 to vector<8x1xi32>
    %15 = arith.cmpi eq, %3, %14 : vector<8x1xi32>
    %c1 = arith.constant 1 : index
    %c0_9 = arith.constant 0 : index
    %16 = vector.load %arg7[%c1, %c0_9] : memref<2x128xf32, #tpu.memory_space<vmem>>, vector<1x128xf32>
    %c0_10 = arith.constant 0 : index
    %c0_11 = arith.constant 0 : index
    %17 = vector.load %arg7[%c0_10, %c0_11] : memref<2x128xf32, #tpu.memory_space<vmem>>, vector<1x128xf32>
    %18 = vector.shape_cast %15 : vector<8x1xi1> to vector<8x1xi1>
    %19 = vector.broadcast %18 : vector<8x1xi1> to vector<8x128xi1>
    %20 = vector.shape_cast %16 : vector<1x128xf32> to vector<1x128xf32>
    %21 = vector.broadcast %20 : vector<1x128xf32> to vector<8x128xf32>
    %22 = vector.shape_cast %17 : vector<1x128xf32> to vector<1x128xf32>
    %23 = vector.broadcast %22 : vector<1x128xf32> to vector<8x128xf32>
    %24 = arith.select %19, %21, %23 : vector<8x128xi1>, vector<8x128xf32>
    %25 = arith.addf %13, %24 : vector<8x128xf32>
    %c0_12 = arith.constant 0 : index
    %c0_13 = arith.constant 0 : index
    %26 = vector.load %arg8[%c0_12, %c0_13] : memref<1x128xf32, #tpu.memory_space<vmem>>, vector<1x128xf32>
    %c0_14 = arith.constant 0 : index
    %c0_15 = arith.constant 0 : index
    %27 = vector.load %arg9[%c0_14, %c0_15] : memref<1x128xf32, #tpu.memory_space<vmem>>, vector<1x128xf32>
    %cst_16 = arith.constant dense<0.000000e+00> : vector<8xf32>
    %28 = vector.multi_reduction <add>, %25, %cst_16 [1] : vector<8x128xf32> to vector<8xf32>
    %29 = vector.shape_cast %28 : vector<8xf32> to vector<8x1xf32>
    %cst_17 = arith.constant 1.280000e+02 : f32
    %30 = vector.broadcast %cst_17 : f32 to vector<8x1xf32>
    %31 = arith.divf %29, %30 : vector<8x1xf32>
    %32 = vector.broadcast %31 : vector<8x1xf32> to vector<8x128xf32>
    %33 = arith.subf %25, %32 : vector<8x128xf32>
    %34 = arith.mulf %33, %33 : vector<8x128xf32>
    %cst_18 = arith.constant dense<0.000000e+00> : vector<8xf32>
    %35 = vector.multi_reduction <add>, %34, %cst_18 [1] : vector<8x128xf32> to vector<8xf32>
    %36 = vector.shape_cast %35 : vector<8xf32> to vector<8x1xf32>
    %cst_19 = arith.constant 1.280000e+02 : f32
    %37 = vector.broadcast %cst_19 : f32 to vector<8x1xf32>
    %38 = arith.divf %36, %37 : vector<8x1xf32>
    %39 = vector.broadcast %31 : vector<8x1xf32> to vector<8x128xf32>
    %40 = arith.subf %25, %39 : vector<8x128xf32>
    %cst_20 = arith.constant 9.99999974E-6 : f32
    %41 = vector.broadcast %cst_20 : f32 to vector<8x1xf32>
    %42 = arith.addf %38, %41 : vector<8x1xf32>
    %43 = math.rsqrt %42 : vector<8x1xf32>
    %44 = vector.broadcast %43 : vector<8x1xf32> to vector<8x128xf32>
    %45 = arith.mulf %40, %44 : vector<8x128xf32>
    %46 = vector.broadcast %26 : vector<1x128xf32> to vector<8x128xf32>
    %47 = arith.mulf %45, %46 : vector<8x128xf32>
    %48 = vector.broadcast %27 : vector<1x128xf32> to vector<8x128xf32>
    %49 = arith.addf %47, %48 : vector<8x128xf32>
    %50 = vector.shape_cast %1 : vector<8x1xi32> to vector<1x1x8xi32>
    %c0_i32 = arith.constant 0 : i32
    %51 = vector.broadcast %c0_i32 : i32 to vector<1x1x8xi32>
    %52 = arith.cmpi eq, %50, %51 : vector<1x1x8xi32>
    %cst_21 = arith.constant -1.000000e+09 : f32
    %cst_22 = arith.constant 0.000000e+00 : f32
    %53 = vector.broadcast %cst_21 : f32 to vector<1x1x8xf32>
    %54 = vector.broadcast %cst_22 : f32 to vector<1x1x8xf32>
    %55 = arith.select %52, %53, %54 : vector<1x1x8xi1>, vector<1x1x8xf32>
    %c0_23 = arith.constant 0 : index
    %c0_24 = arith.constant 0 : index
    %c0_25 = arith.constant 0 : index
    %56 = vector.load %arg10[%c0_23, %c0_24, %c0_25] : memref<2x128x384xbf16, #tpu.memory_space<vmem>>, vector<1x128x384xbf16>
    %57 = vector.shape_cast %56 : vector<1x128x384xbf16> to vector<128x384xbf16>
    %c0_26 = arith.constant 0 : index
    %c0_27 = arith.constant 0 : index
    %c0_28 = arith.constant 0 : index
    %58 = vector.load %arg11[%c0_26, %c0_27, %c0_28] : memref<2x1x384xf32, #tpu.memory_space<vmem>>, vector<1x1x384xf32>
    %59 = vector.shape_cast %58 : vector<1x1x384xf32> to vector<1x384xf32>
    %60 = arith.truncf %49 : vector<8x128xf32> to vector<8x128xbf16>
    %cst_29 = arith.constant dense<0.000000e+00> : vector<8x384xf32>
    %61 = tpu.matmul %60, %57, %cst_29 {dimension_numbers = #tpu.dot_dimension_numbers<[1], [0], [0], [1], [0, 0, 1, 1], [], []>} : vector<8x128xbf16>, vector<128x384xbf16>, vector<8x384xf32> -> vector<8x384xf32>
    %62 = vector.broadcast %59 : vector<1x384xf32> to vector<8x384xf32>
    %63 = arith.addf %61, %62 : vector<8x384xf32>
    %64 = vector.extract_strided_slice %63 {offsets = [0, 0], sizes = [8, 128], strides = [1, 1]} : vector<8x384xf32> to vector<8x128xf32>
    %65 = vector.shape_cast %64 : vector<8x128xf32> to vector<8x4x32xf32>
    %66 = arith.truncf %65 : vector<8x4x32xf32> to vector<8x4x32xbf16>
    %67 = vector.extract_strided_slice %63 {offsets = [0, 128], sizes = [8, 128], strides = [1, 1]} : vector<8x384xf32> to vector<8x128xf32>
    %68 = vector.shape_cast %67 : vector<8x128xf32> to vector<8x4x32xf32>
    %69 = arith.truncf %68 : vector<8x4x32xf32> to vector<8x4x32xbf16>
    %70 = vector.extract_strided_slice %63 {offsets = [0, 256], sizes = [8, 128], strides = [1, 1]} : vector<8x384xf32> to vector<8x128xf32>
    %71 = vector.shape_cast %70 : vector<8x128xf32> to vector<8x4x32xf32>
    %72 = arith.truncf %71 : vector<8x4x32xf32> to vector<8x4x32xbf16>
    "tpu.trace_start"() <{level = 10 : i32, message = "qhd,khd->hqk"}> : () -> ()
    %cst_30 = arith.constant dense<0.000000e+00> : vector<4x8x8xf32>
    %73 = tpu.matmul %66, %69, %cst_30 {dimension_numbers = #tpu.dot_dimension_numbers<[2], [2], [0], [0], [0, 1, 0, 0, 1, 0], [1], [1]>} : vector<8x4x32xbf16>, vector<8x4x32xbf16>, vector<4x8x8xf32> -> vector<4x8x8xf32>
    "tpu.trace_stop"() : () -> ()
    %cst_31 = arith.constant 0.176776692 : f32
    %74 = vector.broadcast %cst_31 : f32 to vector<4x8x8xf32>
    %75 = arith.mulf %73, %74 : vector<4x8x8xf32>
    %76 = vector.broadcast %55 : vector<1x1x8xf32> to vector<4x8x8xf32>
    %77 = arith.addf %75, %76 : vector<4x8x8xf32>
    %cst_32 = arith.constant dense<0xFF800000> : vector<4x8xf32>
    %78 = vector.multi_reduction <maximumf>, %77, %cst_32 [2] : vector<4x8x8xf32> to vector<4x8xf32>
    %79 = vector.shape_cast %78 : vector<4x8xf32> to vector<4x8x1xf32>
    %80 = vector.broadcast %79 : vector<4x8x1xf32> to vector<4x8x8xf32>
    %81 = arith.subf %77, %80 : vector<4x8x8xf32>
    %82 = math.exp %81 : vector<4x8x8xf32>
    %cst_33 = arith.constant dense<0.000000e+00> : vector<4x8xf32>
    %83 = vector.multi_reduction <add>, %82, %cst_33 [2] : vector<4x8x8xf32> to vector<4x8xf32>
    %84 = vector.shape_cast %83 : vector<4x8xf32> to vector<4x8x1xf32>
    %85 = tpu.reciprocal %84 {approx = true} : vector<4x8x1xf32> -> vector<4x8x1xf32>
    %86 = vector.broadcast %85 : vector<4x8x1xf32> to vector<4x8x8xf32>
    %87 = arith.mulf %82, %86 : vector<4x8x8xf32>
    %88 = arith.truncf %87 : vector<4x8x8xf32> to vector<4x8x8xbf16>
    "tpu.trace_start"() <{level = 10 : i32, message = "hqk,khd->qhd"}> : () -> ()
    %cst_34 = arith.constant dense<0.000000e+00> : vector<4x32x8xf32>
    %89 = tpu.matmul %72, %88, %cst_34 {dimension_numbers = #tpu.dot_dimension_numbers<[0], [2], [2], [1], [0, 1, 0, 2, 1, 1], [1], [0]>} : vector<8x4x32xbf16>, vector<4x8x8xbf16>, vector<4x32x8xf32> -> vector<4x32x8xf32>
    %90 = tpu.transpose %89, [2, 0, 1] : vector<4x32x8xf32> -> vector<8x4x32xf32>
    "tpu.trace_stop"() : () -> ()
    %91 = vector.shape_cast %90 : vector<8x4x32xf32> to vector<8x128xf32>
    %c0_35 = arith.constant 0 : index
    %c0_36 = arith.constant 0 : index
    %c0_37 = arith.constant 0 : index
    %92 = vector.load %arg12[%c0_35, %c0_36, %c0_37] : memref<2x128x128xbf16, #tpu.memory_space<vmem>>, vector<1x128x128xbf16>
    %93 = vector.shape_cast %92 : vector<1x128x128xbf16> to vector<128x128xbf16>
    %c0_38 = arith.constant 0 : index
    %c0_39 = arith.constant 0 : index
    %c0_40 = arith.constant 0 : index
    %94 = vector.load %arg13[%c0_38, %c0_39, %c0_40] : memref<2x1x128xf32, #tpu.memory_space<vmem>>, vector<1x1x128xf32>
    %95 = vector.shape_cast %94 : vector<1x1x128xf32> to vector<1x128xf32>
    %96 = arith.truncf %91 : vector<8x128xf32> to vector<8x128xbf16>
    %cst_41 = arith.constant dense<0.000000e+00> : vector<8x128xf32>
    %97 = tpu.matmul %96, %93, %cst_41 {dimension_numbers = #tpu.dot_dimension_numbers<[1], [0], [0], [1], [0, 0, 1, 1], [], []>} : vector<8x128xbf16>, vector<128x128xbf16>, vector<8x128xf32> -> vector<8x128xf32>
    %98 = vector.broadcast %95 : vector<1x128xf32> to vector<8x128xf32>
    %99 = arith.addf %97, %98 : vector<8x128xf32>
    %100 = arith.addf %99, %49 : vector<8x128xf32>
    %c0_42 = arith.constant 0 : index
    %c0_43 = arith.constant 0 : index
    %c0_44 = arith.constant 0 : index
    %101 = vector.load %arg14[%c0_42, %c0_43, %c0_44] : memref<2x1x128xf32, #tpu.memory_space<vmem>>, vector<1x1x128xf32>
    %102 = vector.shape_cast %101 : vector<1x1x128xf32> to vector<1x128xf32>
    %c0_45 = arith.constant 0 : index
    %c0_46 = arith.constant 0 : index
    %c0_47 = arith.constant 0 : index
    %103 = vector.load %arg15[%c0_45, %c0_46, %c0_47] : memref<2x1x128xf32, #tpu.memory_space<vmem>>, vector<1x1x128xf32>
    %104 = vector.shape_cast %103 : vector<1x1x128xf32> to vector<1x128xf32>
    %cst_48 = arith.constant dense<0.000000e+00> : vector<8xf32>
    %105 = vector.multi_reduction <add>, %100, %cst_48 [1] : vector<8x128xf32> to vector<8xf32>
    %106 = vector.shape_cast %105 : vector<8xf32> to vector<8x1xf32>
    %cst_49 = arith.constant 1.280000e+02 : f32
    %107 = vector.broadcast %cst_49 : f32 to vector<8x1xf32>
    %108 = arith.divf %106, %107 : vector<8x1xf32>
    %109 = vector.broadcast %108 : vector<8x1xf32> to vector<8x128xf32>
    %110 = arith.subf %100, %109 : vector<8x128xf32>
    %111 = arith.mulf %110, %110 : vector<8x128xf32>
    %cst_50 = arith.constant dense<0.000000e+00> : vector<8xf32>
    %112 = vector.multi_reduction <add>, %111, %cst_50 [1] : vector<8x128xf32> to vector<8xf32>
    %113 = vector.shape_cast %112 : vector<8xf32> to vector<8x1xf32>
    %cst_51 = arith.constant 1.280000e+02 : f32
    %114 = vector.broadcast %cst_51 : f32 to vector<8x1xf32>
    %115 = arith.divf %113, %114 : vector<8x1xf32>
    %116 = vector.broadcast %108 : vector<8x1xf32> to vector<8x128xf32>
    %117 = arith.subf %100, %116 : vector<8x128xf32>
    %cst_52 = arith.constant 9.99999974E-6 : f32
    %118 = vector.broadcast %cst_52 : f32 to vector<8x1xf32>
    %119 = arith.addf %115, %118 : vector<8x1xf32>
    %120 = math.rsqrt %119 : vector<8x1xf32>
    %121 = vector.broadcast %120 : vector<8x1xf32> to vector<8x128xf32>
    %122 = arith.mulf %117, %121 : vector<8x128xf32>
    %123 = vector.broadcast %102 : vector<1x128xf32> to vector<8x128xf32>
    %124 = arith.mulf %122, %123 : vector<8x128xf32>
    %125 = vector.broadcast %104 : vector<1x128xf32> to vector<8x128xf32>
    %126 = arith.addf %124, %125 : vector<8x128xf32>
    %c0_53 = arith.constant 0 : index
    %c0_54 = arith.constant 0 : index
    %c0_55 = arith.constant 0 : index
    %127 = vector.load %arg16[%c0_53, %c0_54, %c0_55] : memref<2x128x256xbf16, #tpu.memory_space<vmem>>, vector<1x128x256xbf16>
    %128 = vector.shape_cast %127 : vector<1x128x256xbf16> to vector<128x256xbf16>
    %c0_56 = arith.constant 0 : index
    %c0_57 = arith.constant 0 : index
    %c0_58 = arith.constant 0 : index
    %129 = vector.load %arg17[%c0_56, %c0_57, %c0_58] : memref<2x1x256xf32, #tpu.memory_space<vmem>>, vector<1x1x256xf32>
    %130 = vector.shape_cast %129 : vector<1x1x256xf32> to vector<1x256xf32>
    %131 = arith.truncf %126 : vector<8x128xf32> to vector<8x128xbf16>
    %cst_59 = arith.constant dense<0.000000e+00> : vector<8x256xf32>
    %132 = tpu.matmul %131, %128, %cst_59 {dimension_numbers = #tpu.dot_dimension_numbers<[1], [0], [0], [1], [0, 0, 1, 1], [], []>} : vector<8x128xbf16>, vector<128x256xbf16>, vector<8x256xf32> -> vector<8x256xf32>
    %133 = vector.broadcast %130 : vector<1x256xf32> to vector<8x256xf32>
    %134 = arith.addf %132, %133 : vector<8x256xf32>
    %cst_60 = arith.constant 5.000000e-01 : f32
    %135 = vector.broadcast %cst_60 : f32 to vector<8x256xf32>
    %136 = arith.mulf %134, %135 : vector<8x256xf32>
    %cst_61 = arith.constant 0.707106769 : f32
    %137 = vector.broadcast %cst_61 : f32 to vector<8x256xf32>
    %138 = arith.mulf %134, %137 : vector<8x256xf32>
    %cst_62 = arith.constant 0.000000e+00 : f32
    %139 = vector.broadcast %cst_62 : f32 to vector<8x256xf32>
    %140 = arith.cmpf oge, %138, %139 : vector<8x256xf32>
    %cst_63 = arith.constant 1.000000e+00 : f32
    %cst_64 = arith.constant -1.000000e+00 : f32
    %141 = vector.broadcast %cst_63 : f32 to vector<8x256xf32>
    %142 = vector.broadcast %cst_64 : f32 to vector<8x256xf32>
    %143 = arith.select %140, %141, %142 : vector<8x256xi1>, vector<8x256xf32>
    %144 = math.absf %138 : vector<8x256xf32>
    %cst_65 = arith.constant 0.327591091 : f32
    %145 = vector.broadcast %cst_65 : f32 to vector<8x256xf32>
    %146 = arith.mulf %145, %144 : vector<8x256xf32>
    %cst_66 = arith.constant 1.000000e+00 : f32
    %147 = vector.broadcast %cst_66 : f32 to vector<8x256xf32>
    %148 = arith.addf %147, %146 : vector<8x256xf32>
    %cst_67 = arith.constant 1.000000e+00 : f32
    %149 = vector.broadcast %cst_67 : f32 to vector<8x256xf32>
    %150 = arith.divf %149, %148 : vector<8x256xf32>
    %cst_68 = arith.constant 1.06140542 : f32
    %151 = vector.broadcast %cst_68 : f32 to vector<8x256xf32>
    %152 = arith.mulf %151, %150 : vector<8x256xf32>
    %cst_69 = arith.constant -1.45315206 : f32
    %153 = vector.broadcast %cst_69 : f32 to vector<8x256xf32>
    %154 = arith.addf %152, %153 : vector<8x256xf32>
    %155 = arith.mulf %154, %150 : vector<8x256xf32>
    %cst_70 = arith.constant 1.42141378 : f32
    %156 = vector.broadcast %cst_70 : f32 to vector<8x256xf32>
    %157 = arith.addf %155, %156 : vector<8x256xf32>
    %158 = arith.mulf %157, %150 : vector<8x256xf32>
    %cst_71 = arith.constant -0.284496725 : f32
    %159 = vector.broadcast %cst_71 : f32 to vector<8x256xf32>
    %160 = arith.addf %158, %159 : vector<8x256xf32>
    %161 = arith.mulf %160, %150 : vector<8x256xf32>
    %cst_72 = arith.constant 0.254829586 : f32
    %162 = vector.broadcast %cst_72 : f32 to vector<8x256xf32>
    %163 = arith.addf %161, %162 : vector<8x256xf32>
    %164 = arith.mulf %163, %150 : vector<8x256xf32>
    %cst_73 = arith.constant 0.000000e+00 : f32
    %165 = vector.broadcast %cst_73 : f32 to vector<8x256xf32>
    %166 = arith.subf %165, %144 : vector<8x256xf32>
    %167 = arith.mulf %166, %144 : vector<8x256xf32>
    %168 = math.exp %167 : vector<8x256xf32>
    %169 = arith.mulf %164, %168 : vector<8x256xf32>
    %cst_74 = arith.constant 1.000000e+00 : f32
    %170 = vector.broadcast %cst_74 : f32 to vector<8x256xf32>
    %171 = arith.subf %170, %169 : vector<8x256xf32>
    %172 = arith.mulf %143, %171 : vector<8x256xf32>
    %cst_75 = arith.constant 1.000000e+00 : f32
    %173 = vector.broadcast %cst_75 : f32 to vector<8x256xf32>
    %174 = arith.addf %173, %172 : vector<8x256xf32>
    %175 = arith.mulf %136, %174 : vector<8x256xf32>
    %c0_76 = arith.constant 0 : index
    %c0_77 = arith.constant 0 : index
    %c0_78 = arith.constant 0 : index
    %176 = vector.load %arg18[%c0_76, %c0_77, %c0_78] : memref<2x256x128xbf16, #tpu.memory_space<vmem>>, vector<1x256x128xbf16>
    %177 = vector.shape_cast %176 : vector<1x256x128xbf16> to vector<256x128xbf16>
    %c0_79 = arith.constant 0 : index
    %c0_80 = arith.constant 0 : index
    %c0_81 = arith.constant 0 : index
    %178 = vector.load %arg19[%c0_79, %c0_80, %c0_81] : memref<2x1x128xf32, #tpu.memory_space<vmem>>, vector<1x1x128xf32>
    %179 = vector.shape_cast %178 : vector<1x1x128xf32> to vector<1x128xf32>
    %180 = arith.truncf %175 : vector<8x256xf32> to vector<8x256xbf16>
    %cst_82 = arith.constant dense<0.000000e+00> : vector<8x128xf32>
    %181 = tpu.matmul %180, %177, %cst_82 {dimension_numbers = #tpu.dot_dimension_numbers<[1], [0], [0], [1], [0, 0, 1, 1], [], []>} : vector<8x256xbf16>, vector<256x128xbf16>, vector<8x128xf32> -> vector<8x128xf32>
    %182 = vector.broadcast %179 : vector<1x128xf32> to vector<8x128xf32>
    %183 = arith.addf %181, %182 : vector<8x128xf32>
    %c1_83 = arith.constant 1 : index
    %c0_84 = arith.constant 0 : index
    %c0_85 = arith.constant 0 : index
    %184 = vector.load %arg10[%c1_83, %c0_84, %c0_85] : memref<2x128x384xbf16, #tpu.memory_space<vmem>>, vector<1x128x384xbf16>
    %185 = vector.shape_cast %184 : vector<1x128x384xbf16> to vector<128x384xbf16>
    %c1_86 = arith.constant 1 : index
    %c0_87 = arith.constant 0 : index
    %c0_88 = arith.constant 0 : index
    %186 = vector.load %arg11[%c1_86, %c0_87, %c0_88] : memref<2x1x384xf32, #tpu.memory_space<vmem>>, vector<1x1x384xf32>
    %187 = vector.shape_cast %186 : vector<1x1x384xf32> to vector<1x384xf32>
    %188 = arith.truncf %183 : vector<8x128xf32> to vector<8x128xbf16>
    %cst_89 = arith.constant dense<0.000000e+00> : vector<8x384xf32>
    %189 = tpu.matmul %188, %185, %cst_89 {dimension_numbers = #tpu.dot_dimension_numbers<[1], [0], [0], [1], [0, 0, 1, 1], [], []>} : vector<8x128xbf16>, vector<128x384xbf16>, vector<8x384xf32> -> vector<8x384xf32>
    %190 = vector.broadcast %187 : vector<1x384xf32> to vector<8x384xf32>
    %191 = arith.addf %189, %190 : vector<8x384xf32>
    %192 = vector.extract_strided_slice %191 {offsets = [0, 0], sizes = [8, 128], strides = [1, 1]} : vector<8x384xf32> to vector<8x128xf32>
    %193 = vector.shape_cast %192 : vector<8x128xf32> to vector<8x4x32xf32>
    %194 = arith.truncf %193 : vector<8x4x32xf32> to vector<8x4x32xbf16>
    %195 = vector.extract_strided_slice %191 {offsets = [0, 128], sizes = [8, 128], strides = [1, 1]} : vector<8x384xf32> to vector<8x128xf32>
    %196 = vector.shape_cast %195 : vector<8x128xf32> to vector<8x4x32xf32>
    %197 = arith.truncf %196 : vector<8x4x32xf32> to vector<8x4x32xbf16>
    %198 = vector.extract_strided_slice %191 {offsets = [0, 256], sizes = [8, 128], strides = [1, 1]} : vector<8x384xf32> to vector<8x128xf32>
    %199 = vector.shape_cast %198 : vector<8x128xf32> to vector<8x4x32xf32>
    %200 = arith.truncf %199 : vector<8x4x32xf32> to vector<8x4x32xbf16>
    "tpu.trace_start"() <{level = 10 : i32, message = "qhd,khd->hqk"}> : () -> ()
    %cst_90 = arith.constant dense<0.000000e+00> : vector<4x8x8xf32>
    %201 = tpu.matmul %194, %197, %cst_90 {dimension_numbers = #tpu.dot_dimension_numbers<[2], [2], [0], [0], [0, 1, 0, 0, 1, 0], [1], [1]>} : vector<8x4x32xbf16>, vector<8x4x32xbf16>, vector<4x8x8xf32> -> vector<4x8x8xf32>
    "tpu.trace_stop"() : () -> ()
    %cst_91 = arith.constant 0.176776692 : f32
    %202 = vector.broadcast %cst_91 : f32 to vector<4x8x8xf32>
    %203 = arith.mulf %201, %202 : vector<4x8x8xf32>
    %204 = vector.broadcast %55 : vector<1x1x8xf32> to vector<4x8x8xf32>
    %205 = arith.addf %203, %204 : vector<4x8x8xf32>
    %cst_92 = arith.constant dense<0xFF800000> : vector<4x8xf32>
    %206 = vector.multi_reduction <maximumf>, %205, %cst_92 [2] : vector<4x8x8xf32> to vector<4x8xf32>
    %207 = vector.shape_cast %206 : vector<4x8xf32> to vector<4x8x1xf32>
    %208 = vector.broadcast %207 : vector<4x8x1xf32> to vector<4x8x8xf32>
    %209 = arith.subf %205, %208 : vector<4x8x8xf32>
    %210 = math.exp %209 : vector<4x8x8xf32>
    %cst_93 = arith.constant dense<0.000000e+00> : vector<4x8xf32>
    %211 = vector.multi_reduction <add>, %210, %cst_93 [2] : vector<4x8x8xf32> to vector<4x8xf32>
    %212 = vector.shape_cast %211 : vector<4x8xf32> to vector<4x8x1xf32>
    %213 = tpu.reciprocal %212 {approx = true} : vector<4x8x1xf32> -> vector<4x8x1xf32>
    %214 = vector.broadcast %213 : vector<4x8x1xf32> to vector<4x8x8xf32>
    %215 = arith.mulf %210, %214 : vector<4x8x8xf32>
    %216 = arith.truncf %215 : vector<4x8x8xf32> to vector<4x8x8xbf16>
    "tpu.trace_start"() <{level = 10 : i32, message = "hqk,khd->qhd"}> : () -> ()
    %cst_94 = arith.constant dense<0.000000e+00> : vector<4x32x8xf32>
    %217 = tpu.matmul %200, %216, %cst_94 {dimension_numbers = #tpu.dot_dimension_numbers<[0], [2], [2], [1], [0, 1, 0, 2, 1, 1], [1], [0]>} : vector<8x4x32xbf16>, vector<4x8x8xbf16>, vector<4x32x8xf32> -> vector<4x32x8xf32>
    %218 = tpu.transpose %217, [2, 0, 1] : vector<4x32x8xf32> -> vector<8x4x32xf32>
    "tpu.trace_stop"() : () -> ()
    %219 = vector.shape_cast %218 : vector<8x4x32xf32> to vector<8x128xf32>
    %c1_95 = arith.constant 1 : index
    %c0_96 = arith.constant 0 : index
    %c0_97 = arith.constant 0 : index
    %220 = vector.load %arg12[%c1_95, %c0_96, %c0_97] : memref<2x128x128xbf16, #tpu.memory_space<vmem>>, vector<1x128x128xbf16>
    %221 = vector.shape_cast %220 : vector<1x128x128xbf16> to vector<128x128xbf16>
    %c1_98 = arith.constant 1 : index
    %c0_99 = arith.constant 0 : index
    %c0_100 = arith.constant 0 : index
    %222 = vector.load %arg13[%c1_98, %c0_99, %c0_100] : memref<2x1x128xf32, #tpu.memory_space<vmem>>, vector<1x1x128xf32>
    %223 = vector.shape_cast %222 : vector<1x1x128xf32> to vector<1x128xf32>
    %224 = arith.truncf %219 : vector<8x128xf32> to vector<8x128xbf16>
    %cst_101 = arith.constant dense<0.000000e+00> : vector<8x128xf32>
    %225 = tpu.matmul %224, %221, %cst_101 {dimension_numbers = #tpu.dot_dimension_numbers<[1], [0], [0], [1], [0, 0, 1, 1], [], []>} : vector<8x128xbf16>, vector<128x128xbf16>, vector<8x128xf32> -> vector<8x128xf32>
    %226 = vector.broadcast %223 : vector<1x128xf32> to vector<8x128xf32>
    %227 = arith.addf %225, %226 : vector<8x128xf32>
    %228 = arith.addf %227, %183 : vector<8x128xf32>
    %c1_102 = arith.constant 1 : index
    %c0_103 = arith.constant 0 : index
    %c0_104 = arith.constant 0 : index
    %229 = vector.load %arg14[%c1_102, %c0_103, %c0_104] : memref<2x1x128xf32, #tpu.memory_space<vmem>>, vector<1x1x128xf32>
    %230 = vector.shape_cast %229 : vector<1x1x128xf32> to vector<1x128xf32>
    %c1_105 = arith.constant 1 : index
    %c0_106 = arith.constant 0 : index
    %c0_107 = arith.constant 0 : index
    %231 = vector.load %arg15[%c1_105, %c0_106, %c0_107] : memref<2x1x128xf32, #tpu.memory_space<vmem>>, vector<1x1x128xf32>
    %232 = vector.shape_cast %231 : vector<1x1x128xf32> to vector<1x128xf32>
    %cst_108 = arith.constant dense<0.000000e+00> : vector<8xf32>
    %233 = vector.multi_reduction <add>, %228, %cst_108 [1] : vector<8x128xf32> to vector<8xf32>
    %234 = vector.shape_cast %233 : vector<8xf32> to vector<8x1xf32>
    %cst_109 = arith.constant 1.280000e+02 : f32
    %235 = vector.broadcast %cst_109 : f32 to vector<8x1xf32>
    %236 = arith.divf %234, %235 : vector<8x1xf32>
    %237 = vector.broadcast %236 : vector<8x1xf32> to vector<8x128xf32>
    %238 = arith.subf %228, %237 : vector<8x128xf32>
    %239 = arith.mulf %238, %238 : vector<8x128xf32>
    %cst_110 = arith.constant dense<0.000000e+00> : vector<8xf32>
    %240 = vector.multi_reduction <add>, %239, %cst_110 [1] : vector<8x128xf32> to vector<8xf32>
    %241 = vector.shape_cast %240 : vector<8xf32> to vector<8x1xf32>
    %cst_111 = arith.constant 1.280000e+02 : f32
    %242 = vector.broadcast %cst_111 : f32 to vector<8x1xf32>
    %243 = arith.divf %241, %242 : vector<8x1xf32>
    %244 = vector.broadcast %236 : vector<8x1xf32> to vector<8x128xf32>
    %245 = arith.subf %228, %244 : vector<8x128xf32>
    %cst_112 = arith.constant 9.99999974E-6 : f32
    %246 = vector.broadcast %cst_112 : f32 to vector<8x1xf32>
    %247 = arith.addf %243, %246 : vector<8x1xf32>
    %248 = math.rsqrt %247 : vector<8x1xf32>
    %249 = vector.broadcast %248 : vector<8x1xf32> to vector<8x128xf32>
    %250 = arith.mulf %245, %249 : vector<8x128xf32>
    %251 = vector.broadcast %230 : vector<1x128xf32> to vector<8x128xf32>
    %252 = arith.mulf %250, %251 : vector<8x128xf32>
    %253 = vector.broadcast %232 : vector<1x128xf32> to vector<8x128xf32>
    %254 = arith.addf %252, %253 : vector<8x128xf32>
    %c1_113 = arith.constant 1 : index
    %c0_114 = arith.constant 0 : index
    %c0_115 = arith.constant 0 : index
    %255 = vector.load %arg16[%c1_113, %c0_114, %c0_115] : memref<2x128x256xbf16, #tpu.memory_space<vmem>>, vector<1x128x256xbf16>
    %256 = vector.shape_cast %255 : vector<1x128x256xbf16> to vector<128x256xbf16>
    %c1_116 = arith.constant 1 : index
    %c0_117 = arith.constant 0 : index
    %c0_118 = arith.constant 0 : index
    %257 = vector.load %arg17[%c1_116, %c0_117, %c0_118] : memref<2x1x256xf32, #tpu.memory_space<vmem>>, vector<1x1x256xf32>
    %258 = vector.shape_cast %257 : vector<1x1x256xf32> to vector<1x256xf32>
    %259 = arith.truncf %254 : vector<8x128xf32> to vector<8x128xbf16>
    %cst_119 = arith.constant dense<0.000000e+00> : vector<8x256xf32>
    %260 = tpu.matmul %259, %256, %cst_119 {dimension_numbers = #tpu.dot_dimension_numbers<[1], [0], [0], [1], [0, 0, 1, 1], [], []>} : vector<8x128xbf16>, vector<128x256xbf16>, vector<8x256xf32> -> vector<8x256xf32>
    %261 = vector.broadcast %258 : vector<1x256xf32> to vector<8x256xf32>
    %262 = arith.addf %260, %261 : vector<8x256xf32>
    %cst_120 = arith.constant 5.000000e-01 : f32
    %263 = vector.broadcast %cst_120 : f32 to vector<8x256xf32>
    %264 = arith.mulf %262, %263 : vector<8x256xf32>
    %cst_121 = arith.constant 0.707106769 : f32
    %265 = vector.broadcast %cst_121 : f32 to vector<8x256xf32>
    %266 = arith.mulf %262, %265 : vector<8x256xf32>
    %cst_122 = arith.constant 0.000000e+00 : f32
    %267 = vector.broadcast %cst_122 : f32 to vector<8x256xf32>
    %268 = arith.cmpf oge, %266, %267 : vector<8x256xf32>
    %cst_123 = arith.constant 1.000000e+00 : f32
    %cst_124 = arith.constant -1.000000e+00 : f32
    %269 = vector.broadcast %cst_123 : f32 to vector<8x256xf32>
    %270 = vector.broadcast %cst_124 : f32 to vector<8x256xf32>
    %271 = arith.select %268, %269, %270 : vector<8x256xi1>, vector<8x256xf32>
    %272 = math.absf %266 : vector<8x256xf32>
    %cst_125 = arith.constant 0.327591091 : f32
    %273 = vector.broadcast %cst_125 : f32 to vector<8x256xf32>
    %274 = arith.mulf %273, %272 : vector<8x256xf32>
    %cst_126 = arith.constant 1.000000e+00 : f32
    %275 = vector.broadcast %cst_126 : f32 to vector<8x256xf32>
    %276 = arith.addf %275, %274 : vector<8x256xf32>
    %cst_127 = arith.constant 1.000000e+00 : f32
    %277 = vector.broadcast %cst_127 : f32 to vector<8x256xf32>
    %278 = arith.divf %277, %276 : vector<8x256xf32>
    %cst_128 = arith.constant 1.06140542 : f32
    %279 = vector.broadcast %cst_128 : f32 to vector<8x256xf32>
    %280 = arith.mulf %279, %278 : vector<8x256xf32>
    %cst_129 = arith.constant -1.45315206 : f32
    %281 = vector.broadcast %cst_129 : f32 to vector<8x256xf32>
    %282 = arith.addf %280, %281 : vector<8x256xf32>
    %283 = arith.mulf %282, %278 : vector<8x256xf32>
    %cst_130 = arith.constant 1.42141378 : f32
    %284 = vector.broadcast %cst_130 : f32 to vector<8x256xf32>
    %285 = arith.addf %283, %284 : vector<8x256xf32>
    %286 = arith.mulf %285, %278 : vector<8x256xf32>
    %cst_131 = arith.constant -0.284496725 : f32
    %287 = vector.broadcast %cst_131 : f32 to vector<8x256xf32>
    %288 = arith.addf %286, %287 : vector<8x256xf32>
    %289 = arith.mulf %288, %278 : vector<8x256xf32>
    %cst_132 = arith.constant 0.254829586 : f32
    %290 = vector.broadcast %cst_132 : f32 to vector<8x256xf32>
    %291 = arith.addf %289, %290 : vector<8x256xf32>
    %292 = arith.mulf %291, %278 : vector<8x256xf32>
    %cst_133 = arith.constant 0.000000e+00 : f32
    %293 = vector.broadcast %cst_133 : f32 to vector<8x256xf32>
    %294 = arith.subf %293, %272 : vector<8x256xf32>
    %295 = arith.mulf %294, %272 : vector<8x256xf32>
    %296 = math.exp %295 : vector<8x256xf32>
    %297 = arith.mulf %292, %296 : vector<8x256xf32>
    %cst_134 = arith.constant 1.000000e+00 : f32
    %298 = vector.broadcast %cst_134 : f32 to vector<8x256xf32>
    %299 = arith.subf %298, %297 : vector<8x256xf32>
    %300 = arith.mulf %271, %299 : vector<8x256xf32>
    %cst_135 = arith.constant 1.000000e+00 : f32
    %301 = vector.broadcast %cst_135 : f32 to vector<8x256xf32>
    %302 = arith.addf %301, %300 : vector<8x256xf32>
    %303 = arith.mulf %264, %302 : vector<8x256xf32>
    %c1_136 = arith.constant 1 : index
    %c0_137 = arith.constant 0 : index
    %c0_138 = arith.constant 0 : index
    %304 = vector.load %arg18[%c1_136, %c0_137, %c0_138] : memref<2x256x128xbf16, #tpu.memory_space<vmem>>, vector<1x256x128xbf16>
    %305 = vector.shape_cast %304 : vector<1x256x128xbf16> to vector<256x128xbf16>
    %c1_139 = arith.constant 1 : index
    %c0_140 = arith.constant 0 : index
    %c0_141 = arith.constant 0 : index
    %306 = vector.load %arg19[%c1_139, %c0_140, %c0_141] : memref<2x1x128xf32, #tpu.memory_space<vmem>>, vector<1x1x128xf32>
    %307 = vector.shape_cast %306 : vector<1x1x128xf32> to vector<1x128xf32>
    %308 = arith.truncf %303 : vector<8x256xf32> to vector<8x256xbf16>
    %cst_142 = arith.constant dense<0.000000e+00> : vector<8x128xf32>
    %309 = tpu.matmul %308, %305, %cst_142 {dimension_numbers = #tpu.dot_dimension_numbers<[1], [0], [0], [1], [0, 0, 1, 1], [], []>} : vector<8x256xbf16>, vector<256x128xbf16>, vector<8x128xf32> -> vector<8x128xf32>
    %310 = vector.broadcast %307 : vector<1x128xf32> to vector<8x128xf32>
    %311 = arith.addf %309, %310 : vector<8x128xf32>
    %312 = vector.extract_strided_slice %311 {offsets = [0, 0], sizes = [1, 128], strides = [1, 1]} : vector<8x128xf32> to vector<1x128xf32>
    %c0_143 = arith.constant 0 : index
    %c0_144 = arith.constant 0 : index
    %313 = vector.load %arg20[%c0_143, %c0_144] : memref<128x128xbf16, #tpu.memory_space<vmem>>, vector<128x128xbf16>
    %c0_145 = arith.constant 0 : index
    %c0_146 = arith.constant 0 : index
    %314 = vector.load %arg21[%c0_145, %c0_146] : memref<1x128xf32, #tpu.memory_space<vmem>>, vector<1x128xf32>
    %315 = arith.truncf %312 : vector<1x128xf32> to vector<1x128xbf16>
    %cst_147 = arith.constant dense<0.000000e+00> : vector<1x128xf32>
    %316 = tpu.matmul %315, %313, %cst_147 {dimension_numbers = #tpu.dot_dimension_numbers<[1], [0], [0], [1], [0, 0, 1, 1], [], []>} : vector<1x128xbf16>, vector<128x128xbf16>, vector<1x128xf32> -> vector<1x128xf32>
    %317 = arith.addf %316, %314 : vector<1x128xf32>
    %318 = math.tanh %317 : vector<1x128xf32>
    %c0_148 = arith.constant 0 : index
    %c0_149 = arith.constant 0 : index
    %319 = vector.load %arg22[%c0_148, %c0_149] : memref<128x128xbf16, #tpu.memory_space<vmem>>, vector<128x128xbf16>
    %c0_150 = arith.constant 0 : index
    %c0_151 = arith.constant 0 : index
    %320 = vector.load %arg23[%c0_150, %c0_151] : memref<1x128xf32, #tpu.memory_space<vmem>>, vector<1x128xf32>
    %321 = arith.truncf %318 : vector<1x128xf32> to vector<1x128xbf16>
    %cst_152 = arith.constant dense<0.000000e+00> : vector<1x128xf32>
    %322 = tpu.matmul %321, %319, %cst_152 {dimension_numbers = #tpu.dot_dimension_numbers<[1], [0], [0], [1], [0, 0, 1, 1], [], []>} : vector<1x128xbf16>, vector<128x128xbf16>, vector<1x128xf32> -> vector<1x128xf32>
    %323 = arith.addf %322, %320 : vector<1x128xf32>
    %324 = vector.shape_cast %323 : vector<1x128xf32> to vector<1x1x128xf32>
    %c0_153 = arith.constant 0 : index
    %c0_154 = arith.constant 0 : index
    %c0_155 = arith.constant 0 : index
    %325 = vector.load %arg30[%c0_153, %c0_154, %c0_155] : memref<1x1x128xf32, #tpu.memory_space<vmem>>, vector<1x1x128xf32>
    tpu.vector_store %arg30[%c0_153, %c0_154, %c0_155], %324 {strides = array<i32>} : memref<1x1x128xf32, #tpu.memory_space<vmem>>, vector<1x1x128xf32>,
    %c0_156 = arith.constant 0 : index
    %c0_157 = arith.constant 0 : index
    %c0_158 = arith.constant 0 : index
    %326 = vector.load %arg3[%c0_156, %c0_157, %c0_158] : memref<1x2x1xi32, #tpu.memory_space<vmem>>, vector<1x2x1xi32>
    %327 = vector.shape_cast %326 : vector<1x2x1xi32> to vector<2x1xi32>
    %328 = tpu.iota {dimensions = array<i32: 1>} : vector<2x8xi32>
    %329 = vector.broadcast %327 : vector<2x1xi32> to vector<2x8xi32>
    %330 = arith.cmpi eq, %329, %328 : vector<2x8xi32>
    %331 = arith.extui %330 : vector<2x8xi1> to vector<2x8xi32>
    %332 = arith.sitofp %331 : vector<2x8xi32> to vector<2x8xf32>
    %333 = arith.truncf %332 : vector<2x8xf32> to vector<2x8xbf16>
    %334 = arith.truncf %311 : vector<8x128xf32> to vector<8x128xbf16>
    %cst_159 = arith.constant dense<0.000000e+00> : vector<2x128xf32>
    %335 = tpu.matmul %333, %334, %cst_159 {dimension_numbers = #tpu.dot_dimension_numbers<[1], [0], [0], [1], [0, 0, 1, 1], [], []>} : vector<2x8xbf16>, vector<8x128xbf16>, vector<2x128xf32> -> vector<2x128xf32>
    %c0_160 = arith.constant 0 : index
    %c0_161 = arith.constant 0 : index
    %336 = vector.load %arg24[%c0_160, %c0_161] : memref<128x128xbf16, #tpu.memory_space<vmem>>, vector<128x128xbf16>
    %c0_162 = arith.constant 0 : index
    %c0_163 = arith.constant 0 : index
    %337 = vector.load %arg25[%c0_162, %c0_163] : memref<1x128xf32, #tpu.memory_space<vmem>>, vector<1x128xf32>
    %338 = arith.truncf %335 : vector<2x128xf32> to vector<2x128xbf16>
    %cst_164 = arith.constant dense<0.000000e+00> : vector<2x128xf32>
    %339 = tpu.matmul %338, %336, %cst_164 {dimension_numbers = #tpu.dot_dimension_numbers<[1], [0], [0], [1], [0, 0, 1, 1], [], []>} : vector<2x128xbf16>, vector<128x128xbf16>, vector<2x128xf32> -> vector<2x128xf32>
    %340 = vector.broadcast %337 : vector<1x128xf32> to vector<2x128xf32>
    %341 = arith.addf %339, %340 : vector<2x128xf32>
    %cst_165 = arith.constant 5.000000e-01 : f32
    %342 = vector.broadcast %cst_165 : f32 to vector<2x128xf32>
    %343 = arith.mulf %341, %342 : vector<2x128xf32>
    %cst_166 = arith.constant 0.707106769 : f32
    %344 = vector.broadcast %cst_166 : f32 to vector<2x128xf32>
    %345 = arith.mulf %341, %344 : vector<2x128xf32>
    %cst_167 = arith.constant 0.000000e+00 : f32
    %346 = vector.broadcast %cst_167 : f32 to vector<2x128xf32>
    %347 = arith.cmpf oge, %345, %346 : vector<2x128xf32>
    %cst_168 = arith.constant 1.000000e+00 : f32
    %cst_169 = arith.constant -1.000000e+00 : f32
    %348 = vector.broadcast %cst_168 : f32 to vector<2x128xf32>
    %349 = vector.broadcast %cst_169 : f32 to vector<2x128xf32>
    %350 = arith.select %347, %348, %349 : vector<2x128xi1>, vector<2x128xf32>
    %351 = math.absf %345 : vector<2x128xf32>
    %cst_170 = arith.constant 0.327591091 : f32
    %352 = vector.broadcast %cst_170 : f32 to vector<2x128xf32>
    %353 = arith.mulf %352, %351 : vector<2x128xf32>
    %cst_171 = arith.constant 1.000000e+00 : f32
    %354 = vector.broadcast %cst_171 : f32 to vector<2x128xf32>
    %355 = arith.addf %354, %353 : vector<2x128xf32>
    %cst_172 = arith.constant 1.000000e+00 : f32
    %356 = vector.broadcast %cst_172 : f32 to vector<2x128xf32>
    %357 = arith.divf %356, %355 : vector<2x128xf32>
    %cst_173 = arith.constant 1.06140542 : f32
    %358 = vector.broadcast %cst_173 : f32 to vector<2x128xf32>
    %359 = arith.mulf %358, %357 : vector<2x128xf32>
    %cst_174 = arith.constant -1.45315206 : f32
    %360 = vector.broadcast %cst_174 : f32 to vector<2x128xf32>
    %361 = arith.addf %359, %360 : vector<2x128xf32>
    %362 = arith.mulf %361, %357 : vector<2x128xf32>
    %cst_175 = arith.constant 1.42141378 : f32
    %363 = vector.broadcast %cst_175 : f32 to vector<2x128xf32>
    %364 = arith.addf %362, %363 : vector<2x128xf32>
    %365 = arith.mulf %364, %357 : vector<2x128xf32>
    %cst_176 = arith.constant -0.284496725 : f32
    %366 = vector.broadcast %cst_176 : f32 to vector<2x128xf32>
    %367 = arith.addf %365, %366 : vector<2x128xf32>
    %368 = arith.mulf %367, %357 : vector<2x128xf32>
    %cst_177 = arith.constant 0.254829586 : f32
    %369 = vector.broadcast %cst_177 : f32 to vector<2x128xf32>
    %370 = arith.addf %368, %369 : vector<2x128xf32>
    %371 = arith.mulf %370, %357 : vector<2x128xf32>
    %cst_178 = arith.constant 0.000000e+00 : f32
    %372 = vector.broadcast %cst_178 : f32 to vector<2x128xf32>
    %373 = arith.subf %372, %351 : vector<2x128xf32>
    %374 = arith.mulf %373, %351 : vector<2x128xf32>
    %375 = math.exp %374 : vector<2x128xf32>
    %376 = arith.mulf %371, %375 : vector<2x128xf32>
    %cst_179 = arith.constant 1.000000e+00 : f32
    %377 = vector.broadcast %cst_179 : f32 to vector<2x128xf32>
    %378 = arith.subf %377, %376 : vector<2x128xf32>
    %379 = arith.mulf %350, %378 : vector<2x128xf32>
    %cst_180 = arith.constant 1.000000e+00 : f32
    %380 = vector.broadcast %cst_180 : f32 to vector<2x128xf32>
    %381 = arith.addf %380, %379 : vector<2x128xf32>
    %382 = arith.mulf %343, %381 : vector<2x128xf32>
    %c0_181 = arith.constant 0 : index
    %c0_182 = arith.constant 0 : index
    %383 = vector.load %arg26[%c0_181, %c0_182] : memref<1x128xf32, #tpu.memory_space<vmem>>, vector<1x128xf32>
    %c0_183 = arith.constant 0 : index
    %c0_184 = arith.constant 0 : index
    %384 = vector.load %arg27[%c0_183, %c0_184] : memref<1x128xf32, #tpu.memory_space<vmem>>, vector<1x128xf32>
    %cst_185 = arith.constant dense<0.000000e+00> : vector<2xf32>
    %385 = vector.multi_reduction <add>, %382, %cst_185 [1] : vector<2x128xf32> to vector<2xf32>
    %386 = vector.shape_cast %385 : vector<2xf32> to vector<2x1xf32>
    %cst_186 = arith.constant 1.280000e+02 : f32
    %387 = vector.broadcast %cst_186 : f32 to vector<2x1xf32>
    %388 = arith.divf %386, %387 : vector<2x1xf32>
    %389 = vector.broadcast %388 : vector<2x1xf32> to vector<2x128xf32>
    %390 = arith.subf %382, %389 : vector<2x128xf32>
    %391 = arith.mulf %390, %390 : vector<2x128xf32>
    %cst_187 = arith.constant dense<0.000000e+00> : vector<2xf32>
    %392 = vector.multi_reduction <add>, %391, %cst_187 [1] : vector<2x128xf32> to vector<2xf32>
    %393 = vector.shape_cast %392 : vector<2xf32> to vector<2x1xf32>
    %cst_188 = arith.constant 1.280000e+02 : f32
    %394 = vector.broadcast %cst_188 : f32 to vector<2x1xf32>
    %395 = arith.divf %393, %394 : vector<2x1xf32>
    %396 = vector.broadcast %388 : vector<2x1xf32> to vector<2x128xf32>
    %397 = arith.subf %382, %396 : vector<2x128xf32>
    %cst_189 = arith.constant 9.99999974E-6 : f32
    %398 = vector.broadcast %cst_189 : f32 to vector<2x1xf32>
    %399 = arith.addf %395, %398 : vector<2x1xf32>
    %400 = math.rsqrt %399 : vector<2x1xf32>
    %401 = vector.broadcast %400 : vector<2x1xf32> to vector<2x128xf32>
    %402 = arith.mulf %397, %401 : vector<2x128xf32>
    %403 = vector.broadcast %383 : vector<1x128xf32> to vector<2x128xf32>
    %404 = arith.mulf %402, %403 : vector<2x128xf32>
    %405 = vector.broadcast %384 : vector<1x128xf32> to vector<2x128xf32>
    %406 = arith.addf %404, %405 : vector<2x128xf32>
    %c0_190 = arith.constant 0 : index
    %c0_191 = arith.constant 0 : index
    %407 = vector.load %arg5[%c0_190, %c0_191] : memref<128x128xbf16, #tpu.memory_space<vmem>>, vector<128x128xbf16>
    %c0_192 = arith.constant 0 : index
    %c0_193 = arith.constant 0 : index
    %408 = vector.load %arg28[%c0_192, %c0_193] : memref<1x128xf32, #tpu.memory_space<vmem>>, vector<1x128xf32>
    %409 = arith.truncf %406 : vector<2x128xf32> to vector<2x128xbf16>
    %cst_194 = arith.constant dense<0.000000e+00> : vector<2x128xf32>
    %410 = tpu.matmul %409, %407, %cst_194 {dimension_numbers = #tpu.dot_dimension_numbers<[1], [0], [0], [1], [0, 0, 1, 1], [], []>} : vector<2x128xbf16>, vector<128x128xbf16>, vector<2x128xf32> -> vector<2x128xf32>
    %411 = vector.broadcast %408 : vector<1x128xf32> to vector<2x128xf32>
    %412 = arith.addf %410, %411 : vector<2x128xf32>
    %413 = vector.shape_cast %412 : vector<2x128xf32> to vector<1x2x128xf32>
    %c0_195 = arith.constant 0 : index
    %c0_196 = arith.constant 0 : index
    %c0_197 = arith.constant 0 : index
    %414 = vector.load %arg29[%c0_195, %c0_196, %c0_197] : memref<1x2x128xf32, #tpu.memory_space<vmem>>, vector<1x2x128xf32>
    tpu.vector_store %arg29[%c0_195, %c0_196, %c0_197], %413 {strides = array<i32>} : memref<1x2x128xf32, #tpu.memory_space<vmem>>, vector<1x2x128xf32>,
    return
  }
  func.func @transform_0(%arg0: i32) -> (i32, i32, i32) {
    %c0_i32 = arith.constant 0 : i32
    %c0_i32_0 = arith.constant 0 : i32
    %c0_i32_1 = arith.constant 0 : i32
    return %arg0, %c0_i32, %c0_i32_0 : i32, i32, i32
  }
  func.func @transform_1(%arg0: i32) -> (i32, i32, i32) {
    %c0_i32 = arith.constant 0 : i32
    %c0_i32_0 = arith.constant 0 : i32
    %c0_i32_1 = arith.constant 0 : i32
    return %arg0, %c0_i32, %c0_i32_0 : i32, i32, i32
  }
  func.func @transform_2(%arg0: i32) -> (i32, i32, i32) {
    %c0_i32 = arith.constant 0 : i32
    %c0_i32_0 = arith.constant 0 : i32
    %c0_i32_1 = arith.constant 0 : i32
    return %arg0, %c0_i32, %c0_i32_0 : i32, i32, i32
  }
  func.func @transform_3(%arg0: i32) -> (i32, i32) {
    %c0_i32 = arith.constant 0 : i32
    %c0_i32_0 = arith.constant 0 : i32
    %c0_i32_1 = arith.constant 0 : i32
    return %c0_i32, %c0_i32_0 : i32, i32
  }
  func.func @transform_4(%arg0: i32) -> (i32, i32) {
    %c0_i32 = arith.constant 0 : i32
    %c0_i32_0 = arith.constant 0 : i32
    %c0_i32_1 = arith.constant 0 : i32
    return %c0_i32, %c0_i32_0 : i32, i32
  }
  func.func @transform_5(%arg0: i32) -> (i32, i32) {
    %c0_i32 = arith.constant 0 : i32
    %c0_i32_0 = arith.constant 0 : i32
    %c0_i32_1 = arith.constant 0 : i32
    return %c0_i32, %c0_i32_0 : i32, i32
  }
  func.func @transform_6(%arg0: i32) -> (i32, i32) {
    %c0_i32 = arith.constant 0 : i32
    %c0_i32_0 = arith.constant 0 : i32
    %c0_i32_1 = arith.constant 0 : i32
    return %c0_i32, %c0_i32_0 : i32, i32
  }
  func.func @transform_7(%arg0: i32) -> (i32, i32) {
    %c0_i32 = arith.constant 0 : i32
    %c0_i32_0 = arith.constant 0 : i32
    %c0_i32_1 = arith.constant 0 : i32
    return %c0_i32, %c0_i32_0 : i32, i32
  }
  func.func @transform_8(%arg0: i32) -> (i32, i32) {
    %c0_i32 = arith.constant 0 : i32
    %c0_i32_0 = arith.constant 0 : i32
    %c0_i32_1 = arith.constant 0 : i32
    return %c0_i32, %c0_i32_0 : i32, i32
  }
  func.func @transform_9(%arg0: i32) -> (i32, i32, i32) {
    %c0_i32 = arith.constant 0 : i32
    %c0_i32_0 = arith.constant 0 : i32
    %c0_i32_1 = arith.constant 0 : i32
    %c0_i32_2 = arith.constant 0 : i32
    return %c0_i32, %c0_i32_0, %c0_i32_1 : i32, i32, i32
  }
  func.func @transform_10(%arg0: i32) -> (i32, i32, i32) {
    %c0_i32 = arith.constant 0 : i32
    %c0_i32_0 = arith.constant 0 : i32
    %c0_i32_1 = arith.constant 0 : i32
    %c0_i32_2 = arith.constant 0 : i32
    return %c0_i32, %c0_i32_0, %c0_i32_1 : i32, i32, i32
  }
  func.func @transform_11(%arg0: i32) -> (i32, i32, i32) {
    %c0_i32 = arith.constant 0 : i32
    %c0_i32_0 = arith.constant 0 : i32
    %c0_i32_1 = arith.constant 0 : i32
    %c0_i32_2 = arith.constant 0 : i32
    return %c0_i32, %c0_i32_0, %c0_i32_1 : i32, i32, i32
  }
  func.func @transform_12(%arg0: i32) -> (i32, i32, i32) {
    %c0_i32 = arith.constant 0 : i32
    %c0_i32_0 = arith.constant 0 : i32
    %c0_i32_1 = arith.constant 0 : i32
    %c0_i32_2 = arith.constant 0 : i32
    return %c0_i32, %c0_i32_0, %c0_i32_1 : i32, i32, i32
  }
  func.func @transform_13(%arg0: i32) -> (i32, i32, i32) {
    %c0_i32 = arith.constant 0 : i32
    %c0_i32_0 = arith.constant 0 : i32
    %c0_i32_1 = arith.constant 0 : i32
    %c0_i32_2 = arith.constant 0 : i32
    return %c0_i32, %c0_i32_0, %c0_i32_1 : i32, i32, i32
  }
  func.func @transform_14(%arg0: i32) -> (i32, i32, i32) {
    %c0_i32 = arith.constant 0 : i32
    %c0_i32_0 = arith.constant 0 : i32
    %c0_i32_1 = arith.constant 0 : i32
    %c0_i32_2 = arith.constant 0 : i32
    return %c0_i32, %c0_i32_0, %c0_i32_1 : i32, i32, i32
  }
  func.func @transform_15(%arg0: i32) -> (i32, i32, i32) {
    %c0_i32 = arith.constant 0 : i32
    %c0_i32_0 = arith.constant 0 : i32
    %c0_i32_1 = arith.constant 0 : i32
    %c0_i32_2 = arith.constant 0 : i32
    return %c0_i32, %c0_i32_0, %c0_i32_1 : i32, i32, i32
  }
  func.func @transform_16(%arg0: i32) -> (i32, i32, i32) {
    %c0_i32 = arith.constant 0 : i32
    %c0_i32_0 = arith.constant 0 : i32
    %c0_i32_1 = arith.constant 0 : i32
    %c0_i32_2 = arith.constant 0 : i32
    return %c0_i32, %c0_i32_0, %c0_i32_1 : i32, i32, i32
  }
  func.func @transform_17(%arg0: i32) -> (i32, i32, i32) {
    %c0_i32 = arith.constant 0 : i32
    %c0_i32_0 = arith.constant 0 : i32
    %c0_i32_1 = arith.constant 0 : i32
    %c0_i32_2 = arith.constant 0 : i32
    return %c0_i32, %c0_i32_0, %c0_i32_1 : i32, i32, i32
  }
  func.func @transform_18(%arg0: i32) -> (i32, i32, i32) {
    %c0_i32 = arith.constant 0 : i32
    %c0_i32_0 = arith.constant 0 : i32
    %c0_i32_1 = arith.constant 0 : i32
    %c0_i32_2 = arith.constant 0 : i32
    return %c0_i32, %c0_i32_0, %c0_i32_1 : i32, i32, i32
  }
  func.func @transform_19(%arg0: i32) -> (i32, i32) {
    %c0_i32 = arith.constant 0 : i32
    %c0_i32_0 = arith.constant 0 : i32
    %c0_i32_1 = arith.constant 0 : i32
    return %c0_i32, %c0_i32_0 : i32, i32
  }
  func.func @transform_20(%arg0: i32) -> (i32, i32) {
    %c0_i32 = arith.constant 0 : i32
    %c0_i32_0 = arith.constant 0 : i32
    %c0_i32_1 = arith.constant 0 : i32
    return %c0_i32, %c0_i32_0 : i32, i32
  }
  func.func @transform_21(%arg0: i32) -> (i32, i32) {
    %c0_i32 = arith.constant 0 : i32
    %c0_i32_0 = arith.constant 0 : i32
    %c0_i32_1 = arith.constant 0 : i32
    return %c0_i32, %c0_i32_0 : i32, i32
  }
  func.func @transform_22(%arg0: i32) -> (i32, i32) {
    %c0_i32 = arith.constant 0 : i32
    %c0_i32_0 = arith.constant 0 : i32
    %c0_i32_1 = arith.constant 0 : i32
    return %c0_i32, %c0_i32_0 : i32, i32
  }
  func.func @transform_23(%arg0: i32) -> (i32, i32) {
    %c0_i32 = arith.constant 0 : i32
    %c0_i32_0 = arith.constant 0 : i32
    %c0_i32_1 = arith.constant 0 : i32
    return %c0_i32, %c0_i32_0 : i32, i32
  }
  func.func @transform_24(%arg0: i32) -> (i32, i32) {
    %c0_i32 = arith.constant 0 : i32
    %c0_i32_0 = arith.constant 0 : i32
    %c0_i32_1 = arith.constant 0 : i32
    return %c0_i32, %c0_i32_0 : i32, i32
  }
  func.func @transform_25(%arg0: i32) -> (i32, i32) {
    %c0_i32 = arith.constant 0 : i32
    %c0_i32_0 = arith.constant 0 : i32
    %c0_i32_1 = arith.constant 0 : i32
    return %c0_i32, %c0_i32_0 : i32, i32
  }
  func.func @transform_26(%arg0: i32) -> (i32, i32) {
    %c0_i32 = arith.constant 0 : i32
    %c0_i32_0 = arith.constant 0 : i32
    %c0_i32_1 = arith.constant 0 : i32
    return %c0_i32, %c0_i32_0 : i32, i32
  }
  func.func @transform_27(%arg0: i32) -> (i32, i32) {
    %c0_i32 = arith.constant 0 : i32
    %c0_i32_0 = arith.constant 0 : i32
    %c0_i32_1 = arith.constant 0 : i32
    return %c0_i32, %c0_i32_0 : i32, i32
  }
  func.func @transform_28(%arg0: i32) -> (i32, i32, i32) {
    %c0_i32 = arith.constant 0 : i32
    %c0_i32_0 = arith.constant 0 : i32
    %c0_i32_1 = arith.constant 0 : i32
    return %arg0, %c0_i32, %c0_i32_0 : i32, i32, i32
  }
  func.func @transform_29(%arg0: i32) -> (i32, i32, i32) {
    %c0_i32 = arith.constant 0 : i32
    %c0_i32_0 = arith.constant 0 : i32
    %c0_i32_1 = arith.constant 0 : i32
    return %arg0, %c0_i32, %c0_i32_0 : i32, i32, i32
  }
}

</mosaic_0001>

<llo_original>
// kernel: bert_forward.1
$region0: #{bert_forward.1}
  #allocation0 [shape = 'u32[]', space=smem, size = 0x4, offset = 0x4, fixed_abs, tag = 'smem constant byte address 0x4 - core index']
  #allocation1 [shape = 'u32[144,128]{1,0:T(1,128)}', space=vmem, size = 0x12000, scoped, tag = 'internal scratch']
  %s0 = inlined_call_operand.smem [shape: u32[30], index: -1, kind: input, shape index: {}]
  %s1 = sld [smem:[%s0]]
  %s2 = scalar_lea.smem %s0, 1
  %s3 = sld [smem:[%s2]]
  %s4 = scalar_lea.smem %s0, 2
  %s5 = sld [smem:[%s4]]
  %s6 = scalar_lea.smem %s0, 3
  %s7 = sld [smem:[%s6]]
  %s8 = scalar_lea.smem %s0, 4
  %s9 = sld [smem:[%s8]]
  %s10 = scalar_lea.smem %s0, 5
  %s11 = sld [smem:[%s10]]
  %s12 = scalar_lea.smem %s0, 6
  %s13 = sld [smem:[%s12]]
  %s14 = scalar_lea.smem %s0, 7
  %s15 = sld [smem:[%s14]]
  %s16 = scalar_lea.smem %s0, 8
  %s17 = sld [smem:[%s16]]
  %s18 = scalar_lea.smem %s0, 9
  %s19 = sld [smem:[%s18]]
  %s20 = scalar_lea.smem %s0, 10
  %s21 = sld [smem:[%s20]]
  %s22 = scalar_lea.smem %s0, 11
  %s23 = sld [smem:[%s22]]
  %s24 = scalar_lea.smem %s0, 12
  %s25 = sld [smem:[%s24]]
  %s26 = scalar_lea.smem %s0, 13
  %s27 = sld [smem:[%s26]]
  %s28 = scalar_lea.smem %s0, 14
  %s29 = sld [smem:[%s28]]
  %s30 = scalar_lea.smem %s0, 15
  %s31 = sld [smem:[%s30]]
  %s32 = scalar_lea.smem %s0, 16
  %s33 = sld [smem:[%s32]]
  %s34 = scalar_lea.smem %s0, 17
  %s35 = sld [smem:[%s34]]
  %s36 = scalar_lea.smem %s0, 18
  %s37 = sld [smem:[%s36]]
  %s38 = scalar_lea.smem %s0, 19
  %s39 = sld [smem:[%s38]]
  %s40 = scalar_lea.smem %s0, 20
  %s41 = sld [smem:[%s40]]
  %s42 = scalar_lea.smem %s0, 21
  %s43 = sld [smem:[%s42]]
  %s44 = scalar_lea.smem %s0, 22
  %s45 = sld [smem:[%s44]]
  %s46 = scalar_lea.smem %s0, 23
  %s47 = sld [smem:[%s46]]
  %s48 = scalar_lea.smem %s0, 24
  %s49 = sld [smem:[%s48]]
  %s50 = scalar_lea.smem %s0, 25
  %s51 = sld [smem:[%s50]]
  %s52 = scalar_lea.smem %s0, 26
  %s53 = sld [smem:[%s52]]
  %s54 = scalar_lea.smem %s0, 27
  %s55 = sld [smem:[%s54]]
  %s56 = scalar_lea.smem %s0, 28
  %s57 = sld [smem:[%s56]]
  %s58 = scalar_lea.smem %s0, 29
  %s59 = sld [smem:[%s58]]
  %60 = xla_tuple %s57, %s59
  %s61 = sld [smem:[#allocation0]]
  $region241: #{bert_forward.1} parent=0
    _
  %s63 = ssub.s32 1, %s61
  %s64 = scalar_select 0, %s63, %s61
  $region1: #{bert_forward.1} parent=0
    #allocation2 [shape = 'u8[16384]{0}', space=vmem, size = 0x4000, scoped, tag = 'input window, operand 3, single buffered']
    #allocation3 [shape = 's32[2]{0}', space=sflag, size = 0x8, scoped, tag = 'scoped memory for bert_forward.1']
    #allocation4 [shape = 's32[2]{0}', space=sflag, size = 0x8, scoped, tag = 'scoped memory for bert_forward.1']
    #allocation5 [shape = 'u8[1024]{0}', space=vmem, size = 0x400, scoped, tag = 'input window, operand 6, single buffered']
    #allocation6 [shape = 's32[1]{0}', space=sflag, size = 0x4, scoped, tag = 'scoped memory for bert_forward.1']
    #allocation7 [shape = 'u8[512]{0}', space=vmem, size = 0x400, scoped, tag = 'input window, operand 7, single buffered']
    #allocation8 [shape = 'u8[512]{0}', space=vmem, size = 0x400, scoped, tag = 'input window, operand 8, single buffered']
    #allocation9 [shape = 's32[1]{0}', space=sflag, size = 0x4, scoped, tag = 'scoped memory for bert_forward.1']
    #allocation10 [shape = 'u8[196608]{0}', space=vmem, size = 0x30000, scoped, tag = 'input window, operand 9, single buffered']
    #allocation11 [shape = 'u8[3072]{0}', space=vmem, size = 0xc00, scoped, tag = 'input window, operand 10, single buffered']
    #allocation12 [shape = 's32[1]{0}', space=sflag, size = 0x4, scoped, tag = 'scoped memory for bert_forward.1']
    #allocation13 [shape = 'u8[65536]{0}', space=vmem, size = 0x10000, scoped, tag = 'input window, operand 11, single buffered']
    #allocation14 [shape = 'u8[1024]{0}', space=vmem, size = 0x400, scoped, tag = 'input window, operand 12, single buffered']
    #allocation15 [shape = 's32[1]{0}', space=sflag, size = 0x4, scoped, tag = 'scoped memory for bert_forward.1']
    #allocation16 [shape = 'u8[1024]{0}', space=vmem, size = 0x400, scoped, tag = 'input window, operand 13, single buffered']
    #allocation17 [shape = 'u8[1024]{0}', space=vmem, size = 0x400, scoped, tag = 'input window, operand 14, single buffered']
    #allocation18 [shape = 's32[1]{0}', space=sflag, size = 0x4, scoped, tag = 'scoped memory for bert_forward.1']
    #allocation19 [shape = 'u8[131072]{0}', space=vmem, size = 0x20000, scoped, tag = 'input window, operand 15, single buffered']
    #allocation20 [shape = 'u8[131072]{0}', space=vmem, size = 0x20000, scoped, tag = 'input window, operand 17, single buffered']
    #allocation21 [shape = 's32[1]{0}', space=sflag, size = 0x4, scoped, tag = 'scoped memory for bert_forward.1']
    #allocation22 [shape = 'u8[1024]{0}', space=vmem, size = 0x400, scoped, tag = 'input window, operand 18, single buffered']
    #allocation23 [shape = 'u8[32768]{0}', space=vmem, size = 0x8000, scoped, tag = 'input window, operand 19, single buffered']
    #allocation24 [shape = 's32[1]{0}', space=sflag, size = 0x4, scoped, tag = 'scoped memory for bert_forward.1']
    #allocation25 [shape = 'u8[512]{0}', space=vmem, size = 0x400, scoped, tag = 'input window, operand 20, single buffered']
    #allocation26 [shape = 'u8[32768]{0}', space=vmem, size = 0x8000, scoped, tag = 'input window, operand 21, single buffered']
    #allocation27 [shape = 's32[1]{0}', space=sflag, size = 0x4, scoped, tag = 'scoped memory for bert_forward.1']
    #allocation28 [shape = 'u8[512]{0}', space=vmem, size = 0x400, scoped, tag = 'input window, operand 22, single buffered']
    #allocation29 [shape = 'u8[32768]{0}', space=vmem, size = 0x8000, scoped, tag = 'input window, operand 23, single buffered']
    #allocation30 [shape = 's32[1]{0}', space=sflag, size = 0x4, scoped, tag = 'scoped memory for bert_forward.1']
    #allocation31 [shape = 'u8[512]{0}', space=vmem, size = 0x400, scoped, tag = 'input window, operand 24, single buffered']
    #allocation32 [shape = 'u8[512]{0}', space=vmem, size = 0x400, scoped, tag = 'input window, operand 25, single buffered']
    #allocation33 [shape = 's32[1]{0}', space=sflag, size = 0x4, scoped, tag = 'scoped memory for bert_forward.1']
    #allocation34 [shape = 'u8[512]{0}', space=vmem, size = 0x400, scoped, tag = 'input window, operand 26, single buffered']
    #allocation35 [shape = 'u8[512]{0}', space=vmem, size = 0x400, scoped, tag = 'input window, operand 27, single buffered']
    #allocation36 [shape = 's32[1]{0}', space=sflag, size = 0x4, scoped, tag = 'scoped memory for bert_forward.1']
    #allocation37 [shape = 'u8[2048]{0}', space=vmem, size = 0x800, scoped, tag = 'output window, operand 0']
    #allocation38 [shape = 'u8[1024]{0}', space=vmem, size = 0x400, scoped, tag = 'output window, operand 1']
    #allocation39 [shape = 's32[2]{0}', space=sflag, size = 0x8, scoped, tag = 'scoped memory for bert_forward.1']
    %65 = vsyncpa [#allocation3], 0
    %66 = vsyncpa [#allocation6], 0
    %67 = vsyncpa [#allocation9], 0
    %68 = vsyncpa [#allocation12], 0
    %69 = vsyncpa [#allocation15], 0
    %70 = vsyncpa [#allocation18], 0
    %71 = vsyncpa [#allocation21], 0
    %72 = vsyncpa [#allocation24], 0
    %73 = vsyncpa [#allocation27], 0
    %74 = vsyncpa [#allocation30], 0
    %75 = vsyncpa [#allocation33], 0
    %76 = vsyncpa [#allocation36], 0
    %77 = vsyncpa [#allocation4], 0
    %s78 = scalar_lea.sflag [#allocation4], 1
    %79 = vsyncpa %s78, 0
    %80 = vsyncpa [#allocation39], 0
    %s81 = scalar_lea.sflag [#allocation39], 1
    %82 = vsyncpa %s81, 0
    loop: start=0, step=1, limit=4
    $region2: #{bert_forward.1} parent=1 // loop_pre_header
      _
    $region3: #{bert_forward.1} parent=1 // loop_header
      %s84 = sphi 0, %s88
      %p85 = scmp.ge.s32.totalorder %s84, 4
      %s94 = sphi 0, %s96
      %s97 = sphi 0, %s94
      %s98 = sphi 0, %s97
      %s114 = sphi 0, %s98
      %s120 = sphi 0, %s122
      %s123 = sphi 0, %s120
      %s124 = sphi 0, %s123
      %s140 = sphi 0, %s124
      %s146 = sphi 0, %s148
      %s149 = sphi 0, %s146
      %s150 = sphi 0, %s149
      %s166 = sphi 0, %s150
      %s170 = sphi 0, %s170
      %s172 = sphi 0, %s170
      %s173 = sphi 0, %s172
      %s187 = sphi 0, %s173
      %s191 = sphi 0, %s191
      %s193 = sphi 0, %s191
      %s194 = sphi 0, %s193
      %s208 = sphi 0, %s194
      %s212 = sphi 0, %s212
      %s214 = sphi 0, %s212
      %s215 = sphi 0, %s214
      %s229 = sphi 0, %s215
      %s233 = sphi 0, %s233
      %s235 = sphi 0, %s233
      %s236 = sphi 0, %s235
      %s250 = sphi 0, %s236
      %s254 = sphi 0, %s254
      %s256 = sphi 0, %s254
      %s257 = sphi 0, %s256
      %s271 = sphi 0, %s257
      %s275 = sphi 0, %s275
      %s277 = sphi 0, %s275
      %s278 = sphi 0, %s277
      %s292 = sphi 0, %s278
      %s296 = sphi 0, %s296
      %s298 = sphi 0, %s296
      %s299 = sphi 0, %s298
      %s313 = sphi 0, %s299
      %s317 = sphi 0, %s317
      %s319 = sphi 0, %s317
      %s320 = sphi 0, %s319
      %s334 = sphi 0, %s320
      %s338 = sphi 0, %s338
      %s340 = sphi 0, %s338
      %s341 = sphi 0, %s340
      %s355 = sphi 0, %s341
      %s359 = sphi 0, %s359
      %s361 = sphi 0, %s359
      %s362 = sphi 0, %s361
      %s376 = sphi 0, %s362
      %s380 = sphi 0, %s380
      %s382 = sphi 0, %s380
      %s383 = sphi 0, %s382
      %s397 = sphi 0, %s383
      %s401 = sphi 0, %s401
      %s403 = sphi 0, %s401
      %s404 = sphi 0, %s403
      %s418 = sphi 0, %s404
      %s422 = sphi 0, %s422
      %s424 = sphi 0, %s422
      %s425 = sphi 0, %s424
      %s439 = sphi 0, %s425
      %s443 = sphi 0, %s443
      %s445 = sphi 0, %s443
      %s446 = sphi 0, %s445
      %s460 = sphi 0, %s446
      %s464 = sphi 0, %s464
      %s466 = sphi 0, %s464
      %s467 = sphi 0, %s466
      %s481 = sphi 0, %s467
      %s485 = sphi 0, %s485
      %s487 = sphi 0, %s485
      %s488 = sphi 0, %s487
      %s502 = sphi 0, %s488
      %s506 = sphi 0, %s506
      %s508 = sphi 0, %s506
      %s509 = sphi 0, %s508
      %s523 = sphi 0, %s509
      %s527 = sphi 0, %s527
      %s529 = sphi 0, %s527
      %s530 = sphi 0, %s529
      %s544 = sphi 0, %s530
      %s548 = sphi 0, %s548
      %s550 = sphi 0, %s548
      %s551 = sphi 0, %s550
      %s565 = sphi 0, %s551
      %s569 = sphi 0, %s569
      %s571 = sphi 0, %s569
      %s572 = sphi 0, %s571
      %s586 = sphi 0, %s572
      %s590 = sphi 0, %s590
      %s592 = sphi 0, %s590
      %s593 = sphi 0, %s592
      %s607 = sphi 0, %s593
      %s611 = sphi 0, %s611
      %s613 = sphi 0, %s611
      %s614 = sphi 0, %s613
      %s628 = sphi 0, %s614
      %s632 = sphi 0, %s632
      %s634 = sphi 0, %s632
      %s635 = sphi 0, %s634
      %s649 = sphi 0, %s635
      %s653 = sphi 0, %s653
      %s655 = sphi 0, %s653
      %s656 = sphi 0, %s655
      %s670 = sphi 0, %s656
      %s674 = sphi 0, %s674
      %s676 = sphi 0, %s674
      %s677 = sphi 0, %s676
      %s691 = sphi 0, %s677
      %s697 = sphi 0, %s699
      %s700 = sphi 0, %s697
      %s701 = sphi 0, %s700
      %s717 = sphi 0, %s701
      %s723 = sphi 0, %s725
      %s726 = sphi 0, %s723
      %s727 = sphi 0, %s726
      %s743 = sphi 0, %s727
    $region4: #{bert_forward.1} parent=1 // loop_header_branch
      %87 = sbr.rel (%p85) target = $region8
    $region5: #{bert_forward.1} parent=1 // loop_body
      %s89 = ssub.s32 %s84, 1
      %s90 = ssub.s32 %s84, 2
      %s91 = sadd.s32 %s84, 1
      %s92 = ssub.s32 %s84, %s91
      %p93 = scmp.eq.s32.totalorder %s92, 0
      %s95 = sadd.s32 %s94, 1
      %s96 = scalar_select %p93, %s94, %s95
      %p99 = pneg %p93
      %p100 = scmp.eq.s32.totalorder %s84, 1
      %p101 = por %p99, %p100
      %p102 = scmp.ne.s32.totalorder %s94, %s97
      %p103 = scmp.eq.s32.totalorder %s84, 0
      %p104 = por %p102, %p103
      %p105 = scmp.ne.s32.totalorder %s94, %s97
      %p106 = scmp.eq.s32.totalorder %s89, 1
      %p107 = por %p105, %p106
      %p108 = scmp.ne.s32.totalorder %s97, %s98
      %p109 = scmp.eq.s32.totalorder %s89, 0
      %p110 = por %p108, %p109
      %p111 = scmp.ne.s32.totalorder %s97, %s98
      %p112 = scmp.eq.s32.totalorder %s90, 1
      %p113 = por %p111, %p112
      %p115 = scmp.ne.s32.totalorder %s98, %s114
      %p116 = scmp.eq.s32.totalorder %s90, 0
      %p117 = por %p115, %p116
      %s118 = ssub.s32 %s84, %s91
      %p119 = scmp.eq.s32.totalorder %s118, 0
      %s121 = sadd.s32 %s120, 1
      %s122 = scalar_select %p119, %s120, %s121
      %p125 = pneg %p119
      %p126 = scmp.eq.s32.totalorder %s84, 1
      %p127 = por %p125, %p126
      %p128 = scmp.ne.s32.totalorder %s120, %s123
      %p129 = scmp.eq.s32.totalorder %s84, 0
      %p130 = por %p128, %p129
      %p131 = scmp.ne.s32.totalorder %s120, %s123
      %p132 = scmp.eq.s32.totalorder %s89, 1
      %p133 = por %p131, %p132
      %p134 = scmp.ne.s32.totalorder %s123, %s124
      %p135 = scmp.eq.s32.totalorder %s89, 0
      %p136 = por %p134, %p135
      %p137 = scmp.ne.s32.totalorder %s123, %s124
      %p138 = scmp.eq.s32.totalorder %s90, 1
      %p139 = por %p137, %p138
      %p141 = scmp.ne.s32.totalorder %s124, %s140
      %p142 = scmp.eq.s32.totalorder %s90, 0
      %p143 = por %p141, %p142
      %s144 = ssub.s32 %s84, %s91
      %p145 = scmp.eq.s32.totalorder %s144, 0
      %s147 = sadd.s32 %s146, 1
      %s148 = scalar_select %p145, %s146, %s147
      %p151 = pneg %p145
      %p152 = scmp.eq.s32.totalorder %s84, 1
      %p153 = por %p151, %p152
      %p154 = scmp.ne.s32.totalorder %s146, %s149
      %p155 = scmp.eq.s32.totalorder %s84, 0
      %p156 = por %p154, %p155
      %p157 = scmp.ne.s32.totalorder %s146, %s149
      %p158 = scmp.eq.s32.totalorder %s89, 1
      %p159 = por %p157, %p158
      %p160 = scmp.ne.s32.totalorder %s149, %s150
      %p161 = scmp.eq.s32.totalorder %s89, 0
      %p162 = por %p160, %p161
      %p163 = scmp.ne.s32.totalorder %s149, %s150
      %p164 = scmp.eq.s32.totalorder %s90, 1
      %p165 = por %p163, %p164
      %p167 = scmp.ne.s32.totalorder %s150, %s166
      %p168 = scmp.eq.s32.totalorder %s90, 0
      %p169 = por %p167, %p168
      %s171 = sadd.s32 %s170, 1
      %p174 = scmp.eq.s32.totalorder %s84, 1
      %p175 = scmp.ne.s32.totalorder %s170, %s172
      %p176 = scmp.eq.s32.totalorder %s84, 0
      %p177 = por %p175, %p176
      %p178 = scmp.ne.s32.totalorder %s170, %s172
      %p179 = scmp.eq.s32.totalorder %s89, 1
      %p180 = por %p178, %p179
      %p181 = scmp.ne.s32.totalorder %s172, %s173
      %p182 = scmp.eq.s32.totalorder %s89, 0
      %p183 = por %p181, %p182
      %p184 = scmp.ne.s32.totalorder %s172, %s173
      %p185 = scmp.eq.s32.totalorder %s90, 1
      %p186 = por %p184, %p185
      %p188 = scmp.ne.s32.totalorder %s173, %s187
      %p189 = scmp.eq.s32.totalorder %s90, 0
      %p190 = por %p188, %p189
      %s192 = sadd.s32 %s191, 1
      %p195 = scmp.eq.s32.totalorder %s84, 1
      %p196 = scmp.ne.s32.totalorder %s191, %s193
      %p197 = scmp.eq.s32.totalorder %s84, 0
      %p198 = por %p196, %p197
      %p199 = scmp.ne.s32.totalorder %s191, %s193
      %p200 = scmp.eq.s32.totalorder %s89, 1
      %p201 = por %p199, %p200
      %p202 = scmp.ne.s32.totalorder %s193, %s194
      %p203 = scmp.eq.s32.totalorder %s89, 0
      %p204 = por %p202, %p203
      %p205 = scmp.ne.s32.totalorder %s193, %s194
      %p206 = scmp.eq.s32.totalorder %s90, 1
      %p207 = por %p205, %p206
      %p209 = scmp.ne.s32.totalorder %s194, %s208
      %p210 = scmp.eq.s32.totalorder %s90, 0
      %p211 = por %p209, %p210
      %s213 = sadd.s32 %s212, 1
      %p216 = scmp.eq.s32.totalorder %s84, 1
      %p217 = scmp.ne.s32.totalorder %s212, %s214
      %p218 = scmp.eq.s32.totalorder %s84, 0
      %p219 = por %p217, %p218
      %p220 = scmp.ne.s32.totalorder %s212, %s214
      %p221 = scmp.eq.s32.totalorder %s89, 1
      %p222 = por %p220, %p221
      %p223 = scmp.ne.s32.totalorder %s214, %s215
      %p224 = scmp.eq.s32.totalorder %s89, 0
      %p225 = por %p223, %p224
      %p226 = scmp.ne.s32.totalorder %s214, %s215
      %p227 = scmp.eq.s32.totalorder %s90, 1
      %p228 = por %p226, %p227
      %p230 = scmp.ne.s32.totalorder %s215, %s229
      %p231 = scmp.eq.s32.totalorder %s90, 0
      %p232 = por %p230, %p231
      %s234 = sadd.s32 %s233, 1
      %p237 = scmp.eq.s32.totalorder %s84, 1
      %p238 = scmp.ne.s32.totalorder %s233, %s235
      %p239 = scmp.eq.s32.totalorder %s84, 0
      %p240 = por %p238, %p239
      %p241 = scmp.ne.s32.totalorder %s233, %s235
      %p242 = scmp.eq.s32.totalorder %s89, 1
      %p243 = por %p241, %p242
      %p244 = scmp.ne.s32.totalorder %s235, %s236
      %p245 = scmp.eq.s32.totalorder %s89, 0
      %p246 = por %p244, %p245
      %p247 = scmp.ne.s32.totalorder %s235, %s236
      %p248 = scmp.eq.s32.totalorder %s90, 1
      %p249 = por %p247, %p248
      %p251 = scmp.ne.s32.totalorder %s236, %s250
      %p252 = scmp.eq.s32.totalorder %s90, 0
      %p253 = por %p251, %p252
      %s255 = sadd.s32 %s254, 1
      %p258 = scmp.eq.s32.totalorder %s84, 1
      %p259 = scmp.ne.s32.totalorder %s254, %s256
      %p260 = scmp.eq.s32.totalorder %s84, 0
      %p261 = por %p259, %p260
      %p262 = scmp.ne.s32.totalorder %s254, %s256
      %p263 = scmp.eq.s32.totalorder %s89, 1
      %p264 = por %p262, %p263
      %p265 = scmp.ne.s32.totalorder %s256, %s257
      %p266 = scmp.eq.s32.totalorder %s89, 0
      %p267 = por %p265, %p266
      %p268 = scmp.ne.s32.totalorder %s256, %s257
      %p269 = scmp.eq.s32.totalorder %s90, 1
      %p270 = por %p268, %p269
      %p272 = scmp.ne.s32.totalorder %s257, %s271
      %p273 = scmp.eq.s32.totalorder %s90, 0
      %p274 = por %p272, %p273
      %s276 = sadd.s32 %s275, 1
      %p279 = scmp.eq.s32.totalorder %s84, 1
      %p280 = scmp.ne.s32.totalorder %s275, %s277
      %p281 = scmp.eq.s32.totalorder %s84, 0
      %p282 = por %p280, %p281
      %p283 = scmp.ne.s32.totalorder %s275, %s277
      %p284 = scmp.eq.s32.totalorder %s89, 1
      %p285 = por %p283, %p284
      %p286 = scmp.ne.s32.totalorder %s277, %s278
      %p287 = scmp.eq.s32.totalorder %s89, 0
      %p288 = por %p286, %p287
      %p289 = scmp.ne.s32.totalorder %s277, %s278
      %p290 = scmp.eq.s32.totalorder %s90, 1
      %p291 = por %p289, %p290
      %p293 = scmp.ne.s32.totalorder %s278, %s292
      %p294 = scmp.eq.s32.totalorder %s90, 0
      %p295 = por %p293, %p294
      %s297 = sadd.s32 %s296, 1
      %p300 = scmp.eq.s32.totalorder %s84, 1
      %p301 = scmp.ne.s32.totalorder %s296, %s298
      %p302 = scmp.eq.s32.totalorder %s84, 0
      %p303 = por %p301, %p302
      %p304 = scmp.ne.s32.totalorder %s296, %s298
      %p305 = scmp.eq.s32.totalorder %s89, 1
      %p306 = por %p304, %p305
      %p307 = scmp.ne.s32.totalorder %s298, %s299
      %p308 = scmp.eq.s32.totalorder %s89, 0
      %p309 = por %p307, %p308
      %p310 = scmp.ne.s32.totalorder %s298, %s299
      %p311 = scmp.eq.s32.totalorder %s90, 1
      %p312 = por %p310, %p311
      %p314 = scmp.ne.s32.totalorder %s299, %s313
      %p315 = scmp.eq.s32.totalorder %s90, 0
      %p316 = por %p314, %p315
      %s318 = sadd.s32 %s317, 1
      %p321 = scmp.eq.s32.totalorder %s84, 1
      %p322 = scmp.ne.s32.totalorder %s317, %s319
      %p323 = scmp.eq.s32.totalorder %s84, 0
      %p324 = por %p322, %p323
      %p325 = scmp.ne.s32.totalorder %s317, %s319
      %p326 = scmp.eq.s32.totalorder %s89, 1
      %p327 = por %p325, %p326
      %p328 = scmp.ne.s32.totalorder %s319, %s320
      %p329 = scmp.eq.s32.totalorder %s89, 0
      %p330 = por %p328, %p329
      %p331 = scmp.ne.s32.totalorder %s319, %s320
      %p332 = scmp.eq.s32.totalorder %s90, 1
      %p333 = por %p331, %p332
      %p335 = scmp.ne.s32.totalorder %s320, %s334
      %p336 = scmp.eq.s32.totalorder %s90, 0
      %p337 = por %p335, %p336
      %s339 = sadd.s32 %s338, 1
      %p342 = scmp.eq.s32.totalorder %s84, 1
      %p343 = scmp.ne.s32.totalorder %s338, %s340
      %p344 = scmp.eq.s32.totalorder %s84, 0
      %p345 = por %p343, %p344
      %p346 = scmp.ne.s32.totalorder %s338, %s340
      %p347 = scmp.eq.s32.totalorder %s89, 1
      %p348 = por %p346, %p347
      %p349 = scmp.ne.s32.totalorder %s340, %s341
      %p350 = scmp.eq.s32.totalorder %s89, 0
      %p351 = por %p349, %p350
      %p352 = scmp.ne.s32.totalorder %s340, %s341
      %p353 = scmp.eq.s32.totalorder %s90, 1
      %p354 = por %p352, %p353
      %p356 = scmp.ne.s32.totalorder %s341, %s355
      %p357 = scmp.eq.s32.totalorder %s90, 0
      %p358 = por %p356, %p357
      %s360 = sadd.s32 %s359, 1
      %p363 = scmp.eq.s32.totalorder %s84, 1
      %p364 = scmp.ne.s32.totalorder %s359, %s361
      %p365 = scmp.eq.s32.totalorder %s84, 0
      %p366 = por %p364, %p365
      %p367 = scmp.ne.s32.totalorder %s359, %s361
      %p368 = scmp.eq.s32.totalorder %s89, 1
      %p369 = por %p367, %p368
      %p370 = scmp.ne.s32.totalorder %s361, %s362
      %p371 = scmp.eq.s32.totalorder %s89, 0
      %p372 = por %p370, %p371
      %p373 = scmp.ne.s32.totalorder %s361, %s362
      %p374 = scmp.eq.s32.totalorder %s90, 1
      %p375 = por %p373, %p374
      %p377 = scmp.ne.s32.totalorder %s362, %s376
      %p378 = scmp.eq.s32.totalorder %s90, 0
      %p379 = por %p377, %p378
      %s381 = sadd.s32 %s380, 1
      %p384 = scmp.eq.s32.totalorder %s84, 1
      %p385 = scmp.ne.s32.totalorder %s380, %s382
      %p386 = scmp.eq.s32.totalorder %s84, 0
      %p387 = por %p385, %p386
      %p388 = scmp.ne.s32.totalorder %s380, %s382
      %p389 = scmp.eq.s32.totalorder %s89, 1
      %p390 = por %p388, %p389
      %p391 = scmp.ne.s32.totalorder %s382, %s383
      %p392 = scmp.eq.s32.totalorder %s89, 0
      %p393 = por %p391, %p392
      %p394 = scmp.ne.s32.totalorder %s382, %s383
      %p395 = scmp.eq.s32.totalorder %s90, 1
      %p396 = por %p394, %p395
      %p398 = scmp.ne.s32.totalorder %s383, %s397
      %p399 = scmp.eq.s32.totalorder %s90, 0
      %p400 = por %p398, %p399
      %s402 = sadd.s32 %s401, 1
      %p405 = scmp.eq.s32.totalorder %s84, 1
      %p406 = scmp.ne.s32.totalorder %s401, %s403
      %p407 = scmp.eq.s32.totalorder %s84, 0
      %p408 = por %p406, %p407
      %p409 = scmp.ne.s32.totalorder %s401, %s403
      %p410 = scmp.eq.s32.totalorder %s89, 1
      %p411 = por %p409, %p410
      %p412 = scmp.ne.s32.totalorder %s403, %s404
      %p413 = scmp.eq.s32.totalorder %s89, 0
      %p414 = por %p412, %p413
      %p415 = scmp.ne.s32.totalorder %s403, %s404
      %p416 = scmp.eq.s32.totalorder %s90, 1
      %p417 = por %p415, %p416
      %p419 = scmp.ne.s32.totalorder %s404, %s418
      %p420 = scmp.eq.s32.totalorder %s90, 0
      %p421 = por %p419, %p420
      %s423 = sadd.s32 %s422, 1
      %p426 = scmp.eq.s32.totalorder %s84, 1
      %p427 = scmp.ne.s32.totalorder %s422, %s424
      %p428 = scmp.eq.s32.totalorder %s84, 0
      %p429 = por %p427, %p428
      %p430 = scmp.ne.s32.totalorder %s422, %s424
      %p431 = scmp.eq.s32.totalorder %s89, 1
      %p432 = por %p430, %p431
      %p433 = scmp.ne.s32.totalorder %s424, %s425
      %p434 = scmp.eq.s32.totalorder %s89, 0
      %p435 = por %p433, %p434
      %p436 = scmp.ne.s32.totalorder %s424, %s425
      %p437 = scmp.eq.s32.totalorder %s90, 1
      %p438 = por %p436, %p437
      %p440 = scmp.ne.s32.totalorder %s425, %s439
      %p441 = scmp.eq.s32.totalorder %s90, 0
      %p442 = por %p440, %p441
      %s444 = sadd.s32 %s443, 1
      %p447 = scmp.eq.s32.totalorder %s84, 1
      %p448 = scmp.ne.s32.totalorder %s443, %s445
      %p449 = scmp.eq.s32.totalorder %s84, 0
      %p450 = por %p448, %p449
      %p451 = scmp.ne.s32.totalorder %s443, %s445
      %p452 = scmp.eq.s32.totalorder %s89, 1
      %p453 = por %p451, %p452
      %p454 = scmp.ne.s32.totalorder %s445, %s446
      %p455 = scmp.eq.s32.totalorder %s89, 0
      %p456 = por %p454, %p455
      %p457 = scmp.ne.s32.totalorder %s445, %s446
      %p458 = scmp.eq.s32.totalorder %s90, 1
      %p459 = por %p457, %p458
      %p461 = scmp.ne.s32.totalorder %s446, %s460
      %p462 = scmp.eq.s32.totalorder %s90, 0
      %p463 = por %p461, %p462
      %s465 = sadd.s32 %s464, 1
      %p468 = scmp.eq.s32.totalorder %s84, 1
      %p469 = scmp.ne.s32.totalorder %s464, %s466
      %p470 = scmp.eq.s32.totalorder %s84, 0
      %p471 = por %p469, %p470
      %p472 = scmp.ne.s32.totalorder %s464, %s466
      %p473 = scmp.eq.s32.totalorder %s89, 1
      %p474 = por %p472, %p473
      %p475 = scmp.ne.s32.totalorder %s466, %s467
      %p476 = scmp.eq.s32.totalorder %s89, 0
      %p477 = por %p475, %p476
      %p478 = scmp.ne.s32.totalorder %s466, %s467
      %p479 = scmp.eq.s32.totalorder %s90, 1
      %p480 = por %p478, %p479
      %p482 = scmp.ne.s32.totalorder %s467, %s481
      %p483 = scmp.eq.s32.totalorder %s90, 0
      %p484 = por %p482, %p483
      %s486 = sadd.s32 %s485, 1
      %p489 = scmp.eq.s32.totalorder %s84, 1
      %p490 = scmp.ne.s32.totalorder %s485, %s487
      %p491 = scmp.eq.s32.totalorder %s84, 0
      %p492 = por %p490, %p491
      %p493 = scmp.ne.s32.totalorder %s485, %s487
      %p494 = scmp.eq.s32.totalorder %s89, 1
      %p495 = por %p493, %p494
      %p496 = scmp.ne.s32.totalorder %s487, %s488
      %p497 = scmp.eq.s32.totalorder %s89, 0
      %p498 = por %p496, %p497
      %p499 = scmp.ne.s32.totalorder %s487, %s488
      %p500 = scmp.eq.s32.totalorder %s90, 1
      %p501 = por %p499, %p500
      %p503 = scmp.ne.s32.totalorder %s488, %s502
      %p504 = scmp.eq.s32.totalorder %s90, 0
      %p505 = por %p503, %p504
      %s507 = sadd.s32 %s506, 1
      %p510 = scmp.eq.s32.totalorder %s84, 1
      %p511 = scmp.ne.s32.totalorder %s506, %s508
      %p512 = scmp.eq.s32.totalorder %s84, 0
      %p513 = por %p511, %p512
      %p514 = scmp.ne.s32.totalorder %s506, %s508
      %p515 = scmp.eq.s32.totalorder %s89, 1
      %p516 = por %p514, %p515
      %p517 = scmp.ne.s32.totalorder %s508, %s509
      %p518 = scmp.eq.s32.totalorder %s89, 0
      %p519 = por %p517, %p518
      %p520 = scmp.ne.s32.totalorder %s508, %s509
      %p521 = scmp.eq.s32.totalorder %s90, 1
      %p522 = por %p520, %p521
      %p524 = scmp.ne.s32.totalorder %s509, %s523
      %p525 = scmp.eq.s32.totalorder %s90, 0
      %p526 = por %p524, %p525
      %s528 = sadd.s32 %s527, 1
      %p531 = scmp.eq.s32.totalorder %s84, 1
      %p532 = scmp.ne.s32.totalorder %s527, %s529
      %p533 = scmp.eq.s32.totalorder %s84, 0
      %p534 = por %p532, %p533
      %p535 = scmp.ne.s32.totalorder %s527, %s529
      %p536 = scmp.eq.s32.totalorder %s89, 1
      %p537 = por %p535, %p536
      %p538 = scmp.ne.s32.totalorder %s529, %s530
      %p539 = scmp.eq.s32.totalorder %s89, 0
      %p540 = por %p538, %p539
      %p541 = scmp.ne.s32.totalorder %s529, %s530
      %p542 = scmp.eq.s32.totalorder %s90, 1
      %p543 = por %p541, %p542
      %p545 = scmp.ne.s32.totalorder %s530, %s544
      %p546 = scmp.eq.s32.totalorder %s90, 0
      %p547 = por %p545, %p546
      %s549 = sadd.s32 %s548, 1
      %p552 = scmp.eq.s32.totalorder %s84, 1
      %p553 = scmp.ne.s32.totalorder %s548, %s550
      %p554 = scmp.eq.s32.totalorder %s84, 0
      %p555 = por %p553, %p554
      %p556 = scmp.ne.s32.totalorder %s548, %s550
      %p557 = scmp.eq.s32.totalorder %s89, 1
      %p558 = por %p556, %p557
      %p559 = scmp.ne.s32.totalorder %s550, %s551
      %p560 = scmp.eq.s32.totalorder %s89, 0
      %p561 = por %p559, %p560
      %p562 = scmp.ne.s32.totalorder %s550, %s551
      %p563 = scmp.eq.s32.totalorder %s90, 1
      %p564 = por %p562, %p563
      %p566 = scmp.ne.s32.totalorder %s551, %s565
      %p567 = scmp.eq.s32.totalorder %s90, 0
      %p568 = por %p566, %p567
      %s570 = sadd.s32 %s569, 1
      %p573 = scmp.eq.s32.totalorder %s84, 1
      %p574 = scmp.ne.s32.totalorder %s569, %s571
      %p575 = scmp.eq.s32.totalorder %s84, 0
      %p576 = por %p574, %p575
      %p577 = scmp.ne.s32.totalorder %s569, %s571
      %p578 = scmp.eq.s32.totalorder %s89, 1
      %p579 = por %p577, %p578
      %p580 = scmp.ne.s32.totalorder %s571, %s572
      %p581 = scmp.eq.s32.totalorder %s89, 0
      %p582 = por %p580, %p581
      %p583 = scmp.ne.s32.totalorder %s571, %s572
      %p584 = scmp.eq.s32.totalorder %s90, 1
      %p585 = por %p583, %p584
      %p587 = scmp.ne.s32.totalorder %s572, %s586
      %p588 = scmp.eq.s32.totalorder %s90, 0
      %p589 = por %p587, %p588
      %s591 = sadd.s32 %s590, 1
      %p594 = scmp.eq.s32.totalorder %s84, 1
      %p595 = scmp.ne.s32.totalorder %s590, %s592
      %p596 = scmp.eq.s32.totalorder %s84, 0
      %p597 = por %p595, %p596
      %p598 = scmp.ne.s32.totalorder %s590, %s592
      %p599 = scmp.eq.s32.totalorder %s89, 1
      %p600 = por %p598, %p599
      %p601 = scmp.ne.s32.totalorder %s592, %s593
      %p602 = scmp.eq.s32.totalorder %s89, 0
      %p603 = por %p601, %p602
      %p604 = scmp.ne.s32.totalorder %s592, %s593
      %p605 = scmp.eq.s32.totalorder %s90, 1
      %p606 = por %p604, %p605
      %p608 = scmp.ne.s32.totalorder %s593, %s607
      %p609 = scmp.eq.s32.totalorder %s90, 0
      %p610 = por %p608, %p609
      %s612 = sadd.s32 %s611, 1
      %p615 = scmp.eq.s32.totalorder %s84, 1
      %p616 = scmp.ne.s32.totalorder %s611, %s613
      %p617 = scmp.eq.s32.totalorder %s84, 0
      %p618 = por %p616, %p617
      %p619 = scmp.ne.s32.totalorder %s611, %s613
      %p620 = scmp.eq.s32.totalorder %s89, 1
      %p621 = por %p619, %p620
      %p622 = scmp.ne.s32.totalorder %s613, %s614
      %p623 = scmp.eq.s32.totalorder %s89, 0
      %p624 = por %p622, %p623
      %p625 = scmp.ne.s32.totalorder %s613, %s614
      %p626 = scmp.eq.s32.totalorder %s90, 1
      %p627 = por %p625, %p626
      %p629 = scmp.ne.s32.totalorder %s614, %s628
      %p630 = scmp.eq.s32.totalorder %s90, 0
      %p631 = por %p629, %p630
      %s633 = sadd.s32 %s632, 1
      %p636 = scmp.eq.s32.totalorder %s84, 1
      %p637 = scmp.ne.s32.totalorder %s632, %s634
      %p638 = scmp.eq.s32.totalorder %s84, 0
      %p639 = por %p637, %p638
      %p640 = scmp.ne.s32.totalorder %s632, %s634
      %p641 = scmp.eq.s32.totalorder %s89, 1
      %p642 = por %p640, %p641
      %p643 = scmp.ne.s32.totalorder %s634, %s635
      %p644 = scmp.eq.s32.totalorder %s89, 0
      %p645 = por %p643, %p644
      %p646 = scmp.ne.s32.totalorder %s634, %s635
      %p647 = scmp.eq.s32.totalorder %s90, 1
      %p648 = por %p646, %p647
      %p650 = scmp.ne.s32.totalorder %s635, %s649
      %p651 = scmp.eq.s32.totalorder %s90, 0
      %p652 = por %p650, %p651
      %s654 = sadd.s32 %s653, 1
      %p657 = scmp.eq.s32.totalorder %s84, 1
      %p658 = scmp.ne.s32.totalorder %s653, %s655
      %p659 = scmp.eq.s32.totalorder %s84, 0
      %p660 = por %p658, %p659
      %p661 = scmp.ne.s32.totalorder %s653, %s655
      %p662 = scmp.eq.s32.totalorder %s89, 1
      %p663 = por %p661, %p662
      %p664 = scmp.ne.s32.totalorder %s655, %s656
      %p665 = scmp.eq.s32.totalorder %s89, 0
      %p666 = por %p664, %p665
      %p667 = scmp.ne.s32.totalorder %s655, %s656
      %p668 = scmp.eq.s32.totalorder %s90, 1
      %p669 = por %p667, %p668
      %p671 = scmp.ne.s32.totalorder %s656, %s670
      %p672 = scmp.eq.s32.totalorder %s90, 0
      %p673 = por %p671, %p672
      %s675 = sadd.s32 %s674, 1
      %p678 = scmp.eq.s32.totalorder %s84, 1
      %p679 = scmp.ne.s32.totalorder %s674, %s676
      %p680 = scmp.eq.s32.totalorder %s84, 0
      %p681 = por %p679, %p680
      %p682 = scmp.ne.s32.totalorder %s674, %s676
      %p683 = scmp.eq.s32.totalorder %s89, 1
      %p684 = por %p682, %p683
      %p685 = scmp.ne.s32.totalorder %s676, %s677
      %p686 = scmp.eq.s32.totalorder %s89, 0
      %p687 = por %p685, %p686
      %p688 = scmp.ne.s32.totalorder %s676, %s677
      %p689 = scmp.eq.s32.totalorder %s90, 1
      %p690 = por %p688, %p689
      %p692 = scmp.ne.s32.totalorder %s677, %s691
      %p693 = scmp.eq.s32.totalorder %s90, 0
      %p694 = por %p692, %p693
      %s695 = ssub.s32 %s84, %s91
      %p696 = scmp.eq.s32.totalorder %s695, 0
      %s698 = sadd.s32 %s697, 1
      %s699 = scalar_select %p696, %s697, %s698
      %p702 = pneg %p696
      %p703 = scmp.eq.s32.totalorder %s84, 1
      %p704 = por %p702, %p703
      %p705 = scmp.ne.s32.totalorder %s697, %s700
      %p706 = scmp.eq.s32.totalorder %s84, 0
      %p707 = por %p705, %p706
      %p708 = scmp.ne.s32.totalorder %s697, %s700
      %p709 = scmp.eq.s32.totalorder %s89, 1
      %p710 = por %p708, %p709
      %p711 = scmp.ne.s32.totalorder %s700, %s701
      %p712 = scmp.eq.s32.totalorder %s89, 0
      %p713 = por %p711, %p712
      %p714 = scmp.ne.s32.totalorder %s700, %s701
      %p715 = scmp.eq.s32.totalorder %s90, 1
      %p716 = por %p714, %p715
      %p718 = scmp.ne.s32.totalorder %s701, %s717
      %p719 = scmp.eq.s32.totalorder %s90, 0
      %p720 = por %p718, %p719
      %s721 = ssub.s32 %s84, %s91
      %p722 = scmp.eq.s32.totalorder %s721, 0
      %s724 = sadd.s32 %s723, 1
      %s725 = scalar_select %p722, %s723, %s724
      %p728 = pneg %p722
      %p729 = scmp.eq.s32.totalorder %s84, 1
      %p730 = por %p728, %p729
      %p731 = scmp.ne.s32.totalorder %s723, %s726
      %p732 = scmp.eq.s32.totalorder %s84, 0
      %p733 = por %p731, %p732
      %p734 = scmp.ne.s32.totalorder %s723, %s726
      %p735 = scmp.eq.s32.totalorder %s89, 1
      %p736 = por %p734, %p735
      %p737 = scmp.ne.s32.totalorder %s726, %s727
      %p738 = scmp.eq.s32.totalorder %s89, 0
      %p739 = por %p737, %p738
      %p740 = scmp.ne.s32.totalorder %s726, %s727
      %p741 = scmp.eq.s32.totalorder %s90, 1
      %p742 = por %p740, %p741
      %p744 = scmp.ne.s32.totalorder %s727, %s743
      %p745 = scmp.eq.s32.totalorder %s90, 0
      %p746 = por %p744, %p745
      %p747 = scmp.le.s32.totalorder 1, %s84
      %p748 = scmp.lt.s32.totalorder %s84, 3
      %p749 = pnand %p747, %p748
      %p750 = pneg %p749
      // Predicated region
      $region9: #{bert_forward.1} parent=5 // pred_check
        _
      $region10: #{bert_forward.1} parent=5 // pred_check_branch
        %752 = sbr.rel (%p749) target = $region12
      $region11: #{bert_forward.1} parent=5 // pred_region
        %s753 = ssub.s32 %s84, 1
        // Predicated region
        $region13: #{bert_forward.1} parent=11 // pred_check
          %p754 = pneg %p183
        $region14: #{bert_forward.1} parent=11 // pred_check_branch
          %756 = sbr.rel (%p754) target = $region16
        $region15: #{bert_forward.1} parent=11 // pred_region
          %s758 = ssub.s32 512, 512
          %759 = vsyncadd [#allocation3], %s758
          %s760 = sshll.u32 [#allocation2], 4
          %s761 = int_to_ptr.vmem [resolvable:$true] %s760
          %766 = dma.hbm_to_vmem [thread:$0]  %s7, 512, %s761, [#allocation3], 64, 64, 4
        $region16: #{bert_forward.1} parent=11 // pred_fallthru
          _
        // Predicated region
        $region17: #{bert_forward.1} parent=11 // pred_check
          %p767 = pneg %p204
        $region18: #{bert_forward.1} parent=11 // pred_check_branch
          %769 = sbr.rel (%p767) target = $region20
        $region19: #{bert_forward.1} parent=11 // pred_region
          _
        $region20: #{bert_forward.1} parent=11 // pred_fallthru
          _
        // Predicated region
        $region21: #{bert_forward.1} parent=11 // pred_check
          %p770 = pneg %p225
        $region22: #{bert_forward.1} parent=11 // pred_check_branch
          %772 = sbr.rel (%p770) target = $region24
        $region23: #{bert_forward.1} parent=11 // pred_region
          _
        $region24: #{bert_forward.1} parent=11 // pred_fallthru
          _
        // Predicated region
        $region25: #{bert_forward.1} parent=11 // pred_check
          %p773 = pneg %p246
        $region26: #{bert_forward.1} parent=11 // pred_check_branch
          %775 = sbr.rel (%p773) target = $region28
        $region27: #{bert_forward.1} parent=11 // pred_region
          %s777 = ssub.s32 32, 32
          %778 = vsyncadd [#allocation6], %s777
          %s780 = sshll.u32 [#allocation5], 4
          %s781 = int_to_ptr.vmem [resolvable:$true] %s780
          %783 = dma.hbm_to_vmem [thread:$0]  %s13, 32, %s781, [#allocation6]
        $region28: #{bert_forward.1} parent=11 // pred_fallthru
          _
        // Predicated region
        $region29: #{bert_forward.1} parent=11 // pred_check
          %p784 = pneg %p267
        $region30: #{bert_forward.1} parent=11 // pred_check_branch
          %786 = sbr.rel (%p784) target = $region32
        $region31: #{bert_forward.1} parent=11 // pred_region
          %s788 = ssub.s32 16, 16
          %789 = vsyncadd [#allocation6], %s788
          %s791 = sshll.u32 [#allocation7], 4
          %s792 = int_to_ptr.vmem [resolvable:$true] %s791
          %794 = dma.hbm_to_vmem [thread:$0]  %s15, 16, %s792, [#allocation6]
        $region32: #{bert_forward.1} parent=11 // pred_fallthru
          _
        // Predicated region
        $region33: #{bert_forward.1} parent=11 // pred_check
          %p795 = pneg %p288
        $region34: #{bert_forward.1} parent=11 // pred_check_branch
          %797 = sbr.rel (%p795) target = $region36
        $region35: #{bert_forward.1} parent=11 // pred_region
          %s799 = ssub.s32 16, 16
          %800 = vsyncadd [#allocation9], %s799
          %s802 = sshll.u32 [#allocation8], 4
          %s803 = int_to_ptr.vmem [resolvable:$true] %s802
          %805 = dma.hbm_to_vmem [thread:$0]  %s17, 16, %s803, [#allocation9]
        $region36: #{bert_forward.1} parent=11 // pred_fallthru
          _
        // Predicated region
        $region37: #{bert_forward.1} parent=11 // pred_check
          %p806 = pneg %p309
        $region38: #{bert_forward.1} parent=11 // pred_check_branch
          %808 = sbr.rel (%p806) target = $region40
        $region39: #{bert_forward.1} parent=11 // pred_region
          %s810 = ssub.s32 6144, 6144
          %811 = vsyncadd [#allocation9], %s810
          %s812 = sshll.u32 [#allocation10], 4
          %s813 = int_to_ptr.vmem [resolvable:$true] %s812
          %818 = dma.hbm_to_vmem [thread:$0]  %s19, 6144, %s813, [#allocation9], 192, 192, 12
        $region40: #{bert_forward.1} parent=11 // pred_fallthru
          _
        // Predicated region
        $region41: #{bert_forward.1} parent=11 // pred_check
          %p819 = pneg %p330
        $region42: #{bert_forward.1} parent=11 // pred_check_branch
          %821 = sbr.rel (%p819) target = $region44
        $region43: #{bert_forward.1} parent=11 // pred_region
          %s823 = ssub.s32 96, 96
          %824 = vsyncadd [#allocation12], %s823
          %s825 = sshll.u32 [#allocation11], 4
          %s826 = int_to_ptr.vmem [resolvable:$true] %s825
          %831 = dma.hbm_to_vmem [thread:$0]  %s21, 96, %s826, [#allocation12], 48, 48, 3
        $region44: #{bert_forward.1} parent=11 // pred_fallthru
          _
        // Predicated region
        $region45: #{bert_forward.1} parent=11 // pred_check
          %p832 = pneg %p351
        $region46: #{bert_forward.1} parent=11 // pred_check_branch
          %834 = sbr.rel (%p832) target = $region48
        $region47: #{bert_forward.1} parent=11 // pred_region
          %s836 = ssub.s32 2048, 2048
          %837 = vsyncadd [#allocation12], %s836
          %s838 = sshll.u32 [#allocation13], 4
          %s839 = int_to_ptr.vmem [resolvable:$true] %s838
          %844 = dma.hbm_to_vmem [thread:$0]  %s23, 2048, %s839, [#allocation12], 64, 64, 4
        $region48: #{bert_forward.1} parent=11 // pred_fallthru
          _
        // Predicated region
        $region49: #{bert_forward.1} parent=11 // pred_check
          %p845 = pneg %p372
        $region50: #{bert_forward.1} parent=11 // pred_check_branch
          %847 = sbr.rel (%p845) target = $region52
        $region51: #{bert_forward.1} parent=11 // pred_region
          %s849 = ssub.s32 32, 32
          %850 = vsyncadd [#allocation15], %s849
          %s851 = sshll.u32 [#allocation14], 4
          %s852 = int_to_ptr.vmem [resolvable:$true] %s851
          %857 = dma.hbm_to_vmem [thread:$0]  %s25, 32, %s852, [#allocation15], 16, 16, 1
        $region52: #{bert_forward.1} parent=11 // pred_fallthru
          _
        // Predicated region
        $region53: #{bert_forward.1} parent=11 // pred_check
          %p858 = pneg %p393
        $region54: #{bert_forward.1} parent=11 // pred_check_branch
          %860 = sbr.rel (%p858) target = $region56
        $region55: #{bert_forward.1} parent=11 // pred_region
          %s862 = ssub.s32 32, 32
          %863 = vsyncadd [#allocation15], %s862
          %s864 = sshll.u32 [#allocation16], 4
          %s865 = int_to_ptr.vmem [resolvable:$true] %s864
          %870 = dma.hbm_to_vmem [thread:$0]  %s27, 32, %s865, [#allocation15], 16, 16, 1
        $region56: #{bert_forward.1} parent=11 // pred_fallthru
          _
        // Predicated region
        $region57: #{bert_forward.1} parent=11 // pred_check
          %p871 = pneg %p414
        $region58: #{bert_forward.1} parent=11 // pred_check_branch
          %873 = sbr.rel (%p871) target = $region60
        $region59: #{bert_forward.1} parent=11 // pred_region
          %s875 = ssub.s32 32, 32
          %876 = vsyncadd [#allocation18], %s875
          %s877 = sshll.u32 [#allocation17], 4
          %s878 = int_to_ptr.vmem [resolvable:$true] %s877
          %883 = dma.hbm_to_vmem [thread:$0]  %s29, 32, %s878, [#allocation18], 16, 16, 1
        $region60: #{bert_forward.1} parent=11 // pred_fallthru
          _
        // Predicated region
        $region61: #{bert_forward.1} parent=11 // pred_check
          %p884 = pneg %p435
        $region62: #{bert_forward.1} parent=11 // pred_check_branch
          %886 = sbr.rel (%p884) target = $region64
        $region63: #{bert_forward.1} parent=11 // pred_region
          %s888 = ssub.s32 4096, 4096
          %889 = vsyncadd [#allocation18], %s888
          %s890 = sshll.u32 [#allocation19], 4
          %s891 = int_to_ptr.vmem [resolvable:$true] %s890
          %896 = dma.hbm_to_vmem [thread:$0]  %s31, 4096, %s891, [#allocation18], 128, 128, 8
        $region64: #{bert_forward.1} parent=11 // pred_fallthru
          _
        // Predicated region
        $region65: #{bert_forward.1} parent=11 // pred_check
          %p897 = pneg %p456
        $region66: #{bert_forward.1} parent=11 // pred_check_branch
          %899 = sbr.rel (%p897) target = $region68
        $region67: #{bert_forward.1} parent=11 // pred_region
          _
        $region68: #{bert_forward.1} parent=11 // pred_fallthru
          _
        // Predicated region
        $region69: #{bert_forward.1} parent=11 // pred_check
          %p900 = pneg %p477
        $region70: #{bert_forward.1} parent=11 // pred_check_branch
          %902 = sbr.rel (%p900) target = $region72
        $region71: #{bert_forward.1} parent=11 // pred_region
          %s904 = ssub.s32 4096, 4096
          %905 = vsyncadd [#allocation21], %s904
          %s906 = sshll.u32 [#allocation20], 4
          %s907 = int_to_ptr.vmem [resolvable:$true] %s906
          %912 = dma.hbm_to_vmem [thread:$0]  %s35, 4096, %s907, [#allocation21], 64, 64, 4
        $region72: #{bert_forward.1} parent=11 // pred_fallthru
          _
        // Predicated region
        $region73: #{bert_forward.1} parent=11 // pred_check
          %p913 = pneg %p498
        $region74: #{bert_forward.1} parent=11 // pred_check_branch
          %915 = sbr.rel (%p913) target = $region76
        $region75: #{bert_forward.1} parent=11 // pred_region
          %s917 = ssub.s32 32, 32
          %918 = vsyncadd [#allocation21], %s917
          %s919 = sshll.u32 [#allocation22], 4
          %s920 = int_to_ptr.vmem [resolvable:$true] %s919
          %925 = dma.hbm_to_vmem [thread:$0]  %s37, 32, %s920, [#allocation21], 16, 16, 1
        $region76: #{bert_forward.1} parent=11 // pred_fallthru
          _
        // Predicated region
        $region77: #{bert_forward.1} parent=11 // pred_check
          %p926 = pneg %p519
        $region78: #{bert_forward.1} parent=11 // pred_check_branch
          %928 = sbr.rel (%p926) target = $region80
        $region79: #{bert_forward.1} parent=11 // pred_region
          %s930 = ssub.s32 1024, 1024
          %931 = vsyncadd [#allocation24], %s930
          %s932 = sshll.u32 [#allocation23], 4
          %s933 = int_to_ptr.vmem [resolvable:$true] %s932
          %938 = dma.hbm_to_vmem [thread:$0]  %s39, 1024, %s933, [#allocation24], 64, 64, 4
        $region80: #{bert_forward.1} parent=11 // pred_fallthru
          _
        // Predicated region
        $region81: #{bert_forward.1} parent=11 // pred_check
          %p939 = pneg %p540
        $region82: #{bert_forward.1} parent=11 // pred_check_branch
          %941 = sbr.rel (%p939) target = $region84
        $region83: #{bert_forward.1} parent=11 // pred_region
          %s943 = ssub.s32 16, 16
          %944 = vsyncadd [#allocation24], %s943
          %s946 = sshll.u32 [#allocation25], 4
          %s947 = int_to_ptr.vmem [resolvable:$true] %s946
          %949 = dma.hbm_to_vmem [thread:$0]  %s41, 16, %s947, [#allocation24]
        $region84: #{bert_forward.1} parent=11 // pred_fallthru
          _
        // Predicated region
        $region85: #{bert_forward.1} parent=11 // pred_check
          %p950 = pneg %p561
        $region86: #{bert_forward.1} parent=11 // pred_check_branch
          %952 = sbr.rel (%p950) target = $region88
        $region87: #{bert_forward.1} parent=11 // pred_region
          %s954 = ssub.s32 1024, 1024
          %955 = vsyncadd [#allocation27], %s954
          %s956 = sshll.u32 [#allocation26], 4
          %s957 = int_to_ptr.vmem [resolvable:$true] %s956
          %962 = dma.hbm_to_vmem [thread:$0]  %s43, 1024, %s957, [#allocation27], 64, 64, 4
        $region88: #{bert_forward.1} parent=11 // pred_fallthru
          _
        // Predicated region
        $region89: #{bert_forward.1} parent=11 // pred_check
          %p963 = pneg %p582
        $region90: #{bert_forward.1} parent=11 // pred_check_branch
          %965 = sbr.rel (%p963) target = $region92
        $region91: #{bert_forward.1} parent=11 // pred_region
          %s967 = ssub.s32 16, 16
          %968 = vsyncadd [#allocation27], %s967
          %s970 = sshll.u32 [#allocation28], 4
          %s971 = int_to_ptr.vmem [resolvable:$true] %s970
          %973 = dma.hbm_to_vmem [thread:$0]  %s45, 16, %s971, [#allocation27]
        $region92: #{bert_forward.1} parent=11 // pred_fallthru
          _
        // Predicated region
        $region93: #{bert_forward.1} parent=11 // pred_check
          %p974 = pneg %p603
        $region94: #{bert_forward.1} parent=11 // pred_check_branch
          %976 = sbr.rel (%p974) target = $region96
        $region95: #{bert_forward.1} parent=11 // pred_region
          %s978 = ssub.s32 1024, 1024
          %979 = vsyncadd [#allocation30], %s978
          %s980 = sshll.u32 [#allocation29], 4
          %s981 = int_to_ptr.vmem [resolvable:$true] %s980
          %986 = dma.hbm_to_vmem [thread:$0]  %s47, 1024, %s981, [#allocation30], 64, 64, 4
        $region96: #{bert_forward.1} parent=11 // pred_fallthru
          _
        // Predicated region
        $region97: #{bert_forward.1} parent=11 // pred_check
          %p987 = pneg %p624
        $region98: #{bert_forward.1} parent=11 // pred_check_branch
          %989 = sbr.rel (%p987) target = $region100
        $region99: #{bert_forward.1} parent=11 // pred_region
          %s991 = ssub.s32 16, 16
          %992 = vsyncadd [#allocation30], %s991
          %s994 = sshll.u32 [#allocation31], 4
          %s995 = int_to_ptr.vmem [resolvable:$true] %s994
          %997 = dma.hbm_to_vmem [thread:$0]  %s49, 16, %s995, [#allocation30]
        $region100: #{bert_forward.1} parent=11 // pred_fallthru
          _
        // Predicated region
        $region101: #{bert_forward.1} parent=11 // pred_check
          %p998 = pneg %p645
        $region102: #{bert_forward.1} parent=11 // pred_check_branch
          %1000 = sbr.rel (%p998) target = $region104
        $region103: #{bert_forward.1} parent=11 // pred_region
          %s1002 = ssub.s32 16, 16
          %1003 = vsyncadd [#allocation33], %s1002
          %s1005 = sshll.u32 [#allocation32], 4
          %s1006 = int_to_ptr.vmem [resolvable:$true] %s1005
          %1008 = dma.hbm_to_vmem [thread:$0]  %s51, 16, %s1006, [#allocation33]
        $region104: #{bert_forward.1} parent=11 // pred_fallthru
          _
        // Predicated region
        $region105: #{bert_forward.1} parent=11 // pred_check
          %p1009 = pneg %p666
        $region106: #{bert_forward.1} parent=11 // pred_check_branch
          %1011 = sbr.rel (%p1009) target = $region108
        $region107: #{bert_forward.1} parent=11 // pred_region
          %s1013 = ssub.s32 16, 16
          %1014 = vsyncadd [#allocation33], %s1013
          %s1016 = sshll.u32 [#allocation34], 4
          %s1017 = int_to_ptr.vmem [resolvable:$true] %s1016
          %1019 = dma.hbm_to_vmem [thread:$0]  %s53, 16, %s1017, [#allocation33]
        $region108: #{bert_forward.1} parent=11 // pred_fallthru
          _
        // Predicated region
        $region109: #{bert_forward.1} parent=11 // pred_check
          %p1020 = pneg %p687
        $region110: #{bert_forward.1} parent=11 // pred_check_branch
          %1022 = sbr.rel (%p1020) target = $region112
        $region111: #{bert_forward.1} parent=11 // pred_region
          %s1024 = ssub.s32 16, 16
          %1025 = vsyncadd [#allocation36], %s1024
          %s1027 = sshll.u32 [#allocation35], 4
          %s1028 = int_to_ptr.vmem [resolvable:$true] %s1027
          %1030 = dma.hbm_to_vmem [thread:$0]  %s55, 16, %s1028, [#allocation36]
        $region112: #{bert_forward.1} parent=11 // pred_fallthru
          _
      $region12: #{bert_forward.1} parent=5 // pred_fallthru
        _
      %p1031 = scmp.lt.s32.totalorder %s84, 2
      // Predicated region
      $region113: #{bert_forward.1} parent=5 // pred_check
        %p1032 = pneg %p1031
      $region114: #{bert_forward.1} parent=5 // pred_check_branch
        %1034 = sbr.rel (%p1032) target = $region116
      $region115: #{bert_forward.1} parent=5 // pred_region
        // Predicated region
        $region117: #{bert_forward.1} parent=115 // pred_check
          %p1035 = pneg %p104
        $region118: #{bert_forward.1} parent=115 // pred_check_branch
          %1037 = sbr.rel (%p1035) target = $region120
        $region119: #{bert_forward.1} parent=115 // pred_region
          %p1038 = scmp.lt.s32.totalorder %s84, 1
          %s1039 = scalar_select %p1038, %s84, 1
          %s1040 = smul.addr %s1039, 8
          %s1041 = scalar_lea.vmem %s1, %s1040
        $region120: #{bert_forward.1} parent=115 // pred_fallthru
          _
        // Predicated region
        $region121: #{bert_forward.1} parent=115 // pred_check
          %p1042 = pneg %p130
        $region122: #{bert_forward.1} parent=115 // pred_check_branch
          %1044 = sbr.rel (%p1042) target = $region124
        $region123: #{bert_forward.1} parent=115 // pred_region
          %p1045 = scmp.lt.s32.totalorder %s84, 1
          %s1046 = scalar_select %p1045, %s84, 1
          %s1047 = smul.addr %s1046, 8
          %s1048 = scalar_lea.vmem %s3, %s1047
        $region124: #{bert_forward.1} parent=115 // pred_fallthru
          _
        // Predicated region
        $region125: #{bert_forward.1} parent=115 // pred_check
          %p1049 = pneg %p156
        $region126: #{bert_forward.1} parent=115 // pred_check_branch
          %1051 = sbr.rel (%p1049) target = $region128
        $region127: #{bert_forward.1} parent=115 // pred_region
          %p1052 = scmp.lt.s32.totalorder %s84, 1
          %s1053 = scalar_select %p1052, %s84, 1
          %s1054 = smul.addr %s1053, 2
          %s1055 = scalar_lea.vmem %s5, %s1054
        $region128: #{bert_forward.1} parent=115 // pred_fallthru
          _
      $region116: #{bert_forward.1} parent=5 // pred_fallthru
        _
      %p1056 = scmp.le.s32.totalorder 1, %s84
      %p1057 = scmp.lt.s32.totalorder %s84, 3
      %p1058 = pnand %p1056, %p1057
      %p1059 = pneg %p1058
      // Predicated region
      $region129: #{bert_forward.1} parent=5 // pred_check
        _
      $region130: #{bert_forward.1} parent=5 // pred_check_branch
        %1061 = sbr.rel (%p1058) target = $region132
      $region131: #{bert_forward.1} parent=5 // pred_region
        %s1062 = ssub.s32 %s84, 1
        // Predicated region
        $region133: #{bert_forward.1} parent=131 // pred_check
          %p1063 = pneg %p183
        $region134: #{bert_forward.1} parent=131 // pred_check_branch
          %1065 = sbr.rel (%p1063) target = $region136
        $region135: #{bert_forward.1} parent=131 // pred_region
          %1066 = dma.done [#allocation3], 512
        $region136: #{bert_forward.1} parent=131 // pred_fallthru
          _
        // Predicated region
        $region137: #{bert_forward.1} parent=131 // pred_check
          %p1067 = pneg %p246
        $region138: #{bert_forward.1} parent=131 // pred_check_branch
          %1069 = sbr.rel (%p1067) target = $region140
        $region139: #{bert_forward.1} parent=131 // pred_region
          %1070 = dma.done [#allocation6], 32
        $region140: #{bert_forward.1} parent=131 // pred_fallthru
          _
        // Predicated region
        $region141: #{bert_forward.1} parent=131 // pred_check
          %p1071 = pneg %p267
        $region142: #{bert_forward.1} parent=131 // pred_check_branch
          %1073 = sbr.rel (%p1071) target = $region144
        $region143: #{bert_forward.1} parent=131 // pred_region
          %1074 = dma.done [#allocation6], 16
        $region144: #{bert_forward.1} parent=131 // pred_fallthru
          _
        // Predicated region
        $region145: #{bert_forward.1} parent=131 // pred_check
          %p1075 = pneg %p288
        $region146: #{bert_forward.1} parent=131 // pred_check_branch
          %1077 = sbr.rel (%p1075) target = $region148
        $region147: #{bert_forward.1} parent=131 // pred_region
          %1078 = dma.done [#allocation9], 16
        $region148: #{bert_forward.1} parent=131 // pred_fallthru
          _
        // Predicated region
        $region149: #{bert_forward.1} parent=131 // pred_check
          %p1079 = pneg %p309
        $region150: #{bert_forward.1} parent=131 // pred_check_branch
          %1081 = sbr.rel (%p1079) target = $region152
        $region151: #{bert_forward.1} parent=131 // pred_region
          %1082 = dma.done [#allocation9], 6144
        $region152: #{bert_forward.1} parent=131 // pred_fallthru
          _
        // Predicated region
        $region153: #{bert_forward.1} parent=131 // pred_check
          %p1083 = pneg %p330
        $region154: #{bert_forward.1} parent=131 // pred_check_branch
          %1085 = sbr.rel (%p1083) target = $region156
        $region155: #{bert_forward.1} parent=131 // pred_region
          %1086 = dma.done [#allocation12], 96
        $region156: #{bert_forward.1} parent=131 // pred_fallthru
          _
        // Predicated region
        $region157: #{bert_forward.1} parent=131 // pred_check
          %p1087 = pneg %p351
        $region158: #{bert_forward.1} parent=131 // pred_check_branch
          %1089 = sbr.rel (%p1087) target = $region160
        $region159: #{bert_forward.1} parent=131 // pred_region
          %1090 = dma.done [#allocation12], 2048
        $region160: #{bert_forward.1} parent=131 // pred_fallthru
          _
        // Predicated region
        $region161: #{bert_forward.1} parent=131 // pred_check
          %p1091 = pneg %p372
        $region162: #{bert_forward.1} parent=131 // pred_check_branch
          %1093 = sbr.rel (%p1091) target = $region164
        $region163: #{bert_forward.1} parent=131 // pred_region
          %1094 = dma.done [#allocation15], 32
        $region164: #{bert_forward.1} parent=131 // pred_fallthru
          _
        // Predicated region
        $region165: #{bert_forward.1} parent=131 // pred_check
          %p1095 = pneg %p393
        $region166: #{bert_forward.1} parent=131 // pred_check_branch
          %1097 = sbr.rel (%p1095) target = $region168
        $region167: #{bert_forward.1} parent=131 // pred_region
          %1098 = dma.done [#allocation15], 32
        $region168: #{bert_forward.1} parent=131 // pred_fallthru
          _
        // Predicated region
        $region169: #{bert_forward.1} parent=131 // pred_check
          %p1099 = pneg %p414
        $region170: #{bert_forward.1} parent=131 // pred_check_branch
          %1101 = sbr.rel (%p1099) target = $region172
        $region171: #{bert_forward.1} parent=131 // pred_region
          %1102 = dma.done [#allocation18], 32
        $region172: #{bert_forward.1} parent=131 // pred_fallthru
          _
        // Predicated region
        $region173: #{bert_forward.1} parent=131 // pred_check
          %p1103 = pneg %p435
        $region174: #{bert_forward.1} parent=131 // pred_check_branch
          %1105 = sbr.rel (%p1103) target = $region176
        $region175: #{bert_forward.1} parent=131 // pred_region
          %1106 = dma.done [#allocation18], 4096
        $region176: #{bert_forward.1} parent=131 // pred_fallthru
          _
        // Predicated region
        $region177: #{bert_forward.1} parent=131 // pred_check
          %p1107 = pneg %p477
        $region178: #{bert_forward.1} parent=131 // pred_check_branch
          %1109 = sbr.rel (%p1107) target = $region180
        $region179: #{bert_forward.1} parent=131 // pred_region
          %1110 = dma.done [#allocation21], 4096
        $region180: #{bert_forward.1} parent=131 // pred_fallthru
          _
        // Predicated region
        $region181: #{bert_forward.1} parent=131 // pred_check
          %p1111 = pneg %p498
        $region182: #{bert_forward.1} parent=131 // pred_check_branch
          %1113 = sbr.rel (%p1111) target = $region184
        $region183: #{bert_forward.1} parent=131 // pred_region
          %1114 = dma.done [#allocation21], 32
        $region184: #{bert_forward.1} parent=131 // pred_fallthru
          _
        // Predicated region
        $region185: #{bert_forward.1} parent=131 // pred_check
          %p1115 = pneg %p519
        $region186: #{bert_forward.1} parent=131 // pred_check_branch
          %1117 = sbr.rel (%p1115) target = $region188
        $region187: #{bert_forward.1} parent=131 // pred_region
          %1118 = dma.done [#allocation24], 1024
        $region188: #{bert_forward.1} parent=131 // pred_fallthru
          _
        // Predicated region
        $region189: #{bert_forward.1} parent=131 // pred_check
          %p1119 = pneg %p540
        $region190: #{bert_forward.1} parent=131 // pred_check_branch
          %1121 = sbr.rel (%p1119) target = $region192
        $region191: #{bert_forward.1} parent=131 // pred_region
          %1122 = dma.done [#allocation24], 16
        $region192: #{bert_forward.1} parent=131 // pred_fallthru
          _
        // Predicated region
        $region193: #{bert_forward.1} parent=131 // pred_check
          %p1123 = pneg %p561
        $region194: #{bert_forward.1} parent=131 // pred_check_branch
          %1125 = sbr.rel (%p1123) target = $region196
        $region195: #{bert_forward.1} parent=131 // pred_region
          %1126 = dma.done [#allocation27], 1024
        $region196: #{bert_forward.1} parent=131 // pred_fallthru
          _
        // Predicated region
        $region197: #{bert_forward.1} parent=131 // pred_check
          %p1127 = pneg %p582
        $region198: #{bert_forward.1} parent=131 // pred_check_branch
          %1129 = sbr.rel (%p1127) target = $region200
        $region199: #{bert_forward.1} parent=131 // pred_region
          %1130 = dma.done [#allocation27], 16
        $region200: #{bert_forward.1} parent=131 // pred_fallthru
          _
        // Predicated region
        $region201: #{bert_forward.1} parent=131 // pred_check
          %p1131 = pneg %p603
        $region202: #{bert_forward.1} parent=131 // pred_check_branch
          %1133 = sbr.rel (%p1131) target = $region204
        $region203: #{bert_forward.1} parent=131 // pred_region
          %1134 = dma.done [#allocation30], 1024
        $region204: #{bert_forward.1} parent=131 // pred_fallthru
          _
        // Predicated region
        $region205: #{bert_forward.1} parent=131 // pred_check
          %p1135 = pneg %p624
        $region206: #{bert_forward.1} parent=131 // pred_check_branch
          %1137 = sbr.rel (%p1135) target = $region208
        $region207: #{bert_forward.1} parent=131 // pred_region
          %1138 = dma.done [#allocation30], 16
        $region208: #{bert_forward.1} parent=131 // pred_fallthru
          _
        // Predicated region
        $region209: #{bert_forward.1} parent=131 // pred_check
          %p1139 = pneg %p645
        $region210: #{bert_forward.1} parent=131 // pred_check_branch
          %1141 = sbr.rel (%p1139) target = $region212
        $region211: #{bert_forward.1} parent=131 // pred_region
          %1142 = dma.done [#allocation33], 16
        $region212: #{bert_forward.1} parent=131 // pred_fallthru
          _
        // Predicated region
        $region213: #{bert_forward.1} parent=131 // pred_check
          %p1143 = pneg %p666
        $region214: #{bert_forward.1} parent=131 // pred_check_branch
          %1145 = sbr.rel (%p1143) target = $region216
        $region215: #{bert_forward.1} parent=131 // pred_region
          %1146 = dma.done [#allocation33], 16
        $region216: #{bert_forward.1} parent=131 // pred_fallthru
          _
        // Predicated region
        $region217: #{bert_forward.1} parent=131 // pred_check
          %p1147 = pneg %p687
        $region218: #{bert_forward.1} parent=131 // pred_check_branch
          %1149 = sbr.rel (%p1147) target = $region220
        $region219: #{bert_forward.1} parent=131 // pred_region
          %1150 = dma.done [#allocation36], 16
        $region220: #{bert_forward.1} parent=131 // pred_fallthru
          _
        %p1151 = scmp.lt.s32.totalorder %s89, 1
        %s1152 = scalar_select %p1151, %s89, 1
        %s1153 = smul.addr %s1152, 8
        %s1154 = scalar_lea.vmem %s1, %s1153
        %p1155 = pneg %p110
        %p1156 = pneg %p107
        %p1157 = scmp.lt.s32.totalorder %s89, 1
        %s1158 = scalar_select %p1157, %s89, 1
        %s1159 = smul.addr %s1158, 8
        %s1160 = scalar_lea.vmem %s3, %s1159
        %p1161 = pneg %p136
        %p1162 = pneg %p133
        %p1163 = scmp.lt.s32.totalorder %s89, 1
        %s1164 = scalar_select %p1163, %s89, 1
        %s1165 = smul.addr %s1164, 2
        %s1166 = scalar_lea.vmem %s5, %s1165
        %p1167 = pneg %p162
        %p1168 = pneg %p159
        %p1169 = pneg %p183
        %p1170 = pneg %p180
        %p1171 = pneg %p204
        %p1172 = pneg %p201
        %p1173 = pneg %p225
        %p1174 = pneg %p222
        %p1175 = pneg %p246
        %p1176 = pneg %p243
        %p1177 = pneg %p267
        %p1178 = pneg %p264
        %p1179 = pneg %p288
        %p1180 = pneg %p285
        %p1181 = pneg %p309
        %p1182 = pneg %p306
        %p1183 = pneg %p330
        %p1184 = pneg %p327
        %p1185 = pneg %p351
        %p1186 = pneg %p348
        %p1187 = pneg %p372
        %p1188 = pneg %p369
        %p1189 = pneg %p393
        %p1190 = pneg %p390
        %p1191 = pneg %p414
        %p1192 = pneg %p411
        %p1193 = pneg %p435
        %p1194 = pneg %p432
        %p1195 = pneg %p456
        %p1196 = pneg %p453
        %p1197 = pneg %p477
        %p1198 = pneg %p474
        %p1199 = pneg %p498
        %p1200 = pneg %p495
        %p1201 = pneg %p519
        %p1202 = pneg %p516
        %p1203 = pneg %p540
        %p1204 = pneg %p537
        %p1205 = pneg %p561
        %p1206 = pneg %p558
        %p1207 = pneg %p582
        %p1208 = pneg %p579
        %p1209 = pneg %p603
        %p1210 = pneg %p600
        %p1211 = pneg %p624
        %p1212 = pneg %p621
        %p1213 = pneg %p645
        %p1214 = pneg %p642
        %p1215 = pneg %p666
        %p1216 = pneg %p663
        %p1217 = pneg %p687
        %p1218 = pneg %p684
        %p1219 = pneg %p713
        %p1220 = pneg %p710
        %s1221 = sand.u32 %s700, 1
        %s1222 = scalar_lea.sflag [#allocation4], %s1221
        %s1223 = sand.u32 %s700, 1
        %s1224 = smul.addr %s1223, 2
        %s1225 = scalar_lea.vmem [#allocation37], %s1224
        %p1226 = pneg %p739
        %p1227 = pneg %p736
        %s1228 = sand.u32 %s726, 1
        %s1229 = scalar_lea.sflag [#allocation39], %s1228
        %s1230 = sand.u32 %s726, 1
        %s1231 = scalar_lea.vmem [#allocation38], %s1230
        %p1232 = scmp.lt.s32.totalorder %s89, 1
        %s1233 = scalar_select %p1232, %s89, 1
        %s1234 = smul.addr %s1233, 8
        %s1235 = scalar_lea.vmem %s1, %s1234
        %p1236 = scmp.lt.s32.totalorder %s89, 1
        %s1237 = scalar_select %p1236, %s89, 1
        %s1238 = smul.addr %s1237, 8
        %s1239 = scalar_lea.vmem %s3, %s1238
        %p1240 = scmp.lt.s32.totalorder %s89, 1
        %s1241 = scalar_select %p1240, %s89, 1
        %s1242 = smul.addr %s1241, 2
        %s1243 = scalar_lea.vmem %s5, %s1242
        %v1245 = vld [vmem:[%s1235] sm:$0xff]
        %v1246 = vld [vmem:[%s1239] sm:$0xff]
        %v1247 = vlaneseq
        %v1248 = vand.u32 %v1247, 127
        %1249 = vset.pattern.permute.xlu0 0
        %1250 = vperm.xlu0 %1249, %v1245
        %v1251 = vpop.permute.xlu0 %1250
        %vm1252 = vcmp.eq.s32.totalorder %v1251, %v1248
        %v1253 = vsel %vm1252, 1, 0
        %v1254 = vcvt.s32.f32 %v1253
        %v1255 = vpack.c.bf16 %v1254, %v1254
        %v1256 = vld [vmem:[#allocation2] sm:$0xf]
        %v1257 = vld [vmem:[#allocation2 + $0x4] sm:$0xf]
        %v1258 = vld [vmem:[#allocation2 + $0x8] sm:$0xf]
        %v1259 = vld [vmem:[#allocation2 + $0xc] sm:$0xf]
        %v1260 = vld [vmem:[#allocation2 + $0x10] sm:$0xf]
        %v1261 = vld [vmem:[#allocation2 + $0x14] sm:$0xf]
        %v1262 = vld [vmem:[#allocation2 + $0x18] sm:$0xf]
        %v1263 = vld [vmem:[#allocation2 + $0x1c] sm:$0xf]
        %v1264 = vld [vmem:[%s11] sm:$0xff]
        %v1273 = vunpack.c.l.b16 %v1256
        %v1274 = vunpack.c.l.b16 %v1257
        %v1275 = vunpack.c.l.b16 %v1258
        %v1276 = vunpack.c.l.b16 %v1259
        %v1277 = vunpack.c.l.b16 %v1260
        %v1278 = vunpack.c.l.b16 %v1261
        %v1279 = vunpack.c.l.b16 %v1262
        %v1280 = vunpack.c.l.b16 %v1263
        %v1281 = vpack.c.b16 %v1274, %v1273
        %v1282 = vpack.c.b16 %v1276, %v1275
        %v1283 = vpack.c.b16 %v1278, %v1277
        %v1284 = vpack.c.b16 %v1280, %v1279
        %vm1289 = vcmask 523264
        %v1291 = vsel %vm1289, %v1255, 0
        %1293 = vmatprep.subr.bf16.mxu0 0
        %1294 = vmatpush1.bf16.msra.mxu0 0
        %1295 = vmatprep.subr.bf16.mxu0 0
        %1296 = vmatpush1.bf16.msra.mxu0 0
        %1297 = vmatprep.subr.bf16.mxu0 0
        %1298 = vmatpush1.bf16.msra.mxu0 0
        %1299 = vmatprep.subr.bf16.mxu0 0
        %1300 = vmatpush1.bf16.msra.mxu0 0
        %1301 = vmatprep.subr.bf16.mxu0 0
        %1302 = vmatpush1.bf16.msra.mxu0 %v1284
        %1303 = vmatprep.subr.bf16.mxu0 0
        %1304 = vmatpush1.bf16.msra.mxu0 %v1283
        %1305 = vmatprep.subr.bf16.mxu0 0
        %1306 = vmatpush1.bf16.msra.mxu0 %v1282
        %1307 = vmatprep.subr.bf16.mxu0 0
        %1308 = vmatpush1.bf16.msra.mxu0 %v1281
        %1309 = vmatprep.subr.bf16.mxu0 0
        %1310 = vmatpush2.bf16.msra.mxu0 0
        %1311 = vmatprep.subr.bf16.mxu0 0
        %1312 = vmatpush2.bf16.msra.mxu0 0
        %1313 = vmatprep.subr.bf16.mxu0 0
        %1314 = vmatpush2.bf16.msra.mxu0 0
        %1315 = vmatprep.subr.bf16.mxu0 0
        %1316 = vmatpush2.bf16.msra.mxu0 0
        %1317 = vmatprep.subr.bf16.mxu0 0
        %1318 = vmatpush2.bf16.msra.mxu0 0
        %1319 = vmatprep.subr.bf16.mxu0 0
        %1320 = vmatpush2.bf16.msra.mxu0 0
        %1321 = vmatprep.subr.bf16.mxu0 0
        %1322 = vmatpush2.bf16.msra.mxu0 0
        %1323 = vmatprep.subr.bf16.mxu0 0
        %1324 = vmatpush2.bf16.msra.mxu0 0
        %1325 = vmatprep.mubr.bf16.mxu0 0
        %1326 = vmatmul.mubr.bf16.gmra.mxu0 %v1291
        %v1327 = vpop.f32.mrf.mxu0
        %v1328 = vadd.f32 %v1264, %v1327
        %v1329 = vpop.f32.mrf.mxu0
        %v1330 = vpop.f32.mrf.mxu0
        %v1331 = vpop.f32.mrf.mxu0
        %1332 = vdwg.mxu0
        %vm1333 = vcmp.eq.s32.totalorder %v1246, 1
        %v1334 = vld [vmem:[#allocation5 + $0x1] sm:$0x1]
        %v1335 = vld [vmem:[#allocation5] sm:$0x1]
        %v1336 = vsel %vm1333, 1, 0
        %1337 = vset.pattern.permute.xlu0 0
        %1338 = vperm.xlu0 %1337, %v1336
        %v1339 = vpop.permute.xlu0 %1338
        %vm1340 = vcmp.eq.s32.totalorder %v1339, 1
        %v1341 = vlaneseq
        %v1342 = vshrl.u32 %v1341, 7
        %v1343 = vsub.s32 0, %v1342
        %v1344 = vrot.slane %v1334, %v1343
        %v1345 = vlaneseq
        %v1346 = vshrl.u32 %v1345, 7
        %v1347 = vsub.s32 0, %v1346
        %v1348 = vrot.slane %v1335, %v1347
        %v1349 = vsel %vm1340, %v1344, %v1348
        %v1350 = vadd.f32 %v1328, %v1349
        %v1351 = vld [vmem:[#allocation7] sm:$0x1]
        %v1352 = vld [vmem:[#allocation8] sm:$0x1]
        %1353 = vadd.xlane.f32.xlu0 %v1350
        %v1354 = vpop.xlane.xlu0 %1353
        %v1355 = vrcp.pop 128.0
        %v1356 = vmul.f32 %v1354, %v1355
        %v1357 = vsub.f32 %v1350, %v1356
        %v1358 = vmul.f32 %v1357, %v1357
        %1359 = vadd.xlane.f32.xlu0 %v1358
        %v1360 = vpop.xlane.xlu0 %1359
        %v1361 = vmul.f32 %v1360, %v1355
        %v1362 = vadd.f32 %v1361, 1e-05
        %v1363 = vrsqrt.pop %v1362
        %v1364 = vmul.f32 %v1357, %v1363
        %v1366 = vlaneseq
        %v1367 = vshrl.u32 %v1366, 7
        %v1368 = vsub.s32 0, %v1367
        %v1369 = vrot.slane %v1351, %v1368
        %v1371 = vmul.f32 %v1364, %v1369
        %v1373 = vlaneseq
        %v1374 = vshrl.u32 %v1373, 7
        %v1375 = vsub.s32 0, %v1374
        %v1376 = vrot.slane %v1352, %v1375
        %v1378 = vadd.f32 %v1371, %v1376
        %vm1379 = vcmp.eq.s32.totalorder %v1245, 0
        %v1380 = vsel %vm1379, -1e+09, 0.0
        %v1381 = vld [vmem:[#allocation10] sm:$0xff]
        %v1382 = vld [vmem:[#allocation10 + $0x8] sm:$0xf]
        %v1383 = vld [vmem:[#allocation10 + $0xc] sm:$0xff]
        %v1384 = vld [vmem:[#allocation10 + $0x14] sm:$0xf]
        %v1385 = vld [vmem:[#allocation10 + $0x18] sm:$0xff]
        %v1386 = vld [vmem:[#allocation10 + $0x20] sm:$0xf]
        %v1387 = vld [vmem:[#allocation10 + $0x24] sm:$0xff]
        %v1388 = vld [vmem:[#allocation10 + $0x2c] sm:$0xf]
        %v1389 = vld [vmem:[#allocation10 + $0x30] sm:$0xff]
        %v1390 = vld [vmem:[#allocation10 + $0x38] sm:$0xf]
        %v1391 = vld [vmem:[#allocation10 + $0x3c] sm:$0xff]
        %v1392 = vld [vmem:[#allocation10 + $0x44] sm:$0xf]
        %v1393 = vld [vmem:[#allocation10 + $0x48] sm:$0xff]
        %v1394 = vld [vmem:[#allocation10 + $0x50] sm:$0xf]
        %v1395 = vld [vmem:[#allocation10 + $0x54] sm:$0xff]
        %v1396 = vld [vmem:[#allocation10 + $0x5c] sm:$0xf]
        %v1397 = vld [vmem:[#allocation10 + $0x60] sm:$0xff]
        %v1398 = vld [vmem:[#allocation10 + $0x68] sm:$0xf]
        %v1399 = vld [vmem:[#allocation10 + $0x6c] sm:$0xff]
        %v1400 = vld [vmem:[#allocation10 + $0x74] sm:$0xf]
        %v1401 = vld [vmem:[#allocation10 + $0x78] sm:$0xff]
        %v1402 = vld [vmem:[#allocation10 + $0x80] sm:$0xf]
        %v1403 = vld [vmem:[#allocation10 + $0x84] sm:$0xff]
        %v1404 = vld [vmem:[#allocation10 + $0x8c] sm:$0xf]
        %v1405 = vld [vmem:[#allocation10 + $0x90] sm:$0xff]
        %v1406 = vld [vmem:[#allocation10 + $0x98] sm:$0xf]
        %v1407 = vld [vmem:[#allocation10 + $0x9c] sm:$0xff]
        %v1408 = vld [vmem:[#allocation10 + $0xa4] sm:$0xf]
        %v1409 = vld [vmem:[#allocation10 + $0xa8] sm:$0xff]
        %v1410 = vld [vmem:[#allocation10 + $0xb0] sm:$0xf]
        %v1411 = vld [vmem:[#allocation10 + $0xb4] sm:$0xff]
        %v1412 = vld [vmem:[#allocation10 + $0xbc] sm:$0xf]
        %v1413 = vld [vmem:[#allocation11] sm:$0x7]
        %v1414 = vpack.c.bf16 %v1378, %v1378
        %v1416 = vlaneseq
        %v1417 = vshrl.u32 %v1416, 7
        %v1418 = vsub.s32 0, %v1417
        %v1419 = vrot.slane %v1413, %v1418
        %v1420 = vlaneseq
        %v1421 = vshrl.u32 %v1420, 7
        %v1422 = vsub.s32 1, %v1421
        %v1423 = vrot.slane %v1413, %v1422
        %v1424 = vlaneseq
        %v1425 = vshrl.u32 %v1424, 7
        %v1426 = vsub.s32 2, %v1425
        %v1427 = vrot.slane %v1413, %v1426
        %v1463 = vunpack.c.l.b16 %v1381
        %v1464 = vunpack.c.h.b16 %v1381
        %v1465 = vunpack.c.l.b16 %v1382
        %v1466 = vunpack.c.l.b16 %v1383
        %v1467 = vunpack.c.h.b16 %v1383
        %v1468 = vunpack.c.l.b16 %v1384
        %v1469 = vunpack.c.l.b16 %v1385
        %v1470 = vunpack.c.h.b16 %v1385
        %v1471 = vunpack.c.l.b16 %v1386
        %v1472 = vunpack.c.l.b16 %v1387
        %v1473 = vunpack.c.h.b16 %v1387
        %v1474 = vunpack.c.l.b16 %v1388
        %v1475 = vunpack.c.l.b16 %v1389
        %v1476 = vunpack.c.h.b16 %v1389
        %v1477 = vunpack.c.l.b16 %v1390
        %v1478 = vunpack.c.l.b16 %v1391
        %v1479 = vunpack.c.h.b16 %v1391
        %v1480 = vunpack.c.l.b16 %v1392
        %v1481 = vunpack.c.l.b16 %v1393
        %v1482 = vunpack.c.h.b16 %v1393
        %v1483 = vunpack.c.l.b16 %v1394
        %v1484 = vunpack.c.l.b16 %v1395
        %v1485 = vunpack.c.h.b16 %v1395
        %v1486 = vunpack.c.l.b16 %v1396
        %v1487 = vunpack.c.l.b16 %v1397
        %v1488 = vunpack.c.h.b16 %v1397
        %v1489 = vunpack.c.l.b16 %v1398
        %v1490 = vunpack.c.l.b16 %v1399
        %v1491 = vunpack.c.h.b16 %v1399
        %v1492 = vunpack.c.l.b16 %v1400
        %v1493 = vunpack.c.l.b16 %v1401
        %v1494 = vunpack.c.h.b16 %v1401
        %v1495 = vunpack.c.l.b16 %v1402
        %v1496 = vunpack.c.l.b16 %v1403
        %v1497 = vunpack.c.h.b16 %v1403
        %v1498 = vunpack.c.l.b16 %v1404
        %v1499 = vunpack.c.l.b16 %v1405
        %v1500 = vunpack.c.h.b16 %v1405
        %v1501 = vunpack.c.l.b16 %v1406
        %v1502 = vunpack.c.l.b16 %v1407
        %v1503 = vunpack.c.h.b16 %v1407
        %v1504 = vunpack.c.l.b16 %v1408
        %v1505 = vunpack.c.l.b16 %v1409
        %v1506 = vunpack.c.h.b16 %v1409
        %v1507 = vunpack.c.l.b16 %v1410
        %v1508 = vunpack.c.l.b16 %v1411
        %v1509 = vunpack.c.h.b16 %v1411
        %v1510 = vunpack.c.l.b16 %v1412
        %v1511 = vpack.c.b16 %v1466, %v1463
        %v1512 = vpack.c.b16 %v1467, %v1464
        %v1513 = vpack.c.b16 %v1468, %v1465
        %v1514 = vpack.c.b16 %v1472, %v1469
        %v1515 = vpack.c.b16 %v1473, %v1470
        %v1516 = vpack.c.b16 %v1474, %v1471
        %v1517 = vpack.c.b16 %v1478, %v1475
        %v1518 = vpack.c.b16 %v1479, %v1476
        %v1519 = vpack.c.b16 %v1480, %v1477
        %v1520 = vpack.c.b16 %v1484, %v1481
        %v1521 = vpack.c.b16 %v1485, %v1482
        %v1522 = vpack.c.b16 %v1486, %v1483
        %v1523 = vpack.c.b16 %v1490, %v1487
        %v1524 = vpack.c.b16 %v1491, %v1488
        %v1525 = vpack.c.b16 %v1492, %v1489
        %v1526 = vpack.c.b16 %v1496, %v1493
        %v1527 = vpack.c.b16 %v1497, %v1494
        %v1528 = vpack.c.b16 %v1498, %v1495
        %v1529 = vpack.c.b16 %v1502, %v1499
        %v1530 = vpack.c.b16 %v1503, %v1500
        %v1531 = vpack.c.b16 %v1504, %v1501
        %v1532 = vpack.c.b16 %v1508, %v1505
        %v1533 = vpack.c.b16 %v1509, %v1506
        %v1534 = vpack.c.b16 %v1510, %v1507
        %1559 = vmatprep.subr.bf16.mxu0 %v1533
        %1560 = vmatpush1.bf16.msra.mxu0 %v1532
        %1561 = vmatprep.subr.bf16.mxu0 %v1530
        %1562 = vmatpush1.bf16.msra.mxu0 %v1529
        %1563 = vmatprep.subr.bf16.mxu0 %v1527
        %1564 = vmatpush1.bf16.msra.mxu0 %v1526
        %1565 = vmatprep.subr.bf16.mxu0 %v1524
        %1566 = vmatpush1.bf16.msra.mxu0 %v1523
        %1567 = vmatprep.subr.bf16.mxu0 %v1521
        %1568 = vmatpush1.bf16.msra.mxu0 %v1520
        %1569 = vmatprep.subr.bf16.mxu0 %v1518
        %1570 = vmatpush1.bf16.msra.mxu0 %v1517
        %1571 = vmatprep.subr.bf16.mxu0 %v1515
        %1572 = vmatpush1.bf16.msra.mxu0 %v1514
        %1573 = vmatprep.subr.bf16.mxu0 %v1512
        %1574 = vmatpush1.bf16.msra.mxu0 %v1511
        %1575 = vmatprep.subr.bf16.mxu0 0
        %1576 = vmatpush2.bf16.msra.mxu0 0
        %1577 = vmatprep.subr.bf16.mxu0 0
        %1578 = vmatpush2.bf16.msra.mxu0 0
        %1579 = vmatprep.subr.bf16.mxu0 0
        %1580 = vmatpush2.bf16.msra.mxu0 0
        %1581 = vmatprep.subr.bf16.mxu0 0
        %1582 = vmatpush2.bf16.msra.mxu0 0
        %1583 = vmatprep.subr.bf16.mxu0 0
        %1584 = vmatpush2.bf16.msra.mxu0 0
        %1585 = vmatprep.subr.bf16.mxu0 0
        %1586 = vmatpush2.bf16.msra.mxu0 0
        %1587 = vmatprep.subr.bf16.mxu0 0
        %1588 = vmatpush2.bf16.msra.mxu0 0
        %1589 = vmatprep.subr.bf16.mxu0 0
        %1590 = vmatpush2.bf16.msra.mxu0 0
        %1591 = vmatprep.mubr.bf16.mxu0 0
        %1592 = vmatmul.mubr.bf16.gmra.mxu0 %v1414
        %v1593 = vpop.f32.mrf.mxu0
        %v1594 = vadd.f32 %v1419, %v1593
        %v1595 = vpop.f32.mrf.mxu0
        %v1596 = vadd.f32 %v1423, %v1595
        %v1597 = vpop.f32.mrf.mxu0
        %v1598 = vpop.f32.mrf.mxu0
        %1599 = vdwg.mxu0
        %1600 = vmatprep.subr.bf16.mxu0 0
        %1601 = vmatpush1.bf16.msra.mxu0 %v1534
        %1602 = vmatprep.subr.bf16.mxu0 0
        %1603 = vmatpush1.bf16.msra.mxu0 %v1531
        %1604 = vmatprep.subr.bf16.mxu0 0
        %1605 = vmatpush1.bf16.msra.mxu0 %v1528
        %1606 = vmatprep.subr.bf16.mxu0 0
        %1607 = vmatpush1.bf16.msra.mxu0 %v1525
        %1608 = vmatprep.subr.bf16.mxu0 0
        %1609 = vmatpush1.bf16.msra.mxu0 %v1522
        %1610 = vmatprep.subr.bf16.mxu0 0
        %1611 = vmatpush1.bf16.msra.mxu0 %v1519
        %1612 = vmatprep.subr.bf16.mxu0 0
        %1613 = vmatpush1.bf16.msra.mxu0 %v1516
        %1614 = vmatprep.subr.bf16.mxu0 0
        %1615 = vmatpush1.bf16.msra.mxu0 %v1513
        %1616 = vmatprep.subr.bf16.mxu0 0
        %1617 = vmatpush2.bf16.msra.mxu0 0
        %1618 = vmatprep.subr.bf16.mxu0 0
        %1619 = vmatpush2.bf16.msra.mxu0 0
        %1620 = vmatprep.subr.bf16.mxu0 0
        %1621 = vmatpush2.bf16.msra.mxu0 0
        %1622 = vmatprep.subr.bf16.mxu0 0
        %1623 = vmatpush2.bf16.msra.mxu0 0
        %1624 = vmatprep.subr.bf16.mxu0 0
        %1625 = vmatpush2.bf16.msra.mxu0 0
        %1626 = vmatprep.subr.bf16.mxu0 0
        %1627 = vmatpush2.bf16.msra.mxu0 0
        %1628 = vmatprep.subr.bf16.mxu0 0
        %1629 = vmatpush2.bf16.msra.mxu0 0
        %1630 = vmatprep.subr.bf16.mxu0 0
        %1631 = vmatpush2.bf16.msra.mxu0 0
        %1632 = vmatprep.mubr.bf16.mxu0 0
        %1633 = vmatmul.mubr.bf16.gmra.mxu0 %v1414
        %v1634 = vpop.f32.mrf.mxu0
        %v1635 = vadd.f32 %v1427, %v1634
        %v1636 = vpop.f32.mrf.mxu0
        %v1637 = vpop.f32.mrf.mxu0
        %v1638 = vpop.f32.mrf.mxu0
        %1639 = vdwg.mxu0
        %1641 = vrot.lane.b32.xlu0 %v1594, 96
        %v1642 = vpop.permute.xlu0 %1641
        %1644 = vrot.lane.b32.xlu0 %v1594, 64
        %v1645 = vpop.permute.xlu0 %1644
        %1647 = vrot.lane.b32.xlu0 %v1594, 32
        %v1648 = vpop.permute.xlu0 %1647
        %v1650 = vcombine.low %v1594, %v1645
        %v1651 = vcombine.high %v1594, %v1645
        %v1653 = vunpack.c.l.s4 1983009808
        %v1654 = vunpack.c.0.s8 %v1653
        %v1655 = vlaneseq
        %v1656 = vshrl.u32 %v1655, 7
        %v1657 = vsub.s32 %v1654, %v1656
        %v1658 = vrot.slane %v1650, %v1657
        %v1660 = vunpack.c.l.s4 1983009808
        %v1661 = vunpack.c.0.s8 %v1660
        %v1662 = vlaneseq
        %v1663 = vshrl.u32 %v1662, 7
        %v1664 = vsub.s32 %v1661, %v1663
        %v1665 = vrot.slane %v1651, %v1664
        %v1666 = vcombine.low %v1642, %v1648
        %v1667 = vcombine.high %v1642, %v1648
        %v1669 = vunpack.c.l.s4 1983009808
        %v1670 = vunpack.c.0.s8 %v1669
        %v1671 = vlaneseq
        %v1672 = vshrl.u32 %v1671, 7
        %v1673 = vsub.s32 %v1670, %v1672
        %v1674 = vrot.slane %v1666, %v1673
        %v1676 = vunpack.c.l.s4 1983009808
        %v1677 = vunpack.c.0.s8 %v1676
        %v1678 = vlaneseq
        %v1679 = vshrl.u32 %v1678, 7
        %v1680 = vsub.s32 %v1677, %v1679
        %v1681 = vrot.slane %v1667, %v1680
        %v1682 = vcombine.low %v1658, %v1674
        %v1683 = vcombine.high %v1658, %v1674
        %v1685 = vunpack.c.l.s4 1934713408
        %v1686 = vunpack.c.0.s8 %v1685
        %v1687 = vlaneseq
        %v1688 = vshrl.u32 %v1687, 7
        %v1689 = vsub.s32 %v1686, %v1688
        %v1690 = vrot.slane %v1682, %v1689
        %v1692 = vunpack.c.l.s4 1934713408
        %v1693 = vunpack.c.0.s8 %v1692
        %v1694 = vlaneseq
        %v1695 = vshrl.u32 %v1694, 7
        %v1696 = vsub.s32 %v1693, %v1695
        %v1697 = vrot.slane %v1683, %v1696
        %v1698 = vcombine.low %v1665, %v1681
        %v1699 = vcombine.high %v1665, %v1681
        %v1701 = vunpack.c.l.s4 1934713408
        %v1702 = vunpack.c.0.s8 %v1701
        %v1703 = vlaneseq
        %v1704 = vshrl.u32 %v1703, 7
        %v1705 = vsub.s32 %v1702, %v1704
        %v1706 = vrot.slane %v1698, %v1705
        %v1708 = vunpack.c.l.s4 1934713408
        %v1709 = vunpack.c.0.s8 %v1708
        %v1710 = vlaneseq
        %v1711 = vshrl.u32 %v1710, 7
        %v1712 = vsub.s32 %v1709, %v1711
        %v1713 = vrot.slane %v1699, %v1712
        %v1714 = vcombine.high %v1690, 0.0
        %v1715 = vcombine.high %v1697, 0.0
        %v1716 = vcombine.high %v1706, 0.0
        %v1717 = vcombine.high %v1713, 0.0
        %v1718 = vpack.c.bf16 %v1690, %v1690
        %v1719 = vpack.c.bf16 %v1714, %v1714
        %v1720 = vpack.c.bf16 %v1697, %v1697
        %v1721 = vpack.c.bf16 %v1715, %v1715
        %v1722 = vpack.c.bf16 %v1706, %v1706
        %v1723 = vpack.c.bf16 %v1716, %v1716
        %v1724 = vpack.c.bf16 %v1713, %v1713
        %v1725 = vpack.c.bf16 %v1717, %v1717
        %1727 = vrot.lane.b32.xlu0 %v1596, 96
        %v1728 = vpop.permute.xlu0 %1727
        %1730 = vrot.lane.b32.xlu0 %v1596, 64
        %v1731 = vpop.permute.xlu0 %1730
        %1733 = vrot.lane.b32.xlu0 %v1596, 32
        %v1734 = vpop.permute.xlu0 %1733
        %v1736 = vcombine.low %v1596, %v1731
        %v1737 = vcombine.high %v1596, %v1731
        %v1739 = vunpack.c.l.s4 1983009808
        %v1740 = vunpack.c.0.s8 %v1739
        %v1741 = vlaneseq
        %v1742 = vshrl.u32 %v1741, 7
        %v1743 = vsub.s32 %v1740, %v1742
        %v1744 = vrot.slane %v1736, %v1743
        %v1746 = vunpack.c.l.s4 1983009808
        %v1747 = vunpack.c.0.s8 %v1746
        %v1748 = vlaneseq
        %v1749 = vshrl.u32 %v1748, 7
        %v1750 = vsub.s32 %v1747, %v1749
        %v1751 = vrot.slane %v1737, %v1750
        %v1752 = vcombine.low %v1728, %v1734
        %v1753 = vcombine.high %v1728, %v1734
        %v1755 = vunpack.c.l.s4 1983009808
        %v1756 = vunpack.c.0.s8 %v1755
        %v1757 = vlaneseq
        %v1758 = vshrl.u32 %v1757, 7
        %v1759 = vsub.s32 %v1756, %v1758
        %v1760 = vrot.slane %v1752, %v1759
        %v1762 = vunpack.c.l.s4 1983009808
        %v1763 = vunpack.c.0.s8 %v1762
        %v1764 = vlaneseq
        %v1765 = vshrl.u32 %v1764, 7
        %v1766 = vsub.s32 %v1763, %v1765
        %v1767 = vrot.slane %v1753, %v1766
        %v1768 = vcombine.low %v1744, %v1760
        %v1769 = vcombine.high %v1744, %v1760
        %v1771 = vunpack.c.l.s4 1934713408
        %v1772 = vunpack.c.0.s8 %v1771
        %v1773 = vlaneseq
        %v1774 = vshrl.u32 %v1773, 7
        %v1775 = vsub.s32 %v1772, %v1774
        %v1776 = vrot.slane %v1768, %v1775
        %v1778 = vunpack.c.l.s4 1934713408
        %v1779 = vunpack.c.0.s8 %v1778
        %v1780 = vlaneseq
        %v1781 = vshrl.u32 %v1780, 7
        %v1782 = vsub.s32 %v1779, %v1781
        %v1783 = vrot.slane %v1769, %v1782
        %v1784 = vcombine.low %v1751, %v1767
        %v1785 = vcombine.high %v1751, %v1767
        %v1787 = vunpack.c.l.s4 1934713408
        %v1788 = vunpack.c.0.s8 %v1787
        %v1789 = vlaneseq
        %v1790 = vshrl.u32 %v1789, 7
        %v1791 = vsub.s32 %v1788, %v1790
        %v1792 = vrot.slane %v1784, %v1791
        %v1794 = vunpack.c.l.s4 1934713408
        %v1795 = vunpack.c.0.s8 %v1794
        %v1796 = vlaneseq
        %v1797 = vshrl.u32 %v1796, 7
        %v1798 = vsub.s32 %v1795, %v1797
        %v1799 = vrot.slane %v1785, %v1798
        %v1800 = vcombine.high %v1776, 0.0
        %v1801 = vcombine.high %v1783, 0.0
        %v1802 = vcombine.high %v1792, 0.0
        %v1803 = vcombine.high %v1799, 0.0
        %v1804 = vpack.c.bf16 %v1776, %v1776
        %v1805 = vpack.c.bf16 %v1800, %v1800
        %v1806 = vpack.c.bf16 %v1783, %v1783
        %v1807 = vpack.c.bf16 %v1801, %v1801
        %v1808 = vpack.c.bf16 %v1792, %v1792
        %v1809 = vpack.c.bf16 %v1802, %v1802
        %v1810 = vpack.c.bf16 %v1799, %v1799
        %v1811 = vpack.c.bf16 %v1803, %v1803
        %1813 = vrot.lane.b32.xlu0 %v1635, 96
        %v1814 = vpop.permute.xlu0 %1813
        %1816 = vrot.lane.b32.xlu0 %v1635, 64
        %v1817 = vpop.permute.xlu0 %1816
        %1819 = vrot.lane.b32.xlu0 %v1635, 32
        %v1820 = vpop.permute.xlu0 %1819
        %v1822 = vcombine.low %v1635, %v1817
        %v1823 = vcombine.high %v1635, %v1817
        %v1825 = vunpack.c.l.s4 1983009808
        %v1826 = vunpack.c.0.s8 %v1825
        %v1827 = vlaneseq
        %v1828 = vshrl.u32 %v1827, 7
        %v1829 = vsub.s32 %v1826, %v1828
        %v1830 = vrot.slane %v1822, %v1829
        %v1832 = vunpack.c.l.s4 1983009808
        %v1833 = vunpack.c.0.s8 %v1832
        %v1834 = vlaneseq
        %v1835 = vshrl.u32 %v1834, 7
        %v1836 = vsub.s32 %v1833, %v1835
        %v1837 = vrot.slane %v1823, %v1836
        %v1838 = vcombine.low %v1814, %v1820
        %v1839 = vcombine.high %v1814, %v1820
        %v1841 = vunpack.c.l.s4 1983009808
        %v1842 = vunpack.c.0.s8 %v1841
        %v1843 = vlaneseq
        %v1844 = vshrl.u32 %v1843, 7
        %v1845 = vsub.s32 %v1842, %v1844
        %v1846 = vrot.slane %v1838, %v1845
        %v1848 = vunpack.c.l.s4 1983009808
        %v1849 = vunpack.c.0.s8 %v1848
        %v1850 = vlaneseq
        %v1851 = vshrl.u32 %v1850, 7
        %v1852 = vsub.s32 %v1849, %v1851
        %v1853 = vrot.slane %v1839, %v1852
        %v1854 = vcombine.low %v1830, %v1846
        %v1855 = vcombine.high %v1830, %v1846
        %v1857 = vunpack.c.l.s4 1934713408
        %v1858 = vunpack.c.0.s8 %v1857
        %v1859 = vlaneseq
        %v1860 = vshrl.u32 %v1859, 7
        %v1861 = vsub.s32 %v1858, %v1860
        %v1862 = vrot.slane %v1854, %v1861
        %v1864 = vunpack.c.l.s4 1934713408
        %v1865 = vunpack.c.0.s8 %v1864
        %v1866 = vlaneseq
        %v1867 = vshrl.u32 %v1866, 7
        %v1868 = vsub.s32 %v1865, %v1867
        %v1869 = vrot.slane %v1855, %v1868
        %v1870 = vcombine.low %v1837, %v1853
        %v1871 = vcombine.high %v1837, %v1853
        %v1873 = vunpack.c.l.s4 1934713408
        %v1874 = vunpack.c.0.s8 %v1873
        %v1875 = vlaneseq
        %v1876 = vshrl.u32 %v1875, 7
        %v1877 = vsub.s32 %v1874, %v1876
        %v1878 = vrot.slane %v1870, %v1877
        %v1880 = vunpack.c.l.s4 1934713408
        %v1881 = vunpack.c.0.s8 %v1880
        %v1882 = vlaneseq
        %v1883 = vshrl.u32 %v1882, 7
        %v1884 = vsub.s32 %v1881, %v1883
        %v1885 = vrot.slane %v1871, %v1884
        %v1886 = vcombine.high %v1862, 0.0
        %v1887 = vcombine.high %v1869, 0.0
        %v1888 = vcombine.high %v1878, 0.0
        %v1889 = vcombine.high %v1885, 0.0
        %v1890 = vpack.c.bf16 %v1862, %v1862
        %v1891 = vpack.c.bf16 %v1886, %v1886
        %v1892 = vpack.c.bf16 %v1869, %v1869
        %v1893 = vpack.c.bf16 %v1887, %v1887
        %v1894 = vpack.c.bf16 %v1878, %v1878
        %v1895 = vpack.c.bf16 %v1888, %v1888
        %v1896 = vpack.c.bf16 %v1885, %v1885
        %v1897 = vpack.c.bf16 %v1889, %v1889
        %v1898 = vcombine.low %v1718, %v1722
        %v1900 = vunpack.c.l.s4 1983009808
        %v1901 = vunpack.c.0.s8 %v1900
        %v1902 = vlaneseq
        %v1903 = vshrl.u32 %v1902, 7
        %v1904 = vsub.s32 %v1901, %v1903
        %v1905 = vrot.slane %v1898, %v1904
        %v1906 = vcombine.low %v1720, %v1724
        %v1908 = vunpack.c.l.s4 1983009808
        %v1909 = vunpack.c.0.s8 %v1908
        %v1910 = vlaneseq
        %v1911 = vshrl.u32 %v1910, 7
        %v1912 = vsub.s32 %v1909, %v1911
        %v1913 = vrot.slane %v1906, %v1912
        %v1914 = vcombine.low %v1905, %v1913
        %v1916 = vunpack.c.l.s4 1934713408
        %v1917 = vunpack.c.0.s8 %v1916
        %v1918 = vlaneseq
        %v1919 = vshrl.u32 %v1918, 7
        %v1920 = vsub.s32 %v1917, %v1919
        %v1921 = vrot.slane %v1914, %v1920
        %v1922 = vcombine.high %v1921, 0
        %v1923 = vcombine.low %v1719, %v1723
        %v1925 = vunpack.c.l.s4 1983009808
        %v1926 = vunpack.c.0.s8 %v1925
        %v1927 = vlaneseq
        %v1928 = vshrl.u32 %v1927, 7
        %v1929 = vsub.s32 %v1926, %v1928
        %v1930 = vrot.slane %v1923, %v1929
        %v1931 = vcombine.low %v1721, %v1725
        %v1933 = vunpack.c.l.s4 1983009808
        %v1934 = vunpack.c.0.s8 %v1933
        %v1935 = vlaneseq
        %v1936 = vshrl.u32 %v1935, 7
        %v1937 = vsub.s32 %v1934, %v1936
        %v1938 = vrot.slane %v1931, %v1937
        %v1939 = vcombine.low %v1930, %v1938
        %v1941 = vunpack.c.l.s4 1934713408
        %v1942 = vunpack.c.0.s8 %v1941
        %v1943 = vlaneseq
        %v1944 = vshrl.u32 %v1943, 7
        %v1945 = vsub.s32 %v1942, %v1944
        %v1946 = vrot.slane %v1939, %v1945
        %v1947 = vcombine.high %v1946, 0
        %v1950 = vpack.i.b16 %v1946, %v1921
        %v1951 = vshrl.u32 %v1921, 16
        %v1952 = vshrl.u32 %v1946, 16
        %v1953 = vpack.i.b16 %v1952, %v1951
        %v1956 = vpack.i.b16 %v1947, %v1922
        %v1957 = vshrl.u32 %v1922, 16
        %v1958 = vshrl.u32 %v1947, 16
        %v1959 = vpack.i.b16 %v1958, %v1957
        %1960 = vxpose.xlu0.c.b16.start [1/8] %v1804, 128
        %1961 = vxpose.xlu0.c.b16.cont [2/8] 0, 128
        %1962 = vxpose.xlu0.c.b16.cont [3/8] 0, 128
        %1963 = vxpose.xlu0.c.b16.cont [4/8] 0, 128
        %1964 = vxpose.xlu0.c.b16.cont [5/8] 0, 128
        %1965 = vxpose.xlu0.c.b16.cont [6/8] 0, 128
        %1966 = vxpose.xlu0.c.b16.cont [7/8] 0, 128
        %1967 = vxpose.xlu0.c.b16.end [8/8] 0, 128
        %v1968 = vpop.trf.xlu0
        %v1969 = vpop.trf.xlu0
        %v1970 = vpop.trf.xlu0
        %v1971 = vpop.trf.xlu0
        %v1972 = vpop.trf.xlu0
        %v1973 = vpop.trf.xlu0
        %v1974 = vpop.trf.xlu0
        %v1975 = vpop.trf.xlu0
        %1976 = vxpose.xlu0.c.b16.start [1/8] %v1805, 128
        %1977 = vxpose.xlu0.c.b16.cont [2/8] 0, 128
        %1978 = vxpose.xlu0.c.b16.cont [3/8] 0, 128
        %1979 = vxpose.xlu0.c.b16.cont [4/8] 0, 128
        %1980 = vxpose.xlu0.c.b16.cont [5/8] 0, 128
        %1981 = vxpose.xlu0.c.b16.cont [6/8] 0, 128
        %1982 = vxpose.xlu0.c.b16.cont [7/8] 0, 128
        %1983 = vxpose.xlu0.c.b16.end [8/8] 0, 128
        %v1984 = vpop.trf.xlu0
        %v1985 = vpop.trf.xlu0
        %v1986 = vpop.trf.xlu0
        %v1987 = vpop.trf.xlu0
        %v1988 = vpop.trf.xlu0
        %v1989 = vpop.trf.xlu0
        %v1990 = vpop.trf.xlu0
        %v1991 = vpop.trf.xlu0
        %1992 = vxpose.xlu0.c.b16.start [1/8] %v1806, 128
        %1993 = vxpose.xlu0.c.b16.cont [2/8] 0, 128
        %1994 = vxpose.xlu0.c.b16.cont [3/8] 0, 128
        %1995 = vxpose.xlu0.c.b16.cont [4/8] 0, 128
        %1996 = vxpose.xlu0.c.b16.cont [5/8] 0, 128
        %1997 = vxpose.xlu0.c.b16.cont [6/8] 0, 128
        %1998 = vxpose.xlu0.c.b16.cont [7/8] 0, 128
        %1999 = vxpose.xlu0.c.b16.end [8/8] 0, 128
        %v2000 = vpop.trf.xlu0
        %v2001 = vpop.trf.xlu0
        %v2002 = vpop.trf.xlu0
        %v2003 = vpop.trf.xlu0
        %v2004 = vpop.trf.xlu0
        %v2005 = vpop.trf.xlu0
        %v2006 = vpop.trf.xlu0
        %v2007 = vpop.trf.xlu0
        %2008 = vxpose.xlu0.c.b16.start [1/8] %v1807, 128
        %2009 = vxpose.xlu0.c.b16.cont [2/8] 0, 128
        %2010 = vxpose.xlu0.c.b16.cont [3/8] 0, 128
        %2011 = vxpose.xlu0.c.b16.cont [4/8] 0, 128
        %2012 = vxpose.xlu0.c.b16.cont [5/8] 0, 128
        %2013 = vxpose.xlu0.c.b16.cont [6/8] 0, 128
        %2014 = vxpose.xlu0.c.b16.cont [7/8] 0, 128
        %2015 = vxpose.xlu0.c.b16.end [8/8] 0, 128
        %v2016 = vpop.trf.xlu0
        %v2017 = vpop.trf.xlu0
        %v2018 = vpop.trf.xlu0
        %v2019 = vpop.trf.xlu0
        %v2020 = vpop.trf.xlu0
        %v2021 = vpop.trf.xlu0
        %v2022 = vpop.trf.xlu0
        %v2023 = vpop.trf.xlu0
        %2024 = vxpose.xlu0.c.b16.start [1/8] %v1808, 128
        %2025 = vxpose.xlu0.c.b16.cont [2/8] 0, 128
        %2026 = vxpose.xlu0.c.b16.cont [3/8] 0, 128
        %2027 = vxpose.xlu0.c.b16.cont [4/8] 0, 128
        %2028 = vxpose.xlu0.c.b16.cont [5/8] 0, 128
        %2029 = vxpose.xlu0.c.b16.cont [6/8] 0, 128
        %2030 = vxpose.xlu0.c.b16.cont [7/8] 0, 128
        %2031 = vxpose.xlu0.c.b16.end [8/8] 0, 128
        %v2032 = vpop.trf.xlu0
        %v2033 = vpop.trf.xlu0
        %v2034 = vpop.trf.xlu0
        %v2035 = vpop.trf.xlu0
        %v2036 = vpop.trf.xlu0
        %v2037 = vpop.trf.xlu0
        %v2038 = vpop.trf.xlu0
        %v2039 = vpop.trf.xlu0
        %2040 = vxpose.xlu0.c.b16.start [1/8] %v1809, 128
        %2041 = vxpose.xlu0.c.b16.cont [2/8] 0, 128
        %2042 = vxpose.xlu0.c.b16.cont [3/8] 0, 128
        %2043 = vxpose.xlu0.c.b16.cont [4/8] 0, 128
        %2044 = vxpose.xlu0.c.b16.cont [5/8] 0, 128
        %2045 = vxpose.xlu0.c.b16.cont [6/8] 0, 128
        %2046 = vxpose.xlu0.c.b16.cont [7/8] 0, 128
        %2047 = vxpose.xlu0.c.b16.end [8/8] 0, 128
        %v2048 = vpop.trf.xlu0
        %v2049 = vpop.trf.xlu0
        %v2050 = vpop.trf.xlu0
        %v2051 = vpop.trf.xlu0
        %v2052 = vpop.trf.xlu0
        %v2053 = vpop.trf.xlu0
        %v2054 = vpop.trf.xlu0
        %v2055 = vpop.trf.xlu0
        %2056 = vxpose.xlu0.c.b16.start [1/8] %v1810, 128
        %2057 = vxpose.xlu0.c.b16.cont [2/8] 0, 128
        %2058 = vxpose.xlu0.c.b16.cont [3/8] 0, 128
        %2059 = vxpose.xlu0.c.b16.cont [4/8] 0, 128
        %2060 = vxpose.xlu0.c.b16.cont [5/8] 0, 128
        %2061 = vxpose.xlu0.c.b16.cont [6/8] 0, 128
        %2062 = vxpose.xlu0.c.b16.cont [7/8] 0, 128
        %2063 = vxpose.xlu0.c.b16.end [8/8] 0, 128
        %v2064 = vpop.trf.xlu0
        %v2065 = vpop.trf.xlu0
        %v2066 = vpop.trf.xlu0
        %v2067 = vpop.trf.xlu0
        %v2068 = vpop.trf.xlu0
        %v2069 = vpop.trf.xlu0
        %v2070 = vpop.trf.xlu0
        %v2071 = vpop.trf.xlu0
        %2072 = vxpose.xlu0.c.b16.start [1/8] %v1811, 128
        %2073 = vxpose.xlu0.c.b16.cont [2/8] 0, 128
        %2074 = vxpose.xlu0.c.b16.cont [3/8] 0, 128
        %2075 = vxpose.xlu0.c.b16.cont [4/8] 0, 128
        %2076 = vxpose.xlu0.c.b16.cont [5/8] 0, 128
        %2077 = vxpose.xlu0.c.b16.cont [6/8] 0, 128
        %2078 = vxpose.xlu0.c.b16.cont [7/8] 0, 128
        %2079 = vxpose.xlu0.c.b16.end [8/8] 0, 128
        %v2080 = vpop.trf.xlu0
        %v2081 = vpop.trf.xlu0
        %v2082 = vpop.trf.xlu0
        %v2083 = vpop.trf.xlu0
        %v2084 = vpop.trf.xlu0
        %v2085 = vpop.trf.xlu0
        %v2086 = vpop.trf.xlu0
        %v2087 = vpop.trf.xlu0
        %v2090 = vpack.i.b16 %v1984, %v1968
        %v2092 = vshrl.u32 %v1968, 16
        %v2093 = vshrl.u32 %v1984, 16
        %v2094 = vpack.i.b16 %v2093, %v2092
        %v2098 = vpack.i.b16 %v2016, %v2000
        %v2100 = vshrl.u32 %v2000, 16
        %v2101 = vshrl.u32 %v2016, 16
        %v2102 = vpack.i.b16 %v2101, %v2100
        %v2106 = vpack.i.b16 %v2048, %v2032
        %v2108 = vshrl.u32 %v2032, 16
        %v2109 = vshrl.u32 %v2048, 16
        %v2110 = vpack.i.b16 %v2109, %v2108
        %v2114 = vpack.i.b16 %v2080, %v2064
        %v2116 = vshrl.u32 %v2064, 16
        %v2117 = vshrl.u32 %v2080, 16
        %v2118 = vpack.i.b16 %v2117, %v2116
        %v2122 = vpack.i.b16 %v1985, %v1969
        %v2124 = vshrl.u32 %v1969, 16
        %v2125 = vshrl.u32 %v1985, 16
        %v2126 = vpack.i.b16 %v2125, %v2124
        %v2130 = vpack.i.b16 %v2017, %v2001
        %v2132 = vshrl.u32 %v2001, 16
        %v2133 = vshrl.u32 %v2017, 16
        %v2134 = vpack.i.b16 %v2133, %v2132
        %v2138 = vpack.i.b16 %v2049, %v2033
        %v2140 = vshrl.u32 %v2033, 16
        %v2141 = vshrl.u32 %v2049, 16
        %v2142 = vpack.i.b16 %v2141, %v2140
        %v2146 = vpack.i.b16 %v2081, %v2065
        %v2148 = vshrl.u32 %v2065, 16
        %v2149 = vshrl.u32 %v2081, 16
        %v2150 = vpack.i.b16 %v2149, %v2148
        %v2152 = vcombine.low %v2090, %v2106
        %v2153 = vcombine.high %v2090, %v2106
        %v2155 = vunpack.c.l.s4 1983009808
        %v2156 = vunpack.c.0.s8 %v2155
        %v2157 = vlaneseq
        %v2158 = vshrl.u32 %v2157, 7
        %v2159 = vsub.s32 %v2156, %v2158
        %v2160 = vrot.slane %v2152, %v2159
        %v2162 = vunpack.c.l.s4 1983009808
        %v2163 = vunpack.c.0.s8 %v2162
        %v2164 = vlaneseq
        %v2165 = vshrl.u32 %v2164, 7
        %v2166 = vsub.s32 %v2163, %v2165
        %v2167 = vrot.slane %v2153, %v2166
        %v2168 = vcombine.low %v2098, %v2114
        %v2169 = vcombine.high %v2098, %v2114
        %v2171 = vunpack.c.l.s4 1983009808
        %v2172 = vunpack.c.0.s8 %v2171
        %v2173 = vlaneseq
        %v2174 = vshrl.u32 %v2173, 7
        %v2175 = vsub.s32 %v2172, %v2174
        %v2176 = vrot.slane %v2168, %v2175
        %v2178 = vunpack.c.l.s4 1983009808
        %v2179 = vunpack.c.0.s8 %v2178
        %v2180 = vlaneseq
        %v2181 = vshrl.u32 %v2180, 7
        %v2182 = vsub.s32 %v2179, %v2181
        %v2183 = vrot.slane %v2169, %v2182
        %v2184 = vcombine.low %v2160, %v2176
        %v2185 = vcombine.high %v2160, %v2176
        %v2187 = vunpack.c.l.s4 1934713408
        %v2188 = vunpack.c.0.s8 %v2187
        %v2189 = vlaneseq
        %v2190 = vshrl.u32 %v2189, 7
        %v2191 = vsub.s32 %v2188, %v2190
        %v2192 = vrot.slane %v2184, %v2191
        %v2194 = vunpack.c.l.s4 1934713408
        %v2195 = vunpack.c.0.s8 %v2194
        %v2196 = vlaneseq
        %v2197 = vshrl.u32 %v2196, 7
        %v2198 = vsub.s32 %v2195, %v2197
        %v2199 = vrot.slane %v2185, %v2198
        %v2200 = vcombine.low %v2167, %v2183
        %v2201 = vcombine.high %v2167, %v2183
        %v2203 = vunpack.c.l.s4 1934713408
        %v2204 = vunpack.c.0.s8 %v2203
        %v2205 = vlaneseq
        %v2206 = vshrl.u32 %v2205, 7
        %v2207 = vsub.s32 %v2204, %v2206
        %v2208 = vrot.slane %v2200, %v2207
        %v2210 = vunpack.c.l.s4 1934713408
        %v2211 = vunpack.c.0.s8 %v2210
        %v2212 = vlaneseq
        %v2213 = vshrl.u32 %v2212, 7
        %v2214 = vsub.s32 %v2211, %v2213
        %v2215 = vrot.slane %v2201, %v2214
        %v2216 = vcombine.high %v2192, 0
        %v2217 = vcombine.high %v2199, 0
        %v2218 = vcombine.high %v2208, 0
        %v2219 = vcombine.high %v2215, 0
        %v2220 = vcombine.low %v2094, %v2110
        %v2221 = vcombine.high %v2094, %v2110
        %v2223 = vunpack.c.l.s4 1983009808
        %v2224 = vunpack.c.0.s8 %v2223
        %v2225 = vlaneseq
        %v2226 = vshrl.u32 %v2225, 7
        %v2227 = vsub.s32 %v2224, %v2226
        %v2228 = vrot.slane %v2220, %v2227
        %v2230 = vunpack.c.l.s4 1983009808
        %v2231 = vunpack.c.0.s8 %v2230
        %v2232 = vlaneseq
        %v2233 = vshrl.u32 %v2232, 7
        %v2234 = vsub.s32 %v2231, %v2233
        %v2235 = vrot.slane %v2221, %v2234
        %v2236 = vcombine.low %v2102, %v2118
        %v2237 = vcombine.high %v2102, %v2118
        %v2239 = vunpack.c.l.s4 1983009808
        %v2240 = vunpack.c.0.s8 %v2239
        %v2241 = vlaneseq
        %v2242 = vshrl.u32 %v2241, 7
        %v2243 = vsub.s32 %v2240, %v2242
        %v2244 = vrot.slane %v2236, %v2243
        %v2246 = vunpack.c.l.s4 1983009808
        %v2247 = vunpack.c.0.s8 %v2246
        %v2248 = vlaneseq
        %v2249 = vshrl.u32 %v2248, 7
        %v2250 = vsub.s32 %v2247, %v2249
        %v2251 = vrot.slane %v2237, %v2250
        %v2252 = vcombine.low %v2228, %v2244
        %v2253 = vcombine.high %v2228, %v2244
        %v2255 = vunpack.c.l.s4 1934713408
        %v2256 = vunpack.c.0.s8 %v2255
        %v2257 = vlaneseq
        %v2258 = vshrl.u32 %v2257, 7
        %v2259 = vsub.s32 %v2256, %v2258
        %v2260 = vrot.slane %v2252, %v2259
        %v2262 = vunpack.c.l.s4 1934713408
        %v2263 = vunpack.c.0.s8 %v2262
        %v2264 = vlaneseq
        %v2265 = vshrl.u32 %v2264, 7
        %v2266 = vsub.s32 %v2263, %v2265
        %v2267 = vrot.slane %v2253, %v2266
        %v2268 = vcombine.low %v2235, %v2251
        %v2269 = vcombine.high %v2235, %v2251
        %v2271 = vunpack.c.l.s4 1934713408
        %v2272 = vunpack.c.0.s8 %v2271
        %v2273 = vlaneseq
        %v2274 = vshrl.u32 %v2273, 7
        %v2275 = vsub.s32 %v2272, %v2274
        %v2276 = vrot.slane %v2268, %v2275
        %v2278 = vunpack.c.l.s4 1934713408
        %v2279 = vunpack.c.0.s8 %v2278
        %v2280 = vlaneseq
        %v2281 = vshrl.u32 %v2280, 7
        %v2282 = vsub.s32 %v2279, %v2281
        %v2283 = vrot.slane %v2269, %v2282
        %v2284 = vcombine.high %v2260, 0
        %v2285 = vcombine.high %v2267, 0
        %v2286 = vcombine.high %v2276, 0
        %v2287 = vcombine.high %v2283, 0
        %v2288 = vcombine.low %v2122, %v2138
        %v2289 = vcombine.high %v2122, %v2138
        %v2291 = vunpack.c.l.s4 1983009808
        %v2292 = vunpack.c.0.s8 %v2291
        %v2293 = vlaneseq
        %v2294 = vshrl.u32 %v2293, 7
        %v2295 = vsub.s32 %v2292, %v2294
        %v2296 = vrot.slane %v2288, %v2295
        %v2298 = vunpack.c.l.s4 1983009808
        %v2299 = vunpack.c.0.s8 %v2298
        %v2300 = vlaneseq
        %v2301 = vshrl.u32 %v2300, 7
        %v2302 = vsub.s32 %v2299, %v2301
        %v2303 = vrot.slane %v2289, %v2302
        %v2304 = vcombine.low %v2130, %v2146
        %v2305 = vcombine.high %v2130, %v2146
        %v2307 = vunpack.c.l.s4 1983009808
        %v2308 = vunpack.c.0.s8 %v2307
        %v2309 = vlaneseq
        %v2310 = vshrl.u32 %v2309, 7
        %v2311 = vsub.s32 %v2308, %v2310
        %v2312 = vrot.slane %v2304, %v2311
        %v2314 = vunpack.c.l.s4 1983009808
        %v2315 = vunpack.c.0.s8 %v2314
        %v2316 = vlaneseq
        %v2317 = vshrl.u32 %v2316, 7
        %v2318 = vsub.s32 %v2315, %v2317
        %v2319 = vrot.slane %v2305, %v2318
        %v2320 = vcombine.low %v2296, %v2312
        %v2321 = vcombine.high %v2296, %v2312
        %v2323 = vunpack.c.l.s4 1934713408
        %v2324 = vunpack.c.0.s8 %v2323
        %v2325 = vlaneseq
        %v2326 = vshrl.u32 %v2325, 7
        %v2327 = vsub.s32 %v2324, %v2326
        %v2328 = vrot.slane %v2320, %v2327
        %v2330 = vunpack.c.l.s4 1934713408
        %v2331 = vunpack.c.0.s8 %v2330
        %v2332 = vlaneseq
        %v2333 = vshrl.u32 %v2332, 7
        %v2334 = vsub.s32 %v2331, %v2333
        %v2335 = vrot.slane %v2321, %v2334
        %v2336 = vcombine.low %v2303, %v2319
        %v2337 = vcombine.high %v2303, %v2319
        %v2339 = vunpack.c.l.s4 1934713408
        %v2340 = vunpack.c.0.s8 %v2339
        %v2341 = vlaneseq
        %v2342 = vshrl.u32 %v2341, 7
        %v2343 = vsub.s32 %v2340, %v2342
        %v2344 = vrot.slane %v2336, %v2343
        %v2346 = vunpack.c.l.s4 1934713408
        %v2347 = vunpack.c.0.s8 %v2346
        %v2348 = vlaneseq
        %v2349 = vshrl.u32 %v2348, 7
        %v2350 = vsub.s32 %v2347, %v2349
        %v2351 = vrot.slane %v2337, %v2350
        %v2352 = vcombine.high %v2328, 0
        %v2353 = vcombine.high %v2335, 0
        %v2354 = vcombine.high %v2344, 0
        %v2355 = vcombine.high %v2351, 0
        %v2356 = vcombine.low %v2126, %v2142
        %v2357 = vcombine.high %v2126, %v2142
        %v2359 = vunpack.c.l.s4 1983009808
        %v2360 = vunpack.c.0.s8 %v2359
        %v2361 = vlaneseq
        %v2362 = vshrl.u32 %v2361, 7
        %v2363 = vsub.s32 %v2360, %v2362
        %v2364 = vrot.slane %v2356, %v2363
        %v2366 = vunpack.c.l.s4 1983009808
        %v2367 = vunpack.c.0.s8 %v2366
        %v2368 = vlaneseq
        %v2369 = vshrl.u32 %v2368, 7
        %v2370 = vsub.s32 %v2367, %v2369
        %v2371 = vrot.slane %v2357, %v2370
        %v2372 = vcombine.low %v2134, %v2150
        %v2373 = vcombine.high %v2134, %v2150
        %v2375 = vunpack.c.l.s4 1983009808
        %v2376 = vunpack.c.0.s8 %v2375
        %v2377 = vlaneseq
        %v2378 = vshrl.u32 %v2377, 7
        %v2379 = vsub.s32 %v2376, %v2378
        %v2380 = vrot.slane %v2372, %v2379
        %v2382 = vunpack.c.l.s4 1983009808
        %v2383 = vunpack.c.0.s8 %v2382
        %v2384 = vlaneseq
        %v2385 = vshrl.u32 %v2384, 7
        %v2386 = vsub.s32 %v2383, %v2385
        %v2387 = vrot.slane %v2373, %v2386
        %v2388 = vcombine.low %v2364, %v2380
        %v2389 = vcombine.high %v2364, %v2380
        %v2391 = vunpack.c.l.s4 1934713408
        %v2392 = vunpack.c.0.s8 %v2391
        %v2393 = vlaneseq
        %v2394 = vshrl.u32 %v2393, 7
        %v2395 = vsub.s32 %v2392, %v2394
        %v2396 = vrot.slane %v2388, %v2395
        %v2398 = vunpack.c.l.s4 1934713408
        %v2399 = vunpack.c.0.s8 %v2398
        %v2400 = vlaneseq
        %v2401 = vshrl.u32 %v2400, 7
        %v2402 = vsub.s32 %v2399, %v2401
        %v2403 = vrot.slane %v2389, %v2402
        %v2404 = vcombine.low %v2371, %v2387
        %v2405 = vcombine.high %v2371, %v2387
        %v2407 = vunpack.c.l.s4 1934713408
        %v2408 = vunpack.c.0.s8 %v2407
        %v2409 = vlaneseq
        %v2410 = vshrl.u32 %v2409, 7
        %v2411 = vsub.s32 %v2408, %v2410
        %v2412 = vrot.slane %v2404, %v2411
        %v2414 = vunpack.c.l.s4 1934713408
        %v2415 = vunpack.c.0.s8 %v2414
        %v2416 = vlaneseq
        %v2417 = vshrl.u32 %v2416, 7
        %v2418 = vsub.s32 %v2415, %v2417
        %v2419 = vrot.slane %v2405, %v2418
        %v2420 = vcombine.high %v2396, 0
        %v2421 = vcombine.high %v2403, 0
        %v2422 = vcombine.high %v2412, 0
        %v2423 = vcombine.high %v2419, 0
        %2424 = vxpose.xlu0.c.b16.start [1/8] %v2192, 128
        %2425 = vxpose.xlu0.c.b16.cont [2/8] 0, 128
        %2426 = vxpose.xlu0.c.b16.cont [3/8] 0, 128
        %2427 = vxpose.xlu0.c.b16.cont [4/8] 0, 128
        %2428 = vxpose.xlu0.c.b16.cont [5/8] 0, 128
        %2429 = vxpose.xlu0.c.b16.cont [6/8] 0, 128
        %2430 = vxpose.xlu0.c.b16.cont [7/8] 0, 128
        %2431 = vxpose.xlu0.c.b16.end [8/8] 0, 128
        %v2432 = vpop.trf.xlu0
        %v2433 = vpop.trf.xlu0
        %v2434 = vpop.trf.xlu0
        %v2435 = vpop.trf.xlu0
        %v2436 = vpop.trf.xlu0
        %v2437 = vpop.trf.xlu0
        %v2438 = vpop.trf.xlu0
        %v2439 = vpop.trf.xlu0
        %2440 = vxpose.xlu0.c.b16.start [1/8] %v2260, 128
        %2441 = vxpose.xlu0.c.b16.cont [2/8] 0, 128
        %2442 = vxpose.xlu0.c.b16.cont [3/8] 0, 128
        %2443 = vxpose.xlu0.c.b16.cont [4/8] 0, 128
        %2444 = vxpose.xlu0.c.b16.cont [5/8] 0, 128
        %2445 = vxpose.xlu0.c.b16.cont [6/8] 0, 128
        %2446 = vxpose.xlu0.c.b16.cont [7/8] 0, 128
        %2447 = vxpose.xlu0.c.b16.end [8/8] 0, 128
        %v2448 = vpop.trf.xlu0
        %v2449 = vpop.trf.xlu0
        %v2450 = vpop.trf.xlu0
        %v2451 = vpop.trf.xlu0
        %v2452 = vpop.trf.xlu0
        %v2453 = vpop.trf.xlu0
        %v2454 = vpop.trf.xlu0
        %v2455 = vpop.trf.xlu0
        %2456 = vxpose.xlu0.c.b16.start [1/8] %v2216, 128
        %2457 = vxpose.xlu0.c.b16.cont [2/8] 0, 128
        %2458 = vxpose.xlu0.c.b16.cont [3/8] 0, 128
        %2459 = vxpose.xlu0.c.b16.cont [4/8] 0, 128
        %2460 = vxpose.xlu0.c.b16.cont [5/8] 0, 128
        %2461 = vxpose.xlu0.c.b16.cont [6/8] 0, 128
        %2462 = vxpose.xlu0.c.b16.cont [7/8] 0, 128
        %2463 = vxpose.xlu0.c.b16.end [8/8] 0, 128
        %v2464 = vpop.trf.xlu0
        %v2465 = vpop.trf.xlu0
        %v2466 = vpop.trf.xlu0
        %v2467 = vpop.trf.xlu0
        %v2468 = vpop.trf.xlu0
        %v2469 = vpop.trf.xlu0
        %v2470 = vpop.trf.xlu0
        %v2471 = vpop.trf.xlu0
        %2472 = vxpose.xlu0.c.b16.start [1/8] %v2284, 128
        %2473 = vxpose.xlu0.c.b16.cont [2/8] 0, 128
        %2474 = vxpose.xlu0.c.b16.cont [3/8] 0, 128
        %2475 = vxpose.xlu0.c.b16.cont [4/8] 0, 128
        %2476 = vxpose.xlu0.c.b16.cont [5/8] 0, 128
        %2477 = vxpose.xlu0.c.b16.cont [6/8] 0, 128
        %2478 = vxpose.xlu0.c.b16.cont [7/8] 0, 128
        %2479 = vxpose.xlu0.c.b16.end [8/8] 0, 128
        %v2480 = vpop.trf.xlu0
        %v2481 = vpop.trf.xlu0
        %v2482 = vpop.trf.xlu0
        %v2483 = vpop.trf.xlu0
        %v2484 = vpop.trf.xlu0
        %v2485 = vpop.trf.xlu0
        %v2486 = vpop.trf.xlu0
        %v2487 = vpop.trf.xlu0
        %2488 = vxpose.xlu0.c.b16.start [1/8] %v2199, 128
        %2489 = vxpose.xlu0.c.b16.cont [2/8] 0, 128
        %2490 = vxpose.xlu0.c.b16.cont [3/8] 0, 128
        %2491 = vxpose.xlu0.c.b16.cont [4/8] 0, 128
        %2492 = vxpose.xlu0.c.b16.cont [5/8] 0, 128
        %2493 = vxpose.xlu0.c.b16.cont [6/8] 0, 128
        %2494 = vxpose.xlu0.c.b16.cont [7/8] 0, 128
        %2495 = vxpose.xlu0.c.b16.end [8/8] 0, 128
        %v2496 = vpop.trf.xlu0
        %v2497 = vpop.trf.xlu0
        %v2498 = vpop.trf.xlu0
        %v2499 = vpop.trf.xlu0
        %v2500 = vpop.trf.xlu0
        %v2501 = vpop.trf.xlu0
        %v2502 = vpop.trf.xlu0
        %v2503 = vpop.trf.xlu0
        %2504 = vxpose.xlu0.c.b16.start [1/8] %v2267, 128
        %2505 = vxpose.xlu0.c.b16.cont [2/8] 0, 128
        %2506 = vxpose.xlu0.c.b16.cont [3/8] 0, 128
        %2507 = vxpose.xlu0.c.b16.cont [4/8] 0, 128
        %2508 = vxpose.xlu0.c.b16.cont [5/8] 0, 128
        %2509 = vxpose.xlu0.c.b16.cont [6/8] 0, 128
        %2510 = vxpose.xlu0.c.b16.cont [7/8] 0, 128
        %2511 = vxpose.xlu0.c.b16.end [8/8] 0, 128
        %v2512 = vpop.trf.xlu0
        %v2513 = vpop.trf.xlu0
        %v2514 = vpop.trf.xlu0
        %v2515 = vpop.trf.xlu0
        %v2516 = vpop.trf.xlu0
        %v2517 = vpop.trf.xlu0
        %v2518 = vpop.trf.xlu0
        %v2519 = vpop.trf.xlu0
        %2520 = vxpose.xlu0.c.b16.start [1/8] %v2217, 128
        %2521 = vxpose.xlu0.c.b16.cont [2/8] 0, 128
        %2522 = vxpose.xlu0.c.b16.cont [3/8] 0, 128
        %2523 = vxpose.xlu0.c.b16.cont [4/8] 0, 128
        %2524 = vxpose.xlu0.c.b16.cont [5/8] 0, 128
        %2525 = vxpose.xlu0.c.b16.cont [6/8] 0, 128
        %2526 = vxpose.xlu0.c.b16.cont [7/8] 0, 128
        %2527 = vxpose.xlu0.c.b16.end [8/8] 0, 128
        %v2528 = vpop.trf.xlu0
        %v2529 = vpop.trf.xlu0
        %v2530 = vpop.trf.xlu0
        %v2531 = vpop.trf.xlu0
        %v2532 = vpop.trf.xlu0
        %v2533 = vpop.trf.xlu0
        %v2534 = vpop.trf.xlu0
        %v2535 = vpop.trf.xlu0
        %2536 = vxpose.xlu0.c.b16.start [1/8] %v2285, 128
        %2537 = vxpose.xlu0.c.b16.cont [2/8] 0, 128
        %2538 = vxpose.xlu0.c.b16.cont [3/8] 0, 128
        %2539 = vxpose.xlu0.c.b16.cont [4/8] 0, 128
        %2540 = vxpose.xlu0.c.b16.cont [5/8] 0, 128
        %2541 = vxpose.xlu0.c.b16.cont [6/8] 0, 128
        %2542 = vxpose.xlu0.c.b16.cont [7/8] 0, 128
        %2543 = vxpose.xlu0.c.b16.end [8/8] 0, 128
        %v2544 = vpop.trf.xlu0
        %v2545 = vpop.trf.xlu0
        %v2546 = vpop.trf.xlu0
        %v2547 = vpop.trf.xlu0
        %v2548 = vpop.trf.xlu0
        %v2549 = vpop.trf.xlu0
        %v2550 = vpop.trf.xlu0
        %v2551 = vpop.trf.xlu0
        %2552 = vxpose.xlu0.c.b16.start [1/8] %v2208, 128
        %2553 = vxpose.xlu0.c.b16.cont [2/8] 0, 128
        %2554 = vxpose.xlu0.c.b16.cont [3/8] 0, 128
        %2555 = vxpose.xlu0.c.b16.cont [4/8] 0, 128
        %2556 = vxpose.xlu0.c.b16.cont [5/8] 0, 128
        %2557 = vxpose.xlu0.c.b16.cont [6/8] 0, 128
        %2558 = vxpose.xlu0.c.b16.cont [7/8] 0, 128
        %2559 = vxpose.xlu0.c.b16.end [8/8] 0, 128
        %v2560 = vpop.trf.xlu0
        %v2561 = vpop.trf.xlu0
        %v2562 = vpop.trf.xlu0
        %v2563 = vpop.trf.xlu0
        %v2564 = vpop.trf.xlu0
        %v2565 = vpop.trf.xlu0
        %v2566 = vpop.trf.xlu0
        %v2567 = vpop.trf.xlu0
        %2568 = vxpose.xlu0.c.b16.start [1/8] %v2276, 128
        %2569 = vxpose.xlu0.c.b16.cont [2/8] 0, 128
        %2570 = vxpose.xlu0.c.b16.cont [3/8] 0, 128
        %2571 = vxpose.xlu0.c.b16.cont [4/8] 0, 128
        %2572 = vxpose.xlu0.c.b16.cont [5/8] 0, 128
        %2573 = vxpose.xlu0.c.b16.cont [6/8] 0, 128
        %2574 = vxpose.xlu0.c.b16.cont [7/8] 0, 128
        %2575 = vxpose.xlu0.c.b16.end [8/8] 0, 128
        %v2576 = vpop.trf.xlu0
        %v2577 = vpop.trf.xlu0
        %v2578 = vpop.trf.xlu0
        %v2579 = vpop.trf.xlu0
        %v2580 = vpop.trf.xlu0
        %v2581 = vpop.trf.xlu0
        %v2582 = vpop.trf.xlu0
        %v2583 = vpop.trf.xlu0
        %2584 = vxpose.xlu0.c.b16.start [1/8] %v2218, 128
        %2585 = vxpose.xlu0.c.b16.cont [2/8] 0, 128
        %2586 = vxpose.xlu0.c.b16.cont [3/8] 0, 128
        %2587 = vxpose.xlu0.c.b16.cont [4/8] 0, 128
        %2588 = vxpose.xlu0.c.b16.cont [5/8] 0, 128
        %2589 = vxpose.xlu0.c.b16.cont [6/8] 0, 128
        %2590 = vxpose.xlu0.c.b16.cont [7/8] 0, 128
        %2591 = vxpose.xlu0.c.b16.end [8/8] 0, 128
        %v2592 = vpop.trf.xlu0
        %v2593 = vpop.trf.xlu0
        %v2594 = vpop.trf.xlu0
        %v2595 = vpop.trf.xlu0
        %v2596 = vpop.trf.xlu0
        %v2597 = vpop.trf.xlu0
        %v2598 = vpop.trf.xlu0
        %v2599 = vpop.trf.xlu0
        %2600 = vxpose.xlu0.c.b16.start [1/8] %v2286, 128
        %2601 = vxpose.xlu0.c.b16.cont [2/8] 0, 128
        %2602 = vxpose.xlu0.c.b16.cont [3/8] 0, 128
        %2603 = vxpose.xlu0.c.b16.cont [4/8] 0, 128
        %2604 = vxpose.xlu0.c.b16.cont [5/8] 0, 128
        %2605 = vxpose.xlu0.c.b16.cont [6/8] 0, 128
        %2606 = vxpose.xlu0.c.b16.cont [7/8] 0, 128
        %2607 = vxpose.xlu0.c.b16.end [8/8] 0, 128
        %v2608 = vpop.trf.xlu0
        %v2609 = vpop.trf.xlu0
        %v2610 = vpop.trf.xlu0
        %v2611 = vpop.trf.xlu0
        %v2612 = vpop.trf.xlu0
        %v2613 = vpop.trf.xlu0
        %v2614 = vpop.trf.xlu0
        %v2615 = vpop.trf.xlu0
        %2616 = vxpose.xlu0.c.b16.start [1/8] %v2215, 128
        %2617 = vxpose.xlu0.c.b16.cont [2/8] 0, 128
        %2618 = vxpose.xlu0.c.b16.cont [3/8] 0, 128
        %2619 = vxpose.xlu0.c.b16.cont [4/8] 0, 128
        %2620 = vxpose.xlu0.c.b16.cont [5/8] 0, 128
        %2621 = vxpose.xlu0.c.b16.cont [6/8] 0, 128
        %2622 = vxpose.xlu0.c.b16.cont [7/8] 0, 128
        %2623 = vxpose.xlu0.c.b16.end [8/8] 0, 128
        %v2624 = vpop.trf.xlu0
        %v2625 = vpop.trf.xlu0
        %v2626 = vpop.trf.xlu0
        %v2627 = vpop.trf.xlu0
        %v2628 = vpop.trf.xlu0
        %v2629 = vpop.trf.xlu0
        %v2630 = vpop.trf.xlu0
        %v2631 = vpop.trf.xlu0
        %2632 = vxpose.xlu0.c.b16.start [1/8] %v2283, 128
        %2633 = vxpose.xlu0.c.b16.cont [2/8] 0, 128
        %2634 = vxpose.xlu0.c.b16.cont [3/8] 0, 128
        %2635 = vxpose.xlu0.c.b16.cont [4/8] 0, 128
        %2636 = vxpose.xlu0.c.b16.cont [5/8] 0, 128
        %2637 = vxpose.xlu0.c.b16.cont [6/8] 0, 128
        %2638 = vxpose.xlu0.c.b16.cont [7/8] 0, 128
        %2639 = vxpose.xlu0.c.b16.end [8/8] 0, 128
        %v2640 = vpop.trf.xlu0
        %v2641 = vpop.trf.xlu0
        %v2642 = vpop.trf.xlu0
        %v2643 = vpop.trf.xlu0
        %v2644 = vpop.trf.xlu0
        %v2645 = vpop.trf.xlu0
        %v2646 = vpop.trf.xlu0
        %v2647 = vpop.trf.xlu0
        %2648 = vxpose.xlu0.c.b16.start [1/8] %v2219, 128
        %2649 = vxpose.xlu0.c.b16.cont [2/8] 0, 128
        %2650 = vxpose.xlu0.c.b16.cont [3/8] 0, 128
        %2651 = vxpose.xlu0.c.b16.cont [4/8] 0, 128
        %2652 = vxpose.xlu0.c.b16.cont [5/8] 0, 128
        %2653 = vxpose.xlu0.c.b16.cont [6/8] 0, 128
        %2654 = vxpose.xlu0.c.b16.cont [7/8] 0, 128
        %2655 = vxpose.xlu0.c.b16.end [8/8] 0, 128
        %v2656 = vpop.trf.xlu0
        %v2657 = vpop.trf.xlu0
        %v2658 = vpop.trf.xlu0
        %v2659 = vpop.trf.xlu0
        %v2660 = vpop.trf.xlu0
        %v2661 = vpop.trf.xlu0
        %v2662 = vpop.trf.xlu0
        %v2663 = vpop.trf.xlu0
        %2664 = vxpose.xlu0.c.b16.start [1/8] %v2287, 128
        %2665 = vxpose.xlu0.c.b16.cont [2/8] 0, 128
        %2666 = vxpose.xlu0.c.b16.cont [3/8] 0, 128
        %2667 = vxpose.xlu0.c.b16.cont [4/8] 0, 128
        %2668 = vxpose.xlu0.c.b16.cont [5/8] 0, 128
        %2669 = vxpose.xlu0.c.b16.cont [6/8] 0, 128
        %2670 = vxpose.xlu0.c.b16.cont [7/8] 0, 128
        %2671 = vxpose.xlu0.c.b16.end [8/8] 0, 128
        %v2672 = vpop.trf.xlu0
        %v2673 = vpop.trf.xlu0
        %v2674 = vpop.trf.xlu0
        %v2675 = vpop.trf.xlu0
        %v2676 = vpop.trf.xlu0
        %v2677 = vpop.trf.xlu0
        %v2678 = vpop.trf.xlu0
        %v2679 = vpop.trf.xlu0
        %2680 = vxpose.xlu0.c.b16.start [1/8] %v2328, 128
        %2681 = vxpose.xlu0.c.b16.cont [2/8] 0, 128
        %2682 = vxpose.xlu0.c.b16.cont [3/8] 0, 128
        %2683 = vxpose.xlu0.c.b16.cont [4/8] 0, 128
        %2684 = vxpose.xlu0.c.b16.cont [5/8] 0, 128
        %2685 = vxpose.xlu0.c.b16.cont [6/8] 0, 128
        %2686 = vxpose.xlu0.c.b16.cont [7/8] 0, 128
        %2687 = vxpose.xlu0.c.b16.end [8/8] 0, 128
        %v2688 = vpop.trf.xlu0
        %v2689 = vpop.trf.xlu0
        %v2690 = vpop.trf.xlu0
        %v2691 = vpop.trf.xlu0
        %v2692 = vpop.trf.xlu0
        %v2693 = vpop.trf.xlu0
        %v2694 = vpop.trf.xlu0
        %v2695 = vpop.trf.xlu0
        %2696 = vxpose.xlu0.c.b16.start [1/8] %v2396, 128
        %2697 = vxpose.xlu0.c.b16.cont [2/8] 0, 128
        %2698 = vxpose.xlu0.c.b16.cont [3/8] 0, 128
        %2699 = vxpose.xlu0.c.b16.cont [4/8] 0, 128
        %2700 = vxpose.xlu0.c.b16.cont [5/8] 0, 128
        %2701 = vxpose.xlu0.c.b16.cont [6/8] 0, 128
        %2702 = vxpose.xlu0.c.b16.cont [7/8] 0, 128
        %2703 = vxpose.xlu0.c.b16.end [8/8] 0, 128
        %v2704 = vpop.trf.xlu0
        %v2705 = vpop.trf.xlu0
        %v2706 = vpop.trf.xlu0
        %v2707 = vpop.trf.xlu0
        %v2708 = vpop.trf.xlu0
        %v2709 = vpop.trf.xlu0
        %v2710 = vpop.trf.xlu0
        %v2711 = vpop.trf.xlu0
        %2712 = vxpose.xlu0.c.b16.start [1/8] %v2352, 128
        %2713 = vxpose.xlu0.c.b16.cont [2/8] 0, 128
        %2714 = vxpose.xlu0.c.b16.cont [3/8] 0, 128
        %2715 = vxpose.xlu0.c.b16.cont [4/8] 0, 128
        %2716 = vxpose.xlu0.c.b16.cont [5/8] 0, 128
        %2717 = vxpose.xlu0.c.b16.cont [6/8] 0, 128
        %2718 = vxpose.xlu0.c.b16.cont [7/8] 0, 128
        %2719 = vxpose.xlu0.c.b16.end [8/8] 0, 128
        %v2720 = vpop.trf.xlu0
        %v2721 = vpop.trf.xlu0
        %v2722 = vpop.trf.xlu0
        %v2723 = vpop.trf.xlu0
        %v2724 = vpop.trf.xlu0
        %v2725 = vpop.trf.xlu0
        %v2726 = vpop.trf.xlu0
        %v2727 = vpop.trf.xlu0
        %2728 = vxpose.xlu0.c.b16.start [1/8] %v2420, 128
        %2729 = vxpose.xlu0.c.b16.cont [2/8] 0, 128
        %2730 = vxpose.xlu0.c.b16.cont [3/8] 0, 128
        %2731 = vxpose.xlu0.c.b16.cont [4/8] 0, 128
        %2732 = vxpose.xlu0.c.b16.cont [5/8] 0, 128
        %2733 = vxpose.xlu0.c.b16.cont [6/8] 0, 128
        %2734 = vxpose.xlu0.c.b16.cont [7/8] 0, 128
        %2735 = vxpose.xlu0.c.b16.end [8/8] 0, 128
        %v2736 = vpop.trf.xlu0
        %v2737 = vpop.trf.xlu0
        %v2738 = vpop.trf.xlu0
        %v2739 = vpop.trf.xlu0
        %v2740 = vpop.trf.xlu0
        %v2741 = vpop.trf.xlu0
        %v2742 = vpop.trf.xlu0
        %v2743 = vpop.trf.xlu0
        %2744 = vxpose.xlu0.c.b16.start [1/8] %v2335, 128
        %2745 = vxpose.xlu0.c.b16.cont [2/8] 0, 128
        %2746 = vxpose.xlu0.c.b16.cont [3/8] 0, 128
        %2747 = vxpose.xlu0.c.b16.cont [4/8] 0, 128
        %2748 = vxpose.xlu0.c.b16.cont [5/8] 0, 128
        %2749 = vxpose.xlu0.c.b16.cont [6/8] 0, 128
        %2750 = vxpose.xlu0.c.b16.cont [7/8] 0, 128
        %2751 = vxpose.xlu0.c.b16.end [8/8] 0, 128
        %v2752 = vpop.trf.xlu0
        %v2753 = vpop.trf.xlu0
        %v2754 = vpop.trf.xlu0
        %v2755 = vpop.trf.xlu0
        %v2756 = vpop.trf.xlu0
        %v2757 = vpop.trf.xlu0
        %v2758 = vpop.trf.xlu0
        %v2759 = vpop.trf.xlu0
        %2760 = vxpose.xlu0.c.b16.start [1/8] %v2403, 128
        %2761 = vxpose.xlu0.c.b16.cont [2/8] 0, 128
        %2762 = vxpose.xlu0.c.b16.cont [3/8] 0, 128
        %2763 = vxpose.xlu0.c.b16.cont [4/8] 0, 128
        %2764 = vxpose.xlu0.c.b16.cont [5/8] 0, 128
        %2765 = vxpose.xlu0.c.b16.cont [6/8] 0, 128
        %2766 = vxpose.xlu0.c.b16.cont [7/8] 0, 128
        %2767 = vxpose.xlu0.c.b16.end [8/8] 0, 128
        %v2768 = vpop.trf.xlu0
        %v2769 = vpop.trf.xlu0
        %v2770 = vpop.trf.xlu0
        %v2771 = vpop.trf.xlu0
        %v2772 = vpop.trf.xlu0
        %v2773 = vpop.trf.xlu0
        %v2774 = vpop.trf.xlu0
        %v2775 = vpop.trf.xlu0
        %2776 = vxpose.xlu0.c.b16.start [1/8] %v2353, 128
        %2777 = vxpose.xlu0.c.b16.cont [2/8] 0, 128
        %2778 = vxpose.xlu0.c.b16.cont [3/8] 0, 128
        %2779 = vxpose.xlu0.c.b16.cont [4/8] 0, 128
        %2780 = vxpose.xlu0.c.b16.cont [5/8] 0, 128
        %2781 = vxpose.xlu0.c.b16.cont [6/8] 0, 128
        %2782 = vxpose.xlu0.c.b16.cont [7/8] 0, 128
        %2783 = vxpose.xlu0.c.b16.end [8/8] 0, 128
        %v2784 = vpop.trf.xlu0
        %v2785 = vpop.trf.xlu0
        %v2786 = vpop.trf.xlu0
        %v2787 = vpop.trf.xlu0
        %v2788 = vpop.trf.xlu0
        %v2789 = vpop.trf.xlu0
        %v2790 = vpop.trf.xlu0
        %v2791 = vpop.trf.xlu0
        %2792 = vxpose.xlu0.c.b16.start [1/8] %v2421, 128
        %2793 = vxpose.xlu0.c.b16.cont [2/8] 0, 128
        %2794 = vxpose.xlu0.c.b16.cont [3/8] 0, 128
        %2795 = vxpose.xlu0.c.b16.cont [4/8] 0, 128
        %2796 = vxpose.xlu0.c.b16.cont [5/8] 0, 128
        %2797 = vxpose.xlu0.c.b16.cont [6/8] 0, 128
        %2798 = vxpose.xlu0.c.b16.cont [7/8] 0, 128
        %2799 = vxpose.xlu0.c.b16.end [8/8] 0, 128
        %v2800 = vpop.trf.xlu0
        %v2801 = vpop.trf.xlu0
        %v2802 = vpop.trf.xlu0
        %v2803 = vpop.trf.xlu0
        %v2804 = vpop.trf.xlu0
        %v2805 = vpop.trf.xlu0
        %v2806 = vpop.trf.xlu0
        %v2807 = vpop.trf.xlu0
        %2808 = vxpose.xlu0.c.b16.start [1/8] %v2344, 128
        %2809 = vxpose.xlu0.c.b16.cont [2/8] 0, 128
        %2810 = vxpose.xlu0.c.b16.cont [3/8] 0, 128
        %2811 = vxpose.xlu0.c.b16.cont [4/8] 0, 128
        %2812 = vxpose.xlu0.c.b16.cont [5/8] 0, 128
        %2813 = vxpose.xlu0.c.b16.cont [6/8] 0, 128
        %2814 = vxpose.xlu0.c.b16.cont [7/8] 0, 128
        %2815 = vxpose.xlu0.c.b16.end [8/8] 0, 128
        %v2816 = vpop.trf.xlu0
        %v2817 = vpop.trf.xlu0
        %v2818 = vpop.trf.xlu0
        %v2819 = vpop.trf.xlu0
        %v2820 = vpop.trf.xlu0
        %v2821 = vpop.trf.xlu0
        %v2822 = vpop.trf.xlu0
        %v2823 = vpop.trf.xlu0
        %2824 = vxpose.xlu0.c.b16.start [1/8] %v2412, 128
        %2825 = vxpose.xlu0.c.b16.cont [2/8] 0, 128
        %2826 = vxpose.xlu0.c.b16.cont [3/8] 0, 128
        %2827 = vxpose.xlu0.c.b16.cont [4/8] 0, 128
        %2828 = vxpose.xlu0.c.b16.cont [5/8] 0, 128
        %2829 = vxpose.xlu0.c.b16.cont [6/8] 0, 128
        %2830 = vxpose.xlu0.c.b16.cont [7/8] 0, 128
        %2831 = vxpose.xlu0.c.b16.end [8/8] 0, 128
        %v2832 = vpop.trf.xlu0
        %v2833 = vpop.trf.xlu0
        %v2834 = vpop.trf.xlu0
        %v2835 = vpop.trf.xlu0
        %v2836 = vpop.trf.xlu0
        %v2837 = vpop.trf.xlu0
        %v2838 = vpop.trf.xlu0
        %v2839 = vpop.trf.xlu0
        %2840 = vxpose.xlu0.c.b16.start [1/8] %v2354, 128
        %2841 = vxpose.xlu0.c.b16.cont [2/8] 0, 128
        %2842 = vxpose.xlu0.c.b16.cont [3/8] 0, 128
        %2843 = vxpose.xlu0.c.b16.cont [4/8] 0, 128
        %2844 = vxpose.xlu0.c.b16.cont [5/8] 0, 128
        %2845 = vxpose.xlu0.c.b16.cont [6/8] 0, 128
        %2846 = vxpose.xlu0.c.b16.cont [7/8] 0, 128
        %2847 = vxpose.xlu0.c.b16.end [8/8] 0, 128
        %v2848 = vpop.trf.xlu0
        %v2849 = vpop.trf.xlu0
        %v2850 = vpop.trf.xlu0
        %v2851 = vpop.trf.xlu0
        %v2852 = vpop.trf.xlu0
        %v2853 = vpop.trf.xlu0
        %v2854 = vpop.trf.xlu0
        %v2855 = vpop.trf.xlu0
        %2856 = vxpose.xlu0.c.b16.start [1/8] %v2422, 128
        %2857 = vxpose.xlu0.c.b16.cont [2/8] 0, 128
        %2858 = vxpose.xlu0.c.b16.cont [3/8] 0, 128
        %2859 = vxpose.xlu0.c.b16.cont [4/8] 0, 128
        %2860 = vxpose.xlu0.c.b16.cont [5/8] 0, 128
        %2861 = vxpose.xlu0.c.b16.cont [6/8] 0, 128
        %2862 = vxpose.xlu0.c.b16.cont [7/8] 0, 128
        %2863 = vxpose.xlu0.c.b16.end [8/8] 0, 128
        %v2864 = vpop.trf.xlu0
        %v2865 = vpop.trf.xlu0
        %v2866 = vpop.trf.xlu0
        %v2867 = vpop.trf.xlu0
        %v2868 = vpop.trf.xlu0
        %v2869 = vpop.trf.xlu0
        %v2870 = vpop.trf.xlu0
        %v2871 = vpop.trf.xlu0
        %2872 = vxpose.xlu0.c.b16.start [1/8] %v2351, 128
        %2873 = vxpose.xlu0.c.b16.cont [2/8] 0, 128
        %2874 = vxpose.xlu0.c.b16.cont [3/8] 0, 128
        %2875 = vxpose.xlu0.c.b16.cont [4/8] 0, 128
        %2876 = vxpose.xlu0.c.b16.cont [5/8] 0, 128
        %2877 = vxpose.xlu0.c.b16.cont [6/8] 0, 128
        %2878 = vxpose.xlu0.c.b16.cont [7/8] 0, 128
        %2879 = vxpose.xlu0.c.b16.end [8/8] 0, 128
        %v2880 = vpop.trf.xlu0
        %v2881 = vpop.trf.xlu0
        %v2882 = vpop.trf.xlu0
        %v2883 = vpop.trf.xlu0
        %v2884 = vpop.trf.xlu0
        %v2885 = vpop.trf.xlu0
        %v2886 = vpop.trf.xlu0
        %v2887 = vpop.trf.xlu0
        %2888 = vxpose.xlu0.c.b16.start [1/8] %v2419, 128
        %2889 = vxpose.xlu0.c.b16.cont [2/8] 0, 128
        %2890 = vxpose.xlu0.c.b16.cont [3/8] 0, 128
        %2891 = vxpose.xlu0.c.b16.cont [4/8] 0, 128
        %2892 = vxpose.xlu0.c.b16.cont [5/8] 0, 128
        %2893 = vxpose.xlu0.c.b16.cont [6/8] 0, 128
        %2894 = vxpose.xlu0.c.b16.cont [7/8] 0, 128
        %2895 = vxpose.xlu0.c.b16.end [8/8] 0, 128
        %v2896 = vpop.trf.xlu0
        %v2897 = vpop.trf.xlu0
        %v2898 = vpop.trf.xlu0
        %v2899 = vpop.trf.xlu0
        %v2900 = vpop.trf.xlu0
        %v2901 = vpop.trf.xlu0
        %v2902 = vpop.trf.xlu0
        %v2903 = vpop.trf.xlu0
        %2904 = vxpose.xlu0.c.b16.start [1/8] %v2355, 128
        %2905 = vxpose.xlu0.c.b16.cont [2/8] 0, 128
        %2906 = vxpose.xlu0.c.b16.cont [3/8] 0, 128
        %2907 = vxpose.xlu0.c.b16.cont [4/8] 0, 128
        %2908 = vxpose.xlu0.c.b16.cont [5/8] 0, 128
        %2909 = vxpose.xlu0.c.b16.cont [6/8] 0, 128
        %2910 = vxpose.xlu0.c.b16.cont [7/8] 0, 128
        %2911 = vxpose.xlu0.c.b16.end [8/8] 0, 128
        %v2912 = vpop.trf.xlu0
        %v2913 = vpop.trf.xlu0
        %v2914 = vpop.trf.xlu0
        %v2915 = vpop.trf.xlu0
        %v2916 = vpop.trf.xlu0
        %v2917 = vpop.trf.xlu0
        %v2918 = vpop.trf.xlu0
        %v2919 = vpop.trf.xlu0
        %2920 = vxpose.xlu0.c.b16.start [1/8] %v2423, 128
        %2921 = vxpose.xlu0.c.b16.cont [2/8] 0, 128
        %2922 = vxpose.xlu0.c.b16.cont [3/8] 0, 128
        %2923 = vxpose.xlu0.c.b16.cont [4/8] 0, 128
        %2924 = vxpose.xlu0.c.b16.cont [5/8] 0, 128
        %2925 = vxpose.xlu0.c.b16.cont [6/8] 0, 128
        %2926 = vxpose.xlu0.c.b16.cont [7/8] 0, 128
        %2927 = vxpose.xlu0.c.b16.end [8/8] 0, 128
        %v2928 = vpop.trf.xlu0
        %v2929 = vpop.trf.xlu0
        %v2930 = vpop.trf.xlu0
        %v2931 = vpop.trf.xlu0
        %v2932 = vpop.trf.xlu0
        %v2933 = vpop.trf.xlu0
        %v2934 = vpop.trf.xlu0
        %v2935 = vpop.trf.xlu0
        %v2936 = vcombine.low %v2432, %v2496
        %v2938 = vunpack.c.l.s4 1983009808
        %v2939 = vunpack.c.0.s8 %v2938
        %v2940 = vlaneseq
        %v2941 = vshrl.u32 %v2940, 7
        %v2942 = vsub.s32 %v2939, %v2941
        %v2943 = vrot.slane %v2936, %v2942
        %v2944 = vcombine.low %v2464, %v2528
        %v2946 = vunpack.c.l.s4 1983009808
        %v2947 = vunpack.c.0.s8 %v2946
        %v2948 = vlaneseq
        %v2949 = vshrl.u32 %v2948, 7
        %v2950 = vsub.s32 %v2947, %v2949
        %v2951 = vrot.slane %v2944, %v2950
        %v2952 = vcombine.low %v2560, %v2624
        %v2954 = vunpack.c.l.s4 1983009808
        %v2955 = vunpack.c.0.s8 %v2954
        %v2956 = vlaneseq
        %v2957 = vshrl.u32 %v2956, 7
        %v2958 = vsub.s32 %v2955, %v2957
        %v2959 = vrot.slane %v2952, %v2958
        %v2960 = vcombine.low %v2592, %v2656
        %v2962 = vunpack.c.l.s4 1983009808
        %v2963 = vunpack.c.0.s8 %v2962
        %v2964 = vlaneseq
        %v2965 = vshrl.u32 %v2964, 7
        %v2966 = vsub.s32 %v2963, %v2965
        %v2967 = vrot.slane %v2960, %v2966
        %v2968 = vcombine.low %v2943, %v2951
        %v2970 = vunpack.c.l.s4 1934713408
        %v2971 = vunpack.c.0.s8 %v2970
        %v2972 = vlaneseq
        %v2973 = vshrl.u32 %v2972, 7
        %v2974 = vsub.s32 %v2971, %v2973
        %v2975 = vrot.slane %v2968, %v2974
        %v2976 = vcombine.low %v2959, %v2967
        %v2978 = vunpack.c.l.s4 1934713408
        %v2979 = vunpack.c.0.s8 %v2978
        %v2980 = vlaneseq
        %v2981 = vshrl.u32 %v2980, 7
        %v2982 = vsub.s32 %v2979, %v2981
        %v2983 = vrot.slane %v2976, %v2982
        %v2984 = vcombine.low %v2975, %v2983
        %v2985 = vcombine.high %v2975, %v2983
        %v2986 = vcombine.low %v2448, %v2512
        %v2988 = vunpack.c.l.s4 1983009808
        %v2989 = vunpack.c.0.s8 %v2988
        %v2990 = vlaneseq
        %v2991 = vshrl.u32 %v2990, 7
        %v2992 = vsub.s32 %v2989, %v2991
        %v2993 = vrot.slane %v2986, %v2992
        %v2994 = vcombine.low %v2480, %v2544
        %v2996 = vunpack.c.l.s4 1983009808
        %v2997 = vunpack.c.0.s8 %v2996
        %v2998 = vlaneseq
        %v2999 = vshrl.u32 %v2998, 7
        %v3000 = vsub.s32 %v2997, %v2999
        %v3001 = vrot.slane %v2994, %v3000
        %v3002 = vcombine.low %v2576, %v2640
        %v3004 = vunpack.c.l.s4 1983009808
        %v3005 = vunpack.c.0.s8 %v3004
        %v3006 = vlaneseq
        %v3007 = vshrl.u32 %v3006, 7
        %v3008 = vsub.s32 %v3005, %v3007
        %v3009 = vrot.slane %v3002, %v3008
        %v3010 = vcombine.low %v2608, %v2672
        %v3012 = vunpack.c.l.s4 1983009808
        %v3013 = vunpack.c.0.s8 %v3012
        %v3014 = vlaneseq
        %v3015 = vshrl.u32 %v3014, 7
        %v3016 = vsub.s32 %v3013, %v3015
        %v3017 = vrot.slane %v3010, %v3016
        %v3018 = vcombine.low %v2993, %v3001
        %v3020 = vunpack.c.l.s4 1934713408
        %v3021 = vunpack.c.0.s8 %v3020
        %v3022 = vlaneseq
        %v3023 = vshrl.u32 %v3022, 7
        %v3024 = vsub.s32 %v3021, %v3023
        %v3025 = vrot.slane %v3018, %v3024
        %v3026 = vcombine.low %v3009, %v3017
        %v3028 = vunpack.c.l.s4 1934713408
        %v3029 = vunpack.c.0.s8 %v3028
        %v3030 = vlaneseq
        %v3031 = vshrl.u32 %v3030, 7
        %v3032 = vsub.s32 %v3029, %v3031
        %v3033 = vrot.slane %v3026, %v3032
        %v3034 = vcombine.low %v3025, %v3033
        %v3035 = vcombine.high %v3025, %v3033
        %v3036 = vcombine.low %v2688, %v2752
        %v3038 = vunpack.c.l.s4 1983009808
        %v3039 = vunpack.c.0.s8 %v3038
        %v3040 = vlaneseq
        %v3041 = vshrl.u32 %v3040, 7
        %v3042 = vsub.s32 %v3039, %v3041
        %v3043 = vrot.slane %v3036, %v3042
        %v3044 = vcombine.low %v2720, %v2784
        %v3046 = vunpack.c.l.s4 1983009808
        %v3047 = vunpack.c.0.s8 %v3046
        %v3048 = vlaneseq
        %v3049 = vshrl.u32 %v3048, 7
        %v3050 = vsub.s32 %v3047, %v3049
        %v3051 = vrot.slane %v3044, %v3050
        %v3052 = vcombine.low %v2816, %v2880
        %v3054 = vunpack.c.l.s4 1983009808
        %v3055 = vunpack.c.0.s8 %v3054
        %v3056 = vlaneseq
        %v3057 = vshrl.u32 %v3056, 7
        %v3058 = vsub.s32 %v3055, %v3057
        %v3059 = vrot.slane %v3052, %v3058
        %v3060 = vcombine.low %v2848, %v2912
        %v3062 = vunpack.c.l.s4 1983009808
        %v3063 = vunpack.c.0.s8 %v3062
        %v3064 = vlaneseq
        %v3065 = vshrl.u32 %v3064, 7
        %v3066 = vsub.s32 %v3063, %v3065
        %v3067 = vrot.slane %v3060, %v3066
        %v3068 = vcombine.low %v3043, %v3051
        %v3070 = vunpack.c.l.s4 1934713408
        %v3071 = vunpack.c.0.s8 %v3070
        %v3072 = vlaneseq
        %v3073 = vshrl.u32 %v3072, 7
        %v3074 = vsub.s32 %v3071, %v3073
        %v3075 = vrot.slane %v3068, %v3074
        %v3076 = vcombine.low %v3059, %v3067
        %v3078 = vunpack.c.l.s4 1934713408
        %v3079 = vunpack.c.0.s8 %v3078
        %v3080 = vlaneseq
        %v3081 = vshrl.u32 %v3080, 7
        %v3082 = vsub.s32 %v3079, %v3081
        %v3083 = vrot.slane %v3076, %v3082
        %v3084 = vcombine.low %v3075, %v3083
        %v3085 = vcombine.high %v3075, %v3083
        %v3086 = vcombine.low %v2704, %v2768
        %v3088 = vunpack.c.l.s4 1983009808
        %v3089 = vunpack.c.0.s8 %v3088
        %v3090 = vlaneseq
        %v3091 = vshrl.u32 %v3090, 7
        %v3092 = vsub.s32 %v3089, %v3091
        %v3093 = vrot.slane %v3086, %v3092
        %v3094 = vcombine.low %v2736, %v2800
        %v3096 = vunpack.c.l.s4 1983009808
        %v3097 = vunpack.c.0.s8 %v3096
        %v3098 = vlaneseq
        %v3099 = vshrl.u32 %v3098, 7
        %v3100 = vsub.s32 %v3097, %v3099
        %v3101 = vrot.slane %v3094, %v3100
        %v3102 = vcombine.low %v2832, %v2896
        %v3104 = vunpack.c.l.s4 1983009808
        %v3105 = vunpack.c.0.s8 %v3104
        %v3106 = vlaneseq
        %v3107 = vshrl.u32 %v3106, 7
        %v3108 = vsub.s32 %v3105, %v3107
        %v3109 = vrot.slane %v3102, %v3108
        %v3110 = vcombine.low %v2864, %v2928
        %v3112 = vunpack.c.l.s4 1983009808
        %v3113 = vunpack.c.0.s8 %v3112
        %v3114 = vlaneseq
        %v3115 = vshrl.u32 %v3114, 7
        %v3116 = vsub.s32 %v3113, %v3115
        %v3117 = vrot.slane %v3110, %v3116
        %v3118 = vcombine.low %v3093, %v3101
        %v3120 = vunpack.c.l.s4 1934713408
        %v3121 = vunpack.c.0.s8 %v3120
        %v3122 = vlaneseq
        %v3123 = vshrl.u32 %v3122, 7
        %v3124 = vsub.s32 %v3121, %v3123
        %v3125 = vrot.slane %v3118, %v3124
        %v3126 = vcombine.low %v3109, %v3117
        %v3128 = vunpack.c.l.s4 1934713408
        %v3129 = vunpack.c.0.s8 %v3128
        %v3130 = vlaneseq
        %v3131 = vshrl.u32 %v3130, 7
        %v3132 = vsub.s32 %v3129, %v3131
        %v3133 = vrot.slane %v3126, %v3132
        %v3134 = vcombine.low %v3125, %v3133
        %v3135 = vcombine.high %v3125, %v3133
        %v3138 = vpack.i.b16 %v3034, %v2984
        %v3140 = vshrl.u32 %v2984, 16
        %v3141 = vshrl.u32 %v3034, 16
        %v3142 = vpack.i.b16 %v3141, %v3140
        %v3146 = vpack.i.b16 %v3035, %v2985
        %v3148 = vshrl.u32 %v2985, 16
        %v3149 = vshrl.u32 %v3035, 16
        %v3150 = vpack.i.b16 %v3149, %v3148
        %v3154 = vpack.i.b16 %v3134, %v3084
        %v3156 = vshrl.u32 %v3084, 16
        %v3157 = vshrl.u32 %v3134, 16
        %v3158 = vpack.i.b16 %v3157, %v3156
        %v3162 = vpack.i.b16 %v3135, %v3085
        %v3164 = vshrl.u32 %v3085, 16
        %v3165 = vshrl.u32 %v3135, 16
        %v3166 = vpack.i.b16 %v3165, %v3164
        %vm3168 = vcmask 261120
        %v3170 = vsel %vm3168, %v1950, 0
        %3172 = vmatprep.subr.bf16.mxu0 0
        %3173 = vmatpush1.bf16.msra.mxu0 0
        %3174 = vmatprep.subr.bf16.mxu0 0
        %3175 = vmatpush1.bf16.msra.mxu0 0
        %3176 = vmatprep.subr.bf16.mxu0 0
        %3177 = vmatpush1.bf16.msra.mxu0 0
        %3178 = vmatprep.subr.bf16.mxu0 0
        %3179 = vmatpush1.bf16.msra.mxu0 0
        %3180 = vmatprep.subr.bf16.mxu0 0
        %3181 = vmatpush1.bf16.msra.mxu0 0
        %3182 = vmatprep.subr.bf16.mxu0 0
        %3183 = vmatpush1.bf16.msra.mxu0 0
        %3184 = vmatprep.subr.bf16.mxu0 0
        %3185 = vmatpush1.bf16.msra.mxu0 %v3154
        %3186 = vmatprep.subr.bf16.mxu0 0
        %3187 = vmatpush1.bf16.msra.mxu0 %v3138
        %3188 = vmatprep.subr.bf16.mxu0 0
        %3189 = vmatpush2.bf16.msra.mxu0 0
        %3190 = vmatprep.subr.bf16.mxu0 0
        %3191 = vmatpush2.bf16.msra.mxu0 0
        %3192 = vmatprep.subr.bf16.mxu0 0
        %3193 = vmatpush2.bf16.msra.mxu0 0
        %3194 = vmatprep.subr.bf16.mxu0 0
        %3195 = vmatpush2.bf16.msra.mxu0 0
        %3196 = vmatprep.subr.bf16.mxu0 0
        %3197 = vmatpush2.bf16.msra.mxu0 0
        %3198 = vmatprep.subr.bf16.mxu0 0
        %3199 = vmatpush2.bf16.msra.mxu0 0
        %3200 = vmatprep.subr.bf16.mxu0 0
        %3201 = vmatpush2.bf16.msra.mxu0 0
        %3202 = vmatprep.subr.bf16.mxu0 0
        %3203 = vmatpush2.bf16.msra.mxu0 0
        %3204 = vmatprep.mubr.bf16.mxu0 0
        %3205 = vmatmul.mubr.bf16.gmra.mxu0 %v3170
        %v3206 = vpop.f32.mrf.mxu0
        %v3207 = vadd.f32 0.0, %v3206
        %v3208 = vpop.f32.mrf.mxu0
        %v3209 = vpop.f32.mrf.mxu0
        %v3210 = vpop.f32.mrf.mxu0
        %3211 = vdwg.mxu0
        %v3213 = vsel %vm3168, %v1953, 0
        %3215 = vmatprep.subr.bf16.mxu0 0
        %3216 = vmatpush1.bf16.msra.mxu0 0
        %3217 = vmatprep.subr.bf16.mxu0 0
        %3218 = vmatpush1.bf16.msra.mxu0 0
        %3219 = vmatprep.subr.bf16.mxu0 0
        %3220 = vmatpush1.bf16.msra.mxu0 0
        %3221 = vmatprep.subr.bf16.mxu0 0
        %3222 = vmatpush1.bf16.msra.mxu0 0
        %3223 = vmatprep.subr.bf16.mxu0 0
        %3224 = vmatpush1.bf16.msra.mxu0 0
        %3225 = vmatprep.subr.bf16.mxu0 0
        %3226 = vmatpush1.bf16.msra.mxu0 0
        %3227 = vmatprep.subr.bf16.mxu0 0
        %3228 = vmatpush1.bf16.msra.mxu0 %v3158
        %3229 = vmatprep.subr.bf16.mxu0 0
        %3230 = vmatpush1.bf16.msra.mxu0 %v3142
        %3231 = vmatprep.subr.bf16.mxu0 0
        %3232 = vmatpush2.bf16.msra.mxu0 0
        %3233 = vmatprep.subr.bf16.mxu0 0
        %3234 = vmatpush2.bf16.msra.mxu0 0
        %3235 = vmatprep.subr.bf16.mxu0 0
        %3236 = vmatpush2.bf16.msra.mxu0 0
        %3237 = vmatprep.subr.bf16.mxu0 0
        %3238 = vmatpush2.bf16.msra.mxu0 0
        %3239 = vmatprep.subr.bf16.mxu0 0
        %3240 = vmatpush2.bf16.msra.mxu0 0
        %3241 = vmatprep.subr.bf16.mxu0 0
        %3242 = vmatpush2.bf16.msra.mxu0 0
        %3243 = vmatprep.subr.bf16.mxu0 0
        %3244 = vmatpush2.bf16.msra.mxu0 0
        %3245 = vmatprep.subr.bf16.mxu0 0
        %3246 = vmatpush2.bf16.msra.mxu0 0
        %3247 = vmatprep.mubr.bf16.mxu0 0
        %3248 = vmatmul.mubr.bf16.gmra.mxu0 %v3213
        %v3249 = vpop.f32.mrf.mxu0
        %v3250 = vadd.f32 0.0, %v3249
        %v3251 = vpop.f32.mrf.mxu0
        %v3252 = vpop.f32.mrf.mxu0
        %v3253 = vpop.f32.mrf.mxu0
        %3254 = vdwg.mxu0
        %v3256 = vsel %vm3168, %v1956, 0
        %3258 = vmatprep.subr.bf16.mxu0 0
        %3259 = vmatpush1.bf16.msra.mxu0 0
        %3260 = vmatprep.subr.bf16.mxu0 0
        %3261 = vmatpush1.bf16.msra.mxu0 0
        %3262 = vmatprep.subr.bf16.mxu0 0
        %3263 = vmatpush1.bf16.msra.mxu0 0
        %3264 = vmatprep.subr.bf16.mxu0 0
        %3265 = vmatpush1.bf16.msra.mxu0 0
        %3266 = vmatprep.subr.bf16.mxu0 0
        %3267 = vmatpush1.bf16.msra.mxu0 0
        %3268 = vmatprep.subr.bf16.mxu0 0
        %3269 = vmatpush1.bf16.msra.mxu0 0
        %3270 = vmatprep.subr.bf16.mxu0 0
        %3271 = vmatpush1.bf16.msra.mxu0 %v3162
        %3272 = vmatprep.subr.bf16.mxu0 0
        %3273 = vmatpush1.bf16.msra.mxu0 %v3146
        %3274 = vmatprep.subr.bf16.mxu0 0
        %3275 = vmatpush2.bf16.msra.mxu0 0
        %3276 = vmatprep.subr.bf16.mxu0 0
        %3277 = vmatpush2.bf16.msra.mxu0 0
        %3278 = vmatprep.subr.bf16.mxu0 0
        %3279 = vmatpush2.bf16.msra.mxu0 0
        %3280 = vmatprep.subr.bf16.mxu0 0
        %3281 = vmatpush2.bf16.msra.mxu0 0
        %3282 = vmatprep.subr.bf16.mxu0 0
        %3283 = vmatpush2.bf16.msra.mxu0 0
        %3284 = vmatprep.subr.bf16.mxu0 0
        %3285 = vmatpush2.bf16.msra.mxu0 0
        %3286 = vmatprep.subr.bf16.mxu0 0
        %3287 = vmatpush2.bf16.msra.mxu0 0
        %3288 = vmatprep.subr.bf16.mxu0 0
        %3289 = vmatpush2.bf16.msra.mxu0 0
        %3290 = vmatprep.mubr.bf16.mxu0 0
        %3291 = vmatmul.mubr.bf16.gmra.mxu0 %v3256
        %v3292 = vpop.f32.mrf.mxu0
        %v3293 = vadd.f32 0.0, %v3292
        %v3294 = vpop.f32.mrf.mxu0
        %v3295 = vpop.f32.mrf.mxu0
        %v3296 = vpop.f32.mrf.mxu0
        %3297 = vdwg.mxu0
        %v3299 = vsel %vm3168, %v1959, 0
        %3301 = vmatprep.subr.bf16.mxu0 0
        %3302 = vmatpush1.bf16.msra.mxu0 0
        %3303 = vmatprep.subr.bf16.mxu0 0
        %3304 = vmatpush1.bf16.msra.mxu0 0
        %3305 = vmatprep.subr.bf16.mxu0 0
        %3306 = vmatpush1.bf16.msra.mxu0 0
        %3307 = vmatprep.subr.bf16.mxu0 0
        %3308 = vmatpush1.bf16.msra.mxu0 0
        %3309 = vmatprep.subr.bf16.mxu0 0
        %3310 = vmatpush1.bf16.msra.mxu0 0
        %3311 = vmatprep.subr.bf16.mxu0 0
        %3312 = vmatpush1.bf16.msra.mxu0 0
        %3313 = vmatprep.subr.bf16.mxu0 0
        %3314 = vmatpush1.bf16.msra.mxu0 %v3166
        %3315 = vmatprep.subr.bf16.mxu0 0
        %3316 = vmatpush1.bf16.msra.mxu0 %v3150
        %3317 = vmatprep.subr.bf16.mxu0 0
        %3318 = vmatpush2.bf16.msra.mxu0 0
        %3319 = vmatprep.subr.bf16.mxu0 0
        %3320 = vmatpush2.bf16.msra.mxu0 0
        %3321 = vmatprep.subr.bf16.mxu0 0
        %3322 = vmatpush2.bf16.msra.mxu0 0
        %3323 = vmatprep.subr.bf16.mxu0 0
        %3324 = vmatpush2.bf16.msra.mxu0 0
        %3325 = vmatprep.subr.bf16.mxu0 0
        %3326 = vmatpush2.bf16.msra.mxu0 0
        %3327 = vmatprep.subr.bf16.mxu0 0
        %3328 = vmatpush2.bf16.msra.mxu0 0
        %3329 = vmatprep.subr.bf16.mxu0 0
        %3330 = vmatpush2.bf16.msra.mxu0 0
        %3331 = vmatprep.subr.bf16.mxu0 0
        %3332 = vmatpush2.bf16.msra.mxu0 0
        %3333 = vmatprep.mubr.bf16.mxu0 0
        %3334 = vmatmul.mubr.bf16.gmra.mxu0 %v3299
        %v3335 = vpop.f32.mrf.mxu0
        %v3336 = vadd.f32 0.0, %v3335
        %v3337 = vpop.f32.mrf.mxu0
        %v3338 = vpop.f32.mrf.mxu0
        %v3339 = vpop.f32.mrf.mxu0
        %3340 = vdwg.mxu0
        %v3341 = vmul.f32 %v3207, 0.17677669
        %v3342 = vmul.f32 %v3250, 0.17677669
        %v3343 = vmul.f32 %v3293, 0.17677669
        %v3344 = vmul.f32 %v3336, 0.17677669
        %3346 = vset.pattern.permute.xlu0 0
        %3347 = vperm.xlu0 %3346, %v1380
        %v3348 = vpop.permute.xlu0 %3347
        %v3349 = vlaneseq
        %v3350 = vshrl.u32 %v3349, 7
        %v3351 = vsub.s32 %v1248, %v3350
        %v3352 = vrot.slane %v3348, %v3351
        %vm3353 = vcmask 1042434
        %v3354 = vsel %vm3353, %v3352, %v3352
        %vm3355 = vcmask 1043459
        %v3356 = vsel %vm3355, %v3352, %v3354
        %vm3357 = vcmask 1044484
        %v3358 = vsel %vm3357, %v3352, %v3356
        %vm3359 = vcmask 1045509
        %v3360 = vsel %vm3359, %v3352, %v3358
        %vm3361 = vcmask 1046534
        %v3362 = vsel %vm3361, %v3352, %v3360
        %vm3363 = vcmask 1047559
        %v3364 = vsel %vm3363, %v3352, %v3362
        %v3366 = vadd.f32 %v3341, %v3364
        %v3367 = vadd.f32 %v3342, %v3364
        %v3368 = vadd.f32 %v3343, %v3364
        %v3369 = vadd.f32 %v3344, %v3364
        %vm3370 = vcmask 64512
        %v3371 = vsel %vm3370, %v3366, -inf
        %3372 = vmax.xlane.f32.xlu0 %v3371
        %v3373 = vpop.xlane.xlu0 %3372
        %v3374 = vsel %vm3370, %v3367, -inf
        %3375 = vmax.xlane.f32.xlu0 %v3374
        %v3376 = vpop.xlane.xlu0 %3375
        %v3377 = vsel %vm3370, %v3368, -inf
        %3378 = vmax.xlane.f32.xlu0 %v3377
        %v3379 = vpop.xlane.xlu0 %3378
        %v3380 = vsel %vm3370, %v3369, -inf
        %3381 = vmax.xlane.f32.xlu0 %v3380
        %v3382 = vpop.xlane.xlu0 %3381
        %v3383 = vsub.f32 %v3366, %v3373
        %v3384 = vsub.f32 %v3367, %v3376
        %v3385 = vsub.f32 %v3368, %v3379
        %v3386 = vsub.f32 %v3369, %v3382
        %v3387 = vmul.f32 %v3383, 1.442695
        %v3388 = vpow.pop %v3387
        %v3389 = vmul.f32 %v3384, 1.442695
        %v3390 = vpow.pop %v3389
        %v3391 = vmul.f32 %v3385, 1.442695
        %v3392 = vpow.pop %v3391
        %v3393 = vmul.f32 %v3386, 1.442695
        %v3394 = vpow.pop %v3393
        %v3395 = vsel %vm3370, %v3388, 0.0
        %3396 = vadd.xlane.f32.xlu0 %v3395
        %v3397 = vpop.xlane.xlu0 %3396
        %v3398 = vsel %vm3370, %v3390, 0.0
        %3399 = vadd.xlane.f32.xlu0 %v3398
        %v3400 = vpop.xlane.xlu0 %3399
        %v3401 = vsel %vm3370, %v3392, 0.0
        %3402 = vadd.xlane.f32.xlu0 %v3401
        %v3403 = vpop.xlane.xlu0 %3402
        %v3404 = vsel %vm3370, %v3394, 0.0
        %3405 = vadd.xlane.f32.xlu0 %v3404
        %v3406 = vpop.xlane.xlu0 %3405
        %v3407 = vrcp.pop %v3397
        %v3408 = vrcp.pop %v3400
        %v3409 = vrcp.pop %v3403
        %v3410 = vrcp.pop %v3406
        %v3411 = vmul.f32 %v3388, %v3407
        %v3412 = vmul.f32 %v3390, %v3408
        %v3413 = vmul.f32 %v3392, %v3409
        %v3414 = vmul.f32 %v3394, %v3410
        %v3415 = vpack.c.bf16 %v3411, %v3411
        %v3416 = vpack.c.bf16 %v3412, %v3412
        %v3417 = vpack.c.bf16 %v3413, %v3413
        %v3418 = vpack.c.bf16 %v3414, %v3414
        %3419 = vxpose.xlu0.c.b16.start [1/8] %v1890, 128
        %3420 = vxpose.xlu0.c.b16.cont [2/8] 0, 128
        %3421 = vxpose.xlu0.c.b16.cont [3/8] 0, 128
        %3422 = vxpose.xlu0.c.b16.cont [4/8] 0, 128
        %3423 = vxpose.xlu0.c.b16.cont [5/8] 0, 128
        %3424 = vxpose.xlu0.c.b16.cont [6/8] 0, 128
        %3425 = vxpose.xlu0.c.b16.cont [7/8] 0, 128
        %3426 = vxpose.xlu0.c.b16.end [8/8] 0, 128
        %v3427 = vpop.trf.xlu0
        %v3428 = vpop.trf.xlu0
        %v3429 = vpop.trf.xlu0
        %v3430 = vpop.trf.xlu0
        %v3431 = vpop.trf.xlu0
        %v3432 = vpop.trf.xlu0
        %v3433 = vpop.trf.xlu0
        %v3434 = vpop.trf.xlu0
        %3435 = vxpose.xlu0.c.b16.start [1/8] %v1891, 128
        %3436 = vxpose.xlu0.c.b16.cont [2/8] 0, 128
        %3437 = vxpose.xlu0.c.b16.cont [3/8] 0, 128
        %3438 = vxpose.xlu0.c.b16.cont [4/8] 0, 128
        %3439 = vxpose.xlu0.c.b16.cont [5/8] 0, 128
        %3440 = vxpose.xlu0.c.b16.cont [6/8] 0, 128
        %3441 = vxpose.xlu0.c.b16.cont [7/8] 0, 128
        %3442 = vxpose.xlu0.c.b16.end [8/8] 0, 128
        %v3443 = vpop.trf.xlu0
        %v3444 = vpop.trf.xlu0
        %v3445 = vpop.trf.xlu0
        %v3446 = vpop.trf.xlu0
        %v3447 = vpop.trf.xlu0
        %v3448 = vpop.trf.xlu0
        %v3449 = vpop.trf.xlu0
        %v3450 = vpop.trf.xlu0
        %3451 = vxpose.xlu0.c.b16.start [1/8] %v1892, 128
        %3452 = vxpose.xlu0.c.b16.cont [2/8] 0, 128
        %3453 = vxpose.xlu0.c.b16.cont [3/8] 0, 128
        %3454 = vxpose.xlu0.c.b16.cont [4/8] 0, 128
        %3455 = vxpose.xlu0.c.b16.cont [5/8] 0, 128
        %3456 = vxpose.xlu0.c.b16.cont [6/8] 0, 128
        %3457 = vxpose.xlu0.c.b16.cont [7/8] 0, 128
        %3458 = vxpose.xlu0.c.b16.end [8/8] 0, 128
        %v3459 = vpop.trf.xlu0
        %v3460 = vpop.trf.xlu0
        %v3461 = vpop.trf.xlu0
        %v3462 = vpop.trf.xlu0
        %v3463 = vpop.trf.xlu0
        %v3464 = vpop.trf.xlu0
        %v3465 = vpop.trf.xlu0
        %v3466 = vpop.trf.xlu0
        %3467 = vxpose.xlu0.c.b16.start [1/8] %v1893, 128
        %3468 = vxpose.xlu0.c.b16.cont [2/8] 0, 128
        %3469 = vxpose.xlu0.c.b16.cont [3/8] 0, 128
        %3470 = vxpose.xlu0.c.b16.cont [4/8] 0, 128
        %3471 = vxpose.xlu0.c.b16.cont [5/8] 0, 128
        %3472 = vxpose.xlu0.c.b16.cont [6/8] 0, 128
        %3473 = vxpose.xlu0.c.b16.cont [7/8] 0, 128
        %3474 = vxpose.xlu0.c.b16.end [8/8] 0, 128
        %v3475 = vpop.trf.xlu0
        %v3476 = vpop.trf.xlu0
        %v3477 = vpop.trf.xlu0
        %v3478 = vpop.trf.xlu0
        %v3479 = vpop.trf.xlu0
        %v3480 = vpop.trf.xlu0
        %v3481 = vpop.trf.xlu0
        %v3482 = vpop.trf.xlu0
        %3483 = vxpose.xlu0.c.b16.start [1/8] %v1894, 128
        %3484 = vxpose.xlu0.c.b16.cont [2/8] 0, 128
        %3485 = vxpose.xlu0.c.b16.cont [3/8] 0, 128
        %3486 = vxpose.xlu0.c.b16.cont [4/8] 0, 128
        %3487 = vxpose.xlu0.c.b16.cont [5/8] 0, 128
        %3488 = vxpose.xlu0.c.b16.cont [6/8] 0, 128
        %3489 = vxpose.xlu0.c.b16.cont [7/8] 0, 128
        %3490 = vxpose.xlu0.c.b16.end [8/8] 0, 128
        %v3491 = vpop.trf.xlu0
        %v3492 = vpop.trf.xlu0
        %v3493 = vpop.trf.xlu0
        %v3494 = vpop.trf.xlu0
        %v3495 = vpop.trf.xlu0
        %v3496 = vpop.trf.xlu0
        %v3497 = vpop.trf.xlu0
        %v3498 = vpop.trf.xlu0
        %3499 = vxpose.xlu0.c.b16.start [1/8] %v1895, 128
        %3500 = vxpose.xlu0.c.b16.cont [2/8] 0, 128
        %3501 = vxpose.xlu0.c.b16.cont [3/8] 0, 128
        %3502 = vxpose.xlu0.c.b16.cont [4/8] 0, 128
        %3503 = vxpose.xlu0.c.b16.cont [5/8] 0, 128
        %3504 = vxpose.xlu0.c.b16.cont [6/8] 0, 128
        %3505 = vxpose.xlu0.c.b16.cont [7/8] 0, 128
        %3506 = vxpose.xlu0.c.b16.end [8/8] 0, 128
        %v3507 = vpop.trf.xlu0
        %v3508 = vpop.trf.xlu0
        %v3509 = vpop.trf.xlu0
        %v3510 = vpop.trf.xlu0
        %v3511 = vpop.trf.xlu0
        %v3512 = vpop.trf.xlu0
        %v3513 = vpop.trf.xlu0
        %v3514 = vpop.trf.xlu0
        %3515 = vxpose.xlu0.c.b16.start [1/8] %v1896, 128
        %3516 = vxpose.xlu0.c.b16.cont [2/8] 0, 128
        %3517 = vxpose.xlu0.c.b16.cont [3/8] 0, 128
        %3518 = vxpose.xlu0.c.b16.cont [4/8] 0, 128
        %3519 = vxpose.xlu0.c.b16.cont [5/8] 0, 128
        %3520 = vxpose.xlu0.c.b16.cont [6/8] 0, 128
        %3521 = vxpose.xlu0.c.b16.cont [7/8] 0, 128
        %3522 = vxpose.xlu0.c.b16.end [8/8] 0, 128
        %v3523 = vpop.trf.xlu0
        %v3524 = vpop.trf.xlu0
        %v3525 = vpop.trf.xlu0
        %v3526 = vpop.trf.xlu0
        %v3527 = vpop.trf.xlu0
        %v3528 = vpop.trf.xlu0
        %v3529 = vpop.trf.xlu0
        %v3530 = vpop.trf.xlu0
        %3531 = vxpose.xlu0.c.b16.start [1/8] %v1897, 128
        %3532 = vxpose.xlu0.c.b16.cont [2/8] 0, 128
        %3533 = vxpose.xlu0.c.b16.cont [3/8] 0, 128
        %3534 = vxpose.xlu0.c.b16.cont [4/8] 0, 128
        %3535 = vxpose.xlu0.c.b16.cont [5/8] 0, 128
        %3536 = vxpose.xlu0.c.b16.cont [6/8] 0, 128
        %3537 = vxpose.xlu0.c.b16.cont [7/8] 0, 128
        %3538 = vxpose.xlu0.c.b16.end [8/8] 0, 128
        %v3539 = vpop.trf.xlu0
        %v3540 = vpop.trf.xlu0
        %v3541 = vpop.trf.xlu0
        %v3542 = vpop.trf.xlu0
        %v3543 = vpop.trf.xlu0
        %v3544 = vpop.trf.xlu0
        %v3545 = vpop.trf.xlu0
        %v3546 = vpop.trf.xlu0
        %v3549 = vpack.i.b16 %v3443, %v3427
        %v3551 = vshrl.u32 %v3427, 16
        %v3552 = vshrl.u32 %v3443, 16
        %v3553 = vpack.i.b16 %v3552, %v3551
        %v3557 = vpack.i.b16 %v3475, %v3459
        %v3559 = vshrl.u32 %v3459, 16
        %v3560 = vshrl.u32 %v3475, 16
        %v3561 = vpack.i.b16 %v3560, %v3559
        %v3565 = vpack.i.b16 %v3507, %v3491
        %v3567 = vshrl.u32 %v3491, 16
        %v3568 = vshrl.u32 %v3507, 16
        %v3569 = vpack.i.b16 %v3568, %v3567
        %v3573 = vpack.i.b16 %v3539, %v3523
        %v3575 = vshrl.u32 %v3523, 16
        %v3576 = vshrl.u32 %v3539, 16
        %v3577 = vpack.i.b16 %v3576, %v3575
        %v3581 = vpack.i.b16 %v3444, %v3428
        %v3583 = vshrl.u32 %v3428, 16
        %v3584 = vshrl.u32 %v3444, 16
        %v3585 = vpack.i.b16 %v3584, %v3583
        %v3589 = vpack.i.b16 %v3476, %v3460
        %v3591 = vshrl.u32 %v3460, 16
        %v3592 = vshrl.u32 %v3476, 16
        %v3593 = vpack.i.b16 %v3592, %v3591
        %v3597 = vpack.i.b16 %v3508, %v3492
        %v3599 = vshrl.u32 %v3492, 16
        %v3600 = vshrl.u32 %v3508, 16
        %v3601 = vpack.i.b16 %v3600, %v3599
        %v3605 = vpack.i.b16 %v3540, %v3524
        %v3607 = vshrl.u32 %v3524, 16
        %v3608 = vshrl.u32 %v3540, 16
        %v3609 = vpack.i.b16 %v3608, %v3607
        %v3611 = vcombine.low %v3549, %v3565
        %v3612 = vcombine.high %v3549, %v3565
        %v3614 = vunpack.c.l.s4 1983009808
        %v3615 = vunpack.c.0.s8 %v3614
        %v3616 = vlaneseq
        %v3617 = vshrl.u32 %v3616, 7
        %v3618 = vsub.s32 %v3615, %v3617
        %v3619 = vrot.slane %v3611, %v3618
        %v3621 = vunpack.c.l.s4 1983009808
        %v3622 = vunpack.c.0.s8 %v3621
        %v3623 = vlaneseq
        %v3624 = vshrl.u32 %v3623, 7
        %v3625 = vsub.s32 %v3622, %v3624
        %v3626 = vrot.slane %v3612, %v3625
        %v3627 = vcombine.low %v3557, %v3573
        %v3628 = vcombine.high %v3557, %v3573
        %v3630 = vunpack.c.l.s4 1983009808
        %v3631 = vunpack.c.0.s8 %v3630
        %v3632 = vlaneseq
        %v3633 = vshrl.u32 %v3632, 7
        %v3634 = vsub.s32 %v3631, %v3633
        %v3635 = vrot.slane %v3627, %v3634
        %v3637 = vunpack.c.l.s4 1983009808
        %v3638 = vunpack.c.0.s8 %v3637
        %v3639 = vlaneseq
        %v3640 = vshrl.u32 %v3639, 7
        %v3641 = vsub.s32 %v3638, %v3640
        %v3642 = vrot.slane %v3628, %v3641
        %v3643 = vcombine.low %v3619, %v3635
        %v3644 = vcombine.high %v3619, %v3635
        %v3646 = vunpack.c.l.s4 1934713408
        %v3647 = vunpack.c.0.s8 %v3646
        %v3648 = vlaneseq
        %v3649 = vshrl.u32 %v3648, 7
        %v3650 = vsub.s32 %v3647, %v3649
        %v3651 = vrot.slane %v3643, %v3650
        %v3653 = vunpack.c.l.s4 1934713408
        %v3654 = vunpack.c.0.s8 %v3653
        %v3655 = vlaneseq
        %v3656 = vshrl.u32 %v3655, 7
        %v3657 = vsub.s32 %v3654, %v3656
        %v3658 = vrot.slane %v3644, %v3657
        %v3659 = vcombine.low %v3626, %v3642
        %v3660 = vcombine.high %v3626, %v3642
        %v3662 = vunpack.c.l.s4 1934713408
        %v3663 = vunpack.c.0.s8 %v3662
        %v3664 = vlaneseq
        %v3665 = vshrl.u32 %v3664, 7
        %v3666 = vsub.s32 %v3663, %v3665
        %v3667 = vrot.slane %v3659, %v3666
        %v3669 = vunpack.c.l.s4 1934713408
        %v3670 = vunpack.c.0.s8 %v3669
        %v3671 = vlaneseq
        %v3672 = vshrl.u32 %v3671, 7
        %v3673 = vsub.s32 %v3670, %v3672
        %v3674 = vrot.slane %v3660, %v3673
        %v3675 = vcombine.high %v3651, 0
        %v3676 = vcombine.high %v3658, 0
        %v3677 = vcombine.high %v3667, 0
        %v3678 = vcombine.high %v3674, 0
        %v3679 = vcombine.low %v3553, %v3569
        %v3680 = vcombine.high %v3553, %v3569
        %v3682 = vunpack.c.l.s4 1983009808
        %v3683 = vunpack.c.0.s8 %v3682
        %v3684 = vlaneseq
        %v3685 = vshrl.u32 %v3684, 7
        %v3686 = vsub.s32 %v3683, %v3685
        %v3687 = vrot.slane %v3679, %v3686
        %v3689 = vunpack.c.l.s4 1983009808
        %v3690 = vunpack.c.0.s8 %v3689
        %v3691 = vlaneseq
        %v3692 = vshrl.u32 %v3691, 7
        %v3693 = vsub.s32 %v3690, %v3692
        %v3694 = vrot.slane %v3680, %v3693
        %v3695 = vcombine.low %v3561, %v3577
        %v3696 = vcombine.high %v3561, %v3577
        %v3698 = vunpack.c.l.s4 1983009808
        %v3699 = vunpack.c.0.s8 %v3698
        %v3700 = vlaneseq
        %v3701 = vshrl.u32 %v3700, 7
        %v3702 = vsub.s32 %v3699, %v3701
        %v3703 = vrot.slane %v3695, %v3702
        %v3705 = vunpack.c.l.s4 1983009808
        %v3706 = vunpack.c.0.s8 %v3705
        %v3707 = vlaneseq
        %v3708 = vshrl.u32 %v3707, 7
        %v3709 = vsub.s32 %v3706, %v3708
        %v3710 = vrot.slane %v3696, %v3709
        %v3711 = vcombine.low %v3687, %v3703
        %v3712 = vcombine.high %v3687, %v3703
        %v3714 = vunpack.c.l.s4 1934713408
        %v3715 = vunpack.c.0.s8 %v3714
        %v3716 = vlaneseq
        %v3717 = vshrl.u32 %v3716, 7
        %v3718 = vsub.s32 %v3715, %v3717
        %v3719 = vrot.slane %v3711, %v3718
        %v3721 = vunpack.c.l.s4 1934713408
        %v3722 = vunpack.c.0.s8 %v3721
        %v3723 = vlaneseq
        %v3724 = vshrl.u32 %v3723, 7
        %v3725 = vsub.s32 %v3722, %v3724
        %v3726 = vrot.slane %v3712, %v3725
        %v3727 = vcombine.low %v3694, %v3710
        %v3728 = vcombine.high %v3694, %v3710
        %v3730 = vunpack.c.l.s4 1934713408
        %v3731 = vunpack.c.0.s8 %v3730
        %v3732 = vlaneseq
        %v3733 = vshrl.u32 %v3732, 7
        %v3734 = vsub.s32 %v3731, %v3733
        %v3735 = vrot.slane %v3727, %v3734
        %v3737 = vunpack.c.l.s4 1934713408
        %v3738 = vunpack.c.0.s8 %v3737
        %v3739 = vlaneseq
        %v3740 = vshrl.u32 %v3739, 7
        %v3741 = vsub.s32 %v3738, %v3740
        %v3742 = vrot.slane %v3728, %v3741
        %v3743 = vcombine.high %v3719, 0
        %v3744 = vcombine.high %v3726, 0
        %v3745 = vcombine.high %v3735, 0
        %v3746 = vcombine.high %v3742, 0
        %v3747 = vcombine.low %v3581, %v3597
        %v3748 = vcombine.high %v3581, %v3597
        %v3750 = vunpack.c.l.s4 1983009808
        %v3751 = vunpack.c.0.s8 %v3750
        %v3752 = vlaneseq
        %v3753 = vshrl.u32 %v3752, 7
        %v3754 = vsub.s32 %v3751, %v3753
        %v3755 = vrot.slane %v3747, %v3754
        %v3757 = vunpack.c.l.s4 1983009808
        %v3758 = vunpack.c.0.s8 %v3757
        %v3759 = vlaneseq
        %v3760 = vshrl.u32 %v3759, 7
        %v3761 = vsub.s32 %v3758, %v3760
        %v3762 = vrot.slane %v3748, %v3761
        %v3763 = vcombine.low %v3589, %v3605
        %v3764 = vcombine.high %v3589, %v3605
        %v3766 = vunpack.c.l.s4 1983009808
        %v3767 = vunpack.c.0.s8 %v3766
        %v3768 = vlaneseq
        %v3769 = vshrl.u32 %v3768, 7
        %v3770 = vsub.s32 %v3767, %v3769
        %v3771 = vrot.slane %v3763, %v3770
        %v3773 = vunpack.c.l.s4 1983009808
        %v3774 = vunpack.c.0.s8 %v3773
        %v3775 = vlaneseq
        %v3776 = vshrl.u32 %v3775, 7
        %v3777 = vsub.s32 %v3774, %v3776
        %v3778 = vrot.slane %v3764, %v3777
        %v3779 = vcombine.low %v3755, %v3771
        %v3780 = vcombine.high %v3755, %v3771
        %v3782 = vunpack.c.l.s4 1934713408
        %v3783 = vunpack.c.0.s8 %v3782
        %v3784 = vlaneseq
        %v3785 = vshrl.u32 %v3784, 7
        %v3786 = vsub.s32 %v3783, %v3785
        %v3787 = vrot.slane %v3779, %v3786
        %v3789 = vunpack.c.l.s4 1934713408
        %v3790 = vunpack.c.0.s8 %v3789
        %v3791 = vlaneseq
        %v3792 = vshrl.u32 %v3791, 7
        %v3793 = vsub.s32 %v3790, %v3792
        %v3794 = vrot.slane %v3780, %v3793
        %v3795 = vcombine.low %v3762, %v3778
        %v3796 = vcombine.high %v3762, %v3778
        %v3798 = vunpack.c.l.s4 1934713408
        %v3799 = vunpack.c.0.s8 %v3798
        %v3800 = vlaneseq
        %v3801 = vshrl.u32 %v3800, 7
        %v3802 = vsub.s32 %v3799, %v3801
        %v3803 = vrot.slane %v3795, %v3802
        %v3805 = vunpack.c.l.s4 1934713408
        %v3806 = vunpack.c.0.s8 %v3805
        %v3807 = vlaneseq
        %v3808 = vshrl.u32 %v3807, 7
        %v3809 = vsub.s32 %v3806, %v3808
        %v3810 = vrot.slane %v3796, %v3809
        %v3811 = vcombine.high %v3787, 0
        %v3812 = vcombine.high %v3794, 0
        %v3813 = vcombine.high %v3803, 0
        %v3814 = vcombine.high %v3810, 0
        %v3815 = vcombine.low %v3585, %v3601
        %v3816 = vcombine.high %v3585, %v3601
        %v3818 = vunpack.c.l.s4 1983009808
        %v3819 = vunpack.c.0.s8 %v3818
        %v3820 = vlaneseq
        %v3821 = vshrl.u32 %v3820, 7
        %v3822 = vsub.s32 %v3819, %v3821
        %v3823 = vrot.slane %v3815, %v3822
        %v3825 = vunpack.c.l.s4 1983009808
        %v3826 = vunpack.c.0.s8 %v3825
        %v3827 = vlaneseq
        %v3828 = vshrl.u32 %v3827, 7
        %v3829 = vsub.s32 %v3826, %v3828
        %v3830 = vrot.slane %v3816, %v3829
        %v3831 = vcombine.low %v3593, %v3609
        %v3832 = vcombine.high %v3593, %v3609
        %v3834 = vunpack.c.l.s4 1983009808
        %v3835 = vunpack.c.0.s8 %v3834
        %v3836 = vlaneseq
        %v3837 = vshrl.u32 %v3836, 7
        %v3838 = vsub.s32 %v3835, %v3837
        %v3839 = vrot.slane %v3831, %v3838
        %v3841 = vunpack.c.l.s4 1983009808
        %v3842 = vunpack.c.0.s8 %v3841
        %v3843 = vlaneseq
        %v3844 = vshrl.u32 %v3843, 7
        %v3845 = vsub.s32 %v3842, %v3844
        %v3846 = vrot.slane %v3832, %v3845
        %v3847 = vcombine.low %v3823, %v3839
        %v3848 = vcombine.high %v3823, %v3839
        %v3850 = vunpack.c.l.s4 1934713408
        %v3851 = vunpack.c.0.s8 %v3850
        %v3852 = vlaneseq
        %v3853 = vshrl.u32 %v3852, 7
        %v3854 = vsub.s32 %v3851, %v3853
        %v3855 = vrot.slane %v3847, %v3854
        %v3857 = vunpack.c.l.s4 1934713408
        %v3858 = vunpack.c.0.s8 %v3857
        %v3859 = vlaneseq
        %v3860 = vshrl.u32 %v3859, 7
        %v3861 = vsub.s32 %v3858, %v3860
        %v3862 = vrot.slane %v3848, %v3861
        %v3863 = vcombine.low %v3830, %v3846
        %v3864 = vcombine.high %v3830, %v3846
        %v3866 = vunpack.c.l.s4 1934713408
        %v3867 = vunpack.c.0.s8 %v3866
        %v3868 = vlaneseq
        %v3869 = vshrl.u32 %v3868, 7
        %v3870 = vsub.s32 %v3867, %v3869
        %v3871 = vrot.slane %v3863, %v3870
        %v3873 = vunpack.c.l.s4 1934713408
        %v3874 = vunpack.c.0.s8 %v3873
        %v3875 = vlaneseq
        %v3876 = vshrl.u32 %v3875, 7
        %v3877 = vsub.s32 %v3874, %v3876
        %v3878 = vrot.slane %v3864, %v3877
        %v3879 = vcombine.high %v3855, 0
        %v3880 = vcombine.high %v3862, 0
        %v3881 = vcombine.high %v3871, 0
        %v3882 = vcombine.high %v3878, 0
        %3883 = vxpose.xlu0.c.b16.start [1/8] %v3651, 128
        %3884 = vxpose.xlu0.c.b16.cont [2/8] 0, 128
        %3885 = vxpose.xlu0.c.b16.cont [3/8] 0, 128
        %3886 = vxpose.xlu0.c.b16.cont [4/8] 0, 128
        %3887 = vxpose.xlu0.c.b16.cont [5/8] 0, 128
        %3888 = vxpose.xlu0.c.b16.cont [6/8] 0, 128
        %3889 = vxpose.xlu0.c.b16.cont [7/8] 0, 128
        %3890 = vxpose.xlu0.c.b16.end [8/8] 0, 128
        %v3891 = vpop.trf.xlu0
        %v3892 = vpop.trf.xlu0
        %v3893 = vpop.trf.xlu0
        %v3894 = vpop.trf.xlu0
        %v3895 = vpop.trf.xlu0
        %v3896 = vpop.trf.xlu0
        %v3897 = vpop.trf.xlu0
        %v3898 = vpop.trf.xlu0
        %3899 = vxpose.xlu0.c.b16.start [1/8] %v3719, 128
        %3900 = vxpose.xlu0.c.b16.cont [2/8] 0, 128
        %3901 = vxpose.xlu0.c.b16.cont [3/8] 0, 128
        %3902 = vxpose.xlu0.c.b16.cont [4/8] 0, 128
        %3903 = vxpose.xlu0.c.b16.cont [5/8] 0, 128
        %3904 = vxpose.xlu0.c.b16.cont [6/8] 0, 128
        %3905 = vxpose.xlu0.c.b16.cont [7/8] 0, 128
        %3906 = vxpose.xlu0.c.b16.end [8/8] 0, 128
        %v3907 = vpop.trf.xlu0
        %v3908 = vpop.trf.xlu0
        %v3909 = vpop.trf.xlu0
        %v3910 = vpop.trf.xlu0
        %v3911 = vpop.trf.xlu0
        %v3912 = vpop.trf.xlu0
        %v3913 = vpop.trf.xlu0
        %v3914 = vpop.trf.xlu0
        %3915 = vxpose.xlu0.c.b16.start [1/8] %v3675, 128
        %3916 = vxpose.xlu0.c.b16.cont [2/8] 0, 128
        %3917 = vxpose.xlu0.c.b16.cont [3/8] 0, 128
        %3918 = vxpose.xlu0.c.b16.cont [4/8] 0, 128
        %3919 = vxpose.xlu0.c.b16.cont [5/8] 0, 128
        %3920 = vxpose.xlu0.c.b16.cont [6/8] 0, 128
        %3921 = vxpose.xlu0.c.b16.cont [7/8] 0, 128
        %3922 = vxpose.xlu0.c.b16.end [8/8] 0, 128
        %v3923 = vpop.trf.xlu0
        %v3924 = vpop.trf.xlu0
        %v3925 = vpop.trf.xlu0
        %v3926 = vpop.trf.xlu0
        %v3927 = vpop.trf.xlu0
        %v3928 = vpop.trf.xlu0
        %v3929 = vpop.trf.xlu0
        %v3930 = vpop.trf.xlu0
        %3931 = vxpose.xlu0.c.b16.start [1/8] %v3743, 128
        %3932 = vxpose.xlu0.c.b16.cont [2/8] 0, 128
        %3933 = vxpose.xlu0.c.b16.cont [3/8] 0, 128
        %3934 = vxpose.xlu0.c.b16.cont [4/8] 0, 128
        %3935 = vxpose.xlu0.c.b16.cont [5/8] 0, 128
        %3936 = vxpose.xlu0.c.b16.cont [6/8] 0, 128
        %3937 = vxpose.xlu0.c.b16.cont [7/8] 0, 128
        %3938 = vxpose.xlu0.c.b16.end [8/8] 0, 128
        %v3939 = vpop.trf.xlu0
        %v3940 = vpop.trf.xlu0
        %v3941 = vpop.trf.xlu0
        %v3942 = vpop.trf.xlu0
        %v3943 = vpop.trf.xlu0
        %v3944 = vpop.trf.xlu0
        %v3945 = vpop.trf.xlu0
        %v3946 = vpop.trf.xlu0
        %3947 = vxpose.xlu0.c.b16.start [1/8] %v3658, 128
        %3948 = vxpose.xlu0.c.b16.cont [2/8] 0, 128
        %3949 = vxpose.xlu0.c.b16.cont [3/8] 0, 128
        %3950 = vxpose.xlu0.c.b16.cont [4/8] 0, 128
        %3951 = vxpose.xlu0.c.b16.cont [5/8] 0, 128
        %3952 = vxpose.xlu0.c.b16.cont [6/8] 0, 128
        %3953 = vxpose.xlu0.c.b16.cont [7/8] 0, 128
        %3954 = vxpose.xlu0.c.b16.end [8/8] 0, 128
        %v3955 = vpop.trf.xlu0
        %v3956 = vpop.trf.xlu0
        %v3957 = vpop.trf.xlu0
        %v3958 = vpop.trf.xlu0
        %v3959 = vpop.trf.xlu0
        %v3960 = vpop.trf.xlu0
        %v3961 = vpop.trf.xlu0
        %v3962 = vpop.trf.xlu0
        %3963 = vxpose.xlu0.c.b16.start [1/8] %v3726, 128
        %3964 = vxpose.xlu0.c.b16.cont [2/8] 0, 128
        %3965 = vxpose.xlu0.c.b16.cont [3/8] 0, 128
        %3966 = vxpose.xlu0.c.b16.cont [4/8] 0, 128
        %3967 = vxpose.xlu0.c.b16.cont [5/8] 0, 128
        %3968 = vxpose.xlu0.c.b16.cont [6/8] 0, 128
        %3969 = vxpose.xlu0.c.b16.cont [7/8] 0, 128
        %3970 = vxpose.xlu0.c.b16.end [8/8] 0, 128
        %v3971 = vpop.trf.xlu0
        %v3972 = vpop.trf.xlu0
        %v3973 = vpop.trf.xlu0
        %v3974 = vpop.trf.xlu0
        %v3975 = vpop.trf.xlu0
        %v3976 = vpop.trf.xlu0
        %v3977 = vpop.trf.xlu0
        %v3978 = vpop.trf.xlu0
        %3979 = vxpose.xlu0.c.b16.start [1/8] %v3676, 128
        %3980 = vxpose.xlu0.c.b16.cont [2/8] 0, 128
        %3981 = vxpose.xlu0.c.b16.cont [3/8] 0, 128
        %3982 = vxpose.xlu0.c.b16.cont [4/8] 0, 128
        %3983 = vxpose.xlu0.c.b16.cont [5/8] 0, 128
        %3984 = vxpose.xlu0.c.b16.cont [6/8] 0, 128
        %3985 = vxpose.xlu0.c.b16.cont [7/8] 0, 128
        %3986 = vxpose.xlu0.c.b16.end [8/8] 0, 128
        %v3987 = vpop.trf.xlu0
        %v3988 = vpop.trf.xlu0
        %v3989 = vpop.trf.xlu0
        %v3990 = vpop.trf.xlu0
        %v3991 = vpop.trf.xlu0
        %v3992 = vpop.trf.xlu0
        %v3993 = vpop.trf.xlu0
        %v3994 = vpop.trf.xlu0
        %3995 = vxpose.xlu0.c.b16.start [1/8] %v3744, 128
        %3996 = vxpose.xlu0.c.b16.cont [2/8] 0, 128
        %3997 = vxpose.xlu0.c.b16.cont [3/8] 0, 128
        %3998 = vxpose.xlu0.c.b16.cont [4/8] 0, 128
        %3999 = vxpose.xlu0.c.b16.cont [5/8] 0, 128
        %4000 = vxpose.xlu0.c.b16.cont [6/8] 0, 128
        %4001 = vxpose.xlu0.c.b16.cont [7/8] 0, 128
        %4002 = vxpose.xlu0.c.b16.end [8/8] 0, 128
        %v4003 = vpop.trf.xlu0
        %v4004 = vpop.trf.xlu0
        %v4005 = vpop.trf.xlu0
        %v4006 = vpop.trf.xlu0
        %v4007 = vpop.trf.xlu0
        %v4008 = vpop.trf.xlu0
        %v4009 = vpop.trf.xlu0
        %v4010 = vpop.trf.xlu0
        %4011 = vxpose.xlu0.c.b16.start [1/8] %v3667, 128
        %4012 = vxpose.xlu0.c.b16.cont [2/8] 0, 128
        %4013 = vxpose.xlu0.c.b16.cont [3/8] 0, 128
        %4014 = vxpose.xlu0.c.b16.cont [4/8] 0, 128
        %4015 = vxpose.xlu0.c.b16.cont [5/8] 0, 128
        %4016 = vxpose.xlu0.c.b16.cont [6/8] 0, 128
        %4017 = vxpose.xlu0.c.b16.cont [7/8] 0, 128
        %4018 = vxpose.xlu0.c.b16.end [8/8] 0, 128
        %v4019 = vpop.trf.xlu0
        %v4020 = vpop.trf.xlu0
        %v4021 = vpop.trf.xlu0
        %v4022 = vpop.trf.xlu0
        %v4023 = vpop.trf.xlu0
        %v4024 = vpop.trf.xlu0
        %v4025 = vpop.trf.xlu0
        %v4026 = vpop.trf.xlu0
        %4027 = vxpose.xlu0.c.b16.start [1/8] %v3735, 128
        %4028 = vxpose.xlu0.c.b16.cont [2/8] 0, 128
        %4029 = vxpose.xlu0.c.b16.cont [3/8] 0, 128
        %4030 = vxpose.xlu0.c.b16.cont [4/8] 0, 128
        %4031 = vxpose.xlu0.c.b16.cont [5/8] 0, 128
        %4032 = vxpose.xlu0.c.b16.cont [6/8] 0, 128
        %4033 = vxpose.xlu0.c.b16.cont [7/8] 0, 128
        %4034 = vxpose.xlu0.c.b16.end [8/8] 0, 128
        %v4035 = vpop.trf.xlu0
        %v4036 = vpop.trf.xlu0
        %v4037 = vpop.trf.xlu0
        %v4038 = vpop.trf.xlu0
        %v4039 = vpop.trf.xlu0
        %v4040 = vpop.trf.xlu0
        %v4041 = vpop.trf.xlu0
        %v4042 = vpop.trf.xlu0
        %4043 = vxpose.xlu0.c.b16.start [1/8] %v3677, 128
        %4044 = vxpose.xlu0.c.b16.cont [2/8] 0, 128
        %4045 = vxpose.xlu0.c.b16.cont [3/8] 0, 128
        %4046 = vxpose.xlu0.c.b16.cont [4/8] 0, 128
        %4047 = vxpose.xlu0.c.b16.cont [5/8] 0, 128
        %4048 = vxpose.xlu0.c.b16.cont [6/8] 0, 128
        %4049 = vxpose.xlu0.c.b16.cont [7/8] 0, 128
        %4050 = vxpose.xlu0.c.b16.end [8/8] 0, 128
        %v4051 = vpop.trf.xlu0
        %v4052 = vpop.trf.xlu0
        %v4053 = vpop.trf.xlu0
        %v4054 = vpop.trf.xlu0
        %v4055 = vpop.trf.xlu0
        %v4056 = vpop.trf.xlu0
        %v4057 = vpop.trf.xlu0
        %v4058 = vpop.trf.xlu0
        %4059 = vxpose.xlu0.c.b16.start [1/8] %v3745, 128
        %4060 = vxpose.xlu0.c.b16.cont [2/8] 0, 128
        %4061 = vxpose.xlu0.c.b16.cont [3/8] 0, 128
        %4062 = vxpose.xlu0.c.b16.cont [4/8] 0, 128
        %4063 = vxpose.xlu0.c.b16.cont [5/8] 0, 128
        %4064 = vxpose.xlu0.c.b16.cont [6/8] 0, 128
        %4065 = vxpose.xlu0.c.b16.cont [7/8] 0, 128
        %4066 = vxpose.xlu0.c.b16.end [8/8] 0, 128
        %v4067 = vpop.trf.xlu0
        %v4068 = vpop.trf.xlu0
        %v4069 = vpop.trf.xlu0
        %v4070 = vpop.trf.xlu0
        %v4071 = vpop.trf.xlu0
        %v4072 = vpop.trf.xlu0
        %v4073 = vpop.trf.xlu0
        %v4074 = vpop.trf.xlu0
        %4075 = vxpose.xlu0.c.b16.start [1/8] %v3674, 128
        %4076 = vxpose.xlu0.c.b16.cont [2/8] 0, 128
        %4077 = vxpose.xlu0.c.b16.cont [3/8] 0, 128
        %4078 = vxpose.xlu0.c.b16.cont [4/8] 0, 128
        %4079 = vxpose.xlu0.c.b16.cont [5/8] 0, 128
        %4080 = vxpose.xlu0.c.b16.cont [6/8] 0, 128
        %4081 = vxpose.xlu0.c.b16.cont [7/8] 0, 128
        %4082 = vxpose.xlu0.c.b16.end [8/8] 0, 128
        %v4083 = vpop.trf.xlu0
        %v4084 = vpop.trf.xlu0
        %v4085 = vpop.trf.xlu0
        %v4086 = vpop.trf.xlu0
        %v4087 = vpop.trf.xlu0
        %v4088 = vpop.trf.xlu0
        %v4089 = vpop.trf.xlu0
        %v4090 = vpop.trf.xlu0
        %4091 = vxpose.xlu0.c.b16.start [1/8] %v3742, 128
        %4092 = vxpose.xlu0.c.b16.cont [2/8] 0, 128
        %4093 = vxpose.xlu0.c.b16.cont [3/8] 0, 128
        %4094 = vxpose.xlu0.c.b16.cont [4/8] 0, 128
        %4095 = vxpose.xlu0.c.b16.cont [5/8] 0, 128
        %4096 = vxpose.xlu0.c.b16.cont [6/8] 0, 128
        %4097 = vxpose.xlu0.c.b16.cont [7/8] 0, 128
        %4098 = vxpose.xlu0.c.b16.end [8/8] 0, 128
        %v4099 = vpop.trf.xlu0
        %v4100 = vpop.trf.xlu0
        %v4101 = vpop.trf.xlu0
        %v4102 = vpop.trf.xlu0
        %v4103 = vpop.trf.xlu0
        %v4104 = vpop.trf.xlu0
        %v4105 = vpop.trf.xlu0
        %v4106 = vpop.trf.xlu0
        %4107 = vxpose.xlu0.c.b16.start [1/8] %v3678, 128
        %4108 = vxpose.xlu0.c.b16.cont [2/8] 0, 128
        %4109 = vxpose.xlu0.c.b16.cont [3/8] 0, 128
        %4110 = vxpose.xlu0.c.b16.cont [4/8] 0, 128
        %4111 = vxpose.xlu0.c.b16.cont [5/8] 0, 128
        %4112 = vxpose.xlu0.c.b16.cont [6/8] 0, 128
        %4113 = vxpose.xlu0.c.b16.cont [7/8] 0, 128
        %4114 = vxpose.xlu0.c.b16.end [8/8] 0, 128
        %v4115 = vpop.trf.xlu0
        %v4116 = vpop.trf.xlu0
        %v4117 = vpop.trf.xlu0
        %v4118 = vpop.trf.xlu0
        %v4119 = vpop.trf.xlu0
        %v4120 = vpop.trf.xlu0
        %v4121 = vpop.trf.xlu0
        %v4122 = vpop.trf.xlu0
        %4123 = vxpose.xlu0.c.b16.start [1/8] %v3746, 128
        %4124 = vxpose.xlu0.c.b16.cont [2/8] 0, 128
        %4125 = vxpose.xlu0.c.b16.cont [3/8] 0, 128
        %4126 = vxpose.xlu0.c.b16.cont [4/8] 0, 128
        %4127 = vxpose.xlu0.c.b16.cont [5/8] 0, 128
        %4128 = vxpose.xlu0.c.b16.cont [6/8] 0, 128
        %4129 = vxpose.xlu0.c.b16.cont [7/8] 0, 128
        %4130 = vxpose.xlu0.c.b16.end [8/8] 0, 128
        %v4131 = vpop.trf.xlu0
        %v4132 = vpop.trf.xlu0
        %v4133 = vpop.trf.xlu0
        %v4134 = vpop.trf.xlu0
        %v4135 = vpop.trf.xlu0
        %v4136 = vpop.trf.xlu0
        %v4137 = vpop.trf.xlu0
        %v4138 = vpop.trf.xlu0
        %4139 = vxpose.xlu0.c.b16.start [1/8] %v3787, 128
        %4140 = vxpose.xlu0.c.b16.cont [2/8] 0, 128
        %4141 = vxpose.xlu0.c.b16.cont [3/8] 0, 128
        %4142 = vxpose.xlu0.c.b16.cont [4/8] 0, 128
        %4143 = vxpose.xlu0.c.b16.cont [5/8] 0, 128
        %4144 = vxpose.xlu0.c.b16.cont [6/8] 0, 128
        %4145 = vxpose.xlu0.c.b16.cont [7/8] 0, 128
        %4146 = vxpose.xlu0.c.b16.end [8/8] 0, 128
        %v4147 = vpop.trf.xlu0
        %v4148 = vpop.trf.xlu0
        %v4149 = vpop.trf.xlu0
        %v4150 = vpop.trf.xlu0
        %v4151 = vpop.trf.xlu0
        %v4152 = vpop.trf.xlu0
        %v4153 = vpop.trf.xlu0
        %v4154 = vpop.trf.xlu0
        %4155 = vxpose.xlu0.c.b16.start [1/8] %v3855, 128
        %4156 = vxpose.xlu0.c.b16.cont [2/8] 0, 128
        %4157 = vxpose.xlu0.c.b16.cont [3/8] 0, 128
        %4158 = vxpose.xlu0.c.b16.cont [4/8] 0, 128
        %4159 = vxpose.xlu0.c.b16.cont [5/8] 0, 128
        %4160 = vxpose.xlu0.c.b16.cont [6/8] 0, 128
        %4161 = vxpose.xlu0.c.b16.cont [7/8] 0, 128
        %4162 = vxpose.xlu0.c.b16.end [8/8] 0, 128
        %v4163 = vpop.trf.xlu0
        %v4164 = vpop.trf.xlu0
        %v4165 = vpop.trf.xlu0
        %v4166 = vpop.trf.xlu0
        %v4167 = vpop.trf.xlu0
        %v4168 = vpop.trf.xlu0
        %v4169 = vpop.trf.xlu0
        %v4170 = vpop.trf.xlu0
        %4171 = vxpose.xlu0.c.b16.start [1/8] %v3811, 128
        %4172 = vxpose.xlu0.c.b16.cont [2/8] 0, 128
        %4173 = vxpose.xlu0.c.b16.cont [3/8] 0, 128
        %4174 = vxpose.xlu0.c.b16.cont [4/8] 0, 128
        %4175 = vxpose.xlu0.c.b16.cont [5/8] 0, 128
        %4176 = vxpose.xlu0.c.b16.cont [6/8] 0, 128
        %4177 = vxpose.xlu0.c.b16.cont [7/8] 0, 128
        %4178 = vxpose.xlu0.c.b16.end [8/8] 0, 128
        %v4179 = vpop.trf.xlu0
        %v4180 = vpop.trf.xlu0
        %v4181 = vpop.trf.xlu0
        %v4182 = vpop.trf.xlu0
        %v4183 = vpop.trf.xlu0
        %v4184 = vpop.trf.xlu0
        %v4185 = vpop.trf.xlu0
        %v4186 = vpop.trf.xlu0
        %4187 = vxpose.xlu0.c.b16.start [1/8] %v3879, 128
        %4188 = vxpose.xlu0.c.b16.cont [2/8] 0, 128
        %4189 = vxpose.xlu0.c.b16.cont [3/8] 0, 128
        %4190 = vxpose.xlu0.c.b16.cont [4/8] 0, 128
        %4191 = vxpose.xlu0.c.b16.cont [5/8] 0, 128
        %4192 = vxpose.xlu0.c.b16.cont [6/8] 0, 128
        %4193 = vxpose.xlu0.c.b16.cont [7/8] 0, 128
        %4194 = vxpose.xlu0.c.b16.end [8/8] 0, 128
        %v4195 = vpop.trf.xlu0
        %v4196 = vpop.trf.xlu0
        %v4197 = vpop.trf.xlu0
        %v4198 = vpop.trf.xlu0
        %v4199 = vpop.trf.xlu0
        %v4200 = vpop.trf.xlu0
        %v4201 = vpop.trf.xlu0
        %v4202 = vpop.trf.xlu0
        %4203 = vxpose.xlu0.c.b16.start [1/8] %v3794, 128
        %4204 = vxpose.xlu0.c.b16.cont [2/8] 0, 128
        %4205 = vxpose.xlu0.c.b16.cont [3/8] 0, 128
        %4206 = vxpose.xlu0.c.b16.cont [4/8] 0, 128
        %4207 = vxpose.xlu0.c.b16.cont [5/8] 0, 128
        %4208 = vxpose.xlu0.c.b16.cont [6/8] 0, 128
        %4209 = vxpose.xlu0.c.b16.cont [7/8] 0, 128
        %4210 = vxpose.xlu0.c.b16.end [8/8] 0, 128
        %v4211 = vpop.trf.xlu0
        %v4212 = vpop.trf.xlu0
        %v4213 = vpop.trf.xlu0
        %v4214 = vpop.trf.xlu0
        %v4215 = vpop.trf.xlu0
        %v4216 = vpop.trf.xlu0
        %v4217 = vpop.trf.xlu0
        %v4218 = vpop.trf.xlu0
        %4219 = vxpose.xlu0.c.b16.start [1/8] %v3862, 128
        %4220 = vxpose.xlu0.c.b16.cont [2/8] 0, 128
        %4221 = vxpose.xlu0.c.b16.cont [3/8] 0, 128
        %4222 = vxpose.xlu0.c.b16.cont [4/8] 0, 128
        %4223 = vxpose.xlu0.c.b16.cont [5/8] 0, 128
        %4224 = vxpose.xlu0.c.b16.cont [6/8] 0, 128
        %4225 = vxpose.xlu0.c.b16.cont [7/8] 0, 128
        %4226 = vxpose.xlu0.c.b16.end [8/8] 0, 128
        %v4227 = vpop.trf.xlu0
        %v4228 = vpop.trf.xlu0
        %v4229 = vpop.trf.xlu0
        %v4230 = vpop.trf.xlu0
        %v4231 = vpop.trf.xlu0
        %v4232 = vpop.trf.xlu0
        %v4233 = vpop.trf.xlu0
        %v4234 = vpop.trf.xlu0
        %4235 = vxpose.xlu0.c.b16.start [1/8] %v3812, 128
        %4236 = vxpose.xlu0.c.b16.cont [2/8] 0, 128
        %4237 = vxpose.xlu0.c.b16.cont [3/8] 0, 128
        %4238 = vxpose.xlu0.c.b16.cont [4/8] 0, 128
        %4239 = vxpose.xlu0.c.b16.cont [5/8] 0, 128
        %4240 = vxpose.xlu0.c.b16.cont [6/8] 0, 128
        %4241 = vxpose.xlu0.c.b16.cont [7/8] 0, 128
        %4242 = vxpose.xlu0.c.b16.end [8/8] 0, 128
        %v4243 = vpop.trf.xlu0
        %v4244 = vpop.trf.xlu0
        %v4245 = vpop.trf.xlu0
        %v4246 = vpop.trf.xlu0
        %v4247 = vpop.trf.xlu0
        %v4248 = vpop.trf.xlu0
        %v4249 = vpop.trf.xlu0
        %v4250 = vpop.trf.xlu0
        %4251 = vxpose.xlu0.c.b16.start [1/8] %v3880, 128
        %4252 = vxpose.xlu0.c.b16.cont [2/8] 0, 128
        %4253 = vxpose.xlu0.c.b16.cont [3/8] 0, 128
        %4254 = vxpose.xlu0.c.b16.cont [4/8] 0, 128
        %4255 = vxpose.xlu0.c.b16.cont [5/8] 0, 128
        %4256 = vxpose.xlu0.c.b16.cont [6/8] 0, 128
        %4257 = vxpose.xlu0.c.b16.cont [7/8] 0, 128
        %4258 = vxpose.xlu0.c.b16.end [8/8] 0, 128
        %v4259 = vpop.trf.xlu0
        %v4260 = vpop.trf.xlu0
        %v4261 = vpop.trf.xlu0
        %v4262 = vpop.trf.xlu0
        %v4263 = vpop.trf.xlu0
        %v4264 = vpop.trf.xlu0
        %v4265 = vpop.trf.xlu0
        %v4266 = vpop.trf.xlu0
        %4267 = vxpose.xlu0.c.b16.start [1/8] %v3803, 128
        %4268 = vxpose.xlu0.c.b16.cont [2/8] 0, 128
        %4269 = vxpose.xlu0.c.b16.cont [3/8] 0, 128
        %4270 = vxpose.xlu0.c.b16.cont [4/8] 0, 128
        %4271 = vxpose.xlu0.c.b16.cont [5/8] 0, 128
        %4272 = vxpose.xlu0.c.b16.cont [6/8] 0, 128
        %4273 = vxpose.xlu0.c.b16.cont [7/8] 0, 128
        %4274 = vxpose.xlu0.c.b16.end [8/8] 0, 128
        %v4275 = vpop.trf.xlu0
        %v4276 = vpop.trf.xlu0
        %v4277 = vpop.trf.xlu0
        %v4278 = vpop.trf.xlu0
        %v4279 = vpop.trf.xlu0
        %v4280 = vpop.trf.xlu0
        %v4281 = vpop.trf.xlu0
        %v4282 = vpop.trf.xlu0
        %4283 = vxpose.xlu0.c.b16.start [1/8] %v3871, 128
        %4284 = vxpose.xlu0.c.b16.cont [2/8] 0, 128
        %4285 = vxpose.xlu0.c.b16.cont [3/8] 0, 128
        %4286 = vxpose.xlu0.c.b16.cont [4/8] 0, 128
        %4287 = vxpose.xlu0.c.b16.cont [5/8] 0, 128
        %4288 = vxpose.xlu0.c.b16.cont [6/8] 0, 128
        %4289 = vxpose.xlu0.c.b16.cont [7/8] 0, 128
        %4290 = vxpose.xlu0.c.b16.end [8/8] 0, 128
        %v4291 = vpop.trf.xlu0
        %v4292 = vpop.trf.xlu0
        %v4293 = vpop.trf.xlu0
        %v4294 = vpop.trf.xlu0
        %v4295 = vpop.trf.xlu0
        %v4296 = vpop.trf.xlu0
        %v4297 = vpop.trf.xlu0
        %v4298 = vpop.trf.xlu0
        %4299 = vxpose.xlu0.c.b16.start [1/8] %v3813, 128
        %4300 = vxpose.xlu0.c.b16.cont [2/8] 0, 128
        %4301 = vxpose.xlu0.c.b16.cont [3/8] 0, 128
        %4302 = vxpose.xlu0.c.b16.cont [4/8] 0, 128
        %4303 = vxpose.xlu0.c.b16.cont [5/8] 0, 128
        %4304 = vxpose.xlu0.c.b16.cont [6/8] 0, 128
        %4305 = vxpose.xlu0.c.b16.cont [7/8] 0, 128
        %4306 = vxpose.xlu0.c.b16.end [8/8] 0, 128
        %v4307 = vpop.trf.xlu0
        %v4308 = vpop.trf.xlu0
        %v4309 = vpop.trf.xlu0
        %v4310 = vpop.trf.xlu0
        %v4311 = vpop.trf.xlu0
        %v4312 = vpop.trf.xlu0
        %v4313 = vpop.trf.xlu0
        %v4314 = vpop.trf.xlu0
        %4315 = vxpose.xlu0.c.b16.start [1/8] %v3881, 128
        %4316 = vxpose.xlu0.c.b16.cont [2/8] 0, 128
        %4317 = vxpose.xlu0.c.b16.cont [3/8] 0, 128
        %4318 = vxpose.xlu0.c.b16.cont [4/8] 0, 128
        %4319 = vxpose.xlu0.c.b16.cont [5/8] 0, 128
        %4320 = vxpose.xlu0.c.b16.cont [6/8] 0, 128
        %4321 = vxpose.xlu0.c.b16.cont [7/8] 0, 128
        %4322 = vxpose.xlu0.c.b16.end [8/8] 0, 128
        %v4323 = vpop.trf.xlu0
        %v4324 = vpop.trf.xlu0
        %v4325 = vpop.trf.xlu0
        %v4326 = vpop.trf.xlu0
        %v4327 = vpop.trf.xlu0
        %v4328 = vpop.trf.xlu0
        %v4329 = vpop.trf.xlu0
        %v4330 = vpop.trf.xlu0
        %4331 = vxpose.xlu0.c.b16.start [1/8] %v3810, 128
        %4332 = vxpose.xlu0.c.b16.cont [2/8] 0, 128
        %4333 = vxpose.xlu0.c.b16.cont [3/8] 0, 128
        %4334 = vxpose.xlu0.c.b16.cont [4/8] 0, 128
        %4335 = vxpose.xlu0.c.b16.cont [5/8] 0, 128
        %4336 = vxpose.xlu0.c.b16.cont [6/8] 0, 128
        %4337 = vxpose.xlu0.c.b16.cont [7/8] 0, 128
        %4338 = vxpose.xlu0.c.b16.end [8/8] 0, 128
        %v4339 = vpop.trf.xlu0
        %v4340 = vpop.trf.xlu0
        %v4341 = vpop.trf.xlu0
        %v4342 = vpop.trf.xlu0
        %v4343 = vpop.trf.xlu0
        %v4344 = vpop.trf.xlu0
        %v4345 = vpop.trf.xlu0
        %v4346 = vpop.trf.xlu0
        %4347 = vxpose.xlu0.c.b16.start [1/8] %v3878, 128
        %4348 = vxpose.xlu0.c.b16.cont [2/8] 0, 128
        %4349 = vxpose.xlu0.c.b16.cont [3/8] 0, 128
        %4350 = vxpose.xlu0.c.b16.cont [4/8] 0, 128
        %4351 = vxpose.xlu0.c.b16.cont [5/8] 0, 128
        %4352 = vxpose.xlu0.c.b16.cont [6/8] 0, 128
        %4353 = vxpose.xlu0.c.b16.cont [7/8] 0, 128
        %4354 = vxpose.xlu0.c.b16.end [8/8] 0, 128
        %v4355 = vpop.trf.xlu0
        %v4356 = vpop.trf.xlu0
        %v4357 = vpop.trf.xlu0
        %v4358 = vpop.trf.xlu0
        %v4359 = vpop.trf.xlu0
        %v4360 = vpop.trf.xlu0
        %v4361 = vpop.trf.xlu0
        %v4362 = vpop.trf.xlu0
        %4363 = vxpose.xlu0.c.b16.start [1/8] %v3814, 128
        %4364 = vxpose.xlu0.c.b16.cont [2/8] 0, 128
        %4365 = vxpose.xlu0.c.b16.cont [3/8] 0, 128
        %4366 = vxpose.xlu0.c.b16.cont [4/8] 0, 128
        %4367 = vxpose.xlu0.c.b16.cont [5/8] 0, 128
        %4368 = vxpose.xlu0.c.b16.cont [6/8] 0, 128
        %4369 = vxpose.xlu0.c.b16.cont [7/8] 0, 128
        %4370 = vxpose.xlu0.c.b16.end [8/8] 0, 128
        %v4371 = vpop.trf.xlu0
        %v4372 = vpop.trf.xlu0
        %v4373 = vpop.trf.xlu0
        %v4374 = vpop.trf.xlu0
        %v4375 = vpop.trf.xlu0
        %v4376 = vpop.trf.xlu0
        %v4377 = vpop.trf.xlu0
        %v4378 = vpop.trf.xlu0
        %4379 = vxpose.xlu0.c.b16.start [1/8] %v3882, 128
        %4380 = vxpose.xlu0.c.b16.cont [2/8] 0, 128
        %4381 = vxpose.xlu0.c.b16.cont [3/8] 0, 128
        %4382 = vxpose.xlu0.c.b16.cont [4/8] 0, 128
        %4383 = vxpose.xlu0.c.b16.cont [5/8] 0, 128
        %4384 = vxpose.xlu0.c.b16.cont [6/8] 0, 128
        %4385 = vxpose.xlu0.c.b16.cont [7/8] 0, 128
        %4386 = vxpose.xlu0.c.b16.end [8/8] 0, 128
        %v4387 = vpop.trf.xlu0
        %v4388 = vpop.trf.xlu0
        %v4389 = vpop.trf.xlu0
        %v4390 = vpop.trf.xlu0
        %v4391 = vpop.trf.xlu0
        %v4392 = vpop.trf.xlu0
        %v4393 = vpop.trf.xlu0
        %v4394 = vpop.trf.xlu0
        %v4395 = vcombine.low %v3891, %v3955
        %v4397 = vunpack.c.l.s4 1983009808
        %v4398 = vunpack.c.0.s8 %v4397
        %v4399 = vlaneseq
        %v4400 = vshrl.u32 %v4399, 7
        %v4401 = vsub.s32 %v4398, %v4400
        %v4402 = vrot.slane %v4395, %v4401
        %v4403 = vcombine.low %v3923, %v3987
        %v4405 = vunpack.c.l.s4 1983009808
        %v4406 = vunpack.c.0.s8 %v4405
        %v4407 = vlaneseq
        %v4408 = vshrl.u32 %v4407, 7
        %v4409 = vsub.s32 %v4406, %v4408
        %v4410 = vrot.slane %v4403, %v4409
        %v4411 = vcombine.low %v4019, %v4083
        %v4413 = vunpack.c.l.s4 1983009808
        %v4414 = vunpack.c.0.s8 %v4413
        %v4415 = vlaneseq
        %v4416 = vshrl.u32 %v4415, 7
        %v4417 = vsub.s32 %v4414, %v4416
        %v4418 = vrot.slane %v4411, %v4417
        %v4419 = vcombine.low %v4051, %v4115
        %v4421 = vunpack.c.l.s4 1983009808
        %v4422 = vunpack.c.0.s8 %v4421
        %v4423 = vlaneseq
        %v4424 = vshrl.u32 %v4423, 7
        %v4425 = vsub.s32 %v4422, %v4424
        %v4426 = vrot.slane %v4419, %v4425
        %v4427 = vcombine.low %v4402, %v4410
        %v4429 = vunpack.c.l.s4 1934713408
        %v4430 = vunpack.c.0.s8 %v4429
        %v4431 = vlaneseq
        %v4432 = vshrl.u32 %v4431, 7
        %v4433 = vsub.s32 %v4430, %v4432
        %v4434 = vrot.slane %v4427, %v4433
        %v4435 = vcombine.low %v4418, %v4426
        %v4437 = vunpack.c.l.s4 1934713408
        %v4438 = vunpack.c.0.s8 %v4437
        %v4439 = vlaneseq
        %v4440 = vshrl.u32 %v4439, 7
        %v4441 = vsub.s32 %v4438, %v4440
        %v4442 = vrot.slane %v4435, %v4441
        %v4443 = vcombine.low %v4434, %v4442
        %v4444 = vcombine.high %v4434, %v4442
        %v4445 = vcombine.low %v3907, %v3971
        %v4447 = vunpack.c.l.s4 1983009808
        %v4448 = vunpack.c.0.s8 %v4447
        %v4449 = vlaneseq
        %v4450 = vshrl.u32 %v4449, 7
        %v4451 = vsub.s32 %v4448, %v4450
        %v4452 = vrot.slane %v4445, %v4451
        %v4453 = vcombine.low %v3939, %v4003
        %v4455 = vunpack.c.l.s4 1983009808
        %v4456 = vunpack.c.0.s8 %v4455
        %v4457 = vlaneseq
        %v4458 = vshrl.u32 %v4457, 7
        %v4459 = vsub.s32 %v4456, %v4458
        %v4460 = vrot.slane %v4453, %v4459
        %v4461 = vcombine.low %v4035, %v4099
        %v4463 = vunpack.c.l.s4 1983009808
        %v4464 = vunpack.c.0.s8 %v4463
        %v4465 = vlaneseq
        %v4466 = vshrl.u32 %v4465, 7
        %v4467 = vsub.s32 %v4464, %v4466
        %v4468 = vrot.slane %v4461, %v4467
        %v4469 = vcombine.low %v4067, %v4131
        %v4471 = vunpack.c.l.s4 1983009808
        %v4472 = vunpack.c.0.s8 %v4471
        %v4473 = vlaneseq
        %v4474 = vshrl.u32 %v4473, 7
        %v4475 = vsub.s32 %v4472, %v4474
        %v4476 = vrot.slane %v4469, %v4475
        %v4477 = vcombine.low %v4452, %v4460
        %v4479 = vunpack.c.l.s4 1934713408
        %v4480 = vunpack.c.0.s8 %v4479
        %v4481 = vlaneseq
        %v4482 = vshrl.u32 %v4481, 7
        %v4483 = vsub.s32 %v4480, %v4482
        %v4484 = vrot.slane %v4477, %v4483
        %v4485 = vcombine.low %v4468, %v4476
        %v4487 = vunpack.c.l.s4 1934713408
        %v4488 = vunpack.c.0.s8 %v4487
        %v4489 = vlaneseq
        %v4490 = vshrl.u32 %v4489, 7
        %v4491 = vsub.s32 %v4488, %v4490
        %v4492 = vrot.slane %v4485, %v4491
        %v4493 = vcombine.low %v4484, %v4492
        %v4494 = vcombine.high %v4484, %v4492
        %v4495 = vcombine.low %v4147, %v4211
        %v4497 = vunpack.c.l.s4 1983009808
        %v4498 = vunpack.c.0.s8 %v4497
        %v4499 = vlaneseq
        %v4500 = vshrl.u32 %v4499, 7
        %v4501 = vsub.s32 %v4498, %v4500
        %v4502 = vrot.slane %v4495, %v4501
        %v4503 = vcombine.low %v4179, %v4243
        %v4505 = vunpack.c.l.s4 1983009808
        %v4506 = vunpack.c.0.s8 %v4505
        %v4507 = vlaneseq
        %v4508 = vshrl.u32 %v4507, 7
        %v4509 = vsub.s32 %v4506, %v4508
        %v4510 = vrot.slane %v4503, %v4509
        %v4511 = vcombine.low %v4275, %v4339
        %v4513 = vunpack.c.l.s4 1983009808
        %v4514 = vunpack.c.0.s8 %v4513
        %v4515 = vlaneseq
        %v4516 = vshrl.u32 %v4515, 7
        %v4517 = vsub.s32 %v4514, %v4516
        %v4518 = vrot.slane %v4511, %v4517
        %v4519 = vcombine.low %v4307, %v4371
        %v4521 = vunpack.c.l.s4 1983009808
        %v4522 = vunpack.c.0.s8 %v4521
        %v4523 = vlaneseq
        %v4524 = vshrl.u32 %v4523, 7
        %v4525 = vsub.s32 %v4522, %v4524
        %v4526 = vrot.slane %v4519, %v4525
        %v4527 = vcombine.low %v4502, %v4510
        %v4529 = vunpack.c.l.s4 1934713408
        %v4530 = vunpack.c.0.s8 %v4529
        %v4531 = vlaneseq
        %v4532 = vshrl.u32 %v4531, 7
        %v4533 = vsub.s32 %v4530, %v4532
        %v4534 = vrot.slane %v4527, %v4533
        %v4535 = vcombine.low %v4518, %v4526
        %v4537 = vunpack.c.l.s4 1934713408
        %v4538 = vunpack.c.0.s8 %v4537
        %v4539 = vlaneseq
        %v4540 = vshrl.u32 %v4539, 7
        %v4541 = vsub.s32 %v4538, %v4540
        %v4542 = vrot.slane %v4535, %v4541
        %v4543 = vcombine.low %v4534, %v4542
        %v4544 = vcombine.high %v4534, %v4542
        %v4545 = vcombine.low %v4163, %v4227
        %v4547 = vunpack.c.l.s4 1983009808
        %v4548 = vunpack.c.0.s8 %v4547
        %v4549 = vlaneseq
        %v4550 = vshrl.u32 %v4549, 7
        %v4551 = vsub.s32 %v4548, %v4550
        %v4552 = vrot.slane %v4545, %v4551
        %v4553 = vcombine.low %v4195, %v4259
        %v4555 = vunpack.c.l.s4 1983009808
        %v4556 = vunpack.c.0.s8 %v4555
        %v4557 = vlaneseq
        %v4558 = vshrl.u32 %v4557, 7
        %v4559 = vsub.s32 %v4556, %v4558
        %v4560 = vrot.slane %v4553, %v4559
        %v4561 = vcombine.low %v4291, %v4355
        %v4563 = vunpack.c.l.s4 1983009808
        %v4564 = vunpack.c.0.s8 %v4563
        %v4565 = vlaneseq
        %v4566 = vshrl.u32 %v4565, 7
        %v4567 = vsub.s32 %v4564, %v4566
        %v4568 = vrot.slane %v4561, %v4567
        %v4569 = vcombine.low %v4323, %v4387
        %v4571 = vunpack.c.l.s4 1983009808
        %v4572 = vunpack.c.0.s8 %v4571
        %v4573 = vlaneseq
        %v4574 = vshrl.u32 %v4573, 7
        %v4575 = vsub.s32 %v4572, %v4574
        %v4576 = vrot.slane %v4569, %v4575
        %v4577 = vcombine.low %v4552, %v4560
        %v4579 = vunpack.c.l.s4 1934713408
        %v4580 = vunpack.c.0.s8 %v4579
        %v4581 = vlaneseq
        %v4582 = vshrl.u32 %v4581, 7
        %v4583 = vsub.s32 %v4580, %v4582
        %v4584 = vrot.slane %v4577, %v4583
        %v4585 = vcombine.low %v4568, %v4576
        %v4587 = vunpack.c.l.s4 1934713408
        %v4588 = vunpack.c.0.s8 %v4587
        %v4589 = vlaneseq
        %v4590 = vshrl.u32 %v4589, 7
        %v4591 = vsub.s32 %v4588, %v4590
        %v4592 = vrot.slane %v4585, %v4591
        %v4593 = vcombine.low %v4584, %v4592
        %v4594 = vcombine.high %v4584, %v4592
        %v4597 = vpack.i.b16 %v4493, %v4443
        %v4598 = vshrl.u32 %v4443, 16
        %v4599 = vshrl.u32 %v4493, 16
        %v4600 = vpack.i.b16 %v4599, %v4598
        %v4603 = vpack.i.b16 %v4494, %v4444
        %v4604 = vshrl.u32 %v4444, 16
        %v4605 = vshrl.u32 %v4494, 16
        %v4606 = vpack.i.b16 %v4605, %v4604
        %v4609 = vpack.i.b16 %v4593, %v4543
        %v4610 = vshrl.u32 %v4543, 16
        %v4611 = vshrl.u32 %v4593, 16
        %v4612 = vpack.i.b16 %v4611, %v4610
        %v4615 = vpack.i.b16 %v4594, %v4544
        %v4616 = vshrl.u32 %v4544, 16
        %v4617 = vshrl.u32 %v4594, 16
        %v4618 = vpack.i.b16 %v4617, %v4616
        %v4620 = vsel %vm3370, %v4597, 0
        %v4623 = vsel %vm3370, %v4609, 0
        %v4626 = vsel %vm3370, %v3415, 0
        %4628 = vmatprep.subr.bf16.mxu0 0
        %4629 = vmatpush1.bf16.xpose.msra.mxu0 0
        %4630 = vmatprep.subr.bf16.mxu0 0
        %4631 = vmatpush1.bf16.xpose.msra.mxu0 0
        %4632 = vmatprep.subr.bf16.mxu0 0
        %4633 = vmatpush1.bf16.xpose.msra.mxu0 0
        %4634 = vmatprep.subr.bf16.mxu0 0
        %4635 = vmatpush1.bf16.xpose.msra.mxu0 0
        %4636 = vmatprep.subr.bf16.mxu0 0
        %4637 = vmatpush1.bf16.xpose.msra.mxu0 0
        %4638 = vmatprep.subr.bf16.mxu0 0
        %4639 = vmatpush1.bf16.xpose.msra.mxu0 0
        %4640 = vmatprep.subr.bf16.mxu0 0
        %4641 = vmatpush1.bf16.xpose.msra.mxu0 0
        %4642 = vmatprep.subr.bf16.mxu0 0
        %4643 = vmatpush1.bf16.xpose.msra.mxu0 %v4626
        %4644 = vmatprep.subr.bf16.mxu0 0
        %4645 = vmatpush2.bf16.xpose.msra.mxu0 0
        %4646 = vmatprep.subr.bf16.mxu0 0
        %4647 = vmatpush2.bf16.xpose.msra.mxu0 0
        %4648 = vmatprep.subr.bf16.mxu0 0
        %4649 = vmatpush2.bf16.xpose.msra.mxu0 0
        %4650 = vmatprep.subr.bf16.mxu0 0
        %4651 = vmatpush2.bf16.xpose.msra.mxu0 0
        %4652 = vmatprep.subr.bf16.mxu0 0
        %4653 = vmatpush2.bf16.xpose.msra.mxu0 0
        %4654 = vmatprep.subr.bf16.mxu0 0
        %4655 = vmatpush2.bf16.xpose.msra.mxu0 0
        %4656 = vmatprep.subr.bf16.mxu0 0
        %4657 = vmatpush2.bf16.xpose.msra.mxu0 0
        %4658 = vmatprep.subr.bf16.mxu0 0
        %4659 = vmatpush2.bf16.xpose.msra.mxu0 0
        %4660 = vmatprep.mubr.bf16.mxu0 0
        %4661 = vmatmul.mubr.bf16.gmra.mxu0 %v4620
        %v4662 = vpop.f32.mrf.mxu0
        %v4663 = vadd.f32 0.0, %v4662
        %v4664 = vpop.f32.mrf.mxu0
        %v4665 = vpop.f32.mrf.mxu0
        %v4666 = vadd.f32 0.0, %v4665
        %v4667 = vpop.f32.mrf.mxu0
        %4668 = vmatprep.mubr.bf16.mxu0 0
        %4669 = vmatmul.mubr.bf16.gmra.mxu0 %v4623
        %v4670 = vpop.f32.mrf.mxu0
        %v4671 = vadd.f32 0.0, %v4670
        %v4672 = vpop.f32.mrf.mxu0
        %v4673 = vpop.f32.mrf.mxu0
        %v4674 = vadd.f32 0.0, %v4673
        %v4675 = vpop.f32.mrf.mxu0
        %4676 = vdwg.mxu0
        %v4678 = vsel %vm3370, %v4600, 0
        %v4681 = vsel %vm3370, %v4612, 0
        %v4684 = vsel %vm3370, %v3416, 0
        %4686 = vmatprep.subr.bf16.mxu0 0
        %4687 = vmatpush1.bf16.xpose.msra.mxu0 0
        %4688 = vmatprep.subr.bf16.mxu0 0
        %4689 = vmatpush1.bf16.xpose.msra.mxu0 0
        %4690 = vmatprep.subr.bf16.mxu0 0
        %4691 = vmatpush1.bf16.xpose.msra.mxu0 0
        %4692 = vmatprep.subr.bf16.mxu0 0
        %4693 = vmatpush1.bf16.xpose.msra.mxu0 0
        %4694 = vmatprep.subr.bf16.mxu0 0
        %4695 = vmatpush1.bf16.xpose.msra.mxu0 0
        %4696 = vmatprep.subr.bf16.mxu0 0
        %4697 = vmatpush1.bf16.xpose.msra.mxu0 0
        %4698 = vmatprep.subr.bf16.mxu0 0
        %4699 = vmatpush1.bf16.xpose.msra.mxu0 0
        %4700 = vmatprep.subr.bf16.mxu0 0
        %4701 = vmatpush1.bf16.xpose.msra.mxu0 %v4684
        %4702 = vmatprep.subr.bf16.mxu0 0
        %4703 = vmatpush2.bf16.xpose.msra.mxu0 0
        %4704 = vmatprep.subr.bf16.mxu0 0
        %4705 = vmatpush2.bf16.xpose.msra.mxu0 0
        %4706 = vmatprep.subr.bf16.mxu0 0
        %4707 = vmatpush2.bf16.xpose.msra.mxu0 0
        %4708 = vmatprep.subr.bf16.mxu0 0
        %4709 = vmatpush2.bf16.xpose.msra.mxu0 0
        %4710 = vmatprep.subr.bf16.mxu0 0
        %4711 = vmatpush2.bf16.xpose.msra.mxu0 0
        %4712 = vmatprep.subr.bf16.mxu0 0
        %4713 = vmatpush2.bf16.xpose.msra.mxu0 0
        %4714 = vmatprep.subr.bf16.mxu0 0
        %4715 = vmatpush2.bf16.xpose.msra.mxu0 0
        %4716 = vmatprep.subr.bf16.mxu0 0
        %4717 = vmatpush2.bf16.xpose.msra.mxu0 0
        %4718 = vmatprep.mubr.bf16.mxu0 0
        %4719 = vmatmul.mubr.bf16.gmra.mxu0 %v4678
        %v4720 = vpop.f32.mrf.mxu0
        %v4721 = vadd.f32 0.0, %v4720
        %v4722 = vpop.f32.mrf.mxu0
        %v4723 = vpop.f32.mrf.mxu0
        %v4724 = vadd.f32 0.0, %v4723
        %v4725 = vpop.f32.mrf.mxu0
        %4726 = vmatprep.mubr.bf16.mxu0 0
        %4727 = vmatmul.mubr.bf16.gmra.mxu0 %v4681
        %v4728 = vpop.f32.mrf.mxu0
        %v4729 = vadd.f32 0.0, %v4728
        %v4730 = vpop.f32.mrf.mxu0
        %v4731 = vpop.f32.mrf.mxu0
        %v4732 = vadd.f32 0.0, %v4731
        %v4733 = vpop.f32.mrf.mxu0
        %4734 = vdwg.mxu0
        %v4736 = vsel %vm3370, %v4603, 0
        %v4739 = vsel %vm3370, %v4615, 0
        %v4742 = vsel %vm3370, %v3417, 0
        %4744 = vmatprep.subr.bf16.mxu0 0
        %4745 = vmatpush1.bf16.xpose.msra.mxu0 0
        %4746 = vmatprep.subr.bf16.mxu0 0
        %4747 = vmatpush1.bf16.xpose.msra.mxu0 0
        %4748 = vmatprep.subr.bf16.mxu0 0
        %4749 = vmatpush1.bf16.xpose.msra.mxu0 0
        %4750 = vmatprep.subr.bf16.mxu0 0
        %4751 = vmatpush1.bf16.xpose.msra.mxu0 0
        %4752 = vmatprep.subr.bf16.mxu0 0
        %4753 = vmatpush1.bf16.xpose.msra.mxu0 0
        %4754 = vmatprep.subr.bf16.mxu0 0
        %4755 = vmatpush1.bf16.xpose.msra.mxu0 0
        %4756 = vmatprep.subr.bf16.mxu0 0
        %4757 = vmatpush1.bf16.xpose.msra.mxu0 0
        %4758 = vmatprep.subr.bf16.mxu0 0
        %4759 = vmatpush1.bf16.xpose.msra.mxu0 %v4742
        %4760 = vmatprep.subr.bf16.mxu0 0
        %4761 = vmatpush2.bf16.xpose.msra.mxu0 0
        %4762 = vmatprep.subr.bf16.mxu0 0
        %4763 = vmatpush2.bf16.xpose.msra.mxu0 0
        %4764 = vmatprep.subr.bf16.mxu0 0
        %4765 = vmatpush2.bf16.xpose.msra.mxu0 0
        %4766 = vmatprep.subr.bf16.mxu0 0
        %4767 = vmatpush2.bf16.xpose.msra.mxu0 0
        %4768 = vmatprep.subr.bf16.mxu0 0
        %4769 = vmatpush2.bf16.xpose.msra.mxu0 0
        %4770 = vmatprep.subr.bf16.mxu0 0
        %4771 = vmatpush2.bf16.xpose.msra.mxu0 0
        %4772 = vmatprep.subr.bf16.mxu0 0
        %4773 = vmatpush2.bf16.xpose.msra.mxu0 0
        %4774 = vmatprep.subr.bf16.mxu0 0
        %4775 = vmatpush2.bf16.xpose.msra.mxu0 0
        %4776 = vmatprep.mubr.bf16.mxu0 0
        %4777 = vmatmul.mubr.bf16.gmra.mxu0 %v4736
        %v4778 = vpop.f32.mrf.mxu0
        %v4779 = vadd.f32 0.0, %v4778
        %v4780 = vpop.f32.mrf.mxu0
        %v4781 = vpop.f32.mrf.mxu0
        %v4782 = vadd.f32 0.0, %v4781
        %v4783 = vpop.f32.mrf.mxu0
        %4784 = vmatprep.mubr.bf16.mxu0 0
        %4785 = vmatmul.mubr.bf16.gmra.mxu0 %v4739
        %v4786 = vpop.f32.mrf.mxu0
        %v4787 = vadd.f32 0.0, %v4786
        %v4788 = vpop.f32.mrf.mxu0
        %v4789 = vpop.f32.mrf.mxu0
        %v4790 = vadd.f32 0.0, %v4789
        %v4791 = vpop.f32.mrf.mxu0
        %4792 = vdwg.mxu0
        %v4794 = vsel %vm3370, %v4606, 0
        %v4797 = vsel %vm3370, %v4618, 0
        %v4800 = vsel %vm3370, %v3418, 0
        %4802 = vmatprep.subr.bf16.mxu0 0
        %4803 = vmatpush1.bf16.xpose.msra.mxu0 0
        %4804 = vmatprep.subr.bf16.mxu0 0
        %4805 = vmatpush1.bf16.xpose.msra.mxu0 0
        %4806 = vmatprep.subr.bf16.mxu0 0
        %4807 = vmatpush1.bf16.xpose.msra.mxu0 0
        %4808 = vmatprep.subr.bf16.mxu0 0
        %4809 = vmatpush1.bf16.xpose.msra.mxu0 0
        %4810 = vmatprep.subr.bf16.mxu0 0
        %4811 = vmatpush1.bf16.xpose.msra.mxu0 0
        %4812 = vmatprep.subr.bf16.mxu0 0
        %4813 = vmatpush1.bf16.xpose.msra.mxu0 0
        %4814 = vmatprep.subr.bf16.mxu0 0
        %4815 = vmatpush1.bf16.xpose.msra.mxu0 0
        %4816 = vmatprep.subr.bf16.mxu0 0
        %4817 = vmatpush1.bf16.xpose.msra.mxu0 %v4800
        %4818 = vmatprep.subr.bf16.mxu0 0
        %4819 = vmatpush2.bf16.xpose.msra.mxu0 0
        %4820 = vmatprep.subr.bf16.mxu0 0
        %4821 = vmatpush2.bf16.xpose.msra.mxu0 0
        %4822 = vmatprep.subr.bf16.mxu0 0
        %4823 = vmatpush2.bf16.xpose.msra.mxu0 0
        %4824 = vmatprep.subr.bf16.mxu0 0
        %4825 = vmatpush2.bf16.xpose.msra.mxu0 0
        %4826 = vmatprep.subr.bf16.mxu0 0
        %4827 = vmatpush2.bf16.xpose.msra.mxu0 0
        %4828 = vmatprep.subr.bf16.mxu0 0
        %4829 = vmatpush2.bf16.xpose.msra.mxu0 0
        %4830 = vmatprep.subr.bf16.mxu0 0
        %4831 = vmatpush2.bf16.xpose.msra.mxu0 0
        %4832 = vmatprep.subr.bf16.mxu0 0
        %4833 = vmatpush2.bf16.xpose.msra.mxu0 0
        %4834 = vmatprep.mubr.bf16.mxu0 0
        %4835 = vmatmul.mubr.bf16.gmra.mxu0 %v4794
        %v4836 = vpop.f32.mrf.mxu0
        %v4837 = vadd.f32 0.0, %v4836
        %v4838 = vpop.f32.mrf.mxu0
        %v4839 = vpop.f32.mrf.mxu0
        %v4840 = vadd.f32 0.0, %v4839
        %v4841 = vpop.f32.mrf.mxu0
        %4842 = vmatprep.mubr.bf16.mxu0 0
        %4843 = vmatmul.mubr.bf16.gmra.mxu0 %v4797
        %v4844 = vpop.f32.mrf.mxu0
        %v4845 = vadd.f32 0.0, %v4844
        %v4846 = vpop.f32.mrf.mxu0
        %v4847 = vpop.f32.mrf.mxu0
        %v4848 = vadd.f32 0.0, %v4847
        %v4849 = vpop.f32.mrf.mxu0
        %4850 = vdwg.mxu0
        %4851 = vxpose.xlu0.b32.start [1/16] %v4663, 128
        %4852 = vxpose.xlu0.b32.cont [2/16] %v4666, 128
        %4853 = vxpose.xlu0.b32.cont [3/16] %v4671, 128
        %4854 = vxpose.xlu0.b32.cont [4/16] %v4674, 128
        %4855 = vxpose.xlu0.b32.cont [5/16] 0.0, 128
        %4856 = vxpose.xlu0.b32.cont [6/16] 0.0, 128
        %4857 = vxpose.xlu0.b32.cont [7/16] 0.0, 128
        %4858 = vxpose.xlu0.b32.cont [8/16] 0.0, 128
        %4859 = vxpose.xlu0.b32.cont [9/16] 0.0, 128
        %4860 = vxpose.xlu0.b32.cont [10/16] 0.0, 128
        %4861 = vxpose.xlu0.b32.cont [11/16] 0.0, 128
        %4862 = vxpose.xlu0.b32.cont [12/16] 0.0, 128
        %4863 = vxpose.xlu0.b32.cont [13/16] 0.0, 128
        %4864 = vxpose.xlu0.b32.cont [14/16] 0.0, 128
        %4865 = vxpose.xlu0.b32.cont [15/16] 0.0, 128
        %4866 = vxpose.xlu0.b32.end [16/16] 0.0, 128
        %v4867 = vpop.trf.xlu0
        %v4868 = vpop.trf.xlu0
        %v4869 = vpop.trf.xlu0
        %v4870 = vpop.trf.xlu0
        %v4871 = vpop.trf.xlu0
        %v4872 = vpop.trf.xlu0
        %v4873 = vpop.trf.xlu0
        %v4874 = vpop.trf.xlu0
        %v4875 = vpop.trf.xlu0
        %v4876 = vpop.trf.xlu0
        %v4877 = vpop.trf.xlu0
        %v4878 = vpop.trf.xlu0
        %v4879 = vpop.trf.xlu0
        %v4880 = vpop.trf.xlu0
        %v4881 = vpop.trf.xlu0
        %v4882 = vpop.trf.xlu0
        %4883 = vxpose.xlu0.b32.start [1/16] %v4721, 128
        %4884 = vxpose.xlu0.b32.cont [2/16] %v4724, 128
        %4885 = vxpose.xlu0.b32.cont [3/16] %v4729, 128
        %4886 = vxpose.xlu0.b32.cont [4/16] %v4732, 128
        %4887 = vxpose.xlu0.b32.cont [5/16] 0.0, 128
        %4888 = vxpose.xlu0.b32.cont [6/16] 0.0, 128
        %4889 = vxpose.xlu0.b32.cont [7/16] 0.0, 128
        %4890 = vxpose.xlu0.b32.cont [8/16] 0.0, 128
        %4891 = vxpose.xlu0.b32.cont [9/16] 0.0, 128
        %4892 = vxpose.xlu0.b32.cont [10/16] 0.0, 128
        %4893 = vxpose.xlu0.b32.cont [11/16] 0.0, 128
        %4894 = vxpose.xlu0.b32.cont [12/16] 0.0, 128
        %4895 = vxpose.xlu0.b32.cont [13/16] 0.0, 128
        %4896 = vxpose.xlu0.b32.cont [14/16] 0.0, 128
        %4897 = vxpose.xlu0.b32.cont [15/16] 0.0, 128
        %4898 = vxpose.xlu0.b32.end [16/16] 0.0, 128
        %v4899 = vpop.trf.xlu0
        %v4900 = vpop.trf.xlu0
        %v4901 = vpop.trf.xlu0
        %v4902 = vpop.trf.xlu0
        %v4903 = vpop.trf.xlu0
        %v4904 = vpop.trf.xlu0
        %v4905 = vpop.trf.xlu0
        %v4906 = vpop.trf.xlu0
        %v4907 = vpop.trf.xlu0
        %v4908 = vpop.trf.xlu0
        %v4909 = vpop.trf.xlu0
        %v4910 = vpop.trf.xlu0
        %v4911 = vpop.trf.xlu0
        %v4912 = vpop.trf.xlu0
        %v4913 = vpop.trf.xlu0
        %v4914 = vpop.trf.xlu0
        %4915 = vxpose.xlu0.b32.start [1/16] %v4779, 128
        %4916 = vxpose.xlu0.b32.cont [2/16] %v4782, 128
        %4917 = vxpose.xlu0.b32.cont [3/16] %v4787, 128
        %4918 = vxpose.xlu0.b32.cont [4/16] %v4790, 128
        %4919 = vxpose.xlu0.b32.cont [5/16] 0.0, 128
        %4920 = vxpose.xlu0.b32.cont [6/16] 0.0, 128
        %4921 = vxpose.xlu0.b32.cont [7/16] 0.0, 128
        %4922 = vxpose.xlu0.b32.cont [8/16] 0.0, 128
        %4923 = vxpose.xlu0.b32.cont [9/16] 0.0, 128
        %4924 = vxpose.xlu0.b32.cont [10/16] 0.0, 128
        %4925 = vxpose.xlu0.b32.cont [11/16] 0.0, 128
        %4926 = vxpose.xlu0.b32.cont [12/16] 0.0, 128
        %4927 = vxpose.xlu0.b32.cont [13/16] 0.0, 128
        %4928 = vxpose.xlu0.b32.cont [14/16] 0.0, 128
        %4929 = vxpose.xlu0.b32.cont [15/16] 0.0, 128
        %4930 = vxpose.xlu0.b32.end [16/16] 0.0, 128
        %v4931 = vpop.trf.xlu0
        %v4932 = vpop.trf.xlu0
        %v4933 = vpop.trf.xlu0
        %v4934 = vpop.trf.xlu0
        %v4935 = vpop.trf.xlu0
        %v4936 = vpop.trf.xlu0
        %v4937 = vpop.trf.xlu0
        %v4938 = vpop.trf.xlu0
        %v4939 = vpop.trf.xlu0
        %v4940 = vpop.trf.xlu0
        %v4941 = vpop.trf.xlu0
        %v4942 = vpop.trf.xlu0
        %v4943 = vpop.trf.xlu0
        %v4944 = vpop.trf.xlu0
        %v4945 = vpop.trf.xlu0
        %v4946 = vpop.trf.xlu0
        %4947 = vxpose.xlu0.b32.start [1/16] %v4837, 128
        %4948 = vxpose.xlu0.b32.cont [2/16] %v4840, 128
        %4949 = vxpose.xlu0.b32.cont [3/16] %v4845, 128
        %4950 = vxpose.xlu0.b32.cont [4/16] %v4848, 128
        %4951 = vxpose.xlu0.b32.cont [5/16] 0.0, 128
        %4952 = vxpose.xlu0.b32.cont [6/16] 0.0, 128
        %4953 = vxpose.xlu0.b32.cont [7/16] 0.0, 128
        %4954 = vxpose.xlu0.b32.cont [8/16] 0.0, 128
        %4955 = vxpose.xlu0.b32.cont [9/16] 0.0, 128
        %4956 = vxpose.xlu0.b32.cont [10/16] 0.0, 128
        %4957 = vxpose.xlu0.b32.cont [11/16] 0.0, 128
        %4958 = vxpose.xlu0.b32.cont [12/16] 0.0, 128
        %4959 = vxpose.xlu0.b32.cont [13/16] 0.0, 128
        %4960 = vxpose.xlu0.b32.cont [14/16] 0.0, 128
        %4961 = vxpose.xlu0.b32.cont [15/16] 0.0, 128
        %4962 = vxpose.xlu0.b32.end [16/16] 0.0, 128
        %v4963 = vpop.trf.xlu0
        %v4964 = vpop.trf.xlu0
        %v4965 = vpop.trf.xlu0
        %v4966 = vpop.trf.xlu0
        %v4967 = vpop.trf.xlu0
        %v4968 = vpop.trf.xlu0
        %v4969 = vpop.trf.xlu0
        %v4970 = vpop.trf.xlu0
        %v4971 = vpop.trf.xlu0
        %v4972 = vpop.trf.xlu0
        %v4973 = vpop.trf.xlu0
        %v4974 = vpop.trf.xlu0
        %v4975 = vpop.trf.xlu0
        %v4976 = vpop.trf.xlu0
        %v4977 = vpop.trf.xlu0
        %v4978 = vpop.trf.xlu0
        %v4979 = vcombine.low %v4867, %v4931
        %v4980 = vcombine.high %v4867, %v4931
        %v4982 = vunpack.c.l.s4 1983009808
        %v4983 = vunpack.c.0.s8 %v4982
        %v4984 = vlaneseq
        %v4985 = vshrl.u32 %v4984, 7
        %v4986 = vsub.s32 %v4983, %v4985
        %v4987 = vrot.slane %v4979, %v4986
        %v4989 = vunpack.c.l.s4 1983009808
        %v4990 = vunpack.c.0.s8 %v4989
        %v4991 = vlaneseq
        %v4992 = vshrl.u32 %v4991, 7
        %v4993 = vsub.s32 %v4990, %v4992
        %v4994 = vrot.slane %v4980, %v4993
        %v4995 = vcombine.low %v4899, %v4963
        %v4996 = vcombine.high %v4899, %v4963
        %v4998 = vunpack.c.l.s4 1983009808
        %v4999 = vunpack.c.0.s8 %v4998
        %v5000 = vlaneseq
        %v5001 = vshrl.u32 %v5000, 7
        %v5002 = vsub.s32 %v4999, %v5001
        %v5003 = vrot.slane %v4995, %v5002
        %v5005 = vunpack.c.l.s4 1983009808
        %v5006 = vunpack.c.0.s8 %v5005
        %v5007 = vlaneseq
        %v5008 = vshrl.u32 %v5007, 7
        %v5009 = vsub.s32 %v5006, %v5008
        %v5010 = vrot.slane %v4996, %v5009
        %v5011 = vcombine.low %v4987, %v5003
        %v5012 = vcombine.high %v4987, %v5003
        %v5014 = vunpack.c.l.s4 1934713408
        %v5015 = vunpack.c.0.s8 %v5014
        %v5016 = vlaneseq
        %v5017 = vshrl.u32 %v5016, 7
        %v5018 = vsub.s32 %v5015, %v5017
        %v5019 = vrot.slane %v5011, %v5018
        %v5021 = vunpack.c.l.s4 1934713408
        %v5022 = vunpack.c.0.s8 %v5021
        %v5023 = vlaneseq
        %v5024 = vshrl.u32 %v5023, 7
        %v5025 = vsub.s32 %v5022, %v5024
        %v5026 = vrot.slane %v5012, %v5025
        %v5027 = vcombine.low %v4994, %v5010
        %v5028 = vcombine.high %v4994, %v5010
        %v5030 = vunpack.c.l.s4 1934713408
        %v5031 = vunpack.c.0.s8 %v5030
        %v5032 = vlaneseq
        %v5033 = vshrl.u32 %v5032, 7
        %v5034 = vsub.s32 %v5031, %v5033
        %v5035 = vrot.slane %v5027, %v5034
        %v5037 = vunpack.c.l.s4 1934713408
        %v5038 = vunpack.c.0.s8 %v5037
        %v5039 = vlaneseq
        %v5040 = vshrl.u32 %v5039, 7
        %v5041 = vsub.s32 %v5038, %v5040
        %v5042 = vrot.slane %v5028, %v5041
        %v5043 = vcombine.high %v5019, 0.0
        %v5044 = vcombine.high %v5026, 0.0
        %v5045 = vcombine.high %v5035, 0.0
        %v5046 = vcombine.high %v5042, 0.0
        %v5047 = vcombine.low %v5019, %v5026
        %v5049 = vunpack.c.l.s4 1983009808
        %v5050 = vunpack.c.0.s8 %v5049
        %v5051 = vlaneseq
        %v5052 = vshrl.u32 %v5051, 7
        %v5053 = vsub.s32 %v5050, %v5052
        %v5054 = vrot.slane %v5047, %v5053
        %v5055 = vcombine.low %v5043, %v5044
        %v5057 = vunpack.c.l.s4 1983009808
        %v5058 = vunpack.c.0.s8 %v5057
        %v5059 = vlaneseq
        %v5060 = vshrl.u32 %v5059, 7
        %v5061 = vsub.s32 %v5058, %v5060
        %v5062 = vrot.slane %v5055, %v5061
        %v5063 = vcombine.low %v5035, %v5042
        %v5065 = vunpack.c.l.s4 1983009808
        %v5066 = vunpack.c.0.s8 %v5065
        %v5067 = vlaneseq
        %v5068 = vshrl.u32 %v5067, 7
        %v5069 = vsub.s32 %v5066, %v5068
        %v5070 = vrot.slane %v5063, %v5069
        %v5071 = vcombine.low %v5045, %v5046
        %v5073 = vunpack.c.l.s4 1983009808
        %v5074 = vunpack.c.0.s8 %v5073
        %v5075 = vlaneseq
        %v5076 = vshrl.u32 %v5075, 7
        %v5077 = vsub.s32 %v5074, %v5076
        %v5078 = vrot.slane %v5071, %v5077
        %v5079 = vcombine.low %v5054, %v5062
        %v5080 = vcombine.high %v5054, %v5062
        %v5082 = vunpack.c.l.s4 1934713408
        %v5083 = vunpack.c.0.s8 %v5082
        %v5084 = vlaneseq
        %v5085 = vshrl.u32 %v5084, 7
        %v5086 = vsub.s32 %v5083, %v5085
        %v5087 = vrot.slane %v5079, %v5086
        %v5089 = vunpack.c.l.s4 1934713408
        %v5090 = vunpack.c.0.s8 %v5089
        %v5091 = vlaneseq
        %v5092 = vshrl.u32 %v5091, 7
        %v5093 = vsub.s32 %v5090, %v5092
        %v5094 = vrot.slane %v5080, %v5093
        %v5095 = vcombine.low %v5070, %v5078
        %v5096 = vcombine.high %v5070, %v5078
        %v5098 = vunpack.c.l.s4 1934713408
        %v5099 = vunpack.c.0.s8 %v5098
        %v5100 = vlaneseq
        %v5101 = vshrl.u32 %v5100, 7
        %v5102 = vsub.s32 %v5099, %v5101
        %v5103 = vrot.slane %v5095, %v5102
        %v5105 = vunpack.c.l.s4 1934713408
        %v5106 = vunpack.c.0.s8 %v5105
        %v5107 = vlaneseq
        %v5108 = vshrl.u32 %v5107, 7
        %v5109 = vsub.s32 %v5106, %v5108
        %v5110 = vrot.slane %v5096, %v5109
        %v5111 = vcombine.low %v5087, %v5103
        %v5112 = vcombine.high %v5087, %v5103
        %v5113 = vcombine.low %v5094, %v5110
        %v5114 = vcombine.high %v5094, %v5110
        %5116 = vrot.lane.b32.xlu0 %v5112, 32
        %v5117 = vpop.permute.xlu0 %5116
        %5120 = vrot.lane.b32.xlu0 %v5113, 64
        %v5121 = vpop.permute.xlu0 %5120
        %5124 = vrot.lane.b32.xlu0 %v5114, 96
        %v5125 = vpop.permute.xlu0 %5124
        %v5127 = vsel %vm3168, %v5111, %v5117
        %v5128 = vsel %vm1289, %v5127, %v5121
        %vm5129 = vcmask 785408
        %v5130 = vsel %vm5129, %v5128, %v5125
        %v5131 = vld [vmem:[#allocation13] sm:$0xf]
        %v5132 = vld [vmem:[#allocation13 + $0x4] sm:$0xf]
        %v5133 = vld [vmem:[#allocation13 + $0x8] sm:$0xf]
        %v5134 = vld [vmem:[#allocation13 + $0xc] sm:$0xf]
        %v5135 = vld [vmem:[#allocation13 + $0x10] sm:$0xf]
        %v5136 = vld [vmem:[#allocation13 + $0x14] sm:$0xf]
        %v5137 = vld [vmem:[#allocation13 + $0x18] sm:$0xf]
        %v5138 = vld [vmem:[#allocation13 + $0x1c] sm:$0xf]
        %v5139 = vld [vmem:[#allocation13 + $0x20] sm:$0xf]
        %v5140 = vld [vmem:[#allocation13 + $0x24] sm:$0xf]
        %v5141 = vld [vmem:[#allocation13 + $0x28] sm:$0xf]
        %v5142 = vld [vmem:[#allocation13 + $0x2c] sm:$0xf]
        %v5143 = vld [vmem:[#allocation13 + $0x30] sm:$0xf]
        %v5144 = vld [vmem:[#allocation13 + $0x34] sm:$0xf]
        %v5145 = vld [vmem:[#allocation13 + $0x38] sm:$0xf]
        %v5146 = vld [vmem:[#allocation13 + $0x3c] sm:$0xf]
        %v5147 = vld [vmem:[#allocation14] sm:$0x1]
        %v5148 = vpack.c.bf16 %v5130, %v5130
        %v5150 = vlaneseq
        %v5151 = vshrl.u32 %v5150, 7
        %v5152 = vsub.s32 0, %v5151
        %v5153 = vrot.slane %v5147, %v5152
        %v5171 = vunpack.c.l.b16 %v5131
        %v5172 = vunpack.c.l.b16 %v5132
        %v5173 = vunpack.c.l.b16 %v5133
        %v5174 = vunpack.c.l.b16 %v5134
        %v5175 = vunpack.c.l.b16 %v5135
        %v5176 = vunpack.c.l.b16 %v5136
        %v5177 = vunpack.c.l.b16 %v5137
        %v5178 = vunpack.c.l.b16 %v5138
        %v5179 = vunpack.c.l.b16 %v5139
        %v5180 = vunpack.c.l.b16 %v5140
        %v5181 = vunpack.c.l.b16 %v5141
        %v5182 = vunpack.c.l.b16 %v5142
        %v5183 = vunpack.c.l.b16 %v5143
        %v5184 = vunpack.c.l.b16 %v5144
        %v5185 = vunpack.c.l.b16 %v5145
        %v5186 = vunpack.c.l.b16 %v5146
        %v5187 = vpack.c.b16 %v5172, %v5171
        %v5188 = vpack.c.b16 %v5174, %v5173
        %v5189 = vpack.c.b16 %v5176, %v5175
        %v5190 = vpack.c.b16 %v5178, %v5177
        %v5191 = vpack.c.b16 %v5180, %v5179
        %v5192 = vpack.c.b16 %v5182, %v5181
        %v5193 = vpack.c.b16 %v5184, %v5183
        %v5194 = vpack.c.b16 %v5186, %v5185
        %5203 = vmatprep.subr.bf16.mxu0 0
        %5204 = vmatpush1.bf16.msra.mxu0 %v5194
        %5205 = vmatprep.subr.bf16.mxu0 0
        %5206 = vmatpush1.bf16.msra.mxu0 %v5193
        %5207 = vmatprep.subr.bf16.mxu0 0
        %5208 = vmatpush1.bf16.msra.mxu0 %v5192
        %5209 = vmatprep.subr.bf16.mxu0 0
        %5210 = vmatpush1.bf16.msra.mxu0 %v5191
        %5211 = vmatprep.subr.bf16.mxu0 0
        %5212 = vmatpush1.bf16.msra.mxu0 %v5190
        %5213 = vmatprep.subr.bf16.mxu0 0
        %5214 = vmatpush1.bf16.msra.mxu0 %v5189
        %5215 = vmatprep.subr.bf16.mxu0 0
        %5216 = vmatpush1.bf16.msra.mxu0 %v5188
        %5217 = vmatprep.subr.bf16.mxu0 0
        %5218 = vmatpush1.bf16.msra.mxu0 %v5187
        %5219 = vmatprep.subr.bf16.mxu0 0
        %5220 = vmatpush2.bf16.msra.mxu0 0
        %5221 = vmatprep.subr.bf16.mxu0 0
        %5222 = vmatpush2.bf16.msra.mxu0 0
        %5223 = vmatprep.subr.bf16.mxu0 0
        %5224 = vmatpush2.bf16.msra.mxu0 0
        %5225 = vmatprep.subr.bf16.mxu0 0
        %5226 = vmatpush2.bf16.msra.mxu0 0
        %5227 = vmatprep.subr.bf16.mxu0 0
        %5228 = vmatpush2.bf16.msra.mxu0 0
        %5229 = vmatprep.subr.bf16.mxu0 0
        %5230 = vmatpush2.bf16.msra.mxu0 0
        %5231 = vmatprep.subr.bf16.mxu0 0
        %5232 = vmatpush2.bf16.msra.mxu0 0
        %5233 = vmatprep.subr.bf16.mxu0 0
        %5234 = vmatpush2.bf16.msra.mxu0 0
        %5235 = vmatprep.mubr.bf16.mxu0 0
        %5236 = vmatmul.mubr.bf16.gmra.mxu0 %v5148
        %v5237 = vpop.f32.mrf.mxu0
        %v5238 = vadd.f32 %v5153, %v5237
        %v5239 = vpop.f32.mrf.mxu0
        %v5240 = vpop.f32.mrf.mxu0
        %v5241 = vpop.f32.mrf.mxu0
        %5242 = vdwg.mxu0
        %v5243 = vadd.f32 %v5238, %v1378
        %v5244 = vld [vmem:[#allocation16] sm:$0x1]
        %v5245 = vld [vmem:[#allocation17] sm:$0x1]
        %5246 = vadd.xlane.f32.xlu0 %v5243
        %v5247 = vpop.xlane.xlu0 %5246
        %v5248 = vmul.f32 %v5247, %v1355
        %v5249 = vsub.f32 %v5243, %v5248
        %v5250 = vmul.f32 %v5249, %v5249
        %5251 = vadd.xlane.f32.xlu0 %v5250
        %v5252 = vpop.xlane.xlu0 %5251
        %v5253 = vmul.f32 %v5252, %v1355
        %v5254 = vadd.f32 %v5253, 1e-05
        %v5255 = vrsqrt.pop %v5254
        %v5256 = vmul.f32 %v5249, %v5255
        %v5258 = vlaneseq
        %v5259 = vshrl.u32 %v5258, 7
        %v5260 = vsub.s32 0, %v5259
        %v5261 = vrot.slane %v5244, %v5260
        %v5263 = vmul.f32 %v5256, %v5261
        %v5265 = vlaneseq
        %v5266 = vshrl.u32 %v5265, 7
        %v5267 = vsub.s32 0, %v5266
        %v5268 = vrot.slane %v5245, %v5267
        %v5270 = vadd.f32 %v5263, %v5268
        %v5271 = vld [vmem:[#allocation19] sm:$0xff]
        %v5272 = vld [vmem:[#allocation19 + $0x8] sm:$0xff]
        %v5273 = vld [vmem:[#allocation19 + $0x10] sm:$0xff]
        %v5274 = vld [vmem:[#allocation19 + $0x18] sm:$0xff]
        %v5275 = vld [vmem:[#allocation19 + $0x20] sm:$0xff]
        %v5276 = vld [vmem:[#allocation19 + $0x28] sm:$0xff]
        %v5277 = vld [vmem:[#allocation19 + $0x30] sm:$0xff]
        %v5278 = vld [vmem:[#allocation19 + $0x38] sm:$0xff]
        %v5279 = vld [vmem:[#allocation19 + $0x40] sm:$0xff]
        %v5280 = vld [vmem:[#allocation19 + $0x48] sm:$0xff]
        %v5281 = vld [vmem:[#allocation19 + $0x50] sm:$0xff]
        %v5282 = vld [vmem:[#allocation19 + $0x58] sm:$0xff]
        %v5283 = vld [vmem:[#allocation19 + $0x60] sm:$0xff]
        %v5284 = vld [vmem:[#allocation19 + $0x68] sm:$0xff]
        %v5285 = vld [vmem:[#allocation19 + $0x70] sm:$0xff]
        %v5286 = vld [vmem:[#allocation19 + $0x78] sm:$0xff]
        %v5287 = vld [vmem:[%s33] sm:$0x3]
        %v5288 = vpack.c.bf16 %v5270, %v5270
        %v5290 = vlaneseq
        %v5291 = vshrl.u32 %v5290, 7
        %v5292 = vsub.s32 0, %v5291
        %v5293 = vrot.slane %v5287, %v5292
        %v5294 = vlaneseq
        %v5295 = vshrl.u32 %v5294, 7
        %v5296 = vsub.s32 1, %v5295
        %v5297 = vrot.slane %v5287, %v5296
        %v5316 = vunpack.c.l.b16 %v5271
        %v5317 = vunpack.c.h.b16 %v5271
        %v5318 = vunpack.c.l.b16 %v5272
        %v5319 = vunpack.c.h.b16 %v5272
        %v5320 = vunpack.c.l.b16 %v5273
        %v5321 = vunpack.c.h.b16 %v5273
        %v5322 = vunpack.c.l.b16 %v5274
        %v5323 = vunpack.c.h.b16 %v5274
        %v5324 = vunpack.c.l.b16 %v5275
        %v5325 = vunpack.c.h.b16 %v5275
        %v5326 = vunpack.c.l.b16 %v5276
        %v5327 = vunpack.c.h.b16 %v5276
        %v5328 = vunpack.c.l.b16 %v5277
        %v5329 = vunpack.c.h.b16 %v5277
        %v5330 = vunpack.c.l.b16 %v5278
        %v5331 = vunpack.c.h.b16 %v5278
        %v5332 = vunpack.c.l.b16 %v5279
        %v5333 = vunpack.c.h.b16 %v5279
        %v5334 = vunpack.c.l.b16 %v5280
        %v5335 = vunpack.c.h.b16 %v5280
        %v5336 = vunpack.c.l.b16 %v5281
        %v5337 = vunpack.c.h.b16 %v5281
        %v5338 = vunpack.c.l.b16 %v5282
        %v5339 = vunpack.c.h.b16 %v5282
        %v5340 = vunpack.c.l.b16 %v5283
        %v5341 = vunpack.c.h.b16 %v5283
        %v5342 = vunpack.c.l.b16 %v5284
        %v5343 = vunpack.c.h.b16 %v5284
        %v5344 = vunpack.c.l.b16 %v5285
        %v5345 = vunpack.c.h.b16 %v5285
        %v5346 = vunpack.c.l.b16 %v5286
        %v5347 = vunpack.c.h.b16 %v5286
        %v5348 = vpack.c.b16 %v5318, %v5316
        %v5349 = vpack.c.b16 %v5319, %v5317
        %v5350 = vpack.c.b16 %v5322, %v5320
        %v5351 = vpack.c.b16 %v5323, %v5321
        %v5352 = vpack.c.b16 %v5326, %v5324
        %v5353 = vpack.c.b16 %v5327, %v5325
        %v5354 = vpack.c.b16 %v5330, %v5328
        %v5355 = vpack.c.b16 %v5331, %v5329
        %v5356 = vpack.c.b16 %v5334, %v5332
        %v5357 = vpack.c.b16 %v5335, %v5333
        %v5358 = vpack.c.b16 %v5338, %v5336
        %v5359 = vpack.c.b16 %v5339, %v5337
        %v5360 = vpack.c.b16 %v5342, %v5340
        %v5361 = vpack.c.b16 %v5343, %v5341
        %v5362 = vpack.c.b16 %v5346, %v5344
        %v5363 = vpack.c.b16 %v5347, %v5345
        %5380 = vmatprep.subr.bf16.mxu0 %v5363
        %5381 = vmatpush1.bf16.msra.mxu0 %v5362
        %5382 = vmatprep.subr.bf16.mxu0 %v5361
        %5383 = vmatpush1.bf16.msra.mxu0 %v5360
        %5384 = vmatprep.subr.bf16.mxu0 %v5359
        %5385 = vmatpush1.bf16.msra.mxu0 %v5358
        %5386 = vmatprep.subr.bf16.mxu0 %v5357
        %5387 = vmatpush1.bf16.msra.mxu0 %v5356
        %5388 = vmatprep.subr.bf16.mxu0 %v5355
        %5389 = vmatpush1.bf16.msra.mxu0 %v5354
        %5390 = vmatprep.subr.bf16.mxu0 %v5353
        %5391 = vmatpush1.bf16.msra.mxu0 %v5352
        %5392 = vmatprep.subr.bf16.mxu0 %v5351
        %5393 = vmatpush1.bf16.msra.mxu0 %v5350
        %5394 = vmatprep.subr.bf16.mxu0 %v5349
        %5395 = vmatpush1.bf16.msra.mxu0 %v5348
        %5396 = vmatprep.subr.bf16.mxu0 0
        %5397 = vmatpush2.bf16.msra.mxu0 0
        %5398 = vmatprep.subr.bf16.mxu0 0
        %5399 = vmatpush2.bf16.msra.mxu0 0
        %5400 = vmatprep.subr.bf16.mxu0 0
        %5401 = vmatpush2.bf16.msra.mxu0 0
        %5402 = vmatprep.subr.bf16.mxu0 0
        %5403 = vmatpush2.bf16.msra.mxu0 0
        %5404 = vmatprep.subr.bf16.mxu0 0
        %5405 = vmatpush2.bf16.msra.mxu0 0
        %5406 = vmatprep.subr.bf16.mxu0 0
        %5407 = vmatpush2.bf16.msra.mxu0 0
        %5408 = vmatprep.subr.bf16.mxu0 0
        %5409 = vmatpush2.bf16.msra.mxu0 0
        %5410 = vmatprep.subr.bf16.mxu0 0
        %5411 = vmatpush2.bf16.msra.mxu0 0
        %5412 = vmatprep.mubr.bf16.mxu0 0
        %5413 = vmatmul.mubr.bf16.gmra.mxu0 %v5288
        %v5414 = vpop.f32.mrf.mxu0
        %v5415 = vadd.f32 %v5293, %v5414
        %v5416 = vpop.f32.mrf.mxu0
        %v5417 = vadd.f32 %v5297, %v5416
        %v5418 = vpop.f32.mrf.mxu0
        %v5419 = vpop.f32.mrf.mxu0
        %5420 = vdwg.mxu0
        %v5421 = vmul.f32 %v5415, 0.5
        %v5422 = vmul.f32 %v5417, 0.5
        %v5423 = vmul.f32 %v5415, 0.70710677
        %v5424 = vmul.f32 %v5417, 0.70710677
        %vm5425 = vcmp.ge.f32.partialorder %v5423, 0.0
        %vm5426 = vcmp.ge.f32.partialorder %v5424, 0.0
        %v5427 = vsel %vm5425, 1.0, -1.0
        %v5428 = vsel %vm5426, 1.0, -1.0
        %v5429 = vand.u32 2147483647, %v5423
        %v5430 = vand.u32 2147483647, %v5424
        %v5431 = vmul.f32 %v5429, 0.3275911
        %v5432 = vmul.f32 %v5430, 0.3275911
        %v5433 = vadd.f32 %v5431, 1.0
        %v5434 = vadd.f32 %v5432, 1.0
        %v5435 = vrcp.pop %v5433
        %v5436 = vmul.f32 1.0, %v5435
        %v5437 = vrcp.pop %v5434
        %v5438 = vmul.f32 1.0, %v5437
        %v5439 = vmul.f32 %v5436, 1.0614054
        %v5440 = vmul.f32 %v5438, 1.0614054
        %v5441 = vadd.f32 %v5439, -1.4531521
        %v5442 = vadd.f32 %v5440, -1.4531521
        %v5443 = vmul.f32 %v5441, %v5436
        %v5444 = vmul.f32 %v5442, %v5438
        %v5445 = vadd.f32 %v5443, 1.4214138
        %v5446 = vadd.f32 %v5444, 1.4214138
        %v5447 = vmul.f32 %v5445, %v5436
        %v5448 = vmul.f32 %v5446, %v5438
        %v5449 = vadd.f32 %v5447, -0.28449672
        %v5450 = vadd.f32 %v5448, -0.28449672
        %v5451 = vmul.f32 %v5449, %v5436
        %v5452 = vmul.f32 %v5450, %v5438
        %v5453 = vadd.f32 %v5451, 0.2548296
        %v5454 = vadd.f32 %v5452, 0.2548296
        %v5455 = vmul.f32 %v5453, %v5436
        %v5456 = vmul.f32 %v5454, %v5438
        %v5457 = vsub.f32 0.0, %v5429
        %v5458 = vsub.f32 0.0, %v5430
        %v5459 = vmul.f32 %v5457, %v5429
        %v5460 = vmul.f32 %v5458, %v5430
        %v5461 = vmul.f32 %v5459, 1.442695
        %v5462 = vpow.pop %v5461
        %v5463 = vmul.f32 %v5460, 1.442695
        %v5464 = vpow.pop %v5463
        %v5465 = vmul.f32 %v5455, %v5462
        %v5466 = vmul.f32 %v5456, %v5464
        %v5467 = vsub.f32 1.0, %v5465
        %v5468 = vsub.f32 1.0, %v5466
        %v5469 = vmul.f32 %v5427, %v5467
        %v5470 = vmul.f32 %v5428, %v5468
        %v5471 = vadd.f32 %v5469, 1.0
        %v5472 = vadd.f32 %v5470, 1.0
        %v5473 = vmul.f32 %v5421, %v5471
        %v5474 = vmul.f32 %v5422, %v5472
        %v5475 = vld [vmem:[#allocation20] sm:$0xf]
        %v5476 = vld [vmem:[#allocation20 + $0x4] sm:$0xf]
        %v5477 = vld [vmem:[#allocation20 + $0x8] sm:$0xf]
        %v5478 = vld [vmem:[#allocation20 + $0xc] sm:$0xf]
        %v5479 = vld [vmem:[#allocation20 + $0x10] sm:$0xf]
        %v5480 = vld [vmem:[#allocation20 + $0x14] sm:$0xf]
        %v5481 = vld [vmem:[#allocation20 + $0x18] sm:$0xf]
        %v5482 = vld [vmem:[#allocation20 + $0x1c] sm:$0xf]
        %v5483 = vld [vmem:[#allocation20 + $0x20] sm:$0xf]
        %v5484 = vld [vmem:[#allocation20 + $0x24] sm:$0xf]
        %v5485 = vld [vmem:[#allocation20 + $0x28] sm:$0xf]
        %v5486 = vld [vmem:[#allocation20 + $0x2c] sm:$0xf]
        %v5487 = vld [vmem:[#allocation20 + $0x30] sm:$0xf]
        %v5488 = vld [vmem:[#allocation20 + $0x34] sm:$0xf]
        %v5489 = vld [vmem:[#allocation20 + $0x38] sm:$0xf]
        %v5490 = vld [vmem:[#allocation20 + $0x3c] sm:$0xf]
        %v5491 = vld [vmem:[#allocation20 + $0x40] sm:$0xf]
        %v5492 = vld [vmem:[#allocation20 + $0x44] sm:$0xf]
        %v5493 = vld [vmem:[#allocation20 + $0x48] sm:$0xf]
        %v5494 = vld [vmem:[#allocation20 + $0x4c] sm:$0xf]
        %v5495 = vld [vmem:[#allocation20 + $0x50] sm:$0xf]
        %v5496 = vld [vmem:[#allocation20 + $0x54] sm:$0xf]
        %v5497 = vld [vmem:[#allocation20 + $0x58] sm:$0xf]
        %v5498 = vld [vmem:[#allocation20 + $0x5c] sm:$0xf]
        %v5499 = vld [vmem:[#allocation20 + $0x60] sm:$0xf]
        %v5500 = vld [vmem:[#allocation20 + $0x64] sm:$0xf]
        %v5501 = vld [vmem:[#allocation20 + $0x68] sm:$0xf]
        %v5502 = vld [vmem:[#allocation20 + $0x6c] sm:$0xf]
        %v5503 = vld [vmem:[#allocation20 + $0x70] sm:$0xf]
        %v5504 = vld [vmem:[#allocation20 + $0x74] sm:$0xf]
        %v5505 = vld [vmem:[#allocation20 + $0x78] sm:$0xf]
        %v5506 = vld [vmem:[#allocation20 + $0x7c] sm:$0xf]
        %v5507 = vld [vmem:[#allocation22] sm:$0x1]
        %v5508 = vpack.c.bf16 %v5473, %v5473
        %v5509 = vpack.c.bf16 %v5474, %v5474
        %v5511 = vlaneseq
        %v5512 = vshrl.u32 %v5511, 7
        %v5513 = vsub.s32 0, %v5512
        %v5514 = vrot.slane %v5507, %v5513
        %v5548 = vunpack.c.l.b16 %v5475
        %v5549 = vunpack.c.l.b16 %v5476
        %v5550 = vunpack.c.l.b16 %v5477
        %v5551 = vunpack.c.l.b16 %v5478
        %v5552 = vunpack.c.l.b16 %v5479
        %v5553 = vunpack.c.l.b16 %v5480
        %v5554 = vunpack.c.l.b16 %v5481
        %v5555 = vunpack.c.l.b16 %v5482
        %v5556 = vunpack.c.l.b16 %v5483
        %v5557 = vunpack.c.l.b16 %v5484
        %v5558 = vunpack.c.l.b16 %v5485
        %v5559 = vunpack.c.l.b16 %v5486
        %v5560 = vunpack.c.l.b16 %v5487
        %v5561 = vunpack.c.l.b16 %v5488
        %v5562 = vunpack.c.l.b16 %v5489
        %v5563 = vunpack.c.l.b16 %v5490
        %v5564 = vunpack.c.l.b16 %v5491
        %v5565 = vunpack.c.l.b16 %v5492
        %v5566 = vunpack.c.l.b16 %v5493
        %v5567 = vunpack.c.l.b16 %v5494
        %v5568 = vunpack.c.l.b16 %v5495
        %v5569 = vunpack.c.l.b16 %v5496
        %v5570 = vunpack.c.l.b16 %v5497
        %v5571 = vunpack.c.l.b16 %v5498
        %v5572 = vunpack.c.l.b16 %v5499
        %v5573 = vunpack.c.l.b16 %v5500
        %v5574 = vunpack.c.l.b16 %v5501
        %v5575 = vunpack.c.l.b16 %v5502
        %v5576 = vunpack.c.l.b16 %v5503
        %v5577 = vunpack.c.l.b16 %v5504
        %v5578 = vunpack.c.l.b16 %v5505
        %v5579 = vunpack.c.l.b16 %v5506
        %v5580 = vpack.c.b16 %v5549, %v5548
        %v5581 = vpack.c.b16 %v5551, %v5550
        %v5582 = vpack.c.b16 %v5553, %v5552
        %v5583 = vpack.c.b16 %v5555, %v5554
        %v5584 = vpack.c.b16 %v5557, %v5556
        %v5585 = vpack.c.b16 %v5559, %v5558
        %v5586 = vpack.c.b16 %v5561, %v5560
        %v5587 = vpack.c.b16 %v5563, %v5562
        %v5588 = vpack.c.b16 %v5565, %v5564
        %v5589 = vpack.c.b16 %v5567, %v5566
        %v5590 = vpack.c.b16 %v5569, %v5568
        %v5591 = vpack.c.b16 %v5571, %v5570
        %v5592 = vpack.c.b16 %v5573, %v5572
        %v5593 = vpack.c.b16 %v5575, %v5574
        %v5594 = vpack.c.b16 %v5577, %v5576
        %v5595 = vpack.c.b16 %v5579, %v5578
        %5612 = vmatprep.subr.bf16.mxu0 0
        %5613 = vmatpush1.bf16.msra.mxu0 %v5587
        %5614 = vmatprep.subr.bf16.mxu0 0
        %5615 = vmatpush1.bf16.msra.mxu0 %v5586
        %5616 = vmatprep.subr.bf16.mxu0 0
        %5617 = vmatpush1.bf16.msra.mxu0 %v5585
        %5618 = vmatprep.subr.bf16.mxu0 0
        %5619 = vmatpush1.bf16.msra.mxu0 %v5584
        %5620 = vmatprep.subr.bf16.mxu0 0
        %5621 = vmatpush1.bf16.msra.mxu0 %v5583
        %5622 = vmatprep.subr.bf16.mxu0 0
        %5623 = vmatpush1.bf16.msra.mxu0 %v5582
        %5624 = vmatprep.subr.bf16.mxu0 0
        %5625 = vmatpush1.bf16.msra.mxu0 %v5581
        %5626 = vmatprep.subr.bf16.mxu0 0
        %5627 = vmatpush1.bf16.msra.mxu0 %v5580
        %5628 = vmatprep.subr.bf16.mxu0 0
        %5629 = vmatpush2.bf16.msra.mxu0 %v5595
        %5630 = vmatprep.subr.bf16.mxu0 0
        %5631 = vmatpush2.bf16.msra.mxu0 %v5594
        %5632 = vmatprep.subr.bf16.mxu0 0
        %5633 = vmatpush2.bf16.msra.mxu0 %v5593
        %5634 = vmatprep.subr.bf16.mxu0 0
        %5635 = vmatpush2.bf16.msra.mxu0 %v5592
        %5636 = vmatprep.subr.bf16.mxu0 0
        %5637 = vmatpush2.bf16.msra.mxu0 %v5591
        %5638 = vmatprep.subr.bf16.mxu0 0
        %5639 = vmatpush2.bf16.msra.mxu0 %v5590
        %5640 = vmatprep.subr.bf16.mxu0 0
        %5641 = vmatpush2.bf16.msra.mxu0 %v5589
        %5642 = vmatprep.subr.bf16.mxu0 0
        %5643 = vmatpush2.bf16.msra.mxu0 %v5588
        %5644 = vmatprep.mubr.bf16.mxu0 %v5509
        %5645 = vmatmul.mubr.bf16.gmra.mxu0 %v5508
        %v5646 = vpop.f32.mrf.mxu0
        %v5647 = vadd.f32 %v5514, %v5646
        %v5648 = vpop.f32.mrf.mxu0
        %v5649 = vpop.f32.mrf.mxu0
        %v5650 = vpop.f32.mrf.mxu0
        %5651 = vdwg.mxu0
        %s5652 = scalar_lea.vmem [#allocation10], 192
        %v5653 = vld [vmem:[%s5652] sm:$0xff]
        %v5654 = vld [vmem:[%s5652 + $0x8] sm:$0xf]
        %v5655 = vld [vmem:[%s5652 + $0xc] sm:$0xff]
        %v5656 = vld [vmem:[%s5652 + $0x14] sm:$0xf]
        %v5657 = vld [vmem:[%s5652 + $0x18] sm:$0xff]
        %v5658 = vld [vmem:[%s5652 + $0x20] sm:$0xf]
        %v5659 = vld [vmem:[%s5652 + $0x24] sm:$0xff]
        %v5660 = vld [vmem:[%s5652 + $0x2c] sm:$0xf]
        %v5661 = vld [vmem:[%s5652 + $0x30] sm:$0xff]
        %v5662 = vld [vmem:[%s5652 + $0x38] sm:$0xf]
        %v5663 = vld [vmem:[%s5652 + $0x3c] sm:$0xff]
        %v5664 = vld [vmem:[%s5652 + $0x44] sm:$0xf]
        %v5665 = vld [vmem:[%s5652 + $0x48] sm:$0xff]
        %v5666 = vld [vmem:[%s5652 + $0x50] sm:$0xf]
        %v5667 = vld [vmem:[%s5652 + $0x54] sm:$0xff]
        %v5668 = vld [vmem:[%s5652 + $0x5c] sm:$0xf]
        %v5669 = vld [vmem:[%s5652 + $0x60] sm:$0xff]
        %v5670 = vld [vmem:[%s5652 + $0x68] sm:$0xf]
        %v5671 = vld [vmem:[%s5652 + $0x6c] sm:$0xff]
        %v5672 = vld [vmem:[%s5652 + $0x74] sm:$0xf]
        %v5673 = vld [vmem:[%s5652 + $0x78] sm:$0xff]
        %v5674 = vld [vmem:[%s5652 + $0x80] sm:$0xf]
        %v5675 = vld [vmem:[%s5652 + $0x84] sm:$0xff]
        %v5676 = vld [vmem:[%s5652 + $0x8c] sm:$0xf]
        %v5677 = vld [vmem:[%s5652 + $0x90] sm:$0xff]
        %v5678 = vld [vmem:[%s5652 + $0x98] sm:$0xf]
        %v5679 = vld [vmem:[%s5652 + $0x9c] sm:$0xff]
        %v5680 = vld [vmem:[%s5652 + $0xa4] sm:$0xf]
        %v5681 = vld [vmem:[%s5652 + $0xa8] sm:$0xff]
        %v5682 = vld [vmem:[%s5652 + $0xb0] sm:$0xf]
        %v5683 = vld [vmem:[%s5652 + $0xb4] sm:$0xff]
        %v5684 = vld [vmem:[%s5652 + $0xbc] sm:$0xf]
        %s5685 = scalar_lea.vmem [#allocation11], 3
        %v5686 = vld [vmem:[%s5685] sm:$0x7]
        %v5687 = vpack.c.bf16 %v5647, %v5647
        %v5689 = vlaneseq
        %v5690 = vshrl.u32 %v5689, 7
        %v5691 = vsub.s32 0, %v5690
        %v5692 = vrot.slane %v5686, %v5691
        %v5693 = vlaneseq
        %v5694 = vshrl.u32 %v5693, 7
        %v5695 = vsub.s32 1, %v5694
        %v5696 = vrot.slane %v5686, %v5695
        %v5697 = vlaneseq
        %v5698 = vshrl.u32 %v5697, 7
        %v5699 = vsub.s32 2, %v5698
        %v5700 = vrot.slane %v5686, %v5699
        %v5736 = vunpack.c.l.b16 %v5653
        %v5737 = vunpack.c.h.b16 %v5653
        %v5738 = vunpack.c.l.b16 %v5654
        %v5739 = vunpack.c.l.b16 %v5655
        %v5740 = vunpack.c.h.b16 %v5655
        %v5741 = vunpack.c.l.b16 %v5656
        %v5742 = vunpack.c.l.b16 %v5657
        %v5743 = vunpack.c.h.b16 %v5657
        %v5744 = vunpack.c.l.b16 %v5658
        %v5745 = vunpack.c.l.b16 %v5659
        %v5746 = vunpack.c.h.b16 %v5659
        %v5747 = vunpack.c.l.b16 %v5660
        %v5748 = vunpack.c.l.b16 %v5661
        %v5749 = vunpack.c.h.b16 %v5661
        %v5750 = vunpack.c.l.b16 %v5662
        %v5751 = vunpack.c.l.b16 %v5663
        %v5752 = vunpack.c.h.b16 %v5663
        %v5753 = vunpack.c.l.b16 %v5664
        %v5754 = vunpack.c.l.b16 %v5665
        %v5755 = vunpack.c.h.b16 %v5665
        %v5756 = vunpack.c.l.b16 %v5666
        %v5757 = vunpack.c.l.b16 %v5667
        %v5758 = vunpack.c.h.b16 %v5667
        %v5759 = vunpack.c.l.b16 %v5668
        %v5760 = vunpack.c.l.b16 %v5669
        %v5761 = vunpack.c.h.b16 %v5669
        %v5762 = vunpack.c.l.b16 %v5670
        %v5763 = vunpack.c.l.b16 %v5671
        %v5764 = vunpack.c.h.b16 %v5671
        %v5765 = vunpack.c.l.b16 %v5672
        %v5766 = vunpack.c.l.b16 %v5673
        %v5767 = vunpack.c.h.b16 %v5673
        %v5768 = vunpack.c.l.b16 %v5674
        %v5769 = vunpack.c.l.b16 %v5675
        %v5770 = vunpack.c.h.b16 %v5675
        %v5771 = vunpack.c.l.b16 %v5676
        %v5772 = vunpack.c.l.b16 %v5677
        %v5773 = vunpack.c.h.b16 %v5677
        %v5774 = vunpack.c.l.b16 %v5678
        %v5775 = vunpack.c.l.b16 %v5679
        %v5776 = vunpack.c.h.b16 %v5679
        %v5777 = vunpack.c.l.b16 %v5680
        %v5778 = vunpack.c.l.b16 %v5681
        %v5779 = vunpack.c.h.b16 %v5681
        %v5780 = vunpack.c.l.b16 %v5682
        %v5781 = vunpack.c.l.b16 %v5683
        %v5782 = vunpack.c.h.b16 %v5683
        %v5783 = vunpack.c.l.b16 %v5684
        %v5784 = vpack.c.b16 %v5739, %v5736
        %v5785 = vpack.c.b16 %v5740, %v5737
        %v5786 = vpack.c.b16 %v5741, %v5738
        %v5787 = vpack.c.b16 %v5745, %v5742
        %v5788 = vpack.c.b16 %v5746, %v5743
        %v5789 = vpack.c.b16 %v5747, %v5744
        %v5790 = vpack.c.b16 %v5751, %v5748
        %v5791 = vpack.c.b16 %v5752, %v5749
        %v5792 = vpack.c.b16 %v5753, %v5750
        %v5793 = vpack.c.b16 %v5757, %v5754
        %v5794 = vpack.c.b16 %v5758, %v5755
        %v5795 = vpack.c.b16 %v5759, %v5756
        %v5796 = vpack.c.b16 %v5763, %v5760
        %v5797 = vpack.c.b16 %v5764, %v5761
        %v5798 = vpack.c.b16 %v5765, %v5762
        %v5799 = vpack.c.b16 %v5769, %v5766
        %v5800 = vpack.c.b16 %v5770, %v5767
        %v5801 = vpack.c.b16 %v5771, %v5768
        %v5802 = vpack.c.b16 %v5775, %v5772
        %v5803 = vpack.c.b16 %v5776, %v5773
        %v5804 = vpack.c.b16 %v5777, %v5774
        %v5805 = vpack.c.b16 %v5781, %v5778
        %v5806 = vpack.c.b16 %v5782, %v5779
        %v5807 = vpack.c.b16 %v5783, %v5780
        %5832 = vmatprep.subr.bf16.mxu0 %v5806
        %5833 = vmatpush1.bf16.msra.mxu0 %v5805
        %5834 = vmatprep.subr.bf16.mxu0 %v5803
        %5835 = vmatpush1.bf16.msra.mxu0 %v5802
        %5836 = vmatprep.subr.bf16.mxu0 %v5800
        %5837 = vmatpush1.bf16.msra.mxu0 %v5799
        %5838 = vmatprep.subr.bf16.mxu0 %v5797
        %5839 = vmatpush1.bf16.msra.mxu0 %v5796
        %5840 = vmatprep.subr.bf16.mxu0 %v5794
        %5841 = vmatpush1.bf16.msra.mxu0 %v5793
        %5842 = vmatprep.subr.bf16.mxu0 %v5791
        %5843 = vmatpush1.bf16.msra.mxu0 %v5790
        %5844 = vmatprep.subr.bf16.mxu0 %v5788
        %5845 = vmatpush1.bf16.msra.mxu0 %v5787
        %5846 = vmatprep.subr.bf16.mxu0 %v5785
        %5847 = vmatpush1.bf16.msra.mxu0 %v5784
        %5848 = vmatprep.subr.bf16.mxu0 0
        %5849 = vmatpush2.bf16.msra.mxu0 0
        %5850 = vmatprep.subr.bf16.mxu0 0
        %5851 = vmatpush2.bf16.msra.mxu0 0
        %5852 = vmatprep.subr.bf16.mxu0 0
        %5853 = vmatpush2.bf16.msra.mxu0 0
        %5854 = vmatprep.subr.bf16.mxu0 0
        %5855 = vmatpush2.bf16.msra.mxu0 0
        %5856 = vmatprep.subr.bf16.mxu0 0
        %5857 = vmatpush2.bf16.msra.mxu0 0
        %5858 = vmatprep.subr.bf16.mxu0 0
        %5859 = vmatpush2.bf16.msra.mxu0 0
        %5860 = vmatprep.subr.bf16.mxu0 0
        %5861 = vmatpush2.bf16.msra.mxu0 0
        %5862 = vmatprep.subr.bf16.mxu0 0
        %5863 = vmatpush2.bf16.msra.mxu0 0
        %5864 = vmatprep.mubr.bf16.mxu0 0
        %5865 = vmatmul.mubr.bf16.gmra.mxu0 %v5687
        %v5866 = vpop.f32.mrf.mxu0
        %v5867 = vadd.f32 %v5692, %v5866
        %v5868 = vpop.f32.mrf.mxu0
        %v5869 = vadd.f32 %v5696, %v5868
        %v5870 = vpop.f32.mrf.mxu0
        %v5871 = vpop.f32.mrf.mxu0
        %5872 = vdwg.mxu0
        %5873 = vmatprep.subr.bf16.mxu0 0
        %5874 = vmatpush1.bf16.msra.mxu0 %v5807
        %5875 = vmatprep.subr.bf16.mxu0 0
        %5876 = vmatpush1.bf16.msra.mxu0 %v5804
        %5877 = vmatprep.subr.bf16.mxu0 0
        %5878 = vmatpush1.bf16.msra.mxu0 %v5801
        %5879 = vmatprep.subr.bf16.mxu0 0
        %5880 = vmatpush1.bf16.msra.mxu0 %v5798
        %5881 = vmatprep.subr.bf16.mxu0 0
        %5882 = vmatpush1.bf16.msra.mxu0 %v5795
        %5883 = vmatprep.subr.bf16.mxu0 0
        %5884 = vmatpush1.bf16.msra.mxu0 %v5792
        %5885 = vmatprep.subr.bf16.mxu0 0
        %5886 = vmatpush1.bf16.msra.mxu0 %v5789
        %5887 = vmatprep.subr.bf16.mxu0 0
        %5888 = vmatpush1.bf16.msra.mxu0 %v5786
        %5889 = vmatprep.subr.bf16.mxu0 0
        %5890 = vmatpush2.bf16.msra.mxu0 0
        %5891 = vmatprep.subr.bf16.mxu0 0
        %5892 = vmatpush2.bf16.msra.mxu0 0
        %5893 = vmatprep.subr.bf16.mxu0 0
        %5894 = vmatpush2.bf16.msra.mxu0 0
        %5895 = vmatprep.subr.bf16.mxu0 0
        %5896 = vmatpush2.bf16.msra.mxu0 0
        %5897 = vmatprep.subr.bf16.mxu0 0
        %5898 = vmatpush2.bf16.msra.mxu0 0
        %5899 = vmatprep.subr.bf16.mxu0 0
        %5900 = vmatpush2.bf16.msra.mxu0 0
        %5901 = vmatprep.subr.bf16.mxu0 0
        %5902 = vmatpush2.bf16.msra.mxu0 0
        %5903 = vmatprep.subr.bf16.mxu0 0
        %5904 = vmatpush2.bf16.msra.mxu0 0
        %5905 = vmatprep.mubr.bf16.mxu0 0
        %5906 = vmatmul.mubr.bf16.gmra.mxu0 %v5687
        %v5907 = vpop.f32.mrf.mxu0
        %v5908 = vadd.f32 %v5700, %v5907
        %v5909 = vpop.f32.mrf.mxu0
        %v5910 = vpop.f32.mrf.mxu0
        %v5911 = vpop.f32.mrf.mxu0
        %5912 = vdwg.mxu0
        %5914 = vrot.lane.b32.xlu0 %v5867, 96
        %v5915 = vpop.permute.xlu0 %5914
        %5917 = vrot.lane.b32.xlu0 %v5867, 64
        %v5918 = vpop.permute.xlu0 %5917
        %5920 = vrot.lane.b32.xlu0 %v5867, 32
        %v5921 = vpop.permute.xlu0 %5920
        %v5923 = vcombine.low %v5867, %v5918
        %v5924 = vcombine.high %v5867, %v5918
        %v5926 = vunpack.c.l.s4 1983009808
        %v5927 = vunpack.c.0.s8 %v5926
        %v5928 = vlaneseq
        %v5929 = vshrl.u32 %v5928, 7
        %v5930 = vsub.s32 %v5927, %v5929
        %v5931 = vrot.slane %v5923, %v5930
        %v5933 = vunpack.c.l.s4 1983009808
        %v5934 = vunpack.c.0.s8 %v5933
        %v5935 = vlaneseq
        %v5936 = vshrl.u32 %v5935, 7
        %v5937 = vsub.s32 %v5934, %v5936
        %v5938 = vrot.slane %v5924, %v5937
        %v5939 = vcombine.low %v5915, %v5921
        %v5940 = vcombine.high %v5915, %v5921
        %v5942 = vunpack.c.l.s4 1983009808
        %v5943 = vunpack.c.0.s8 %v5942
        %v5944 = vlaneseq
        %v5945 = vshrl.u32 %v5944, 7
        %v5946 = vsub.s32 %v5943, %v5945
        %v5947 = vrot.slane %v5939, %v5946
        %v5949 = vunpack.c.l.s4 1983009808
        %v5950 = vunpack.c.0.s8 %v5949
        %v5951 = vlaneseq
        %v5952 = vshrl.u32 %v5951, 7
        %v5953 = vsub.s32 %v5950, %v5952
        %v5954 = vrot.slane %v5940, %v5953
        %v5955 = vcombine.low %v5931, %v5947
        %v5956 = vcombine.high %v5931, %v5947
        %v5958 = vunpack.c.l.s4 1934713408
        %v5959 = vunpack.c.0.s8 %v5958
        %v5960 = vlaneseq
        %v5961 = vshrl.u32 %v5960, 7
        %v5962 = vsub.s32 %v5959, %v5961
        %v5963 = vrot.slane %v5955, %v5962
        %v5965 = vunpack.c.l.s4 1934713408
        %v5966 = vunpack.c.0.s8 %v5965
        %v5967 = vlaneseq
        %v5968 = vshrl.u32 %v5967, 7
        %v5969 = vsub.s32 %v5966, %v5968
        %v5970 = vrot.slane %v5956, %v5969
        %v5971 = vcombine.low %v5938, %v5954
        %v5972 = vcombine.high %v5938, %v5954
        %v5974 = vunpack.c.l.s4 1934713408
        %v5975 = vunpack.c.0.s8 %v5974
        %v5976 = vlaneseq
        %v5977 = vshrl.u32 %v5976, 7
        %v5978 = vsub.s32 %v5975, %v5977
        %v5979 = vrot.slane %v5971, %v5978
        %v5981 = vunpack.c.l.s4 1934713408
        %v5982 = vunpack.c.0.s8 %v5981
        %v5983 = vlaneseq
        %v5984 = vshrl.u32 %v5983, 7
        %v5985 = vsub.s32 %v5982, %v5984
        %v5986 = vrot.slane %v5972, %v5985
        %v5987 = vcombine.high %v5963, 0.0
        %v5988 = vcombine.high %v5970, 0.0
        %v5989 = vcombine.high %v5979, 0.0
        %v5990 = vcombine.high %v5986, 0.0
        %v5991 = vpack.c.bf16 %v5963, %v5963
        %v5992 = vpack.c.bf16 %v5987, %v5987
        %v5993 = vpack.c.bf16 %v5970, %v5970
        %v5994 = vpack.c.bf16 %v5988, %v5988
        %v5995 = vpack.c.bf16 %v5979, %v5979
        %v5996 = vpack.c.bf16 %v5989, %v5989
        %v5997 = vpack.c.bf16 %v5986, %v5986
        %v5998 = vpack.c.bf16 %v5990, %v5990
        %6000 = vrot.lane.b32.xlu0 %v5869, 96
        %v6001 = vpop.permute.xlu0 %6000
        %6003 = vrot.lane.b32.xlu0 %v5869, 64
        %v6004 = vpop.permute.xlu0 %6003
        %6006 = vrot.lane.b32.xlu0 %v5869, 32
        %v6007 = vpop.permute.xlu0 %6006
        %v6009 = vcombine.low %v5869, %v6004
        %v6010 = vcombine.high %v5869, %v6004
        %v6012 = vunpack.c.l.s4 1983009808
        %v6013 = vunpack.c.0.s8 %v6012
        %v6014 = vlaneseq
        %v6015 = vshrl.u32 %v6014, 7
        %v6016 = vsub.s32 %v6013, %v6015
        %v6017 = vrot.slane %v6009, %v6016
        %v6019 = vunpack.c.l.s4 1983009808
        %v6020 = vunpack.c.0.s8 %v6019
        %v6021 = vlaneseq
        %v6022 = vshrl.u32 %v6021, 7
        %v6023 = vsub.s32 %v6020, %v6022
        %v6024 = vrot.slane %v6010, %v6023
        %v6025 = vcombine.low %v6001, %v6007
        %v6026 = vcombine.high %v6001, %v6007
        %v6028 = vunpack.c.l.s4 1983009808
        %v6029 = vunpack.c.0.s8 %v6028
        %v6030 = vlaneseq
        %v6031 = vshrl.u32 %v6030, 7
        %v6032 = vsub.s32 %v6029, %v6031
        %v6033 = vrot.slane %v6025, %v6032
        %v6035 = vunpack.c.l.s4 1983009808
        %v6036 = vunpack.c.0.s8 %v6035
        %v6037 = vlaneseq
        %v6038 = vshrl.u32 %v6037, 7
        %v6039 = vsub.s32 %v6036, %v6038
        %v6040 = vrot.slane %v6026, %v6039
        %v6041 = vcombine.low %v6017, %v6033
        %v6042 = vcombine.high %v6017, %v6033
        %v6044 = vunpack.c.l.s4 1934713408
        %v6045 = vunpack.c.0.s8 %v6044
        %v6046 = vlaneseq
        %v6047 = vshrl.u32 %v6046, 7
        %v6048 = vsub.s32 %v6045, %v6047
        %v6049 = vrot.slane %v6041, %v6048
        %v6051 = vunpack.c.l.s4 1934713408
        %v6052 = vunpack.c.0.s8 %v6051
        %v6053 = vlaneseq
        %v6054 = vshrl.u32 %v6053, 7
        %v6055 = vsub.s32 %v6052, %v6054
        %v6056 = vrot.slane %v6042, %v6055
        %v6057 = vcombine.low %v6024, %v6040
        %v6058 = vcombine.high %v6024, %v6040
        %v6060 = vunpack.c.l.s4 1934713408
        %v6061 = vunpack.c.0.s8 %v6060
        %v6062 = vlaneseq
        %v6063 = vshrl.u32 %v6062, 7
        %v6064 = vsub.s32 %v6061, %v6063
        %v6065 = vrot.slane %v6057, %v6064
        %v6067 = vunpack.c.l.s4 1934713408
        %v6068 = vunpack.c.0.s8 %v6067
        %v6069 = vlaneseq
        %v6070 = vshrl.u32 %v6069, 7
        %v6071 = vsub.s32 %v6068, %v6070
        %v6072 = vrot.slane %v6058, %v6071
        %v6073 = vcombine.high %v6049, 0.0
        %v6074 = vcombine.high %v6056, 0.0
        %v6075 = vcombine.high %v6065, 0.0
        %v6076 = vcombine.high %v6072, 0.0
        %v6077 = vpack.c.bf16 %v6049, %v6049
        %v6078 = vpack.c.bf16 %v6073, %v6073
        %v6079 = vpack.c.bf16 %v6056, %v6056
        %v6080 = vpack.c.bf16 %v6074, %v6074
        %v6081 = vpack.c.bf16 %v6065, %v6065
        %v6082 = vpack.c.bf16 %v6075, %v6075
        %v6083 = vpack.c.bf16 %v6072, %v6072
        %v6084 = vpack.c.bf16 %v6076, %v6076
        %6086 = vrot.lane.b32.xlu0 %v5908, 96
        %v6087 = vpop.permute.xlu0 %6086
        %6089 = vrot.lane.b32.xlu0 %v5908, 64
        %v6090 = vpop.permute.xlu0 %6089
        %6092 = vrot.lane.b32.xlu0 %v5908, 32
        %v6093 = vpop.permute.xlu0 %6092
        %v6095 = vcombine.low %v5908, %v6090
        %v6096 = vcombine.high %v5908, %v6090
        %v6098 = vunpack.c.l.s4 1983009808
        %v6099 = vunpack.c.0.s8 %v6098
        %v6100 = vlaneseq
        %v6101 = vshrl.u32 %v6100, 7
        %v6102 = vsub.s32 %v6099, %v6101
        %v6103 = vrot.slane %v6095, %v6102
        %v6105 = vunpack.c.l.s4 1983009808
        %v6106 = vunpack.c.0.s8 %v6105
        %v6107 = vlaneseq
        %v6108 = vshrl.u32 %v6107, 7
        %v6109 = vsub.s32 %v6106, %v6108
        %v6110 = vrot.slane %v6096, %v6109
        %v6111 = vcombine.low %v6087, %v6093
        %v6112 = vcombine.high %v6087, %v6093
        %v6114 = vunpack.c.l.s4 1983009808
        %v6115 = vunpack.c.0.s8 %v6114
        %v6116 = vlaneseq
        %v6117 = vshrl.u32 %v6116, 7
        %v6118 = vsub.s32 %v6115, %v6117
        %v6119 = vrot.slane %v6111, %v6118
        %v6121 = vunpack.c.l.s4 1983009808
        %v6122 = vunpack.c.0.s8 %v6121
        %v6123 = vlaneseq
        %v6124 = vshrl.u32 %v6123, 7
        %v6125 = vsub.s32 %v6122, %v6124
        %v6126 = vrot.slane %v6112, %v6125
        %v6127 = vcombine.low %v6103, %v6119
        %v6128 = vcombine.high %v6103, %v6119
        %v6130 = vunpack.c.l.s4 1934713408
        %v6131 = vunpack.c.0.s8 %v6130
        %v6132 = vlaneseq
        %v6133 = vshrl.u32 %v6132, 7
        %v6134 = vsub.s32 %v6131, %v6133
        %v6135 = vrot.slane %v6127, %v6134
        %v6137 = vunpack.c.l.s4 1934713408
        %v6138 = vunpack.c.0.s8 %v6137
        %v6139 = vlaneseq
        %v6140 = vshrl.u32 %v6139, 7
        %v6141 = vsub.s32 %v6138, %v6140
        %v6142 = vrot.slane %v6128, %v6141
        %v6143 = vcombine.low %v6110, %v6126
        %v6144 = vcombine.high %v6110, %v6126
        %v6146 = vunpack.c.l.s4 1934713408
        %v6147 = vunpack.c.0.s8 %v6146
        %v6148 = vlaneseq
        %v6149 = vshrl.u32 %v6148, 7
        %v6150 = vsub.s32 %v6147, %v6149
        %v6151 = vrot.slane %v6143, %v6150
        %v6153 = vunpack.c.l.s4 1934713408
        %v6154 = vunpack.c.0.s8 %v6153
        %v6155 = vlaneseq
        %v6156 = vshrl.u32 %v6155, 7
        %v6157 = vsub.s32 %v6154, %v6156
        %v6158 = vrot.slane %v6144, %v6157
        %v6159 = vcombine.high %v6135, 0.0
        %v6160 = vcombine.high %v6142, 0.0
        %v6161 = vcombine.high %v6151, 0.0
        %v6162 = vcombine.high %v6158, 0.0
        %v6163 = vpack.c.bf16 %v6135, %v6135
        %v6164 = vpack.c.bf16 %v6159, %v6159
        %v6165 = vpack.c.bf16 %v6142, %v6142
        %v6166 = vpack.c.bf16 %v6160, %v6160
        %v6167 = vpack.c.bf16 %v6151, %v6151
        %v6168 = vpack.c.bf16 %v6161, %v6161
        %v6169 = vpack.c.bf16 %v6158, %v6158
        %v6170 = vpack.c.bf16 %v6162, %v6162
        %v6171 = vcombine.low %v5991, %v5995
        %v6173 = vunpack.c.l.s4 1983009808
        %v6174 = vunpack.c.0.s8 %v6173
        %v6175 = vlaneseq
        %v6176 = vshrl.u32 %v6175, 7
        %v6177 = vsub.s32 %v6174, %v6176
        %v6178 = vrot.slane %v6171, %v6177
        %v6179 = vcombine.low %v5993, %v5997
        %v6181 = vunpack.c.l.s4 1983009808
        %v6182 = vunpack.c.0.s8 %v6181
        %v6183 = vlaneseq
        %v6184 = vshrl.u32 %v6183, 7
        %v6185 = vsub.s32 %v6182, %v6184
        %v6186 = vrot.slane %v6179, %v6185
        %v6187 = vcombine.low %v6178, %v6186
        %v6189 = vunpack.c.l.s4 1934713408
        %v6190 = vunpack.c.0.s8 %v6189
        %v6191 = vlaneseq
        %v6192 = vshrl.u32 %v6191, 7
        %v6193 = vsub.s32 %v6190, %v6192
        %v6194 = vrot.slane %v6187, %v6193
        %v6195 = vcombine.high %v6194, 0
        %v6196 = vcombine.low %v5992, %v5996
        %v6198 = vunpack.c.l.s4 1983009808
        %v6199 = vunpack.c.0.s8 %v6198
        %v6200 = vlaneseq
        %v6201 = vshrl.u32 %v6200, 7
        %v6202 = vsub.s32 %v6199, %v6201
        %v6203 = vrot.slane %v6196, %v6202
        %v6204 = vcombine.low %v5994, %v5998
        %v6206 = vunpack.c.l.s4 1983009808
        %v6207 = vunpack.c.0.s8 %v6206
        %v6208 = vlaneseq
        %v6209 = vshrl.u32 %v6208, 7
        %v6210 = vsub.s32 %v6207, %v6209
        %v6211 = vrot.slane %v6204, %v6210
        %v6212 = vcombine.low %v6203, %v6211
        %v6214 = vunpack.c.l.s4 1934713408
        %v6215 = vunpack.c.0.s8 %v6214
        %v6216 = vlaneseq
        %v6217 = vshrl.u32 %v6216, 7
        %v6218 = vsub.s32 %v6215, %v6217
        %v6219 = vrot.slane %v6212, %v6218
        %v6220 = vcombine.high %v6219, 0
        %v6223 = vpack.i.b16 %v6219, %v6194
        %v6224 = vshrl.u32 %v6194, 16
        %v6225 = vshrl.u32 %v6219, 16
        %v6226 = vpack.i.b16 %v6225, %v6224
        %v6229 = vpack.i.b16 %v6220, %v6195
        %v6230 = vshrl.u32 %v6195, 16
        %v6231 = vshrl.u32 %v6220, 16
        %v6232 = vpack.i.b16 %v6231, %v6230
        %6233 = vxpose.xlu0.c.b16.start [1/8] %v6077, 128
        %6234 = vxpose.xlu0.c.b16.cont [2/8] 0, 128
        %6235 = vxpose.xlu0.c.b16.cont [3/8] 0, 128
        %6236 = vxpose.xlu0.c.b16.cont [4/8] 0, 128
        %6237 = vxpose.xlu0.c.b16.cont [5/8] 0, 128
        %6238 = vxpose.xlu0.c.b16.cont [6/8] 0, 128
        %6239 = vxpose.xlu0.c.b16.cont [7/8] 0, 128
        %6240 = vxpose.xlu0.c.b16.end [8/8] 0, 128
        %v6241 = vpop.trf.xlu0
        %v6242 = vpop.trf.xlu0
        %v6243 = vpop.trf.xlu0
        %v6244 = vpop.trf.xlu0
        %v6245 = vpop.trf.xlu0
        %v6246 = vpop.trf.xlu0
        %v6247 = vpop.trf.xlu0
        %v6248 = vpop.trf.xlu0
        %6249 = vxpose.xlu0.c.b16.start [1/8] %v6078, 128
        %6250 = vxpose.xlu0.c.b16.cont [2/8] 0, 128
        %6251 = vxpose.xlu0.c.b16.cont [3/8] 0, 128
        %6252 = vxpose.xlu0.c.b16.cont [4/8] 0, 128
        %6253 = vxpose.xlu0.c.b16.cont [5/8] 0, 128
        %6254 = vxpose.xlu0.c.b16.cont [6/8] 0, 128
        %6255 = vxpose.xlu0.c.b16.cont [7/8] 0, 128
        %6256 = vxpose.xlu0.c.b16.end [8/8] 0, 128
        %v6257 = vpop.trf.xlu0
        %v6258 = vpop.trf.xlu0
        %v6259 = vpop.trf.xlu0
        %v6260 = vpop.trf.xlu0
        %v6261 = vpop.trf.xlu0
        %v6262 = vpop.trf.xlu0
        %v6263 = vpop.trf.xlu0
        %v6264 = vpop.trf.xlu0
        %6265 = vxpose.xlu0.c.b16.start [1/8] %v6079, 128
        %6266 = vxpose.xlu0.c.b16.cont [2/8] 0, 128
        %6267 = vxpose.xlu0.c.b16.cont [3/8] 0, 128
        %6268 = vxpose.xlu0.c.b16.cont [4/8] 0, 128
        %6269 = vxpose.xlu0.c.b16.cont [5/8] 0, 128
        %6270 = vxpose.xlu0.c.b16.cont [6/8] 0, 128
        %6271 = vxpose.xlu0.c.b16.cont [7/8] 0, 128
        %6272 = vxpose.xlu0.c.b16.end [8/8] 0, 128
        %v6273 = vpop.trf.xlu0
        %v6274 = vpop.trf.xlu0
        %v6275 = vpop.trf.xlu0
        %v6276 = vpop.trf.xlu0
        %v6277 = vpop.trf.xlu0
        %v6278 = vpop.trf.xlu0
        %v6279 = vpop.trf.xlu0
        %v6280 = vpop.trf.xlu0
        %6281 = vxpose.xlu0.c.b16.start [1/8] %v6080, 128
        %6282 = vxpose.xlu0.c.b16.cont [2/8] 0, 128
        %6283 = vxpose.xlu0.c.b16.cont [3/8] 0, 128
        %6284 = vxpose.xlu0.c.b16.cont [4/8] 0, 128
        %6285 = vxpose.xlu0.c.b16.cont [5/8] 0, 128
        %6286 = vxpose.xlu0.c.b16.cont [6/8] 0, 128
        %6287 = vxpose.xlu0.c.b16.cont [7/8] 0, 128
        %6288 = vxpose.xlu0.c.b16.end [8/8] 0, 128
        %v6289 = vpop.trf.xlu0
        %v6290 = vpop.trf.xlu0
        %v6291 = vpop.trf.xlu0
        %v6292 = vpop.trf.xlu0
        %v6293 = vpop.trf.xlu0
        %v6294 = vpop.trf.xlu0
        %v6295 = vpop.trf.xlu0
        %v6296 = vpop.trf.xlu0
        %6297 = vxpose.xlu0.c.b16.start [1/8] %v6081, 128
        %6298 = vxpose.xlu0.c.b16.cont [2/8] 0, 128
        %6299 = vxpose.xlu0.c.b16.cont [3/8] 0, 128
        %6300 = vxpose.xlu0.c.b16.cont [4/8] 0, 128
        %6301 = vxpose.xlu0.c.b16.cont [5/8] 0, 128
        %6302 = vxpose.xlu0.c.b16.cont [6/8] 0, 128
        %6303 = vxpose.xlu0.c.b16.cont [7/8] 0, 128
        %6304 = vxpose.xlu0.c.b16.end [8/8] 0, 128
        %v6305 = vpop.trf.xlu0
        %v6306 = vpop.trf.xlu0
        %v6307 = vpop.trf.xlu0
        %v6308 = vpop.trf.xlu0
        %v6309 = vpop.trf.xlu0
        %v6310 = vpop.trf.xlu0
        %v6311 = vpop.trf.xlu0
        %v6312 = vpop.trf.xlu0
        %6313 = vxpose.xlu0.c.b16.start [1/8] %v6082, 128
        %6314 = vxpose.xlu0.c.b16.cont [2/8] 0, 128
        %6315 = vxpose.xlu0.c.b16.cont [3/8] 0, 128
        %6316 = vxpose.xlu0.c.b16.cont [4/8] 0, 128
        %6317 = vxpose.xlu0.c.b16.cont [5/8] 0, 128
        %6318 = vxpose.xlu0.c.b16.cont [6/8] 0, 128
        %6319 = vxpose.xlu0.c.b16.cont [7/8] 0, 128
        %6320 = vxpose.xlu0.c.b16.end [8/8] 0, 128
        %v6321 = vpop.trf.xlu0
        %v6322 = vpop.trf.xlu0
        %v6323 = vpop.trf.xlu0
        %v6324 = vpop.trf.xlu0
        %v6325 = vpop.trf.xlu0
        %v6326 = vpop.trf.xlu0
        %v6327 = vpop.trf.xlu0
        %v6328 = vpop.trf.xlu0
        %6329 = vxpose.xlu0.c.b16.start [1/8] %v6083, 128
        %6330 = vxpose.xlu0.c.b16.cont [2/8] 0, 128
        %6331 = vxpose.xlu0.c.b16.cont [3/8] 0, 128
        %6332 = vxpose.xlu0.c.b16.cont [4/8] 0, 128
        %6333 = vxpose.xlu0.c.b16.cont [5/8] 0, 128
        %6334 = vxpose.xlu0.c.b16.cont [6/8] 0, 128
        %6335 = vxpose.xlu0.c.b16.cont [7/8] 0, 128
        %6336 = vxpose.xlu0.c.b16.end [8/8] 0, 128
        %v6337 = vpop.trf.xlu0
        %v6338 = vpop.trf.xlu0
        %v6339 = vpop.trf.xlu0
        %v6340 = vpop.trf.xlu0
        %v6341 = vpop.trf.xlu0
        %v6342 = vpop.trf.xlu0
        %v6343 = vpop.trf.xlu0
        %v6344 = vpop.trf.xlu0
        %6345 = vxpose.xlu0.c.b16.start [1/8] %v6084, 128
        %6346 = vxpose.xlu0.c.b16.cont [2/8] 0, 128
        %6347 = vxpose.xlu0.c.b16.cont [3/8] 0, 128
        %6348 = vxpose.xlu0.c.b16.cont [4/8] 0, 128
        %6349 = vxpose.xlu0.c.b16.cont [5/8] 0, 128
        %6350 = vxpose.xlu0.c.b16.cont [6/8] 0, 128
        %6351 = vxpose.xlu0.c.b16.cont [7/8] 0, 128
        %6352 = vxpose.xlu0.c.b16.end [8/8] 0, 128
        %v6353 = vpop.trf.xlu0
        %v6354 = vpop.trf.xlu0
        %v6355 = vpop.trf.xlu0
        %v6356 = vpop.trf.xlu0
        %v6357 = vpop.trf.xlu0
        %v6358 = vpop.trf.xlu0
        %v6359 = vpop.trf.xlu0
        %v6360 = vpop.trf.xlu0
        %v6363 = vpack.i.b16 %v6257, %v6241
        %v6365 = vshrl.u32 %v6241, 16
        %v6366 = vshrl.u32 %v6257, 16
        %v6367 = vpack.i.b16 %v6366, %v6365
        %v6371 = vpack.i.b16 %v6289, %v6273
        %v6373 = vshrl.u32 %v6273, 16
        %v6374 = vshrl.u32 %v6289, 16
        %v6375 = vpack.i.b16 %v6374, %v6373
        %v6379 = vpack.i.b16 %v6321, %v6305
        %v6381 = vshrl.u32 %v6305, 16
        %v6382 = vshrl.u32 %v6321, 16
        %v6383 = vpack.i.b16 %v6382, %v6381
        %v6387 = vpack.i.b16 %v6353, %v6337
        %v6389 = vshrl.u32 %v6337, 16
        %v6390 = vshrl.u32 %v6353, 16
        %v6391 = vpack.i.b16 %v6390, %v6389
        %v6395 = vpack.i.b16 %v6258, %v6242
        %v6397 = vshrl.u32 %v6242, 16
        %v6398 = vshrl.u32 %v6258, 16
        %v6399 = vpack.i.b16 %v6398, %v6397
        %v6403 = vpack.i.b16 %v6290, %v6274
        %v6405 = vshrl.u32 %v6274, 16
        %v6406 = vshrl.u32 %v6290, 16
        %v6407 = vpack.i.b16 %v6406, %v6405
        %v6411 = vpack.i.b16 %v6322, %v6306
        %v6413 = vshrl.u32 %v6306, 16
        %v6414 = vshrl.u32 %v6322, 16
        %v6415 = vpack.i.b16 %v6414, %v6413
        %v6419 = vpack.i.b16 %v6354, %v6338
        %v6421 = vshrl.u32 %v6338, 16
        %v6422 = vshrl.u32 %v6354, 16
        %v6423 = vpack.i.b16 %v6422, %v6421
        %v6425 = vcombine.low %v6363, %v6379
        %v6426 = vcombine.high %v6363, %v6379
        %v6428 = vunpack.c.l.s4 1983009808
        %v6429 = vunpack.c.0.s8 %v6428
        %v6430 = vlaneseq
        %v6431 = vshrl.u32 %v6430, 7
        %v6432 = vsub.s32 %v6429, %v6431
        %v6433 = vrot.slane %v6425, %v6432
        %v6435 = vunpack.c.l.s4 1983009808
        %v6436 = vunpack.c.0.s8 %v6435
        %v6437 = vlaneseq
        %v6438 = vshrl.u32 %v6437, 7
        %v6439 = vsub.s32 %v6436, %v6438
        %v6440 = vrot.slane %v6426, %v6439
        %v6441 = vcombine.low %v6371, %v6387
        %v6442 = vcombine.high %v6371, %v6387
        %v6444 = vunpack.c.l.s4 1983009808
        %v6445 = vunpack.c.0.s8 %v6444
        %v6446 = vlaneseq
        %v6447 = vshrl.u32 %v6446, 7
        %v6448 = vsub.s32 %v6445, %v6447
        %v6449 = vrot.slane %v6441, %v6448
        %v6451 = vunpack.c.l.s4 1983009808
        %v6452 = vunpack.c.0.s8 %v6451
        %v6453 = vlaneseq
        %v6454 = vshrl.u32 %v6453, 7
        %v6455 = vsub.s32 %v6452, %v6454
        %v6456 = vrot.slane %v6442, %v6455
        %v6457 = vcombine.low %v6433, %v6449
        %v6458 = vcombine.high %v6433, %v6449
        %v6460 = vunpack.c.l.s4 1934713408
        %v6461 = vunpack.c.0.s8 %v6460
        %v6462 = vlaneseq
        %v6463 = vshrl.u32 %v6462, 7
        %v6464 = vsub.s32 %v6461, %v6463
        %v6465 = vrot.slane %v6457, %v6464
        %v6467 = vunpack.c.l.s4 1934713408
        %v6468 = vunpack.c.0.s8 %v6467
        %v6469 = vlaneseq
        %v6470 = vshrl.u32 %v6469, 7
        %v6471 = vsub.s32 %v6468, %v6470
        %v6472 = vrot.slane %v6458, %v6471
        %v6473 = vcombine.low %v6440, %v6456
        %v6474 = vcombine.high %v6440, %v6456
        %v6476 = vunpack.c.l.s4 1934713408
        %v6477 = vunpack.c.0.s8 %v6476
        %v6478 = vlaneseq
        %v6479 = vshrl.u32 %v6478, 7
        %v6480 = vsub.s32 %v6477, %v6479
        %v6481 = vrot.slane %v6473, %v6480
        %v6483 = vunpack.c.l.s4 1934713408
        %v6484 = vunpack.c.0.s8 %v6483
        %v6485 = vlaneseq
        %v6486 = vshrl.u32 %v6485, 7
        %v6487 = vsub.s32 %v6484, %v6486
        %v6488 = vrot.slane %v6474, %v6487
        %v6489 = vcombine.high %v6465, 0
        %v6490 = vcombine.high %v6472, 0
        %v6491 = vcombine.high %v6481, 0
        %v6492 = vcombine.high %v6488, 0
        %v6493 = vcombine.low %v6367, %v6383
        %v6494 = vcombine.high %v6367, %v6383
        %v6496 = vunpack.c.l.s4 1983009808
        %v6497 = vunpack.c.0.s8 %v6496
        %v6498 = vlaneseq
        %v6499 = vshrl.u32 %v6498, 7
        %v6500 = vsub.s32 %v6497, %v6499
        %v6501 = vrot.slane %v6493, %v6500
        %v6503 = vunpack.c.l.s4 1983009808
        %v6504 = vunpack.c.0.s8 %v6503
        %v6505 = vlaneseq
        %v6506 = vshrl.u32 %v6505, 7
        %v6507 = vsub.s32 %v6504, %v6506
        %v6508 = vrot.slane %v6494, %v6507
        %v6509 = vcombine.low %v6375, %v6391
        %v6510 = vcombine.high %v6375, %v6391
        %v6512 = vunpack.c.l.s4 1983009808
        %v6513 = vunpack.c.0.s8 %v6512
        %v6514 = vlaneseq
        %v6515 = vshrl.u32 %v6514, 7
        %v6516 = vsub.s32 %v6513, %v6515
        %v6517 = vrot.slane %v6509, %v6516
        %v6519 = vunpack.c.l.s4 1983009808
        %v6520 = vunpack.c.0.s8 %v6519
        %v6521 = vlaneseq
        %v6522 = vshrl.u32 %v6521, 7
        %v6523 = vsub.s32 %v6520, %v6522
        %v6524 = vrot.slane %v6510, %v6523
        %v6525 = vcombine.low %v6501, %v6517
        %v6526 = vcombine.high %v6501, %v6517
        %v6528 = vunpack.c.l.s4 1934713408
        %v6529 = vunpack.c.0.s8 %v6528
        %v6530 = vlaneseq
        %v6531 = vshrl.u32 %v6530, 7
        %v6532 = vsub.s32 %v6529, %v6531
        %v6533 = vrot.slane %v6525, %v6532
        %v6535 = vunpack.c.l.s4 1934713408
        %v6536 = vunpack.c.0.s8 %v6535
        %v6537 = vlaneseq
        %v6538 = vshrl.u32 %v6537, 7
        %v6539 = vsub.s32 %v6536, %v6538
        %v6540 = vrot.slane %v6526, %v6539
        %v6541 = vcombine.low %v6508, %v6524
        %v6542 = vcombine.high %v6508, %v6524
        %v6544 = vunpack.c.l.s4 1934713408
        %v6545 = vunpack.c.0.s8 %v6544
        %v6546 = vlaneseq
        %v6547 = vshrl.u32 %v6546, 7
        %v6548 = vsub.s32 %v6545, %v6547
        %v6549 = vrot.slane %v6541, %v6548
        %v6551 = vunpack.c.l.s4 1934713408
        %v6552 = vunpack.c.0.s8 %v6551
        %v6553 = vlaneseq
        %v6554 = vshrl.u32 %v6553, 7
        %v6555 = vsub.s32 %v6552, %v6554
        %v6556 = vrot.slane %v6542, %v6555
        %v6557 = vcombine.high %v6533, 0
        %v6558 = vcombine.high %v6540, 0
        %v6559 = vcombine.high %v6549, 0
        %v6560 = vcombine.high %v6556, 0
        %v6561 = vcombine.low %v6395, %v6411
        %v6562 = vcombine.high %v6395, %v6411
        %v6564 = vunpack.c.l.s4 1983009808
        %v6565 = vunpack.c.0.s8 %v6564
        %v6566 = vlaneseq
        %v6567 = vshrl.u32 %v6566, 7
        %v6568 = vsub.s32 %v6565, %v6567
        %v6569 = vrot.slane %v6561, %v6568
        %v6571 = vunpack.c.l.s4 1983009808
        %v6572 = vunpack.c.0.s8 %v6571
        %v6573 = vlaneseq
        %v6574 = vshrl.u32 %v6573, 7
        %v6575 = vsub.s32 %v6572, %v6574
        %v6576 = vrot.slane %v6562, %v6575
        %v6577 = vcombine.low %v6403, %v6419
        %v6578 = vcombine.high %v6403, %v6419
        %v6580 = vunpack.c.l.s4 1983009808
        %v6581 = vunpack.c.0.s8 %v6580
        %v6582 = vlaneseq
        %v6583 = vshrl.u32 %v6582, 7
        %v6584 = vsub.s32 %v6581, %v6583
        %v6585 = vrot.slane %v6577, %v6584
        %v6587 = vunpack.c.l.s4 1983009808
        %v6588 = vunpack.c.0.s8 %v6587
        %v6589 = vlaneseq
        %v6590 = vshrl.u32 %v6589, 7
        %v6591 = vsub.s32 %v6588, %v6590
        %v6592 = vrot.slane %v6578, %v6591
        %v6593 = vcombine.low %v6569, %v6585
        %v6594 = vcombine.high %v6569, %v6585
        %v6596 = vunpack.c.l.s4 1934713408
        %v6597 = vunpack.c.0.s8 %v6596
        %v6598 = vlaneseq
        %v6599 = vshrl.u32 %v6598, 7
        %v6600 = vsub.s32 %v6597, %v6599
        %v6601 = vrot.slane %v6593, %v6600
        %v6603 = vunpack.c.l.s4 1934713408
        %v6604 = vunpack.c.0.s8 %v6603
        %v6605 = vlaneseq
        %v6606 = vshrl.u32 %v6605, 7
        %v6607 = vsub.s32 %v6604, %v6606
        %v6608 = vrot.slane %v6594, %v6607
        %v6609 = vcombine.low %v6576, %v6592
        %v6610 = vcombine.high %v6576, %v6592
        %v6612 = vunpack.c.l.s4 1934713408
        %v6613 = vunpack.c.0.s8 %v6612
        %v6614 = vlaneseq
        %v6615 = vshrl.u32 %v6614, 7
        %v6616 = vsub.s32 %v6613, %v6615
        %v6617 = vrot.slane %v6609, %v6616
        %v6619 = vunpack.c.l.s4 1934713408
        %v6620 = vunpack.c.0.s8 %v6619
        %v6621 = vlaneseq
        %v6622 = vshrl.u32 %v6621, 7
        %v6623 = vsub.s32 %v6620, %v6622
        %v6624 = vrot.slane %v6610, %v6623
        %v6625 = vcombine.high %v6601, 0
        %v6626 = vcombine.high %v6608, 0
        %v6627 = vcombine.high %v6617, 0
        %v6628 = vcombine.high %v6624, 0
        %v6629 = vcombine.low %v6399, %v6415
        %v6630 = vcombine.high %v6399, %v6415
        %v6632 = vunpack.c.l.s4 1983009808
        %v6633 = vunpack.c.0.s8 %v6632
        %v6634 = vlaneseq
        %v6635 = vshrl.u32 %v6634, 7
        %v6636 = vsub.s32 %v6633, %v6635
        %v6637 = vrot.slane %v6629, %v6636
        %v6639 = vunpack.c.l.s4 1983009808
        %v6640 = vunpack.c.0.s8 %v6639
        %v6641 = vlaneseq
        %v6642 = vshrl.u32 %v6641, 7
        %v6643 = vsub.s32 %v6640, %v6642
        %v6644 = vrot.slane %v6630, %v6643
        %v6645 = vcombine.low %v6407, %v6423
        %v6646 = vcombine.high %v6407, %v6423
        %v6648 = vunpack.c.l.s4 1983009808
        %v6649 = vunpack.c.0.s8 %v6648
        %v6650 = vlaneseq
        %v6651 = vshrl.u32 %v6650, 7
        %v6652 = vsub.s32 %v6649, %v6651
        %v6653 = vrot.slane %v6645, %v6652
        %v6655 = vunpack.c.l.s4 1983009808
        %v6656 = vunpack.c.0.s8 %v6655
        %v6657 = vlaneseq
        %v6658 = vshrl.u32 %v6657, 7
        %v6659 = vsub.s32 %v6656, %v6658
        %v6660 = vrot.slane %v6646, %v6659
        %v6661 = vcombine.low %v6637, %v6653
        %v6662 = vcombine.high %v6637, %v6653
        %v6664 = vunpack.c.l.s4 1934713408
        %v6665 = vunpack.c.0.s8 %v6664
        %v6666 = vlaneseq
        %v6667 = vshrl.u32 %v6666, 7
        %v6668 = vsub.s32 %v6665, %v6667
        %v6669 = vrot.slane %v6661, %v6668
        %v6671 = vunpack.c.l.s4 1934713408
        %v6672 = vunpack.c.0.s8 %v6671
        %v6673 = vlaneseq
        %v6674 = vshrl.u32 %v6673, 7
        %v6675 = vsub.s32 %v6672, %v6674
        %v6676 = vrot.slane %v6662, %v6675
        %v6677 = vcombine.low %v6644, %v6660
        %v6678 = vcombine.high %v6644, %v6660
        %v6680 = vunpack.c.l.s4 1934713408
        %v6681 = vunpack.c.0.s8 %v6680
        %v6682 = vlaneseq
        %v6683 = vshrl.u32 %v6682, 7
        %v6684 = vsub.s32 %v6681, %v6683
        %v6685 = vrot.slane %v6677, %v6684
        %v6687 = vunpack.c.l.s4 1934713408
        %v6688 = vunpack.c.0.s8 %v6687
        %v6689 = vlaneseq
        %v6690 = vshrl.u32 %v6689, 7
        %v6691 = vsub.s32 %v6688, %v6690
        %v6692 = vrot.slane %v6678, %v6691
        %v6693 = vcombine.high %v6669, 0
        %v6694 = vcombine.high %v6676, 0
        %v6695 = vcombine.high %v6685, 0
        %v6696 = vcombine.high %v6692, 0
        %6697 = vxpose.xlu0.c.b16.start [1/8] %v6465, 128
        %6698 = vxpose.xlu0.c.b16.cont [2/8] 0, 128
        %6699 = vxpose.xlu0.c.b16.cont [3/8] 0, 128
        %6700 = vxpose.xlu0.c.b16.cont [4/8] 0, 128
        %6701 = vxpose.xlu0.c.b16.cont [5/8] 0, 128
        %6702 = vxpose.xlu0.c.b16.cont [6/8] 0, 128
        %6703 = vxpose.xlu0.c.b16.cont [7/8] 0, 128
        %6704 = vxpose.xlu0.c.b16.end [8/8] 0, 128
        %v6705 = vpop.trf.xlu0
        %v6706 = vpop.trf.xlu0
        %v6707 = vpop.trf.xlu0
        %v6708 = vpop.trf.xlu0
        %v6709 = vpop.trf.xlu0
        %v6710 = vpop.trf.xlu0
        %v6711 = vpop.trf.xlu0
        %v6712 = vpop.trf.xlu0
        %6713 = vxpose.xlu0.c.b16.start [1/8] %v6533, 128
        %6714 = vxpose.xlu0.c.b16.cont [2/8] 0, 128
        %6715 = vxpose.xlu0.c.b16.cont [3/8] 0, 128
        %6716 = vxpose.xlu0.c.b16.cont [4/8] 0, 128
        %6717 = vxpose.xlu0.c.b16.cont [5/8] 0, 128
        %6718 = vxpose.xlu0.c.b16.cont [6/8] 0, 128
        %6719 = vxpose.xlu0.c.b16.cont [7/8] 0, 128
        %6720 = vxpose.xlu0.c.b16.end [8/8] 0, 128
        %v6721 = vpop.trf.xlu0
        %v6722 = vpop.trf.xlu0
        %v6723 = vpop.trf.xlu0
        %v6724 = vpop.trf.xlu0
        %v6725 = vpop.trf.xlu0
        %v6726 = vpop.trf.xlu0
        %v6727 = vpop.trf.xlu0
        %v6728 = vpop.trf.xlu0
        %6729 = vxpose.xlu0.c.b16.start [1/8] %v6489, 128
        %6730 = vxpose.xlu0.c.b16.cont [2/8] 0, 128
        %6731 = vxpose.xlu0.c.b16.cont [3/8] 0, 128
        %6732 = vxpose.xlu0.c.b16.cont [4/8] 0, 128
        %6733 = vxpose.xlu0.c.b16.cont [5/8] 0, 128
        %6734 = vxpose.xlu0.c.b16.cont [6/8] 0, 128
        %6735 = vxpose.xlu0.c.b16.cont [7/8] 0, 128
        %6736 = vxpose.xlu0.c.b16.end [8/8] 0, 128
        %v6737 = vpop.trf.xlu0
        %v6738 = vpop.trf.xlu0
        %v6739 = vpop.trf.xlu0
        %v6740 = vpop.trf.xlu0
        %v6741 = vpop.trf.xlu0
        %v6742 = vpop.trf.xlu0
        %v6743 = vpop.trf.xlu0
        %v6744 = vpop.trf.xlu0
        %6745 = vxpose.xlu0.c.b16.start [1/8] %v6557, 128
        %6746 = vxpose.xlu0.c.b16.cont [2/8] 0, 128
        %6747 = vxpose.xlu0.c.b16.cont [3/8] 0, 128
        %6748 = vxpose.xlu0.c.b16.cont [4/8] 0, 128
        %6749 = vxpose.xlu0.c.b16.cont [5/8] 0, 128
        %6750 = vxpose.xlu0.c.b16.cont [6/8] 0, 128
        %6751 = vxpose.xlu0.c.b16.cont [7/8] 0, 128
        %6752 = vxpose.xlu0.c.b16.end [8/8] 0, 128
        %v6753 = vpop.trf.xlu0
        %v6754 = vpop.trf.xlu0
        %v6755 = vpop.trf.xlu0
        %v6756 = vpop.trf.xlu0
        %v6757 = vpop.trf.xlu0
        %v6758 = vpop.trf.xlu0
        %v6759 = vpop.trf.xlu0
        %v6760 = vpop.trf.xlu0
        %6761 = vxpose.xlu0.c.b16.start [1/8] %v6472, 128
        %6762 = vxpose.xlu0.c.b16.cont [2/8] 0, 128
        %6763 = vxpose.xlu0.c.b16.cont [3/8] 0, 128
        %6764 = vxpose.xlu0.c.b16.cont [4/8] 0, 128
        %6765 = vxpose.xlu0.c.b16.cont [5/8] 0, 128
        %6766 = vxpose.xlu0.c.b16.cont [6/8] 0, 128
        %6767 = vxpose.xlu0.c.b16.cont [7/8] 0, 128
        %6768 = vxpose.xlu0.c.b16.end [8/8] 0, 128
        %v6769 = vpop.trf.xlu0
        %v6770 = vpop.trf.xlu0
        %v6771 = vpop.trf.xlu0
        %v6772 = vpop.trf.xlu0
        %v6773 = vpop.trf.xlu0
        %v6774 = vpop.trf.xlu0
        %v6775 = vpop.trf.xlu0
        %v6776 = vpop.trf.xlu0
        %6777 = vxpose.xlu0.c.b16.start [1/8] %v6540, 128
        %6778 = vxpose.xlu0.c.b16.cont [2/8] 0, 128
        %6779 = vxpose.xlu0.c.b16.cont [3/8] 0, 128
        %6780 = vxpose.xlu0.c.b16.cont [4/8] 0, 128
        %6781 = vxpose.xlu0.c.b16.cont [5/8] 0, 128
        %6782 = vxpose.xlu0.c.b16.cont [6/8] 0, 128
        %6783 = vxpose.xlu0.c.b16.cont [7/8] 0, 128
        %6784 = vxpose.xlu0.c.b16.end [8/8] 0, 128
        %v6785 = vpop.trf.xlu0
        %v6786 = vpop.trf.xlu0
        %v6787 = vpop.trf.xlu0
        %v6788 = vpop.trf.xlu0
        %v6789 = vpop.trf.xlu0
        %v6790 = vpop.trf.xlu0
        %v6791 = vpop.trf.xlu0
        %v6792 = vpop.trf.xlu0
        %6793 = vxpose.xlu0.c.b16.start [1/8] %v6490, 128
        %6794 = vxpose.xlu0.c.b16.cont [2/8] 0, 128
        %6795 = vxpose.xlu0.c.b16.cont [3/8] 0, 128
        %6796 = vxpose.xlu0.c.b16.cont [4/8] 0, 128
        %6797 = vxpose.xlu0.c.b16.cont [5/8] 0, 128
        %6798 = vxpose.xlu0.c.b16.cont [6/8] 0, 128
        %6799 = vxpose.xlu0.c.b16.cont [7/8] 0, 128
        %6800 = vxpose.xlu0.c.b16.end [8/8] 0, 128
        %v6801 = vpop.trf.xlu0
        %v6802 = vpop.trf.xlu0
        %v6803 = vpop.trf.xlu0
        %v6804 = vpop.trf.xlu0
        %v6805 = vpop.trf.xlu0
        %v6806 = vpop.trf.xlu0
        %v6807 = vpop.trf.xlu0
        %v6808 = vpop.trf.xlu0
        %6809 = vxpose.xlu0.c.b16.start [1/8] %v6558, 128
        %6810 = vxpose.xlu0.c.b16.cont [2/8] 0, 128
        %6811 = vxpose.xlu0.c.b16.cont [3/8] 0, 128
        %6812 = vxpose.xlu0.c.b16.cont [4/8] 0, 128
        %6813 = vxpose.xlu0.c.b16.cont [5/8] 0, 128
        %6814 = vxpose.xlu0.c.b16.cont [6/8] 0, 128
        %6815 = vxpose.xlu0.c.b16.cont [7/8] 0, 128
        %6816 = vxpose.xlu0.c.b16.end [8/8] 0, 128
        %v6817 = vpop.trf.xlu0
        %v6818 = vpop.trf.xlu0
        %v6819 = vpop.trf.xlu0
        %v6820 = vpop.trf.xlu0
        %v6821 = vpop.trf.xlu0
        %v6822 = vpop.trf.xlu0
        %v6823 = vpop.trf.xlu0
        %v6824 = vpop.trf.xlu0
        %6825 = vxpose.xlu0.c.b16.start [1/8] %v6481, 128
        %6826 = vxpose.xlu0.c.b16.cont [2/8] 0, 128
        %6827 = vxpose.xlu0.c.b16.cont [3/8] 0, 128
        %6828 = vxpose.xlu0.c.b16.cont [4/8] 0, 128
        %6829 = vxpose.xlu0.c.b16.cont [5/8] 0, 128
        %6830 = vxpose.xlu0.c.b16.cont [6/8] 0, 128
        %6831 = vxpose.xlu0.c.b16.cont [7/8] 0, 128
        %6832 = vxpose.xlu0.c.b16.end [8/8] 0, 128
        %v6833 = vpop.trf.xlu0
        %v6834 = vpop.trf.xlu0
        %v6835 = vpop.trf.xlu0
        %v6836 = vpop.trf.xlu0
        %v6837 = vpop.trf.xlu0
        %v6838 = vpop.trf.xlu0
        %v6839 = vpop.trf.xlu0
        %v6840 = vpop.trf.xlu0
        %6841 = vxpose.xlu0.c.b16.start [1/8] %v6549, 128
        %6842 = vxpose.xlu0.c.b16.cont [2/8] 0, 128
        %6843 = vxpose.xlu0.c.b16.cont [3/8] 0, 128
        %6844 = vxpose.xlu0.c.b16.cont [4/8] 0, 128
        %6845 = vxpose.xlu0.c.b16.cont [5/8] 0, 128
        %6846 = vxpose.xlu0.c.b16.cont [6/8] 0, 128
        %6847 = vxpose.xlu0.c.b16.cont [7/8] 0, 128
        %6848 = vxpose.xlu0.c.b16.end [8/8] 0, 128
        %v6849 = vpop.trf.xlu0
        %v6850 = vpop.trf.xlu0
        %v6851 = vpop.trf.xlu0
        %v6852 = vpop.trf.xlu0
        %v6853 = vpop.trf.xlu0
        %v6854 = vpop.trf.xlu0
        %v6855 = vpop.trf.xlu0
        %v6856 = vpop.trf.xlu0
        %6857 = vxpose.xlu0.c.b16.start [1/8] %v6491, 128
        %6858 = vxpose.xlu0.c.b16.cont [2/8] 0, 128
        %6859 = vxpose.xlu0.c.b16.cont [3/8] 0, 128
        %6860 = vxpose.xlu0.c.b16.cont [4/8] 0, 128
        %6861 = vxpose.xlu0.c.b16.cont [5/8] 0, 128
        %6862 = vxpose.xlu0.c.b16.cont [6/8] 0, 128
        %6863 = vxpose.xlu0.c.b16.cont [7/8] 0, 128
        %6864 = vxpose.xlu0.c.b16.end [8/8] 0, 128
        %v6865 = vpop.trf.xlu0
        %v6866 = vpop.trf.xlu0
        %v6867 = vpop.trf.xlu0
        %v6868 = vpop.trf.xlu0
        %v6869 = vpop.trf.xlu0
        %v6870 = vpop.trf.xlu0
        %v6871 = vpop.trf.xlu0
        %v6872 = vpop.trf.xlu0
        %6873 = vxpose.xlu0.c.b16.start [1/8] %v6559, 128
        %6874 = vxpose.xlu0.c.b16.cont [2/8] 0, 128
        %6875 = vxpose.xlu0.c.b16.cont [3/8] 0, 128
        %6876 = vxpose.xlu0.c.b16.cont [4/8] 0, 128
        %6877 = vxpose.xlu0.c.b16.cont [5/8] 0, 128
        %6878 = vxpose.xlu0.c.b16.cont [6/8] 0, 128
        %6879 = vxpose.xlu0.c.b16.cont [7/8] 0, 128
        %6880 = vxpose.xlu0.c.b16.end [8/8] 0, 128
        %v6881 = vpop.trf.xlu0
        %v6882 = vpop.trf.xlu0
        %v6883 = vpop.trf.xlu0
        %v6884 = vpop.trf.xlu0
        %v6885 = vpop.trf.xlu0
        %v6886 = vpop.trf.xlu0
        %v6887 = vpop.trf.xlu0
        %v6888 = vpop.trf.xlu0
        %6889 = vxpose.xlu0.c.b16.start [1/8] %v6488, 128
        %6890 = vxpose.xlu0.c.b16.cont [2/8] 0, 128
        %6891 = vxpose.xlu0.c.b16.cont [3/8] 0, 128
        %6892 = vxpose.xlu0.c.b16.cont [4/8] 0, 128
        %6893 = vxpose.xlu0.c.b16.cont [5/8] 0, 128
        %6894 = vxpose.xlu0.c.b16.cont [6/8] 0, 128
        %6895 = vxpose.xlu0.c.b16.cont [7/8] 0, 128
        %6896 = vxpose.xlu0.c.b16.end [8/8] 0, 128
        %v6897 = vpop.trf.xlu0
        %v6898 = vpop.trf.xlu0
        %v6899 = vpop.trf.xlu0
        %v6900 = vpop.trf.xlu0
        %v6901 = vpop.trf.xlu0
        %v6902 = vpop.trf.xlu0
        %v6903 = vpop.trf.xlu0
        %v6904 = vpop.trf.xlu0
        %6905 = vxpose.xlu0.c.b16.start [1/8] %v6556, 128
        %6906 = vxpose.xlu0.c.b16.cont [2/8] 0, 128
        %6907 = vxpose.xlu0.c.b16.cont [3/8] 0, 128
        %6908 = vxpose.xlu0.c.b16.cont [4/8] 0, 128
        %6909 = vxpose.xlu0.c.b16.cont [5/8] 0, 128
        %6910 = vxpose.xlu0.c.b16.cont [6/8] 0, 128
        %6911 = vxpose.xlu0.c.b16.cont [7/8] 0, 128
        %6912 = vxpose.xlu0.c.b16.end [8/8] 0, 128
        %v6913 = vpop.trf.xlu0
        %v6914 = vpop.trf.xlu0
        %v6915 = vpop.trf.xlu0
        %v6916 = vpop.trf.xlu0
        %v6917 = vpop.trf.xlu0
        %v6918 = vpop.trf.xlu0
        %v6919 = vpop.trf.xlu0
        %v6920 = vpop.trf.xlu0
        %6921 = vxpose.xlu0.c.b16.start [1/8] %v6492, 128
        %6922 = vxpose.xlu0.c.b16.cont [2/8] 0, 128
        %6923 = vxpose.xlu0.c.b16.cont [3/8] 0, 128
        %6924 = vxpose.xlu0.c.b16.cont [4/8] 0, 128
        %6925 = vxpose.xlu0.c.b16.cont [5/8] 0, 128
        %6926 = vxpose.xlu0.c.b16.cont [6/8] 0, 128
        %6927 = vxpose.xlu0.c.b16.cont [7/8] 0, 128
        %6928 = vxpose.xlu0.c.b16.end [8/8] 0, 128
        %v6929 = vpop.trf.xlu0
        %v6930 = vpop.trf.xlu0
        %v6931 = vpop.trf.xlu0
        %v6932 = vpop.trf.xlu0
        %v6933 = vpop.trf.xlu0
        %v6934 = vpop.trf.xlu0
        %v6935 = vpop.trf.xlu0
        %v6936 = vpop.trf.xlu0
        %6937 = vxpose.xlu0.c.b16.start [1/8] %v6560, 128
        %6938 = vxpose.xlu0.c.b16.cont [2/8] 0, 128
        %6939 = vxpose.xlu0.c.b16.cont [3/8] 0, 128
        %6940 = vxpose.xlu0.c.b16.cont [4/8] 0, 128
        %6941 = vxpose.xlu0.c.b16.cont [5/8] 0, 128
        %6942 = vxpose.xlu0.c.b16.cont [6/8] 0, 128
        %6943 = vxpose.xlu0.c.b16.cont [7/8] 0, 128
        %6944 = vxpose.xlu0.c.b16.end [8/8] 0, 128
        %v6945 = vpop.trf.xlu0
        %v6946 = vpop.trf.xlu0
        %v6947 = vpop.trf.xlu0
        %v6948 = vpop.trf.xlu0
        %v6949 = vpop.trf.xlu0
        %v6950 = vpop.trf.xlu0
        %v6951 = vpop.trf.xlu0
        %v6952 = vpop.trf.xlu0
        %6953 = vxpose.xlu0.c.b16.start [1/8] %v6601, 128
        %6954 = vxpose.xlu0.c.b16.cont [2/8] 0, 128
        %6955 = vxpose.xlu0.c.b16.cont [3/8] 0, 128
        %6956 = vxpose.xlu0.c.b16.cont [4/8] 0, 128
        %6957 = vxpose.xlu0.c.b16.cont [5/8] 0, 128
        %6958 = vxpose.xlu0.c.b16.cont [6/8] 0, 128
        %6959 = vxpose.xlu0.c.b16.cont [7/8] 0, 128
        %6960 = vxpose.xlu0.c.b16.end [8/8] 0, 128
        %v6961 = vpop.trf.xlu0
        %v6962 = vpop.trf.xlu0
        %v6963 = vpop.trf.xlu0
        %v6964 = vpop.trf.xlu0
        %v6965 = vpop.trf.xlu0
        %v6966 = vpop.trf.xlu0
        %v6967 = vpop.trf.xlu0
        %v6968 = vpop.trf.xlu0
        %6969 = vxpose.xlu0.c.b16.start [1/8] %v6669, 128
        %6970 = vxpose.xlu0.c.b16.cont [2/8] 0, 128
        %6971 = vxpose.xlu0.c.b16.cont [3/8] 0, 128
        %6972 = vxpose.xlu0.c.b16.cont [4/8] 0, 128
        %6973 = vxpose.xlu0.c.b16.cont [5/8] 0, 128
        %6974 = vxpose.xlu0.c.b16.cont [6/8] 0, 128
        %6975 = vxpose.xlu0.c.b16.cont [7/8] 0, 128
        %6976 = vxpose.xlu0.c.b16.end [8/8] 0, 128
        %v6977 = vpop.trf.xlu0
        %v6978 = vpop.trf.xlu0
        %v6979 = vpop.trf.xlu0
        %v6980 = vpop.trf.xlu0
        %v6981 = vpop.trf.xlu0
        %v6982 = vpop.trf.xlu0
        %v6983 = vpop.trf.xlu0
        %v6984 = vpop.trf.xlu0
        %6985 = vxpose.xlu0.c.b16.start [1/8] %v6625, 128
        %6986 = vxpose.xlu0.c.b16.cont [2/8] 0, 128
        %6987 = vxpose.xlu0.c.b16.cont [3/8] 0, 128
        %6988 = vxpose.xlu0.c.b16.cont [4/8] 0, 128
        %6989 = vxpose.xlu0.c.b16.cont [5/8] 0, 128
        %6990 = vxpose.xlu0.c.b16.cont [6/8] 0, 128
        %6991 = vxpose.xlu0.c.b16.cont [7/8] 0, 128
        %6992 = vxpose.xlu0.c.b16.end [8/8] 0, 128
        %v6993 = vpop.trf.xlu0
        %v6994 = vpop.trf.xlu0
        %v6995 = vpop.trf.xlu0
        %v6996 = vpop.trf.xlu0
        %v6997 = vpop.trf.xlu0
        %v6998 = vpop.trf.xlu0
        %v6999 = vpop.trf.xlu0
        %v7000 = vpop.trf.xlu0
        %7001 = vxpose.xlu0.c.b16.start [1/8] %v6693, 128
        %7002 = vxpose.xlu0.c.b16.cont [2/8] 0, 128
        %7003 = vxpose.xlu0.c.b16.cont [3/8] 0, 128
        %7004 = vxpose.xlu0.c.b16.cont [4/8] 0, 128
        %7005 = vxpose.xlu0.c.b16.cont [5/8] 0, 128
        %7006 = vxpose.xlu0.c.b16.cont [6/8] 0, 128
        %7007 = vxpose.xlu0.c.b16.cont [7/8] 0, 128
        %7008 = vxpose.xlu0.c.b16.end [8/8] 0, 128
        %v7009 = vpop.trf.xlu0
        %v7010 = vpop.trf.xlu0
        %v7011 = vpop.trf.xlu0
        %v7012 = vpop.trf.xlu0
        %v7013 = vpop.trf.xlu0
        %v7014 = vpop.trf.xlu0
        %v7015 = vpop.trf.xlu0
        %v7016 = vpop.trf.xlu0
        %7017 = vxpose.xlu0.c.b16.start [1/8] %v6608, 128
        %7018 = vxpose.xlu0.c.b16.cont [2/8] 0, 128
        %7019 = vxpose.xlu0.c.b16.cont [3/8] 0, 128
        %7020 = vxpose.xlu0.c.b16.cont [4/8] 0, 128
        %7021 = vxpose.xlu0.c.b16.cont [5/8] 0, 128
        %7022 = vxpose.xlu0.c.b16.cont [6/8] 0, 128
        %7023 = vxpose.xlu0.c.b16.cont [7/8] 0, 128
        %7024 = vxpose.xlu0.c.b16.end [8/8] 0, 128
        %v7025 = vpop.trf.xlu0
        %v7026 = vpop.trf.xlu0
        %v7027 = vpop.trf.xlu0
        %v7028 = vpop.trf.xlu0
        %v7029 = vpop.trf.xlu0
        %v7030 = vpop.trf.xlu0
        %v7031 = vpop.trf.xlu0
        %v7032 = vpop.trf.xlu0
        %7033 = vxpose.xlu0.c.b16.start [1/8] %v6676, 128
        %7034 = vxpose.xlu0.c.b16.cont [2/8] 0, 128
        %7035 = vxpose.xlu0.c.b16.cont [3/8] 0, 128
        %7036 = vxpose.xlu0.c.b16.cont [4/8] 0, 128
        %7037 = vxpose.xlu0.c.b16.cont [5/8] 0, 128
        %7038 = vxpose.xlu0.c.b16.cont [6/8] 0, 128
        %7039 = vxpose.xlu0.c.b16.cont [7/8] 0, 128
        %7040 = vxpose.xlu0.c.b16.end [8/8] 0, 128
        %v7041 = vpop.trf.xlu0
        %v7042 = vpop.trf.xlu0
        %v7043 = vpop.trf.xlu0
        %v7044 = vpop.trf.xlu0
        %v7045 = vpop.trf.xlu0
        %v7046 = vpop.trf.xlu0
        %v7047 = vpop.trf.xlu0
        %v7048 = vpop.trf.xlu0
        %7049 = vxpose.xlu0.c.b16.start [1/8] %v6626, 128
        %7050 = vxpose.xlu0.c.b16.cont [2/8] 0, 128
        %7051 = vxpose.xlu0.c.b16.cont [3/8] 0, 128
        %7052 = vxpose.xlu0.c.b16.cont [4/8] 0, 128
        %7053 = vxpose.xlu0.c.b16.cont [5/8] 0, 128
        %7054 = vxpose.xlu0.c.b16.cont [6/8] 0, 128
        %7055 = vxpose.xlu0.c.b16.cont [7/8] 0, 128
        %7056 = vxpose.xlu0.c.b16.end [8/8] 0, 128
        %v7057 = vpop.trf.xlu0
        %v7058 = vpop.trf.xlu0
        %v7059 = vpop.trf.xlu0
        %v7060 = vpop.trf.xlu0
        %v7061 = vpop.trf.xlu0
        %v7062 = vpop.trf.xlu0
        %v7063 = vpop.trf.xlu0
        %v7064 = vpop.trf.xlu0
        %7065 = vxpose.xlu0.c.b16.start [1/8] %v6694, 128
        %7066 = vxpose.xlu0.c.b16.cont [2/8] 0, 128
        %7067 = vxpose.xlu0.c.b16.cont [3/8] 0, 128
        %7068 = vxpose.xlu0.c.b16.cont [4/8] 0, 128
        %7069 = vxpose.xlu0.c.b16.cont [5/8] 0, 128
        %7070 = vxpose.xlu0.c.b16.cont [6/8] 0, 128
        %7071 = vxpose.xlu0.c.b16.cont [7/8] 0, 128
        %7072 = vxpose.xlu0.c.b16.end [8/8] 0, 128
        %v7073 = vpop.trf.xlu0
        %v7074 = vpop.trf.xlu0
        %v7075 = vpop.trf.xlu0
        %v7076 = vpop.trf.xlu0
        %v7077 = vpop.trf.xlu0
        %v7078 = vpop.trf.xlu0
        %v7079 = vpop.trf.xlu0
        %v7080 = vpop.trf.xlu0
        %7081 = vxpose.xlu0.c.b16.start [1/8] %v6617, 128
        %7082 = vxpose.xlu0.c.b16.cont [2/8] 0, 128
        %7083 = vxpose.xlu0.c.b16.cont [3/8] 0, 128
        %7084 = vxpose.xlu0.c.b16.cont [4/8] 0, 128
        %7085 = vxpose.xlu0.c.b16.cont [5/8] 0, 128
        %7086 = vxpose.xlu0.c.b16.cont [6/8] 0, 128
        %7087 = vxpose.xlu0.c.b16.cont [7/8] 0, 128
        %7088 = vxpose.xlu0.c.b16.end [8/8] 0, 128
        %v7089 = vpop.trf.xlu0
        %v7090 = vpop.trf.xlu0
        %v7091 = vpop.trf.xlu0
        %v7092 = vpop.trf.xlu0
        %v7093 = vpop.trf.xlu0
        %v7094 = vpop.trf.xlu0
        %v7095 = vpop.trf.xlu0
        %v7096 = vpop.trf.xlu0
        %7097 = vxpose.xlu0.c.b16.start [1/8] %v6685, 128
        %7098 = vxpose.xlu0.c.b16.cont [2/8] 0, 128
        %7099 = vxpose.xlu0.c.b16.cont [3/8] 0, 128
        %7100 = vxpose.xlu0.c.b16.cont [4/8] 0, 128
        %7101 = vxpose.xlu0.c.b16.cont [5/8] 0, 128
        %7102 = vxpose.xlu0.c.b16.cont [6/8] 0, 128
        %7103 = vxpose.xlu0.c.b16.cont [7/8] 0, 128
        %7104 = vxpose.xlu0.c.b16.end [8/8] 0, 128
        %v7105 = vpop.trf.xlu0
        %v7106 = vpop.trf.xlu0
        %v7107 = vpop.trf.xlu0
        %v7108 = vpop.trf.xlu0
        %v7109 = vpop.trf.xlu0
        %v7110 = vpop.trf.xlu0
        %v7111 = vpop.trf.xlu0
        %v7112 = vpop.trf.xlu0
        %7113 = vxpose.xlu0.c.b16.start [1/8] %v6627, 128
        %7114 = vxpose.xlu0.c.b16.cont [2/8] 0, 128
        %7115 = vxpose.xlu0.c.b16.cont [3/8] 0, 128
        %7116 = vxpose.xlu0.c.b16.cont [4/8] 0, 128
        %7117 = vxpose.xlu0.c.b16.cont [5/8] 0, 128
        %7118 = vxpose.xlu0.c.b16.cont [6/8] 0, 128
        %7119 = vxpose.xlu0.c.b16.cont [7/8] 0, 128
        %7120 = vxpose.xlu0.c.b16.end [8/8] 0, 128
        %v7121 = vpop.trf.xlu0
        %v7122 = vpop.trf.xlu0
        %v7123 = vpop.trf.xlu0
        %v7124 = vpop.trf.xlu0
        %v7125 = vpop.trf.xlu0
        %v7126 = vpop.trf.xlu0
        %v7127 = vpop.trf.xlu0
        %v7128 = vpop.trf.xlu0
        %7129 = vxpose.xlu0.c.b16.start [1/8] %v6695, 128
        %7130 = vxpose.xlu0.c.b16.cont [2/8] 0, 128
        %7131 = vxpose.xlu0.c.b16.cont [3/8] 0, 128
        %7132 = vxpose.xlu0.c.b16.cont [4/8] 0, 128
        %7133 = vxpose.xlu0.c.b16.cont [5/8] 0, 128
        %7134 = vxpose.xlu0.c.b16.cont [6/8] 0, 128
        %7135 = vxpose.xlu0.c.b16.cont [7/8] 0, 128
        %7136 = vxpose.xlu0.c.b16.end [8/8] 0, 128
        %v7137 = vpop.trf.xlu0
        %v7138 = vpop.trf.xlu0
        %v7139 = vpop.trf.xlu0
        %v7140 = vpop.trf.xlu0
        %v7141 = vpop.trf.xlu0
        %v7142 = vpop.trf.xlu0
        %v7143 = vpop.trf.xlu0
        %v7144 = vpop.trf.xlu0
        %7145 = vxpose.xlu0.c.b16.start [1/8] %v6624, 128
        %7146 = vxpose.xlu0.c.b16.cont [2/8] 0, 128
        %7147 = vxpose.xlu0.c.b16.cont [3/8] 0, 128
        %7148 = vxpose.xlu0.c.b16.cont [4/8] 0, 128
        %7149 = vxpose.xlu0.c.b16.cont [5/8] 0, 128
        %7150 = vxpose.xlu0.c.b16.cont [6/8] 0, 128
        %7151 = vxpose.xlu0.c.b16.cont [7/8] 0, 128
        %7152 = vxpose.xlu0.c.b16.end [8/8] 0, 128
        %v7153 = vpop.trf.xlu0
        %v7154 = vpop.trf.xlu0
        %v7155 = vpop.trf.xlu0
        %v7156 = vpop.trf.xlu0
        %v7157 = vpop.trf.xlu0
        %v7158 = vpop.trf.xlu0
        %v7159 = vpop.trf.xlu0
        %v7160 = vpop.trf.xlu0
        %7161 = vxpose.xlu0.c.b16.start [1/8] %v6692, 128
        %7162 = vxpose.xlu0.c.b16.cont [2/8] 0, 128
        %7163 = vxpose.xlu0.c.b16.cont [3/8] 0, 128
        %7164 = vxpose.xlu0.c.b16.cont [4/8] 0, 128
        %7165 = vxpose.xlu0.c.b16.cont [5/8] 0, 128
        %7166 = vxpose.xlu0.c.b16.cont [6/8] 0, 128
        %7167 = vxpose.xlu0.c.b16.cont [7/8] 0, 128
        %7168 = vxpose.xlu0.c.b16.end [8/8] 0, 128
        %v7169 = vpop.trf.xlu0
        %v7170 = vpop.trf.xlu0
        %v7171 = vpop.trf.xlu0
        %v7172 = vpop.trf.xlu0
        %v7173 = vpop.trf.xlu0
        %v7174 = vpop.trf.xlu0
        %v7175 = vpop.trf.xlu0
        %v7176 = vpop.trf.xlu0
        %7177 = vxpose.xlu0.c.b16.start [1/8] %v6628, 128
        %7178 = vxpose.xlu0.c.b16.cont [2/8] 0, 128
        %7179 = vxpose.xlu0.c.b16.cont [3/8] 0, 128
        %7180 = vxpose.xlu0.c.b16.cont [4/8] 0, 128
        %7181 = vxpose.xlu0.c.b16.cont [5/8] 0, 128
        %7182 = vxpose.xlu0.c.b16.cont [6/8] 0, 128
        %7183 = vxpose.xlu0.c.b16.cont [7/8] 0, 128
        %7184 = vxpose.xlu0.c.b16.end [8/8] 0, 128
        %v7185 = vpop.trf.xlu0
        %v7186 = vpop.trf.xlu0
        %v7187 = vpop.trf.xlu0
        %v7188 = vpop.trf.xlu0
        %v7189 = vpop.trf.xlu0
        %v7190 = vpop.trf.xlu0
        %v7191 = vpop.trf.xlu0
        %v7192 = vpop.trf.xlu0
        %7193 = vxpose.xlu0.c.b16.start [1/8] %v6696, 128
        %7194 = vxpose.xlu0.c.b16.cont [2/8] 0, 128
        %7195 = vxpose.xlu0.c.b16.cont [3/8] 0, 128
        %7196 = vxpose.xlu0.c.b16.cont [4/8] 0, 128
        %7197 = vxpose.xlu0.c.b16.cont [5/8] 0, 128
        %7198 = vxpose.xlu0.c.b16.cont [6/8] 0, 128
        %7199 = vxpose.xlu0.c.b16.cont [7/8] 0, 128
        %7200 = vxpose.xlu0.c.b16.end [8/8] 0, 128
        %v7201 = vpop.trf.xlu0
        %v7202 = vpop.trf.xlu0
        %v7203 = vpop.trf.xlu0
        %v7204 = vpop.trf.xlu0
        %v7205 = vpop.trf.xlu0
        %v7206 = vpop.trf.xlu0
        %v7207 = vpop.trf.xlu0
        %v7208 = vpop.trf.xlu0
        %v7209 = vcombine.low %v6705, %v6769
        %v7211 = vunpack.c.l.s4 1983009808
        %v7212 = vunpack.c.0.s8 %v7211
        %v7213 = vlaneseq
        %v7214 = vshrl.u32 %v7213, 7
        %v7215 = vsub.s32 %v7212, %v7214
        %v7216 = vrot.slane %v7209, %v7215
        %v7217 = vcombine.low %v6737, %v6801
        %v7219 = vunpack.c.l.s4 1983009808
        %v7220 = vunpack.c.0.s8 %v7219
        %v7221 = vlaneseq
        %v7222 = vshrl.u32 %v7221, 7
        %v7223 = vsub.s32 %v7220, %v7222
        %v7224 = vrot.slane %v7217, %v7223
        %v7225 = vcombine.low %v6833, %v6897
        %v7227 = vunpack.c.l.s4 1983009808
        %v7228 = vunpack.c.0.s8 %v7227
        %v7229 = vlaneseq
        %v7230 = vshrl.u32 %v7229, 7
        %v7231 = vsub.s32 %v7228, %v7230
        %v7232 = vrot.slane %v7225, %v7231
        %v7233 = vcombine.low %v6865, %v6929
        %v7235 = vunpack.c.l.s4 1983009808
        %v7236 = vunpack.c.0.s8 %v7235
        %v7237 = vlaneseq
        %v7238 = vshrl.u32 %v7237, 7
        %v7239 = vsub.s32 %v7236, %v7238
        %v7240 = vrot.slane %v7233, %v7239
        %v7241 = vcombine.low %v7216, %v7224
        %v7243 = vunpack.c.l.s4 1934713408
        %v7244 = vunpack.c.0.s8 %v7243
        %v7245 = vlaneseq
        %v7246 = vshrl.u32 %v7245, 7
        %v7247 = vsub.s32 %v7244, %v7246
        %v7248 = vrot.slane %v7241, %v7247
        %v7249 = vcombine.low %v7232, %v7240
        %v7251 = vunpack.c.l.s4 1934713408
        %v7252 = vunpack.c.0.s8 %v7251
        %v7253 = vlaneseq
        %v7254 = vshrl.u32 %v7253, 7
        %v7255 = vsub.s32 %v7252, %v7254
        %v7256 = vrot.slane %v7249, %v7255
        %v7257 = vcombine.low %v7248, %v7256
        %v7258 = vcombine.high %v7248, %v7256
        %v7259 = vcombine.low %v6721, %v6785
        %v7261 = vunpack.c.l.s4 1983009808
        %v7262 = vunpack.c.0.s8 %v7261
        %v7263 = vlaneseq
        %v7264 = vshrl.u32 %v7263, 7
        %v7265 = vsub.s32 %v7262, %v7264
        %v7266 = vrot.slane %v7259, %v7265
        %v7267 = vcombine.low %v6753, %v6817
        %v7269 = vunpack.c.l.s4 1983009808
        %v7270 = vunpack.c.0.s8 %v7269
        %v7271 = vlaneseq
        %v7272 = vshrl.u32 %v7271, 7
        %v7273 = vsub.s32 %v7270, %v7272
        %v7274 = vrot.slane %v7267, %v7273
        %v7275 = vcombine.low %v6849, %v6913
        %v7277 = vunpack.c.l.s4 1983009808
        %v7278 = vunpack.c.0.s8 %v7277
        %v7279 = vlaneseq
        %v7280 = vshrl.u32 %v7279, 7
        %v7281 = vsub.s32 %v7278, %v7280
        %v7282 = vrot.slane %v7275, %v7281
        %v7283 = vcombine.low %v6881, %v6945
        %v7285 = vunpack.c.l.s4 1983009808
        %v7286 = vunpack.c.0.s8 %v7285
        %v7287 = vlaneseq
        %v7288 = vshrl.u32 %v7287, 7
        %v7289 = vsub.s32 %v7286, %v7288
        %v7290 = vrot.slane %v7283, %v7289
        %v7291 = vcombine.low %v7266, %v7274
        %v7293 = vunpack.c.l.s4 1934713408
        %v7294 = vunpack.c.0.s8 %v7293
        %v7295 = vlaneseq
        %v7296 = vshrl.u32 %v7295, 7
        %v7297 = vsub.s32 %v7294, %v7296
        %v7298 = vrot.slane %v7291, %v7297
        %v7299 = vcombine.low %v7282, %v7290
        %v7301 = vunpack.c.l.s4 1934713408
        %v7302 = vunpack.c.0.s8 %v7301
        %v7303 = vlaneseq
        %v7304 = vshrl.u32 %v7303, 7
        %v7305 = vsub.s32 %v7302, %v7304
        %v7306 = vrot.slane %v7299, %v7305
        %v7307 = vcombine.low %v7298, %v7306
        %v7308 = vcombine.high %v7298, %v7306
        %v7309 = vcombine.low %v6961, %v7025
        %v7311 = vunpack.c.l.s4 1983009808
        %v7312 = vunpack.c.0.s8 %v7311
        %v7313 = vlaneseq
        %v7314 = vshrl.u32 %v7313, 7
        %v7315 = vsub.s32 %v7312, %v7314
        %v7316 = vrot.slane %v7309, %v7315
        %v7317 = vcombine.low %v6993, %v7057
        %v7319 = vunpack.c.l.s4 1983009808
        %v7320 = vunpack.c.0.s8 %v7319
        %v7321 = vlaneseq
        %v7322 = vshrl.u32 %v7321, 7
        %v7323 = vsub.s32 %v7320, %v7322
        %v7324 = vrot.slane %v7317, %v7323
        %v7325 = vcombine.low %v7089, %v7153
        %v7327 = vunpack.c.l.s4 1983009808
        %v7328 = vunpack.c.0.s8 %v7327
        %v7329 = vlaneseq
        %v7330 = vshrl.u32 %v7329, 7
        %v7331 = vsub.s32 %v7328, %v7330
        %v7332 = vrot.slane %v7325, %v7331
        %v7333 = vcombine.low %v7121, %v7185
        %v7335 = vunpack.c.l.s4 1983009808
        %v7336 = vunpack.c.0.s8 %v7335
        %v7337 = vlaneseq
        %v7338 = vshrl.u32 %v7337, 7
        %v7339 = vsub.s32 %v7336, %v7338
        %v7340 = vrot.slane %v7333, %v7339
        %v7341 = vcombine.low %v7316, %v7324
        %v7343 = vunpack.c.l.s4 1934713408
        %v7344 = vunpack.c.0.s8 %v7343
        %v7345 = vlaneseq
        %v7346 = vshrl.u32 %v7345, 7
        %v7347 = vsub.s32 %v7344, %v7346
        %v7348 = vrot.slane %v7341, %v7347
        %v7349 = vcombine.low %v7332, %v7340
        %v7351 = vunpack.c.l.s4 1934713408
        %v7352 = vunpack.c.0.s8 %v7351
        %v7353 = vlaneseq
        %v7354 = vshrl.u32 %v7353, 7
        %v7355 = vsub.s32 %v7352, %v7354
        %v7356 = vrot.slane %v7349, %v7355
        %v7357 = vcombine.low %v7348, %v7356
        %v7358 = vcombine.high %v7348, %v7356
        %v7359 = vcombine.low %v6977, %v7041
        %v7361 = vunpack.c.l.s4 1983009808
        %v7362 = vunpack.c.0.s8 %v7361
        %v7363 = vlaneseq
        %v7364 = vshrl.u32 %v7363, 7
        %v7365 = vsub.s32 %v7362, %v7364
        %v7366 = vrot.slane %v7359, %v7365
        %v7367 = vcombine.low %v7009, %v7073
        %v7369 = vunpack.c.l.s4 1983009808
        %v7370 = vunpack.c.0.s8 %v7369
        %v7371 = vlaneseq
        %v7372 = vshrl.u32 %v7371, 7
        %v7373 = vsub.s32 %v7370, %v7372
        %v7374 = vrot.slane %v7367, %v7373
        %v7375 = vcombine.low %v7105, %v7169
        %v7377 = vunpack.c.l.s4 1983009808
        %v7378 = vunpack.c.0.s8 %v7377
        %v7379 = vlaneseq
        %v7380 = vshrl.u32 %v7379, 7
        %v7381 = vsub.s32 %v7378, %v7380
        %v7382 = vrot.slane %v7375, %v7381
        %v7383 = vcombine.low %v7137, %v7201
        %v7385 = vunpack.c.l.s4 1983009808
        %v7386 = vunpack.c.0.s8 %v7385
        %v7387 = vlaneseq
        %v7388 = vshrl.u32 %v7387, 7
        %v7389 = vsub.s32 %v7386, %v7388
        %v7390 = vrot.slane %v7383, %v7389
        %v7391 = vcombine.low %v7366, %v7374
        %v7393 = vunpack.c.l.s4 1934713408
        %v7394 = vunpack.c.0.s8 %v7393
        %v7395 = vlaneseq
        %v7396 = vshrl.u32 %v7395, 7
        %v7397 = vsub.s32 %v7394, %v7396
        %v7398 = vrot.slane %v7391, %v7397
        %v7399 = vcombine.low %v7382, %v7390
        %v7401 = vunpack.c.l.s4 1934713408
        %v7402 = vunpack.c.0.s8 %v7401
        %v7403 = vlaneseq
        %v7404 = vshrl.u32 %v7403, 7
        %v7405 = vsub.s32 %v7402, %v7404
        %v7406 = vrot.slane %v7399, %v7405
        %v7407 = vcombine.low %v7398, %v7406
        %v7408 = vcombine.high %v7398, %v7406
        %v7411 = vpack.i.b16 %v7307, %v7257
        %v7413 = vshrl.u32 %v7257, 16
        %v7414 = vshrl.u32 %v7307, 16
        %v7415 = vpack.i.b16 %v7414, %v7413
        %v7419 = vpack.i.b16 %v7308, %v7258
        %v7421 = vshrl.u32 %v7258, 16
        %v7422 = vshrl.u32 %v7308, 16
        %v7423 = vpack.i.b16 %v7422, %v7421
        %v7427 = vpack.i.b16 %v7407, %v7357
        %v7429 = vshrl.u32 %v7357, 16
        %v7430 = vshrl.u32 %v7407, 16
        %v7431 = vpack.i.b16 %v7430, %v7429
        %v7435 = vpack.i.b16 %v7408, %v7358
        %v7437 = vshrl.u32 %v7358, 16
        %v7438 = vshrl.u32 %v7408, 16
        %v7439 = vpack.i.b16 %v7438, %v7437
        %v7442 = vsel %vm3168, %v6223, 0
        %7444 = vmatprep.subr.bf16.mxu0 0
        %7445 = vmatpush1.bf16.msra.mxu0 0
        %7446 = vmatprep.subr.bf16.mxu0 0
        %7447 = vmatpush1.bf16.msra.mxu0 0
        %7448 = vmatprep.subr.bf16.mxu0 0
        %7449 = vmatpush1.bf16.msra.mxu0 0
        %7450 = vmatprep.subr.bf16.mxu0 0
        %7451 = vmatpush1.bf16.msra.mxu0 0
        %7452 = vmatprep.subr.bf16.mxu0 0
        %7453 = vmatpush1.bf16.msra.mxu0 0
        %7454 = vmatprep.subr.bf16.mxu0 0
        %7455 = vmatpush1.bf16.msra.mxu0 0
        %7456 = vmatprep.subr.bf16.mxu0 0
        %7457 = vmatpush1.bf16.msra.mxu0 %v7427
        %7458 = vmatprep.subr.bf16.mxu0 0
        %7459 = vmatpush1.bf16.msra.mxu0 %v7411
        %7460 = vmatprep.subr.bf16.mxu0 0
        %7461 = vmatpush2.bf16.msra.mxu0 0
        %7462 = vmatprep.subr.bf16.mxu0 0
        %7463 = vmatpush2.bf16.msra.mxu0 0
        %7464 = vmatprep.subr.bf16.mxu0 0
        %7465 = vmatpush2.bf16.msra.mxu0 0
        %7466 = vmatprep.subr.bf16.mxu0 0
        %7467 = vmatpush2.bf16.msra.mxu0 0
        %7468 = vmatprep.subr.bf16.mxu0 0
        %7469 = vmatpush2.bf16.msra.mxu0 0
        %7470 = vmatprep.subr.bf16.mxu0 0
        %7471 = vmatpush2.bf16.msra.mxu0 0
        %7472 = vmatprep.subr.bf16.mxu0 0
        %7473 = vmatpush2.bf16.msra.mxu0 0
        %7474 = vmatprep.subr.bf16.mxu0 0
        %7475 = vmatpush2.bf16.msra.mxu0 0
        %7476 = vmatprep.mubr.bf16.mxu0 0
        %7477 = vmatmul.mubr.bf16.gmra.mxu0 %v7442
        %v7478 = vpop.f32.mrf.mxu0
        %v7479 = vadd.f32 0.0, %v7478
        %v7480 = vpop.f32.mrf.mxu0
        %v7481 = vpop.f32.mrf.mxu0
        %v7482 = vpop.f32.mrf.mxu0
        %7483 = vdwg.mxu0
        %v7485 = vsel %vm3168, %v6226, 0
        %7487 = vmatprep.subr.bf16.mxu0 0
        %7488 = vmatpush1.bf16.msra.mxu0 0
        %7489 = vmatprep.subr.bf16.mxu0 0
        %7490 = vmatpush1.bf16.msra.mxu0 0
        %7491 = vmatprep.subr.bf16.mxu0 0
        %7492 = vmatpush1.bf16.msra.mxu0 0
        %7493 = vmatprep.subr.bf16.mxu0 0
        %7494 = vmatpush1.bf16.msra.mxu0 0
        %7495 = vmatprep.subr.bf16.mxu0 0
        %7496 = vmatpush1.bf16.msra.mxu0 0
        %7497 = vmatprep.subr.bf16.mxu0 0
        %7498 = vmatpush1.bf16.msra.mxu0 0
        %7499 = vmatprep.subr.bf16.mxu0 0
        %7500 = vmatpush1.bf16.msra.mxu0 %v7431
        %7501 = vmatprep.subr.bf16.mxu0 0
        %7502 = vmatpush1.bf16.msra.mxu0 %v7415
        %7503 = vmatprep.subr.bf16.mxu0 0
        %7504 = vmatpush2.bf16.msra.mxu0 0
        %7505 = vmatprep.subr.bf16.mxu0 0
        %7506 = vmatpush2.bf16.msra.mxu0 0
        %7507 = vmatprep.subr.bf16.mxu0 0
        %7508 = vmatpush2.bf16.msra.mxu0 0
        %7509 = vmatprep.subr.bf16.mxu0 0
        %7510 = vmatpush2.bf16.msra.mxu0 0
        %7511 = vmatprep.subr.bf16.mxu0 0
        %7512 = vmatpush2.bf16.msra.mxu0 0
        %7513 = vmatprep.subr.bf16.mxu0 0
        %7514 = vmatpush2.bf16.msra.mxu0 0
        %7515 = vmatprep.subr.bf16.mxu0 0
        %7516 = vmatpush2.bf16.msra.mxu0 0
        %7517 = vmatprep.subr.bf16.mxu0 0
        %7518 = vmatpush2.bf16.msra.mxu0 0
        %7519 = vmatprep.mubr.bf16.mxu0 0
        %7520 = vmatmul.mubr.bf16.gmra.mxu0 %v7485
        %v7521 = vpop.f32.mrf.mxu0
        %v7522 = vadd.f32 0.0, %v7521
        %v7523 = vpop.f32.mrf.mxu0
        %v7524 = vpop.f32.mrf.mxu0
        %v7525 = vpop.f32.mrf.mxu0
        %7526 = vdwg.mxu0
        %v7528 = vsel %vm3168, %v6229, 0
        %7530 = vmatprep.subr.bf16.mxu0 0
        %7531 = vmatpush1.bf16.msra.mxu0 0
        %7532 = vmatprep.subr.bf16.mxu0 0
        %7533 = vmatpush1.bf16.msra.mxu0 0
        %7534 = vmatprep.subr.bf16.mxu0 0
        %7535 = vmatpush1.bf16.msra.mxu0 0
        %7536 = vmatprep.subr.bf16.mxu0 0
        %7537 = vmatpush1.bf16.msra.mxu0 0
        %7538 = vmatprep.subr.bf16.mxu0 0
        %7539 = vmatpush1.bf16.msra.mxu0 0
        %7540 = vmatprep.subr.bf16.mxu0 0
        %7541 = vmatpush1.bf16.msra.mxu0 0
        %7542 = vmatprep.subr.bf16.mxu0 0
        %7543 = vmatpush1.bf16.msra.mxu0 %v7435
        %7544 = vmatprep.subr.bf16.mxu0 0
        %7545 = vmatpush1.bf16.msra.mxu0 %v7419
        %7546 = vmatprep.subr.bf16.mxu0 0
        %7547 = vmatpush2.bf16.msra.mxu0 0
        %7548 = vmatprep.subr.bf16.mxu0 0
        %7549 = vmatpush2.bf16.msra.mxu0 0
        %7550 = vmatprep.subr.bf16.mxu0 0
        %7551 = vmatpush2.bf16.msra.mxu0 0
        %7552 = vmatprep.subr.bf16.mxu0 0
        %7553 = vmatpush2.bf16.msra.mxu0 0
        %7554 = vmatprep.subr.bf16.mxu0 0
        %7555 = vmatpush2.bf16.msra.mxu0 0
        %7556 = vmatprep.subr.bf16.mxu0 0
        %7557 = vmatpush2.bf16.msra.mxu0 0
        %7558 = vmatprep.subr.bf16.mxu0 0
        %7559 = vmatpush2.bf16.msra.mxu0 0
        %7560 = vmatprep.subr.bf16.mxu0 0
        %7561 = vmatpush2.bf16.msra.mxu0 0
        %7562 = vmatprep.mubr.bf16.mxu0 0
        %7563 = vmatmul.mubr.bf16.gmra.mxu0 %v7528
        %v7564 = vpop.f32.mrf.mxu0
        %v7565 = vadd.f32 0.0, %v7564
        %v7566 = vpop.f32.mrf.mxu0
        %v7567 = vpop.f32.mrf.mxu0
        %v7568 = vpop.f32.mrf.mxu0
        %7569 = vdwg.mxu0
        %v7571 = vsel %vm3168, %v6232, 0
        %7573 = vmatprep.subr.bf16.mxu0 0
        %7574 = vmatpush1.bf16.msra.mxu0 0
        %7575 = vmatprep.subr.bf16.mxu0 0
        %7576 = vmatpush1.bf16.msra.mxu0 0
        %7577 = vmatprep.subr.bf16.mxu0 0
        %7578 = vmatpush1.bf16.msra.mxu0 0
        %7579 = vmatprep.subr.bf16.mxu0 0
        %7580 = vmatpush1.bf16.msra.mxu0 0
        %7581 = vmatprep.subr.bf16.mxu0 0
        %7582 = vmatpush1.bf16.msra.mxu0 0
        %7583 = vmatprep.subr.bf16.mxu0 0
        %7584 = vmatpush1.bf16.msra.mxu0 0
        %7585 = vmatprep.subr.bf16.mxu0 0
        %7586 = vmatpush1.bf16.msra.mxu0 %v7439
        %7587 = vmatprep.subr.bf16.mxu0 0
        %7588 = vmatpush1.bf16.msra.mxu0 %v7423
        %7589 = vmatprep.subr.bf16.mxu0 0
        %7590 = vmatpush2.bf16.msra.mxu0 0
        %7591 = vmatprep.subr.bf16.mxu0 0
        %7592 = vmatpush2.bf16.msra.mxu0 0
        %7593 = vmatprep.subr.bf16.mxu0 0
        %7594 = vmatpush2.bf16.msra.mxu0 0
        %7595 = vmatprep.subr.bf16.mxu0 0
        %7596 = vmatpush2.bf16.msra.mxu0 0
        %7597 = vmatprep.subr.bf16.mxu0 0
        %7598 = vmatpush2.bf16.msra.mxu0 0
        %7599 = vmatprep.subr.bf16.mxu0 0
        %7600 = vmatpush2.bf16.msra.mxu0 0
        %7601 = vmatprep.subr.bf16.mxu0 0
        %7602 = vmatpush2.bf16.msra.mxu0 0
        %7603 = vmatprep.subr.bf16.mxu0 0
        %7604 = vmatpush2.bf16.msra.mxu0 0
        %7605 = vmatprep.mubr.bf16.mxu0 0
        %7606 = vmatmul.mubr.bf16.gmra.mxu0 %v7571
        %v7607 = vpop.f32.mrf.mxu0
        %v7608 = vadd.f32 0.0, %v7607
        %v7609 = vpop.f32.mrf.mxu0
        %v7610 = vpop.f32.mrf.mxu0
        %v7611 = vpop.f32.mrf.mxu0
        %7612 = vdwg.mxu0
        %v7613 = vmul.f32 %v7479, 0.17677669
        %v7614 = vmul.f32 %v7522, 0.17677669
        %v7615 = vmul.f32 %v7565, 0.17677669
        %v7616 = vmul.f32 %v7608, 0.17677669
        %v7617 = vadd.f32 %v7613, %v3364
        %v7618 = vadd.f32 %v7614, %v3364
        %v7619 = vadd.f32 %v7615, %v3364
        %v7620 = vadd.f32 %v7616, %v3364
        %v7621 = vsel %vm3370, %v7617, -inf
        %7622 = vmax.xlane.f32.xlu0 %v7621
        %v7623 = vpop.xlane.xlu0 %7622
        %v7624 = vsel %vm3370, %v7618, -inf
        %7625 = vmax.xlane.f32.xlu0 %v7624
        %v7626 = vpop.xlane.xlu0 %7625
        %v7627 = vsel %vm3370, %v7619, -inf
        %7628 = vmax.xlane.f32.xlu0 %v7627
        %v7629 = vpop.xlane.xlu0 %7628
        %v7630 = vsel %vm3370, %v7620, -inf
        %7631 = vmax.xlane.f32.xlu0 %v7630
        %v7632 = vpop.xlane.xlu0 %7631
        %v7633 = vsub.f32 %v7617, %v7623
        %v7634 = vsub.f32 %v7618, %v7626
        %v7635 = vsub.f32 %v7619, %v7629
        %v7636 = vsub.f32 %v7620, %v7632
        %v7637 = vmul.f32 %v7633, 1.442695
        %v7638 = vpow.pop %v7637
        %v7639 = vmul.f32 %v7634, 1.442695
        %v7640 = vpow.pop %v7639
        %v7641 = vmul.f32 %v7635, 1.442695
        %v7642 = vpow.pop %v7641
        %v7643 = vmul.f32 %v7636, 1.442695
        %v7644 = vpow.pop %v7643
        %v7645 = vsel %vm3370, %v7638, 0.0
        %7646 = vadd.xlane.f32.xlu0 %v7645
        %v7647 = vpop.xlane.xlu0 %7646
        %v7648 = vsel %vm3370, %v7640, 0.0
        %7649 = vadd.xlane.f32.xlu0 %v7648
        %v7650 = vpop.xlane.xlu0 %7649
        %v7651 = vsel %vm3370, %v7642, 0.0
        %7652 = vadd.xlane.f32.xlu0 %v7651
        %v7653 = vpop.xlane.xlu0 %7652
        %v7654 = vsel %vm3370, %v7644, 0.0
        %7655 = vadd.xlane.f32.xlu0 %v7654
        %v7656 = vpop.xlane.xlu0 %7655
        %v7657 = vrcp.pop %v7647
        %v7658 = vrcp.pop %v7650
        %v7659 = vrcp.pop %v7653
        %v7660 = vrcp.pop %v7656
        %v7661 = vmul.f32 %v7638, %v7657
        %v7662 = vmul.f32 %v7640, %v7658
        %v7663 = vmul.f32 %v7642, %v7659
        %v7664 = vmul.f32 %v7644, %v7660
        %v7665 = vpack.c.bf16 %v7661, %v7661
        %v7666 = vpack.c.bf16 %v7662, %v7662
        %v7667 = vpack.c.bf16 %v7663, %v7663
        %v7668 = vpack.c.bf16 %v7664, %v7664
        %7669 = vxpose.xlu0.c.b16.start [1/8] %v6163, 128
        %7670 = vxpose.xlu0.c.b16.cont [2/8] 0, 128
        %7671 = vxpose.xlu0.c.b16.cont [3/8] 0, 128
        %7672 = vxpose.xlu0.c.b16.cont [4/8] 0, 128
        %7673 = vxpose.xlu0.c.b16.cont [5/8] 0, 128
        %7674 = vxpose.xlu0.c.b16.cont [6/8] 0, 128
        %7675 = vxpose.xlu0.c.b16.cont [7/8] 0, 128
        %7676 = vxpose.xlu0.c.b16.end [8/8] 0, 128
        %v7677 = vpop.trf.xlu0
        %v7678 = vpop.trf.xlu0
        %v7679 = vpop.trf.xlu0
        %v7680 = vpop.trf.xlu0
        %v7681 = vpop.trf.xlu0
        %v7682 = vpop.trf.xlu0
        %v7683 = vpop.trf.xlu0
        %v7684 = vpop.trf.xlu0
        %7685 = vxpose.xlu0.c.b16.start [1/8] %v6164, 128
        %7686 = vxpose.xlu0.c.b16.cont [2/8] 0, 128
        %7687 = vxpose.xlu0.c.b16.cont [3/8] 0, 128
        %7688 = vxpose.xlu0.c.b16.cont [4/8] 0, 128
        %7689 = vxpose.xlu0.c.b16.cont [5/8] 0, 128
        %7690 = vxpose.xlu0.c.b16.cont [6/8] 0, 128
        %7691 = vxpose.xlu0.c.b16.cont [7/8] 0, 128
        %7692 = vxpose.xlu0.c.b16.end [8/8] 0, 128
        %v7693 = vpop.trf.xlu0
        %v7694 = vpop.trf.xlu0
        %v7695 = vpop.trf.xlu0
        %v7696 = vpop.trf.xlu0
        %v7697 = vpop.trf.xlu0
        %v7698 = vpop.trf.xlu0
        %v7699 = vpop.trf.xlu0
        %v7700 = vpop.trf.xlu0
        %7701 = vxpose.xlu0.c.b16.start [1/8] %v6165, 128
        %7702 = vxpose.xlu0.c.b16.cont [2/8] 0, 128
        %7703 = vxpose.xlu0.c.b16.cont [3/8] 0, 128
        %7704 = vxpose.xlu0.c.b16.cont [4/8] 0, 128
        %7705 = vxpose.xlu0.c.b16.cont [5/8] 0, 128
        %7706 = vxpose.xlu0.c.b16.cont [6/8] 0, 128
        %7707 = vxpose.xlu0.c.b16.cont [7/8] 0, 128
        %7708 = vxpose.xlu0.c.b16.end [8/8] 0, 128
        %v7709 = vpop.trf.xlu0
        %v7710 = vpop.trf.xlu0
        %v7711 = vpop.trf.xlu0
        %v7712 = vpop.trf.xlu0
        %v7713 = vpop.trf.xlu0
        %v7714 = vpop.trf.xlu0
        %v7715 = vpop.trf.xlu0
        %v7716 = vpop.trf.xlu0
        %7717 = vxpose.xlu0.c.b16.start [1/8] %v6166, 128
        %7718 = vxpose.xlu0.c.b16.cont [2/8] 0, 128
        %7719 = vxpose.xlu0.c.b16.cont [3/8] 0, 128
        %7720 = vxpose.xlu0.c.b16.cont [4/8] 0, 128
        %7721 = vxpose.xlu0.c.b16.cont [5/8] 0, 128
        %7722 = vxpose.xlu0.c.b16.cont [6/8] 0, 128
        %7723 = vxpose.xlu0.c.b16.cont [7/8] 0, 128
        %7724 = vxpose.xlu0.c.b16.end [8/8] 0, 128
        %v7725 = vpop.trf.xlu0
        %v7726 = vpop.trf.xlu0
        %v7727 = vpop.trf.xlu0
        %v7728 = vpop.trf.xlu0
        %v7729 = vpop.trf.xlu0
        %v7730 = vpop.trf.xlu0
        %v7731 = vpop.trf.xlu0
        %v7732 = vpop.trf.xlu0
        %7733 = vxpose.xlu0.c.b16.start [1/8] %v6167, 128
        %7734 = vxpose.xlu0.c.b16.cont [2/8] 0, 128
        %7735 = vxpose.xlu0.c.b16.cont [3/8] 0, 128
        %7736 = vxpose.xlu0.c.b16.cont [4/8] 0, 128
        %7737 = vxpose.xlu0.c.b16.cont [5/8] 0, 128
        %7738 = vxpose.xlu0.c.b16.cont [6/8] 0, 128
        %7739 = vxpose.xlu0.c.b16.cont [7/8] 0, 128
        %7740 = vxpose.xlu0.c.b16.end [8/8] 0, 128
        %v7741 = vpop.trf.xlu0
        %v7742 = vpop.trf.xlu0
        %v7743 = vpop.trf.xlu0
        %v7744 = vpop.trf.xlu0
        %v7745 = vpop.trf.xlu0
        %v7746 = vpop.trf.xlu0
        %v7747 = vpop.trf.xlu0
        %v7748 = vpop.trf.xlu0
        %7749 = vxpose.xlu0.c.b16.start [1/8] %v6168, 128
        %7750 = vxpose.xlu0.c.b16.cont [2/8] 0, 128
        %7751 = vxpose.xlu0.c.b16.cont [3/8] 0, 128
        %7752 = vxpose.xlu0.c.b16.cont [4/8] 0, 128
        %7753 = vxpose.xlu0.c.b16.cont [5/8] 0, 128
        %7754 = vxpose.xlu0.c.b16.cont [6/8] 0, 128
        %7755 = vxpose.xlu0.c.b16.cont [7/8] 0, 128
        %7756 = vxpose.xlu0.c.b16.end [8/8] 0, 128
        %v7757 = vpop.trf.xlu0
        %v7758 = vpop.trf.xlu0
        %v7759 = vpop.trf.xlu0
        %v7760 = vpop.trf.xlu0
        %v7761 = vpop.trf.xlu0
        %v7762 = vpop.trf.xlu0
        %v7763 = vpop.trf.xlu0
        %v7764 = vpop.trf.xlu0
        %7765 = vxpose.xlu0.c.b16.start [1/8] %v6169, 128
        %7766 = vxpose.xlu0.c.b16.cont [2/8] 0, 128
        %7767 = vxpose.xlu0.c.b16.cont [3/8] 0, 128
        %7768 = vxpose.xlu0.c.b16.cont [4/8] 0, 128
        %7769 = vxpose.xlu0.c.b16.cont [5/8] 0, 128
        %7770 = vxpose.xlu0.c.b16.cont [6/8] 0, 128
        %7771 = vxpose.xlu0.c.b16.cont [7/8] 0, 128
        %7772 = vxpose.xlu0.c.b16.end [8/8] 0, 128
        %v7773 = vpop.trf.xlu0
        %v7774 = vpop.trf.xlu0
        %v7775 = vpop.trf.xlu0
        %v7776 = vpop.trf.xlu0
        %v7777 = vpop.trf.xlu0
        %v7778 = vpop.trf.xlu0
        %v7779 = vpop.trf.xlu0
        %v7780 = vpop.trf.xlu0
        %7781 = vxpose.xlu0.c.b16.start [1/8] %v6170, 128
        %7782 = vxpose.xlu0.c.b16.cont [2/8] 0, 128
        %7783 = vxpose.xlu0.c.b16.cont [3/8] 0, 128
        %7784 = vxpose.xlu0.c.b16.cont [4/8] 0, 128
        %7785 = vxpose.xlu0.c.b16.cont [5/8] 0, 128
        %7786 = vxpose.xlu0.c.b16.cont [6/8] 0, 128
        %7787 = vxpose.xlu0.c.b16.cont [7/8] 0, 128
        %7788 = vxpose.xlu0.c.b16.end [8/8] 0, 128
        %v7789 = vpop.trf.xlu0
        %v7790 = vpop.trf.xlu0
        %v7791 = vpop.trf.xlu0
        %v7792 = vpop.trf.xlu0
        %v7793 = vpop.trf.xlu0
        %v7794 = vpop.trf.xlu0
        %v7795 = vpop.trf.xlu0
        %v7796 = vpop.trf.xlu0
        %v7799 = vpack.i.b16 %v7693, %v7677
        %v7801 = vshrl.u32 %v7677, 16
        %v7802 = vshrl.u32 %v7693, 16
        %v7803 = vpack.i.b16 %v7802, %v7801
        %v7807 = vpack.i.b16 %v7725, %v7709
        %v7809 = vshrl.u32 %v7709, 16
        %v7810 = vshrl.u32 %v7725, 16
        %v7811 = vpack.i.b16 %v7810, %v7809
        %v7815 = vpack.i.b16 %v7757, %v7741
        %v7817 = vshrl.u32 %v7741, 16
        %v7818 = vshrl.u32 %v7757, 16
        %v7819 = vpack.i.b16 %v7818, %v7817
        %v7823 = vpack.i.b16 %v7789, %v7773
        %v7825 = vshrl.u32 %v7773, 16
        %v7826 = vshrl.u32 %v7789, 16
        %v7827 = vpack.i.b16 %v7826, %v7825
        %v7831 = vpack.i.b16 %v7694, %v7678
        %v7833 = vshrl.u32 %v7678, 16
        %v7834 = vshrl.u32 %v7694, 16
        %v7835 = vpack.i.b16 %v7834, %v7833
        %v7839 = vpack.i.b16 %v7726, %v7710
        %v7841 = vshrl.u32 %v7710, 16
        %v7842 = vshrl.u32 %v7726, 16
        %v7843 = vpack.i.b16 %v7842, %v7841
        %v7847 = vpack.i.b16 %v7758, %v7742
        %v7849 = vshrl.u32 %v7742, 16
        %v7850 = vshrl.u32 %v7758, 16
        %v7851 = vpack.i.b16 %v7850, %v7849
        %v7855 = vpack.i.b16 %v7790, %v7774
        %v7857 = vshrl.u32 %v7774, 16
        %v7858 = vshrl.u32 %v7790, 16
        %v7859 = vpack.i.b16 %v7858, %v7857
        %v7861 = vcombine.low %v7799, %v7815
        %v7862 = vcombine.high %v7799, %v7815
        %v7864 = vunpack.c.l.s4 1983009808
        %v7865 = vunpack.c.0.s8 %v7864
        %v7866 = vlaneseq
        %v7867 = vshrl.u32 %v7866, 7
        %v7868 = vsub.s32 %v7865, %v7867
        %v7869 = vrot.slane %v7861, %v7868
        %v7871 = vunpack.c.l.s4 1983009808
        %v7872 = vunpack.c.0.s8 %v7871
        %v7873 = vlaneseq
        %v7874 = vshrl.u32 %v7873, 7
        %v7875 = vsub.s32 %v7872, %v7874
        %v7876 = vrot.slane %v7862, %v7875
        %v7877 = vcombine.low %v7807, %v7823
        %v7878 = vcombine.high %v7807, %v7823
        %v7880 = vunpack.c.l.s4 1983009808
        %v7881 = vunpack.c.0.s8 %v7880
        %v7882 = vlaneseq
        %v7883 = vshrl.u32 %v7882, 7
        %v7884 = vsub.s32 %v7881, %v7883
        %v7885 = vrot.slane %v7877, %v7884
        %v7887 = vunpack.c.l.s4 1983009808
        %v7888 = vunpack.c.0.s8 %v7887
        %v7889 = vlaneseq
        %v7890 = vshrl.u32 %v7889, 7
        %v7891 = vsub.s32 %v7888, %v7890
        %v7892 = vrot.slane %v7878, %v7891
        %v7893 = vcombine.low %v7869, %v7885
        %v7894 = vcombine.high %v7869, %v7885
        %v7896 = vunpack.c.l.s4 1934713408
        %v7897 = vunpack.c.0.s8 %v7896
        %v7898 = vlaneseq
        %v7899 = vshrl.u32 %v7898, 7
        %v7900 = vsub.s32 %v7897, %v7899
        %v7901 = vrot.slane %v7893, %v7900
        %v7903 = vunpack.c.l.s4 1934713408
        %v7904 = vunpack.c.0.s8 %v7903
        %v7905 = vlaneseq
        %v7906 = vshrl.u32 %v7905, 7
        %v7907 = vsub.s32 %v7904, %v7906
        %v7908 = vrot.slane %v7894, %v7907
        %v7909 = vcombine.low %v7876, %v7892
        %v7910 = vcombine.high %v7876, %v7892
        %v7912 = vunpack.c.l.s4 1934713408
        %v7913 = vunpack.c.0.s8 %v7912
        %v7914 = vlaneseq
        %v7915 = vshrl.u32 %v7914, 7
        %v7916 = vsub.s32 %v7913, %v7915
        %v7917 = vrot.slane %v7909, %v7916
        %v7919 = vunpack.c.l.s4 1934713408
        %v7920 = vunpack.c.0.s8 %v7919
        %v7921 = vlaneseq
        %v7922 = vshrl.u32 %v7921, 7
        %v7923 = vsub.s32 %v7920, %v7922
        %v7924 = vrot.slane %v7910, %v7923
        %v7925 = vcombine.high %v7901, 0
        %v7926 = vcombine.high %v7908, 0
        %v7927 = vcombine.high %v7917, 0
        %v7928 = vcombine.high %v7924, 0
        %v7929 = vcombine.low %v7803, %v7819
        %v7930 = vcombine.high %v7803, %v7819
        %v7932 = vunpack.c.l.s4 1983009808
        %v7933 = vunpack.c.0.s8 %v7932
        %v7934 = vlaneseq
        %v7935 = vshrl.u32 %v7934, 7
        %v7936 = vsub.s32 %v7933, %v7935
        %v7937 = vrot.slane %v7929, %v7936
        %v7939 = vunpack.c.l.s4 1983009808
        %v7940 = vunpack.c.0.s8 %v7939
        %v7941 = vlaneseq
        %v7942 = vshrl.u32 %v7941, 7
        %v7943 = vsub.s32 %v7940, %v7942
        %v7944 = vrot.slane %v7930, %v7943
        %v7945 = vcombine.low %v7811, %v7827
        %v7946 = vcombine.high %v7811, %v7827
        %v7948 = vunpack.c.l.s4 1983009808
        %v7949 = vunpack.c.0.s8 %v7948
        %v7950 = vlaneseq
        %v7951 = vshrl.u32 %v7950, 7
        %v7952 = vsub.s32 %v7949, %v7951
        %v7953 = vrot.slane %v7945, %v7952
        %v7955 = vunpack.c.l.s4 1983009808
        %v7956 = vunpack.c.0.s8 %v7955
        %v7957 = vlaneseq
        %v7958 = vshrl.u32 %v7957, 7
        %v7959 = vsub.s32 %v7956, %v7958
        %v7960 = vrot.slane %v7946, %v7959
        %v7961 = vcombine.low %v7937, %v7953
        %v7962 = vcombine.high %v7937, %v7953
        %v7964 = vunpack.c.l.s4 1934713408
        %v7965 = vunpack.c.0.s8 %v7964
        %v7966 = vlaneseq
        %v7967 = vshrl.u32 %v7966, 7
        %v7968 = vsub.s32 %v7965, %v7967
        %v7969 = vrot.slane %v7961, %v7968
        %v7971 = vunpack.c.l.s4 1934713408
        %v7972 = vunpack.c.0.s8 %v7971
        %v7973 = vlaneseq
        %v7974 = vshrl.u32 %v7973, 7
        %v7975 = vsub.s32 %v7972, %v7974
        %v7976 = vrot.slane %v7962, %v7975
        %v7977 = vcombine.low %v7944, %v7960
        %v7978 = vcombine.high %v7944, %v7960
        %v7980 = vunpack.c.l.s4 1934713408
        %v7981 = vunpack.c.0.s8 %v7980
        %v7982 = vlaneseq
        %v7983 = vshrl.u32 %v7982, 7
        %v7984 = vsub.s32 %v7981, %v7983
        %v7985 = vrot.slane %v7977, %v7984
        %v7987 = vunpack.c.l.s4 1934713408
        %v7988 = vunpack.c.0.s8 %v7987
        %v7989 = vlaneseq
        %v7990 = vshrl.u32 %v7989, 7
        %v7991 = vsub.s32 %v7988, %v7990
        %v7992 = vrot.slane %v7978, %v7991
        %v7993 = vcombine.high %v7969, 0
        %v7994 = vcombine.high %v7976, 0
        %v7995 = vcombine.high %v7985, 0
        %v7996 = vcombine.high %v7992, 0
        %v7997 = vcombine.low %v7831, %v7847
        %v7998 = vcombine.high %v7831, %v7847
        %v8000 = vunpack.c.l.s4 1983009808
        %v8001 = vunpack.c.0.s8 %v8000
        %v8002 = vlaneseq
        %v8003 = vshrl.u32 %v8002, 7
        %v8004 = vsub.s32 %v8001, %v8003
        %v8005 = vrot.slane %v7997, %v8004
        %v8007 = vunpack.c.l.s4 1983009808
        %v8008 = vunpack.c.0.s8 %v8007
        %v8009 = vlaneseq
        %v8010 = vshrl.u32 %v8009, 7
        %v8011 = vsub.s32 %v8008, %v8010
        %v8012 = vrot.slane %v7998, %v8011
        %v8013 = vcombine.low %v7839, %v7855
        %v8014 = vcombine.high %v7839, %v7855
        %v8016 = vunpack.c.l.s4 1983009808
        %v8017 = vunpack.c.0.s8 %v8016
        %v8018 = vlaneseq
        %v8019 = vshrl.u32 %v8018, 7
        %v8020 = vsub.s32 %v8017, %v8019
        %v8021 = vrot.slane %v8013, %v8020
        %v8023 = vunpack.c.l.s4 1983009808
        %v8024 = vunpack.c.0.s8 %v8023
        %v8025 = vlaneseq
        %v8026 = vshrl.u32 %v8025, 7
        %v8027 = vsub.s32 %v8024, %v8026
        %v8028 = vrot.slane %v8014, %v8027
        %v8029 = vcombine.low %v8005, %v8021
        %v8030 = vcombine.high %v8005, %v8021
        %v8032 = vunpack.c.l.s4 1934713408
        %v8033 = vunpack.c.0.s8 %v8032
        %v8034 = vlaneseq
        %v8035 = vshrl.u32 %v8034, 7
        %v8036 = vsub.s32 %v8033, %v8035
        %v8037 = vrot.slane %v8029, %v8036
        %v8039 = vunpack.c.l.s4 1934713408
        %v8040 = vunpack.c.0.s8 %v8039
        %v8041 = vlaneseq
        %v8042 = vshrl.u32 %v8041, 7
        %v8043 = vsub.s32 %v8040, %v8042
        %v8044 = vrot.slane %v8030, %v8043
        %v8045 = vcombine.low %v8012, %v8028
        %v8046 = vcombine.high %v8012, %v8028
        %v8048 = vunpack.c.l.s4 1934713408
        %v8049 = vunpack.c.0.s8 %v8048
        %v8050 = vlaneseq
        %v8051 = vshrl.u32 %v8050, 7
        %v8052 = vsub.s32 %v8049, %v8051
        %v8053 = vrot.slane %v8045, %v8052
        %v8055 = vunpack.c.l.s4 1934713408
        %v8056 = vunpack.c.0.s8 %v8055
        %v8057 = vlaneseq
        %v8058 = vshrl.u32 %v8057, 7
        %v8059 = vsub.s32 %v8056, %v8058
        %v8060 = vrot.slane %v8046, %v8059
        %v8061 = vcombine.high %v8037, 0
        %v8062 = vcombine.high %v8044, 0
        %v8063 = vcombine.high %v8053, 0
        %v8064 = vcombine.high %v8060, 0
        %v8065 = vcombine.low %v7835, %v7851
        %v8066 = vcombine.high %v7835, %v7851
        %v8068 = vunpack.c.l.s4 1983009808
        %v8069 = vunpack.c.0.s8 %v8068
        %v8070 = vlaneseq
        %v8071 = vshrl.u32 %v8070, 7
        %v8072 = vsub.s32 %v8069, %v8071
        %v8073 = vrot.slane %v8065, %v8072
        %v8075 = vunpack.c.l.s4 1983009808
        %v8076 = vunpack.c.0.s8 %v8075
        %v8077 = vlaneseq
        %v8078 = vshrl.u32 %v8077, 7
        %v8079 = vsub.s32 %v8076, %v8078
        %v8080 = vrot.slane %v8066, %v8079
        %v8081 = vcombine.low %v7843, %v7859
        %v8082 = vcombine.high %v7843, %v7859
        %v8084 = vunpack.c.l.s4 1983009808
        %v8085 = vunpack.c.0.s8 %v8084
        %v8086 = vlaneseq
        %v8087 = vshrl.u32 %v8086, 7
        %v8088 = vsub.s32 %v8085, %v8087
        %v8089 = vrot.slane %v8081, %v8088
        %v8091 = vunpack.c.l.s4 1983009808
        %v8092 = vunpack.c.0.s8 %v8091
        %v8093 = vlaneseq
        %v8094 = vshrl.u32 %v8093, 7
        %v8095 = vsub.s32 %v8092, %v8094
        %v8096 = vrot.slane %v8082, %v8095
        %v8097 = vcombine.low %v8073, %v8089
        %v8098 = vcombine.high %v8073, %v8089
        %v8100 = vunpack.c.l.s4 1934713408
        %v8101 = vunpack.c.0.s8 %v8100
        %v8102 = vlaneseq
        %v8103 = vshrl.u32 %v8102, 7
        %v8104 = vsub.s32 %v8101, %v8103
        %v8105 = vrot.slane %v8097, %v8104
        %v8107 = vunpack.c.l.s4 1934713408
        %v8108 = vunpack.c.0.s8 %v8107
        %v8109 = vlaneseq
        %v8110 = vshrl.u32 %v8109, 7
        %v8111 = vsub.s32 %v8108, %v8110
        %v8112 = vrot.slane %v8098, %v8111
        %v8113 = vcombine.low %v8080, %v8096
        %v8114 = vcombine.high %v8080, %v8096
        %v8116 = vunpack.c.l.s4 1934713408
        %v8117 = vunpack.c.0.s8 %v8116
        %v8118 = vlaneseq
        %v8119 = vshrl.u32 %v8118, 7
        %v8120 = vsub.s32 %v8117, %v8119
        %v8121 = vrot.slane %v8113, %v8120
        %v8123 = vunpack.c.l.s4 1934713408
        %v8124 = vunpack.c.0.s8 %v8123
        %v8125 = vlaneseq
        %v8126 = vshrl.u32 %v8125, 7
        %v8127 = vsub.s32 %v8124, %v8126
        %v8128 = vrot.slane %v8114, %v8127
        %v8129 = vcombine.high %v8105, 0
        %v8130 = vcombine.high %v8112, 0
        %v8131 = vcombine.high %v8121, 0
        %v8132 = vcombine.high %v8128, 0
        %8133 = vxpose.xlu0.c.b16.start [1/8] %v7901, 128
        %8134 = vxpose.xlu0.c.b16.cont [2/8] 0, 128
        %8135 = vxpose.xlu0.c.b16.cont [3/8] 0, 128
        %8136 = vxpose.xlu0.c.b16.cont [4/8] 0, 128
        %8137 = vxpose.xlu0.c.b16.cont [5/8] 0, 128
        %8138 = vxpose.xlu0.c.b16.cont [6/8] 0, 128
        %8139 = vxpose.xlu0.c.b16.cont [7/8] 0, 128
        %8140 = vxpose.xlu0.c.b16.end [8/8] 0, 128
        %v8141 = vpop.trf.xlu0
        %v8142 = vpop.trf.xlu0
        %v8143 = vpop.trf.xlu0
        %v8144 = vpop.trf.xlu0
        %v8145 = vpop.trf.xlu0
        %v8146 = vpop.trf.xlu0
        %v8147 = vpop.trf.xlu0
        %v8148 = vpop.trf.xlu0
        %8149 = vxpose.xlu0.c.b16.start [1/8] %v7969, 128
        %8150 = vxpose.xlu0.c.b16.cont [2/8] 0, 128
        %8151 = vxpose.xlu0.c.b16.cont [3/8] 0, 128
        %8152 = vxpose.xlu0.c.b16.cont [4/8] 0, 128
        %8153 = vxpose.xlu0.c.b16.cont [5/8] 0, 128
        %8154 = vxpose.xlu0.c.b16.cont [6/8] 0, 128
        %8155 = vxpose.xlu0.c.b16.cont [7/8] 0, 128
        %8156 = vxpose.xlu0.c.b16.end [8/8] 0, 128
        %v8157 = vpop.trf.xlu0
        %v8158 = vpop.trf.xlu0
        %v8159 = vpop.trf.xlu0
        %v8160 = vpop.trf.xlu0
        %v8161 = vpop.trf.xlu0
        %v8162 = vpop.trf.xlu0
        %v8163 = vpop.trf.xlu0
        %v8164 = vpop.trf.xlu0
        %8165 = vxpose.xlu0.c.b16.start [1/8] %v7925, 128
        %8166 = vxpose.xlu0.c.b16.cont [2/8] 0, 128
        %8167 = vxpose.xlu0.c.b16.cont [3/8] 0, 128
        %8168 = vxpose.xlu0.c.b16.cont [4/8] 0, 128
        %8169 = vxpose.xlu0.c.b16.cont [5/8] 0, 128
        %8170 = vxpose.xlu0.c.b16.cont [6/8] 0, 128
        %8171 = vxpose.xlu0.c.b16.cont [7/8] 0, 128
        %8172 = vxpose.xlu0.c.b16.end [8/8] 0, 128
        %v8173 = vpop.trf.xlu0
        %v8174 = vpop.trf.xlu0
        %v8175 = vpop.trf.xlu0
        %v8176 = vpop.trf.xlu0
        %v8177 = vpop.trf.xlu0
        %v8178 = vpop.trf.xlu0
        %v8179 = vpop.trf.xlu0
        %v8180 = vpop.trf.xlu0
        %8181 = vxpose.xlu0.c.b16.start [1/8] %v7993, 128
        %8182 = vxpose.xlu0.c.b16.cont [2/8] 0, 128
        %8183 = vxpose.xlu0.c.b16.cont [3/8] 0, 128
        %8184 = vxpose.xlu0.c.b16.cont [4/8] 0, 128
        %8185 = vxpose.xlu0.c.b16.cont [5/8] 0, 128
        %8186 = vxpose.xlu0.c.b16.cont [6/8] 0, 128
        %8187 = vxpose.xlu0.c.b16.cont [7/8] 0, 128
        %8188 = vxpose.xlu0.c.b16.end [8/8] 0, 128
        %v8189 = vpop.trf.xlu0
        %v8190 = vpop.trf.xlu0
        %v8191 = vpop.trf.xlu0
        %v8192 = vpop.trf.xlu0
        %v8193 = vpop.trf.xlu0
        %v8194 = vpop.trf.xlu0
        %v8195 = vpop.trf.xlu0
        %v8196 = vpop.trf.xlu0
        %8197 = vxpose.xlu0.c.b16.start [1/8] %v7908, 128
        %8198 = vxpose.xlu0.c.b16.cont [2/8] 0, 128
        %8199 = vxpose.xlu0.c.b16.cont [3/8] 0, 128
        %8200 = vxpose.xlu0.c.b16.cont [4/8] 0, 128
        %8201 = vxpose.xlu0.c.b16.cont [5/8] 0, 128
        %8202 = vxpose.xlu0.c.b16.cont [6/8] 0, 128
        %8203 = vxpose.xlu0.c.b16.cont [7/8] 0, 128
        %8204 = vxpose.xlu0.c.b16.end [8/8] 0, 128
        %v8205 = vpop.trf.xlu0
        %v8206 = vpop.trf.xlu0
        %v8207 = vpop.trf.xlu0
        %v8208 = vpop.trf.xlu0
        %v8209 = vpop.trf.xlu0
        %v8210 = vpop.trf.xlu0
        %v8211 = vpop.trf.xlu0
        %v8212 = vpop.trf.xlu0
        %8213 = vxpose.xlu0.c.b16.start [1/8] %v7976, 128
        %8214 = vxpose.xlu0.c.b16.cont [2/8] 0, 128
        %8215 = vxpose.xlu0.c.b16.cont [3/8] 0, 128
        %8216 = vxpose.xlu0.c.b16.cont [4/8] 0, 128
        %8217 = vxpose.xlu0.c.b16.cont [5/8] 0, 128
        %8218 = vxpose.xlu0.c.b16.cont [6/8] 0, 128
        %8219 = vxpose.xlu0.c.b16.cont [7/8] 0, 128
        %8220 = vxpose.xlu0.c.b16.end [8/8] 0, 128
        %v8221 = vpop.trf.xlu0
        %v8222 = vpop.trf.xlu0
        %v8223 = vpop.trf.xlu0
        %v8224 = vpop.trf.xlu0
        %v8225 = vpop.trf.xlu0
        %v8226 = vpop.trf.xlu0
        %v8227 = vpop.trf.xlu0
        %v8228 = vpop.trf.xlu0
        %8229 = vxpose.xlu0.c.b16.start [1/8] %v7926, 128
        %8230 = vxpose.xlu0.c.b16.cont [2/8] 0, 128
        %8231 = vxpose.xlu0.c.b16.cont [3/8] 0, 128
        %8232 = vxpose.xlu0.c.b16.cont [4/8] 0, 128
        %8233 = vxpose.xlu0.c.b16.cont [5/8] 0, 128
        %8234 = vxpose.xlu0.c.b16.cont [6/8] 0, 128
        %8235 = vxpose.xlu0.c.b16.cont [7/8] 0, 128
        %8236 = vxpose.xlu0.c.b16.end [8/8] 0, 128
        %v8237 = vpop.trf.xlu0
        %v8238 = vpop.trf.xlu0
        %v8239 = vpop.trf.xlu0
        %v8240 = vpop.trf.xlu0
        %v8241 = vpop.trf.xlu0
        %v8242 = vpop.trf.xlu0
        %v8243 = vpop.trf.xlu0
        %v8244 = vpop.trf.xlu0
        %8245 = vxpose.xlu0.c.b16.start [1/8] %v7994, 128
        %8246 = vxpose.xlu0.c.b16.cont [2/8] 0, 128
        %8247 = vxpose.xlu0.c.b16.cont [3/8] 0, 128
        %8248 = vxpose.xlu0.c.b16.cont [4/8] 0, 128
        %8249 = vxpose.xlu0.c.b16.cont [5/8] 0, 128
        %8250 = vxpose.xlu0.c.b16.cont [6/8] 0, 128
        %8251 = vxpose.xlu0.c.b16.cont [7/8] 0, 128
        %8252 = vxpose.xlu0.c.b16.end [8/8] 0, 128
        %v8253 = vpop.trf.xlu0
        %v8254 = vpop.trf.xlu0
        %v8255 = vpop.trf.xlu0
        %v8256 = vpop.trf.xlu0
        %v8257 = vpop.trf.xlu0
        %v8258 = vpop.trf.xlu0
        %v8259 = vpop.trf.xlu0
        %v8260 = vpop.trf.xlu0
        %8261 = vxpose.xlu0.c.b16.start [1/8] %v7917, 128
        %8262 = vxpose.xlu0.c.b16.cont [2/8] 0, 128
        %8263 = vxpose.xlu0.c.b16.cont [3/8] 0, 128
        %8264 = vxpose.xlu0.c.b16.cont [4/8] 0, 128
        %8265 = vxpose.xlu0.c.b16.cont [5/8] 0, 128
        %8266 = vxpose.xlu0.c.b16.cont [6/8] 0, 128
        %8267 = vxpose.xlu0.c.b16.cont [7/8] 0, 128
        %8268 = vxpose.xlu0.c.b16.end [8/8] 0, 128
        %v8269 = vpop.trf.xlu0
        %v8270 = vpop.trf.xlu0
        %v8271 = vpop.trf.xlu0
        %v8272 = vpop.trf.xlu0
        %v8273 = vpop.trf.xlu0
        %v8274 = vpop.trf.xlu0
        %v8275 = vpop.trf.xlu0
        %v8276 = vpop.trf.xlu0
        %8277 = vxpose.xlu0.c.b16.start [1/8] %v7985, 128
        %8278 = vxpose.xlu0.c.b16.cont [2/8] 0, 128
        %8279 = vxpose.xlu0.c.b16.cont [3/8] 0, 128
        %8280 = vxpose.xlu0.c.b16.cont [4/8] 0, 128
        %8281 = vxpose.xlu0.c.b16.cont [5/8] 0, 128
        %8282 = vxpose.xlu0.c.b16.cont [6/8] 0, 128
        %8283 = vxpose.xlu0.c.b16.cont [7/8] 0, 128
        %8284 = vxpose.xlu0.c.b16.end [8/8] 0, 128
        %v8285 = vpop.trf.xlu0
        %v8286 = vpop.trf.xlu0
        %v8287 = vpop.trf.xlu0
        %v8288 = vpop.trf.xlu0
        %v8289 = vpop.trf.xlu0
        %v8290 = vpop.trf.xlu0
        %v8291 = vpop.trf.xlu0
        %v8292 = vpop.trf.xlu0
        %8293 = vxpose.xlu0.c.b16.start [1/8] %v7927, 128
        %8294 = vxpose.xlu0.c.b16.cont [2/8] 0, 128
        %8295 = vxpose.xlu0.c.b16.cont [3/8] 0, 128
        %8296 = vxpose.xlu0.c.b16.cont [4/8] 0, 128
        %8297 = vxpose.xlu0.c.b16.cont [5/8] 0, 128
        %8298 = vxpose.xlu0.c.b16.cont [6/8] 0, 128
        %8299 = vxpose.xlu0.c.b16.cont [7/8] 0, 128
        %8300 = vxpose.xlu0.c.b16.end [8/8] 0, 128
        %v8301 = vpop.trf.xlu0
        %v8302 = vpop.trf.xlu0
        %v8303 = vpop.trf.xlu0
        %v8304 = vpop.trf.xlu0
        %v8305 = vpop.trf.xlu0
        %v8306 = vpop.trf.xlu0
        %v8307 = vpop.trf.xlu0
        %v8308 = vpop.trf.xlu0
        %8309 = vxpose.xlu0.c.b16.start [1/8] %v7995, 128
        %8310 = vxpose.xlu0.c.b16.cont [2/8] 0, 128
        %8311 = vxpose.xlu0.c.b16.cont [3/8] 0, 128
        %8312 = vxpose.xlu0.c.b16.cont [4/8] 0, 128
        %8313 = vxpose.xlu0.c.b16.cont [5/8] 0, 128
        %8314 = vxpose.xlu0.c.b16.cont [6/8] 0, 128
        %8315 = vxpose.xlu0.c.b16.cont [7/8] 0, 128
        %8316 = vxpose.xlu0.c.b16.end [8/8] 0, 128
        %v8317 = vpop.trf.xlu0
        %v8318 = vpop.trf.xlu0
        %v8319 = vpop.trf.xlu0
        %v8320 = vpop.trf.xlu0
        %v8321 = vpop.trf.xlu0
        %v8322 = vpop.trf.xlu0
        %v8323 = vpop.trf.xlu0
        %v8324 = vpop.trf.xlu0
        %8325 = vxpose.xlu0.c.b16.start [1/8] %v7924, 128
        %8326 = vxpose.xlu0.c.b16.cont [2/8] 0, 128
        %8327 = vxpose.xlu0.c.b16.cont [3/8] 0, 128
        %8328 = vxpose.xlu0.c.b16.cont [4/8] 0, 128
        %8329 = vxpose.xlu0.c.b16.cont [5/8] 0, 128
        %8330 = vxpose.xlu0.c.b16.cont [6/8] 0, 128
        %8331 = vxpose.xlu0.c.b16.cont [7/8] 0, 128
        %8332 = vxpose.xlu0.c.b16.end [8/8] 0, 128
        %v8333 = vpop.trf.xlu0
        %v8334 = vpop.trf.xlu0
        %v8335 = vpop.trf.xlu0
        %v8336 = vpop.trf.xlu0
        %v8337 = vpop.trf.xlu0
        %v8338 = vpop.trf.xlu0
        %v8339 = vpop.trf.xlu0
        %v8340 = vpop.trf.xlu0
        %8341 = vxpose.xlu0.c.b16.start [1/8] %v7992, 128
        %8342 = vxpose.xlu0.c.b16.cont [2/8] 0, 128
        %8343 = vxpose.xlu0.c.b16.cont [3/8] 0, 128
        %8344 = vxpose.xlu0.c.b16.cont [4/8] 0, 128
        %8345 = vxpose.xlu0.c.b16.cont [5/8] 0, 128
        %8346 = vxpose.xlu0.c.b16.cont [6/8] 0, 128
        %8347 = vxpose.xlu0.c.b16.cont [7/8] 0, 128
        %8348 = vxpose.xlu0.c.b16.end [8/8] 0, 128
        %v8349 = vpop.trf.xlu0
        %v8350 = vpop.trf.xlu0
        %v8351 = vpop.trf.xlu0
        %v8352 = vpop.trf.xlu0
        %v8353 = vpop.trf.xlu0
        %v8354 = vpop.trf.xlu0
        %v8355 = vpop.trf.xlu0
        %v8356 = vpop.trf.xlu0
        %8357 = vxpose.xlu0.c.b16.start [1/8] %v7928, 128
        %8358 = vxpose.xlu0.c.b16.cont [2/8] 0, 128
        %8359 = vxpose.xlu0.c.b16.cont [3/8] 0, 128
        %8360 = vxpose.xlu0.c.b16.cont [4/8] 0, 128
        %8361 = vxpose.xlu0.c.b16.cont [5/8] 0, 128
        %8362 = vxpose.xlu0.c.b16.cont [6/8] 0, 128
        %8363 = vxpose.xlu0.c.b16.cont [7/8] 0, 128
        %8364 = vxpose.xlu0.c.b16.end [8/8] 0, 128
        %v8365 = vpop.trf.xlu0
        %v8366 = vpop.trf.xlu0
        %v8367 = vpop.trf.xlu0
        %v8368 = vpop.trf.xlu0
        %v8369 = vpop.trf.xlu0
        %v8370 = vpop.trf.xlu0
        %v8371 = vpop.trf.xlu0
        %v8372 = vpop.trf.xlu0
        %8373 = vxpose.xlu0.c.b16.start [1/8] %v7996, 128
        %8374 = vxpose.xlu0.c.b16.cont [2/8] 0, 128
        %8375 = vxpose.xlu0.c.b16.cont [3/8] 0, 128
        %8376 = vxpose.xlu0.c.b16.cont [4/8] 0, 128
        %8377 = vxpose.xlu0.c.b16.cont [5/8] 0, 128
        %8378 = vxpose.xlu0.c.b16.cont [6/8] 0, 128
        %8379 = vxpose.xlu0.c.b16.cont [7/8] 0, 128
        %8380 = vxpose.xlu0.c.b16.end [8/8] 0, 128
        %v8381 = vpop.trf.xlu0
        %v8382 = vpop.trf.xlu0
        %v8383 = vpop.trf.xlu0
        %v8384 = vpop.trf.xlu0
        %v8385 = vpop.trf.xlu0
        %v8386 = vpop.trf.xlu0
        %v8387 = vpop.trf.xlu0
        %v8388 = vpop.trf.xlu0
        %8389 = vxpose.xlu0.c.b16.start [1/8] %v8037, 128
        %8390 = vxpose.xlu0.c.b16.cont [2/8] 0, 128
        %8391 = vxpose.xlu0.c.b16.cont [3/8] 0, 128
        %8392 = vxpose.xlu0.c.b16.cont [4/8] 0, 128
        %8393 = vxpose.xlu0.c.b16.cont [5/8] 0, 128
        %8394 = vxpose.xlu0.c.b16.cont [6/8] 0, 128
        %8395 = vxpose.xlu0.c.b16.cont [7/8] 0, 128
        %8396 = vxpose.xlu0.c.b16.end [8/8] 0, 128
        %v8397 = vpop.trf.xlu0
        %v8398 = vpop.trf.xlu0
        %v8399 = vpop.trf.xlu0
        %v8400 = vpop.trf.xlu0
        %v8401 = vpop.trf.xlu0
        %v8402 = vpop.trf.xlu0
        %v8403 = vpop.trf.xlu0
        %v8404 = vpop.trf.xlu0
        %8405 = vxpose.xlu0.c.b16.start [1/8] %v8105, 128
        %8406 = vxpose.xlu0.c.b16.cont [2/8] 0, 128
        %8407 = vxpose.xlu0.c.b16.cont [3/8] 0, 128
        %8408 = vxpose.xlu0.c.b16.cont [4/8] 0, 128
        %8409 = vxpose.xlu0.c.b16.cont [5/8] 0, 128
        %8410 = vxpose.xlu0.c.b16.cont [6/8] 0, 128
        %8411 = vxpose.xlu0.c.b16.cont [7/8] 0, 128
        %8412 = vxpose.xlu0.c.b16.end [8/8] 0, 128
        %v8413 = vpop.trf.xlu0
        %v8414 = vpop.trf.xlu0
        %v8415 = vpop.trf.xlu0
        %v8416 = vpop.trf.xlu0
        %v8417 = vpop.trf.xlu0
        %v8418 = vpop.trf.xlu0
        %v8419 = vpop.trf.xlu0
        %v8420 = vpop.trf.xlu0
        %8421 = vxpose.xlu0.c.b16.start [1/8] %v8061, 128
        %8422 = vxpose.xlu0.c.b16.cont [2/8] 0, 128
        %8423 = vxpose.xlu0.c.b16.cont [3/8] 0, 128
        %8424 = vxpose.xlu0.c.b16.cont [4/8] 0, 128
        %8425 = vxpose.xlu0.c.b16.cont [5/8] 0, 128
        %8426 = vxpose.xlu0.c.b16.cont [6/8] 0, 128
        %8427 = vxpose.xlu0.c.b16.cont [7/8] 0, 128
        %8428 = vxpose.xlu0.c.b16.end [8/8] 0, 128
        %v8429 = vpop.trf.xlu0
        %v8430 = vpop.trf.xlu0
        %v8431 = vpop.trf.xlu0
        %v8432 = vpop.trf.xlu0
        %v8433 = vpop.trf.xlu0
        %v8434 = vpop.trf.xlu0
        %v8435 = vpop.trf.xlu0
        %v8436 = vpop.trf.xlu0
        %8437 = vxpose.xlu0.c.b16.start [1/8] %v8129, 128
        %8438 = vxpose.xlu0.c.b16.cont [2/8] 0, 128
        %8439 = vxpose.xlu0.c.b16.cont [3/8] 0, 128
        %8440 = vxpose.xlu0.c.b16.cont [4/8] 0, 128
        %8441 = vxpose.xlu0.c.b16.cont [5/8] 0, 128
        %8442 = vxpose.xlu0.c.b16.cont [6/8] 0, 128
        %8443 = vxpose.xlu0.c.b16.cont [7/8] 0, 128
        %8444 = vxpose.xlu0.c.b16.end [8/8] 0, 128
        %v8445 = vpop.trf.xlu0
        %v8446 = vpop.trf.xlu0
        %v8447 = vpop.trf.xlu0
        %v8448 = vpop.trf.xlu0
        %v8449 = vpop.trf.xlu0
        %v8450 = vpop.trf.xlu0
        %v8451 = vpop.trf.xlu0
        %v8452 = vpop.trf.xlu0
        %8453 = vxpose.xlu0.c.b16.start [1/8] %v8044, 128
        %8454 = vxpose.xlu0.c.b16.cont [2/8] 0, 128
        %8455 = vxpose.xlu0.c.b16.cont [3/8] 0, 128
        %8456 = vxpose.xlu0.c.b16.cont [4/8] 0, 128
        %8457 = vxpose.xlu0.c.b16.cont [5/8] 0, 128
        %8458 = vxpose.xlu0.c.b16.cont [6/8] 0, 128
        %8459 = vxpose.xlu0.c.b16.cont [7/8] 0, 128
        %8460 = vxpose.xlu0.c.b16.end [8/8] 0, 128
        %v8461 = vpop.trf.xlu0
        %v8462 = vpop.trf.xlu0
        %v8463 = vpop.trf.xlu0
        %v8464 = vpop.trf.xlu0
        %v8465 = vpop.trf.xlu0
        %v8466 = vpop.trf.xlu0
        %v8467 = vpop.trf.xlu0
        %v8468 = vpop.trf.xlu0
        %8469 = vxpose.xlu0.c.b16.start [1/8] %v8112, 128
        %8470 = vxpose.xlu0.c.b16.cont [2/8] 0, 128
        %8471 = vxpose.xlu0.c.b16.cont [3/8] 0, 128
        %8472 = vxpose.xlu0.c.b16.cont [4/8] 0, 128
        %8473 = vxpose.xlu0.c.b16.cont [5/8] 0, 128
        %8474 = vxpose.xlu0.c.b16.cont [6/8] 0, 128
        %8475 = vxpose.xlu0.c.b16.cont [7/8] 0, 128
        %8476 = vxpose.xlu0.c.b16.end [8/8] 0, 128
        %v8477 = vpop.trf.xlu0
        %v8478 = vpop.trf.xlu0
        %v8479 = vpop.trf.xlu0
        %v8480 = vpop.trf.xlu0
        %v8481 = vpop.trf.xlu0
        %v8482 = vpop.trf.xlu0
        %v8483 = vpop.trf.xlu0
        %v8484 = vpop.trf.xlu0
        %8485 = vxpose.xlu0.c.b16.start [1/8] %v8062, 128
        %8486 = vxpose.xlu0.c.b16.cont [2/8] 0, 128
        %8487 = vxpose.xlu0.c.b16.cont [3/8] 0, 128
        %8488 = vxpose.xlu0.c.b16.cont [4/8] 0, 128
        %8489 = vxpose.xlu0.c.b16.cont [5/8] 0, 128
        %8490 = vxpose.xlu0.c.b16.cont [6/8] 0, 128
        %8491 = vxpose.xlu0.c.b16.cont [7/8] 0, 128
        %8492 = vxpose.xlu0.c.b16.end [8/8] 0, 128
        %v8493 = vpop.trf.xlu0
        %v8494 = vpop.trf.xlu0
        %v8495 = vpop.trf.xlu0
        %v8496 = vpop.trf.xlu0
        %v8497 = vpop.trf.xlu0
        %v8498 = vpop.trf.xlu0
        %v8499 = vpop.trf.xlu0
        %v8500 = vpop.trf.xlu0
        %8501 = vxpose.xlu0.c.b16.start [1/8] %v8130, 128
        %8502 = vxpose.xlu0.c.b16.cont [2/8] 0, 128
        %8503 = vxpose.xlu0.c.b16.cont [3/8] 0, 128
        %8504 = vxpose.xlu0.c.b16.cont [4/8] 0, 128
        %8505 = vxpose.xlu0.c.b16.cont [5/8] 0, 128
        %8506 = vxpose.xlu0.c.b16.cont [6/8] 0, 128
        %8507 = vxpose.xlu0.c.b16.cont [7/8] 0, 128
        %8508 = vxpose.xlu0.c.b16.end [8/8] 0, 128
        %v8509 = vpop.trf.xlu0
        %v8510 = vpop.trf.xlu0
        %v8511 = vpop.trf.xlu0
        %v8512 = vpop.trf.xlu0
        %v8513 = vpop.trf.xlu0
        %v8514 = vpop.trf.xlu0
        %v8515 = vpop.trf.xlu0
        %v8516 = vpop.trf.xlu0
        %8517 = vxpose.xlu0.c.b16.start [1/8] %v8053, 128
        %8518 = vxpose.xlu0.c.b16.cont [2/8] 0, 128
        %8519 = vxpose.xlu0.c.b16.cont [3/8] 0, 128
        %8520 = vxpose.xlu0.c.b16.cont [4/8] 0, 128
        %8521 = vxpose.xlu0.c.b16.cont [5/8] 0, 128
        %8522 = vxpose.xlu0.c.b16.cont [6/8] 0, 128
        %8523 = vxpose.xlu0.c.b16.cont [7/8] 0, 128
        %8524 = vxpose.xlu0.c.b16.end [8/8] 0, 128
        %v8525 = vpop.trf.xlu0
        %v8526 = vpop.trf.xlu0
        %v8527 = vpop.trf.xlu0
        %v8528 = vpop.trf.xlu0
        %v8529 = vpop.trf.xlu0
        %v8530 = vpop.trf.xlu0
        %v8531 = vpop.trf.xlu0
        %v8532 = vpop.trf.xlu0
        %8533 = vxpose.xlu0.c.b16.start [1/8] %v8121, 128
        %8534 = vxpose.xlu0.c.b16.cont [2/8] 0, 128
        %8535 = vxpose.xlu0.c.b16.cont [3/8] 0, 128
        %8536 = vxpose.xlu0.c.b16.cont [4/8] 0, 128
        %8537 = vxpose.xlu0.c.b16.cont [5/8] 0, 128
        %8538 = vxpose.xlu0.c.b16.cont [6/8] 0, 128
        %8539 = vxpose.xlu0.c.b16.cont [7/8] 0, 128
        %8540 = vxpose.xlu0.c.b16.end [8/8] 0, 128
        %v8541 = vpop.trf.xlu0
        %v8542 = vpop.trf.xlu0
        %v8543 = vpop.trf.xlu0
        %v8544 = vpop.trf.xlu0
        %v8545 = vpop.trf.xlu0
        %v8546 = vpop.trf.xlu0
        %v8547 = vpop.trf.xlu0
        %v8548 = vpop.trf.xlu0
        %8549 = vxpose.xlu0.c.b16.start [1/8] %v8063, 128
        %8550 = vxpose.xlu0.c.b16.cont [2/8] 0, 128
        %8551 = vxpose.xlu0.c.b16.cont [3/8] 0, 128
        %8552 = vxpose.xlu0.c.b16.cont [4/8] 0, 128
        %8553 = vxpose.xlu0.c.b16.cont [5/8] 0, 128
        %8554 = vxpose.xlu0.c.b16.cont [6/8] 0, 128
        %8555 = vxpose.xlu0.c.b16.cont [7/8] 0, 128
        %8556 = vxpose.xlu0.c.b16.end [8/8] 0, 128
        %v8557 = vpop.trf.xlu0
        %v8558 = vpop.trf.xlu0
        %v8559 = vpop.trf.xlu0
        %v8560 = vpop.trf.xlu0
        %v8561 = vpop.trf.xlu0
        %v8562 = vpop.trf.xlu0
        %v8563 = vpop.trf.xlu0
        %v8564 = vpop.trf.xlu0
        %8565 = vxpose.xlu0.c.b16.start [1/8] %v8131, 128
        %8566 = vxpose.xlu0.c.b16.cont [2/8] 0, 128
        %8567 = vxpose.xlu0.c.b16.cont [3/8] 0, 128
        %8568 = vxpose.xlu0.c.b16.cont [4/8] 0, 128
        %8569 = vxpose.xlu0.c.b16.cont [5/8] 0, 128
        %8570 = vxpose.xlu0.c.b16.cont [6/8] 0, 128
        %8571 = vxpose.xlu0.c.b16.cont [7/8] 0, 128
        %8572 = vxpose.xlu0.c.b16.end [8/8] 0, 128
        %v8573 = vpop.trf.xlu0
        %v8574 = vpop.trf.xlu0
        %v8575 = vpop.trf.xlu0
        %v8576 = vpop.trf.xlu0
        %v8577 = vpop.trf.xlu0
        %v8578 = vpop.trf.xlu0
        %v8579 = vpop.trf.xlu0
        %v8580 = vpop.trf.xlu0
        %8581 = vxpose.xlu0.c.b16.start [1/8] %v8060, 128
        %8582 = vxpose.xlu0.c.b16.cont [2/8] 0, 128
        %8583 = vxpose.xlu0.c.b16.cont [3/8] 0, 128
        %8584 = vxpose.xlu0.c.b16.cont [4/8] 0, 128
        %8585 = vxpose.xlu0.c.b16.cont [5/8] 0, 128
        %8586 = vxpose.xlu0.c.b16.cont [6/8] 0, 128
        %8587 = vxpose.xlu0.c.b16.cont [7/8] 0, 128
        %8588 = vxpose.xlu0.c.b16.end [8/8] 0, 128
        %v8589 = vpop.trf.xlu0
        %v8590 = vpop.trf.xlu0
        %v8591 = vpop.trf.xlu0
        %v8592 = vpop.trf.xlu0
        %v8593 = vpop.trf.xlu0
        %v8594 = vpop.trf.xlu0
        %v8595 = vpop.trf.xlu0
        %v8596 = vpop.trf.xlu0
        %8597 = vxpose.xlu0.c.b16.start [1/8] %v8128, 128
        %8598 = vxpose.xlu0.c.b16.cont [2/8] 0, 128
        %8599 = vxpose.xlu0.c.b16.cont [3/8] 0, 128
        %8600 = vxpose.xlu0.c.b16.cont [4/8] 0, 128
        %8601 = vxpose.xlu0.c.b16.cont [5/8] 0, 128
        %8602 = vxpose.xlu0.c.b16.cont [6/8] 0, 128
        %8603 = vxpose.xlu0.c.b16.cont [7/8] 0, 128
        %8604 = vxpose.xlu0.c.b16.end [8/8] 0, 128
        %v8605 = vpop.trf.xlu0
        %v8606 = vpop.trf.xlu0
        %v8607 = vpop.trf.xlu0
        %v8608 = vpop.trf.xlu0
        %v8609 = vpop.trf.xlu0
        %v8610 = vpop.trf.xlu0
        %v8611 = vpop.trf.xlu0
        %v8612 = vpop.trf.xlu0
        %8613 = vxpose.xlu0.c.b16.start [1/8] %v8064, 128
        %8614 = vxpose.xlu0.c.b16.cont [2/8] 0, 128
        %8615 = vxpose.xlu0.c.b16.cont [3/8] 0, 128
        %8616 = vxpose.xlu0.c.b16.cont [4/8] 0, 128
        %8617 = vxpose.xlu0.c.b16.cont [5/8] 0, 128
        %8618 = vxpose.xlu0.c.b16.cont [6/8] 0, 128
        %8619 = vxpose.xlu0.c.b16.cont [7/8] 0, 128
        %8620 = vxpose.xlu0.c.b16.end [8/8] 0, 128
        %v8621 = vpop.trf.xlu0
        %v8622 = vpop.trf.xlu0
        %v8623 = vpop.trf.xlu0
        %v8624 = vpop.trf.xlu0
        %v8625 = vpop.trf.xlu0
        %v8626 = vpop.trf.xlu0
        %v8627 = vpop.trf.xlu0
        %v8628 = vpop.trf.xlu0
        %8629 = vxpose.xlu0.c.b16.start [1/8] %v8132, 128
        %8630 = vxpose.xlu0.c.b16.cont [2/8] 0, 128
        %8631 = vxpose.xlu0.c.b16.cont [3/8] 0, 128
        %8632 = vxpose.xlu0.c.b16.cont [4/8] 0, 128
        %8633 = vxpose.xlu0.c.b16.cont [5/8] 0, 128
        %8634 = vxpose.xlu0.c.b16.cont [6/8] 0, 128
        %8635 = vxpose.xlu0.c.b16.cont [7/8] 0, 128
        %8636 = vxpose.xlu0.c.b16.end [8/8] 0, 128
        %v8637 = vpop.trf.xlu0
        %v8638 = vpop.trf.xlu0
        %v8639 = vpop.trf.xlu0
        %v8640 = vpop.trf.xlu0
        %v8641 = vpop.trf.xlu0
        %v8642 = vpop.trf.xlu0
        %v8643 = vpop.trf.xlu0
        %v8644 = vpop.trf.xlu0
        %v8645 = vcombine.low %v8141, %v8205
        %v8647 = vunpack.c.l.s4 1983009808
        %v8648 = vunpack.c.0.s8 %v8647
        %v8649 = vlaneseq
        %v8650 = vshrl.u32 %v8649, 7
        %v8651 = vsub.s32 %v8648, %v8650
        %v8652 = vrot.slane %v8645, %v8651
        %v8653 = vcombine.low %v8173, %v8237
        %v8655 = vunpack.c.l.s4 1983009808
        %v8656 = vunpack.c.0.s8 %v8655
        %v8657 = vlaneseq
        %v8658 = vshrl.u32 %v8657, 7
        %v8659 = vsub.s32 %v8656, %v8658
        %v8660 = vrot.slane %v8653, %v8659
        %v8661 = vcombine.low %v8269, %v8333
        %v8663 = vunpack.c.l.s4 1983009808
        %v8664 = vunpack.c.0.s8 %v8663
        %v8665 = vlaneseq
        %v8666 = vshrl.u32 %v8665, 7
        %v8667 = vsub.s32 %v8664, %v8666
        %v8668 = vrot.slane %v8661, %v8667
        %v8669 = vcombine.low %v8301, %v8365
        %v8671 = vunpack.c.l.s4 1983009808
        %v8672 = vunpack.c.0.s8 %v8671
        %v8673 = vlaneseq
        %v8674 = vshrl.u32 %v8673, 7
        %v8675 = vsub.s32 %v8672, %v8674
        %v8676 = vrot.slane %v8669, %v8675
        %v8677 = vcombine.low %v8652, %v8660
        %v8679 = vunpack.c.l.s4 1934713408
        %v8680 = vunpack.c.0.s8 %v8679
        %v8681 = vlaneseq
        %v8682 = vshrl.u32 %v8681, 7
        %v8683 = vsub.s32 %v8680, %v8682
        %v8684 = vrot.slane %v8677, %v8683
        %v8685 = vcombine.low %v8668, %v8676
        %v8687 = vunpack.c.l.s4 1934713408
        %v8688 = vunpack.c.0.s8 %v8687
        %v8689 = vlaneseq
        %v8690 = vshrl.u32 %v8689, 7
        %v8691 = vsub.s32 %v8688, %v8690
        %v8692 = vrot.slane %v8685, %v8691
        %v8693 = vcombine.low %v8684, %v8692
        %v8694 = vcombine.high %v8684, %v8692
        %v8695 = vcombine.low %v8157, %v8221
        %v8697 = vunpack.c.l.s4 1983009808
        %v8698 = vunpack.c.0.s8 %v8697
        %v8699 = vlaneseq
        %v8700 = vshrl.u32 %v8699, 7
        %v8701 = vsub.s32 %v8698, %v8700
        %v8702 = vrot.slane %v8695, %v8701
        %v8703 = vcombine.low %v8189, %v8253
        %v8705 = vunpack.c.l.s4 1983009808
        %v8706 = vunpack.c.0.s8 %v8705
        %v8707 = vlaneseq
        %v8708 = vshrl.u32 %v8707, 7
        %v8709 = vsub.s32 %v8706, %v8708
        %v8710 = vrot.slane %v8703, %v8709
        %v8711 = vcombine.low %v8285, %v8349
        %v8713 = vunpack.c.l.s4 1983009808
        %v8714 = vunpack.c.0.s8 %v8713
        %v8715 = vlaneseq
        %v8716 = vshrl.u32 %v8715, 7
        %v8717 = vsub.s32 %v8714, %v8716
        %v8718 = vrot.slane %v8711, %v8717
        %v8719 = vcombine.low %v8317, %v8381
        %v8721 = vunpack.c.l.s4 1983009808
        %v8722 = vunpack.c.0.s8 %v8721
        %v8723 = vlaneseq
        %v8724 = vshrl.u32 %v8723, 7
        %v8725 = vsub.s32 %v8722, %v8724
        %v8726 = vrot.slane %v8719, %v8725
        %v8727 = vcombine.low %v8702, %v8710
        %v8729 = vunpack.c.l.s4 1934713408
        %v8730 = vunpack.c.0.s8 %v8729
        %v8731 = vlaneseq
        %v8732 = vshrl.u32 %v8731, 7
        %v8733 = vsub.s32 %v8730, %v8732
        %v8734 = vrot.slane %v8727, %v8733
        %v8735 = vcombine.low %v8718, %v8726
        %v8737 = vunpack.c.l.s4 1934713408
        %v8738 = vunpack.c.0.s8 %v8737
        %v8739 = vlaneseq
        %v8740 = vshrl.u32 %v8739, 7
        %v8741 = vsub.s32 %v8738, %v8740
        %v8742 = vrot.slane %v8735, %v8741
        %v8743 = vcombine.low %v8734, %v8742
        %v8744 = vcombine.high %v8734, %v8742
        %v8745 = vcombine.low %v8397, %v8461
        %v8747 = vunpack.c.l.s4 1983009808
        %v8748 = vunpack.c.0.s8 %v8747
        %v8749 = vlaneseq
        %v8750 = vshrl.u32 %v8749, 7
        %v8751 = vsub.s32 %v8748, %v8750
        %v8752 = vrot.slane %v8745, %v8751
        %v8753 = vcombine.low %v8429, %v8493
        %v8755 = vunpack.c.l.s4 1983009808
        %v8756 = vunpack.c.0.s8 %v8755
        %v8757 = vlaneseq
        %v8758 = vshrl.u32 %v8757, 7
        %v8759 = vsub.s32 %v8756, %v8758
        %v8760 = vrot.slane %v8753, %v8759
        %v8761 = vcombine.low %v8525, %v8589
        %v8763 = vunpack.c.l.s4 1983009808
        %v8764 = vunpack.c.0.s8 %v8763
        %v8765 = vlaneseq
        %v8766 = vshrl.u32 %v8765, 7
        %v8767 = vsub.s32 %v8764, %v8766
        %v8768 = vrot.slane %v8761, %v8767
        %v8769 = vcombine.low %v8557, %v8621
        %v8771 = vunpack.c.l.s4 1983009808
        %v8772 = vunpack.c.0.s8 %v8771
        %v8773 = vlaneseq
        %v8774 = vshrl.u32 %v8773, 7
        %v8775 = vsub.s32 %v8772, %v8774
        %v8776 = vrot.slane %v8769, %v8775
        %v8777 = vcombine.low %v8752, %v8760
        %v8779 = vunpack.c.l.s4 1934713408
        %v8780 = vunpack.c.0.s8 %v8779
        %v8781 = vlaneseq
        %v8782 = vshrl.u32 %v8781, 7
        %v8783 = vsub.s32 %v8780, %v8782
        %v8784 = vrot.slane %v8777, %v8783
        %v8785 = vcombine.low %v8768, %v8776
        %v8787 = vunpack.c.l.s4 1934713408
        %v8788 = vunpack.c.0.s8 %v8787
        %v8789 = vlaneseq
        %v8790 = vshrl.u32 %v8789, 7
        %v8791 = vsub.s32 %v8788, %v8790
        %v8792 = vrot.slane %v8785, %v8791
        %v8793 = vcombine.low %v8784, %v8792
        %v8794 = vcombine.high %v8784, %v8792
        %v8795 = vcombine.low %v8413, %v8477
        %v8797 = vunpack.c.l.s4 1983009808
        %v8798 = vunpack.c.0.s8 %v8797
        %v8799 = vlaneseq
        %v8800 = vshrl.u32 %v8799, 7
        %v8801 = vsub.s32 %v8798, %v8800
        %v8802 = vrot.slane %v8795, %v8801
        %v8803 = vcombine.low %v8445, %v8509
        %v8805 = vunpack.c.l.s4 1983009808
        %v8806 = vunpack.c.0.s8 %v8805
        %v8807 = vlaneseq
        %v8808 = vshrl.u32 %v8807, 7
        %v8809 = vsub.s32 %v8806, %v8808
        %v8810 = vrot.slane %v8803, %v8809
        %v8811 = vcombine.low %v8541, %v8605
        %v8813 = vunpack.c.l.s4 1983009808
        %v8814 = vunpack.c.0.s8 %v8813
        %v8815 = vlaneseq
        %v8816 = vshrl.u32 %v8815, 7
        %v8817 = vsub.s32 %v8814, %v8816
        %v8818 = vrot.slane %v8811, %v8817
        %v8819 = vcombine.low %v8573, %v8637
        %v8821 = vunpack.c.l.s4 1983009808
        %v8822 = vunpack.c.0.s8 %v8821
        %v8823 = vlaneseq
        %v8824 = vshrl.u32 %v8823, 7
        %v8825 = vsub.s32 %v8822, %v8824
        %v8826 = vrot.slane %v8819, %v8825
        %v8827 = vcombine.low %v8802, %v8810
        %v8829 = vunpack.c.l.s4 1934713408
        %v8830 = vunpack.c.0.s8 %v8829
        %v8831 = vlaneseq
        %v8832 = vshrl.u32 %v8831, 7
        %v8833 = vsub.s32 %v8830, %v8832
        %v8834 = vrot.slane %v8827, %v8833
        %v8835 = vcombine.low %v8818, %v8826
        %v8837 = vunpack.c.l.s4 1934713408
        %v8838 = vunpack.c.0.s8 %v8837
        %v8839 = vlaneseq
        %v8840 = vshrl.u32 %v8839, 7
        %v8841 = vsub.s32 %v8838, %v8840
        %v8842 = vrot.slane %v8835, %v8841
        %v8843 = vcombine.low %v8834, %v8842
        %v8844 = vcombine.high %v8834, %v8842
        %v8847 = vpack.i.b16 %v8743, %v8693
        %v8848 = vshrl.u32 %v8693, 16
        %v8849 = vshrl.u32 %v8743, 16
        %v8850 = vpack.i.b16 %v8849, %v8848
        %v8853 = vpack.i.b16 %v8744, %v8694
        %v8854 = vshrl.u32 %v8694, 16
        %v8855 = vshrl.u32 %v8744, 16
        %v8856 = vpack.i.b16 %v8855, %v8854
        %v8859 = vpack.i.b16 %v8843, %v8793
        %v8860 = vshrl.u32 %v8793, 16
        %v8861 = vshrl.u32 %v8843, 16
        %v8862 = vpack.i.b16 %v8861, %v8860
        %v8865 = vpack.i.b16 %v8844, %v8794
        %v8866 = vshrl.u32 %v8794, 16
        %v8867 = vshrl.u32 %v8844, 16
        %v8868 = vpack.i.b16 %v8867, %v8866
        %v8870 = vsel %vm3370, %v8847, 0
        %v8873 = vsel %vm3370, %v8859, 0
        %v8876 = vsel %vm3370, %v7665, 0
        %8878 = vmatprep.subr.bf16.mxu0 0
        %8879 = vmatpush1.bf16.xpose.msra.mxu0 0
        %8880 = vmatprep.subr.bf16.mxu0 0
        %8881 = vmatpush1.bf16.xpose.msra.mxu0 0
        %8882 = vmatprep.subr.bf16.mxu0 0
        %8883 = vmatpush1.bf16.xpose.msra.mxu0 0
        %8884 = vmatprep.subr.bf16.mxu0 0
        %8885 = vmatpush1.bf16.xpose.msra.mxu0 0
        %8886 = vmatprep.subr.bf16.mxu0 0
        %8887 = vmatpush1.bf16.xpose.msra.mxu0 0
        %8888 = vmatprep.subr.bf16.mxu0 0
        %8889 = vmatpush1.bf16.xpose.msra.mxu0 0
        %8890 = vmatprep.subr.bf16.mxu0 0
        %8891 = vmatpush1.bf16.xpose.msra.mxu0 0
        %8892 = vmatprep.subr.bf16.mxu0 0
        %8893 = vmatpush1.bf16.xpose.msra.mxu0 %v8876
        %8894 = vmatprep.subr.bf16.mxu0 0
        %8895 = vmatpush2.bf16.xpose.msra.mxu0 0
        %8896 = vmatprep.subr.bf16.mxu0 0
        %8897 = vmatpush2.bf16.xpose.msra.mxu0 0
        %8898 = vmatprep.subr.bf16.mxu0 0
        %8899 = vmatpush2.bf16.xpose.msra.mxu0 0
        %8900 = vmatprep.subr.bf16.mxu0 0
        %8901 = vmatpush2.bf16.xpose.msra.mxu0 0
        %8902 = vmatprep.subr.bf16.mxu0 0
        %8903 = vmatpush2.bf16.xpose.msra.mxu0 0
        %8904 = vmatprep.subr.bf16.mxu0 0
        %8905 = vmatpush2.bf16.xpose.msra.mxu0 0
        %8906 = vmatprep.subr.bf16.mxu0 0
        %8907 = vmatpush2.bf16.xpose.msra.mxu0 0
        %8908 = vmatprep.subr.bf16.mxu0 0
        %8909 = vmatpush2.bf16.xpose.msra.mxu0 0
        %8910 = vmatprep.mubr.bf16.mxu0 0
        %8911 = vmatmul.mubr.bf16.gmra.mxu0 %v8870
        %v8912 = vpop.f32.mrf.mxu0
        %v8913 = vadd.f32 0.0, %v8912
        %v8914 = vpop.f32.mrf.mxu0
        %v8915 = vpop.f32.mrf.mxu0
        %v8916 = vadd.f32 0.0, %v8915
        %v8917 = vpop.f32.mrf.mxu0
        %8918 = vmatprep.mubr.bf16.mxu0 0
        %8919 = vmatmul.mubr.bf16.gmra.mxu0 %v8873
        %v8920 = vpop.f32.mrf.mxu0
        %v8921 = vadd.f32 0.0, %v8920
        %v8922 = vpop.f32.mrf.mxu0
        %v8923 = vpop.f32.mrf.mxu0
        %v8924 = vadd.f32 0.0, %v8923
        %v8925 = vpop.f32.mrf.mxu0
        %8926 = vdwg.mxu0
        %v8928 = vsel %vm3370, %v8850, 0
        %v8931 = vsel %vm3370, %v8862, 0
        %v8934 = vsel %vm3370, %v7666, 0
        %8936 = vmatprep.subr.bf16.mxu0 0
        %8937 = vmatpush1.bf16.xpose.msra.mxu0 0
        %8938 = vmatprep.subr.bf16.mxu0 0
        %8939 = vmatpush1.bf16.xpose.msra.mxu0 0
        %8940 = vmatprep.subr.bf16.mxu0 0
        %8941 = vmatpush1.bf16.xpose.msra.mxu0 0
        %8942 = vmatprep.subr.bf16.mxu0 0
        %8943 = vmatpush1.bf16.xpose.msra.mxu0 0
        %8944 = vmatprep.subr.bf16.mxu0 0
        %8945 = vmatpush1.bf16.xpose.msra.mxu0 0
        %8946 = vmatprep.subr.bf16.mxu0 0
        %8947 = vmatpush1.bf16.xpose.msra.mxu0 0
        %8948 = vmatprep.subr.bf16.mxu0 0
        %8949 = vmatpush1.bf16.xpose.msra.mxu0 0
        %8950 = vmatprep.subr.bf16.mxu0 0
        %8951 = vmatpush1.bf16.xpose.msra.mxu0 %v8934
        %8952 = vmatprep.subr.bf16.mxu0 0
        %8953 = vmatpush2.bf16.xpose.msra.mxu0 0
        %8954 = vmatprep.subr.bf16.mxu0 0
        %8955 = vmatpush2.bf16.xpose.msra.mxu0 0
        %8956 = vmatprep.subr.bf16.mxu0 0
        %8957 = vmatpush2.bf16.xpose.msra.mxu0 0
        %8958 = vmatprep.subr.bf16.mxu0 0
        %8959 = vmatpush2.bf16.xpose.msra.mxu0 0
        %8960 = vmatprep.subr.bf16.mxu0 0
        %8961 = vmatpush2.bf16.xpose.msra.mxu0 0
        %8962 = vmatprep.subr.bf16.mxu0 0
        %8963 = vmatpush2.bf16.xpose.msra.mxu0 0
        %8964 = vmatprep.subr.bf16.mxu0 0
        %8965 = vmatpush2.bf16.xpose.msra.mxu0 0
        %8966 = vmatprep.subr.bf16.mxu0 0
        %8967 = vmatpush2.bf16.xpose.msra.mxu0 0
        %8968 = vmatprep.mubr.bf16.mxu0 0
        %8969 = vmatmul.mubr.bf16.gmra.mxu0 %v8928
        %v8970 = vpop.f32.mrf.mxu0
        %v8971 = vadd.f32 0.0, %v8970
        %v8972 = vpop.f32.mrf.mxu0
        %v8973 = vpop.f32.mrf.mxu0
        %v8974 = vadd.f32 0.0, %v8973
        %v8975 = vpop.f32.mrf.mxu0
        %8976 = vmatprep.mubr.bf16.mxu0 0
        %8977 = vmatmul.mubr.bf16.gmra.mxu0 %v8931
        %v8978 = vpop.f32.mrf.mxu0
        %v8979 = vadd.f32 0.0, %v8978
        %v8980 = vpop.f32.mrf.mxu0
        %v8981 = vpop.f32.mrf.mxu0
        %v8982 = vadd.f32 0.0, %v8981
        %v8983 = vpop.f32.mrf.mxu0
        %8984 = vdwg.mxu0
        %v8986 = vsel %vm3370, %v8853, 0
        %v8989 = vsel %vm3370, %v8865, 0
        %v8992 = vsel %vm3370, %v7667, 0
        %8994 = vmatprep.subr.bf16.mxu0 0
        %8995 = vmatpush1.bf16.xpose.msra.mxu0 0
        %8996 = vmatprep.subr.bf16.mxu0 0
        %8997 = vmatpush1.bf16.xpose.msra.mxu0 0
        %8998 = vmatprep.subr.bf16.mxu0 0
        %8999 = vmatpush1.bf16.xpose.msra.mxu0 0
        %9000 = vmatprep.subr.bf16.mxu0 0
        %9001 = vmatpush1.bf16.xpose.msra.mxu0 0
        %9002 = vmatprep.subr.bf16.mxu0 0
        %9003 = vmatpush1.bf16.xpose.msra.mxu0 0
        %9004 = vmatprep.subr.bf16.mxu0 0
        %9005 = vmatpush1.bf16.xpose.msra.mxu0 0
        %9006 = vmatprep.subr.bf16.mxu0 0
        %9007 = vmatpush1.bf16.xpose.msra.mxu0 0
        %9008 = vmatprep.subr.bf16.mxu0 0
        %9009 = vmatpush1.bf16.xpose.msra.mxu0 %v8992
        %9010 = vmatprep.subr.bf16.mxu0 0
        %9011 = vmatpush2.bf16.xpose.msra.mxu0 0
        %9012 = vmatprep.subr.bf16.mxu0 0
        %9013 = vmatpush2.bf16.xpose.msra.mxu0 0
        %9014 = vmatprep.subr.bf16.mxu0 0
        %9015 = vmatpush2.bf16.xpose.msra.mxu0 0
        %9016 = vmatprep.subr.bf16.mxu0 0
        %9017 = vmatpush2.bf16.xpose.msra.mxu0 0
        %9018 = vmatprep.subr.bf16.mxu0 0
        %9019 = vmatpush2.bf16.xpose.msra.mxu0 0
        %9020 = vmatprep.subr.bf16.mxu0 0
        %9021 = vmatpush2.bf16.xpose.msra.mxu0 0
        %9022 = vmatprep.subr.bf16.mxu0 0
        %9023 = vmatpush2.bf16.xpose.msra.mxu0 0
        %9024 = vmatprep.subr.bf16.mxu0 0
        %9025 = vmatpush2.bf16.xpose.msra.mxu0 0
        %9026 = vmatprep.mubr.bf16.mxu0 0
        %9027 = vmatmul.mubr.bf16.gmra.mxu0 %v8986
        %v9028 = vpop.f32.mrf.mxu0
        %v9029 = vadd.f32 0.0, %v9028
        %v9030 = vpop.f32.mrf.mxu0
        %v9031 = vpop.f32.mrf.mxu0
        %v9032 = vadd.f32 0.0, %v9031
        %v9033 = vpop.f32.mrf.mxu0
        %9034 = vmatprep.mubr.bf16.mxu0 0
        %9035 = vmatmul.mubr.bf16.gmra.mxu0 %v8989
        %v9036 = vpop.f32.mrf.mxu0
        %v9037 = vadd.f32 0.0, %v9036
        %v9038 = vpop.f32.mrf.mxu0
        %v9039 = vpop.f32.mrf.mxu0
        %v9040 = vadd.f32 0.0, %v9039
        %v9041 = vpop.f32.mrf.mxu0
        %9042 = vdwg.mxu0
        %v9044 = vsel %vm3370, %v8856, 0
        %v9047 = vsel %vm3370, %v8868, 0
        %v9050 = vsel %vm3370, %v7668, 0
        %9052 = vmatprep.subr.bf16.mxu0 0
        %9053 = vmatpush1.bf16.xpose.msra.mxu0 0
        %9054 = vmatprep.subr.bf16.mxu0 0
        %9055 = vmatpush1.bf16.xpose.msra.mxu0 0
        %9056 = vmatprep.subr.bf16.mxu0 0
        %9057 = vmatpush1.bf16.xpose.msra.mxu0 0
        %9058 = vmatprep.subr.bf16.mxu0 0
        %9059 = vmatpush1.bf16.xpose.msra.mxu0 0
        %9060 = vmatprep.subr.bf16.mxu0 0
        %9061 = vmatpush1.bf16.xpose.msra.mxu0 0
        %9062 = vmatprep.subr.bf16.mxu0 0
        %9063 = vmatpush1.bf16.xpose.msra.mxu0 0
        %9064 = vmatprep.subr.bf16.mxu0 0
        %9065 = vmatpush1.bf16.xpose.msra.mxu0 0
        %9066 = vmatprep.subr.bf16.mxu0 0
        %9067 = vmatpush1.bf16.xpose.msra.mxu0 %v9050
        %9068 = vmatprep.subr.bf16.mxu0 0
        %9069 = vmatpush2.bf16.xpose.msra.mxu0 0
        %9070 = vmatprep.subr.bf16.mxu0 0
        %9071 = vmatpush2.bf16.xpose.msra.mxu0 0
        %9072 = vmatprep.subr.bf16.mxu0 0
        %9073 = vmatpush2.bf16.xpose.msra.mxu0 0
        %9074 = vmatprep.subr.bf16.mxu0 0
        %9075 = vmatpush2.bf16.xpose.msra.mxu0 0
        %9076 = vmatprep.subr.bf16.mxu0 0
        %9077 = vmatpush2.bf16.xpose.msra.mxu0 0
        %9078 = vmatprep.subr.bf16.mxu0 0
        %9079 = vmatpush2.bf16.xpose.msra.mxu0 0
        %9080 = vmatprep.subr.bf16.mxu0 0
        %9081 = vmatpush2.bf16.xpose.msra.mxu0 0
        %9082 = vmatprep.subr.bf16.mxu0 0
        %9083 = vmatpush2.bf16.xpose.msra.mxu0 0
        %9084 = vmatprep.mubr.bf16.mxu0 0
        %9085 = vmatmul.mubr.bf16.gmra.mxu0 %v9044
        %v9086 = vpop.f32.mrf.mxu0
        %v9087 = vadd.f32 0.0, %v9086
        %v9088 = vpop.f32.mrf.mxu0
        %v9089 = vpop.f32.mrf.mxu0
        %v9090 = vadd.f32 0.0, %v9089
        %v9091 = vpop.f32.mrf.mxu0
        %9092 = vmatprep.mubr.bf16.mxu0 0
        %9093 = vmatmul.mubr.bf16.gmra.mxu0 %v9047
        %v9094 = vpop.f32.mrf.mxu0
        %v9095 = vadd.f32 0.0, %v9094
        %v9096 = vpop.f32.mrf.mxu0
        %v9097 = vpop.f32.mrf.mxu0
        %v9098 = vadd.f32 0.0, %v9097
        %v9099 = vpop.f32.mrf.mxu0
        %9100 = vdwg.mxu0
        %9101 = vxpose.xlu0.b32.start [1/16] %v8913, 128
        %9102 = vxpose.xlu0.b32.cont [2/16] %v8916, 128
        %9103 = vxpose.xlu0.b32.cont [3/16] %v8921, 128
        %9104 = vxpose.xlu0.b32.cont [4/16] %v8924, 128
        %9105 = vxpose.xlu0.b32.cont [5/16] 0.0, 128
        %9106 = vxpose.xlu0.b32.cont [6/16] 0.0, 128
        %9107 = vxpose.xlu0.b32.cont [7/16] 0.0, 128
        %9108 = vxpose.xlu0.b32.cont [8/16] 0.0, 128
        %9109 = vxpose.xlu0.b32.cont [9/16] 0.0, 128
        %9110 = vxpose.xlu0.b32.cont [10/16] 0.0, 128
        %9111 = vxpose.xlu0.b32.cont [11/16] 0.0, 128
        %9112 = vxpose.xlu0.b32.cont [12/16] 0.0, 128
        %9113 = vxpose.xlu0.b32.cont [13/16] 0.0, 128
        %9114 = vxpose.xlu0.b32.cont [14/16] 0.0, 128
        %9115 = vxpose.xlu0.b32.cont [15/16] 0.0, 128
        %9116 = vxpose.xlu0.b32.end [16/16] 0.0, 128
        %v9117 = vpop.trf.xlu0
        %v9118 = vpop.trf.xlu0
        %v9119 = vpop.trf.xlu0
        %v9120 = vpop.trf.xlu0
        %v9121 = vpop.trf.xlu0
        %v9122 = vpop.trf.xlu0
        %v9123 = vpop.trf.xlu0
        %v9124 = vpop.trf.xlu0
        %v9125 = vpop.trf.xlu0
        %v9126 = vpop.trf.xlu0
        %v9127 = vpop.trf.xlu0
        %v9128 = vpop.trf.xlu0
        %v9129 = vpop.trf.xlu0
        %v9130 = vpop.trf.xlu0
        %v9131 = vpop.trf.xlu0
        %v9132 = vpop.trf.xlu0
        %9133 = vxpose.xlu0.b32.start [1/16] %v8971, 128
        %9134 = vxpose.xlu0.b32.cont [2/16] %v8974, 128
        %9135 = vxpose.xlu0.b32.cont [3/16] %v8979, 128
        %9136 = vxpose.xlu0.b32.cont [4/16] %v8982, 128
        %9137 = vxpose.xlu0.b32.cont [5/16] 0.0, 128
        %9138 = vxpose.xlu0.b32.cont [6/16] 0.0, 128
        %9139 = vxpose.xlu0.b32.cont [7/16] 0.0, 128
        %9140 = vxpose.xlu0.b32.cont [8/16] 0.0, 128
        %9141 = vxpose.xlu0.b32.cont [9/16] 0.0, 128
        %9142 = vxpose.xlu0.b32.cont [10/16] 0.0, 128
        %9143 = vxpose.xlu0.b32.cont [11/16] 0.0, 128
        %9144 = vxpose.xlu0.b32.cont [12/16] 0.0, 128
        %9145 = vxpose.xlu0.b32.cont [13/16] 0.0, 128
        %9146 = vxpose.xlu0.b32.cont [14/16] 0.0, 128
        %9147 = vxpose.xlu0.b32.cont [15/16] 0.0, 128
        %9148 = vxpose.xlu0.b32.end [16/16] 0.0, 128
        %v9149 = vpop.trf.xlu0
        %v9150 = vpop.trf.xlu0
        %v9151 = vpop.trf.xlu0
        %v9152 = vpop.trf.xlu0
        %v9153 = vpop.trf.xlu0
        %v9154 = vpop.trf.xlu0
        %v9155 = vpop.trf.xlu0
        %v9156 = vpop.trf.xlu0
        %v9157 = vpop.trf.xlu0
        %v9158 = vpop.trf.xlu0
        %v9159 = vpop.trf.xlu0
        %v9160 = vpop.trf.xlu0
        %v9161 = vpop.trf.xlu0
        %v9162 = vpop.trf.xlu0
        %v9163 = vpop.trf.xlu0
        %v9164 = vpop.trf.xlu0
        %9165 = vxpose.xlu0.b32.start [1/16] %v9029, 128
        %9166 = vxpose.xlu0.b32.cont [2/16] %v9032, 128
        %9167 = vxpose.xlu0.b32.cont [3/16] %v9037, 128
        %9168 = vxpose.xlu0.b32.cont [4/16] %v9040, 128
        %9169 = vxpose.xlu0.b32.cont [5/16] 0.0, 128
        %9170 = vxpose.xlu0.b32.cont [6/16] 0.0, 128
        %9171 = vxpose.xlu0.b32.cont [7/16] 0.0, 128
        %9172 = vxpose.xlu0.b32.cont [8/16] 0.0, 128
        %9173 = vxpose.xlu0.b32.cont [9/16] 0.0, 128
        %9174 = vxpose.xlu0.b32.cont [10/16] 0.0, 128
        %9175 = vxpose.xlu0.b32.cont [11/16] 0.0, 128
        %9176 = vxpose.xlu0.b32.cont [12/16] 0.0, 128
        %9177 = vxpose.xlu0.b32.cont [13/16] 0.0, 128
        %9178 = vxpose.xlu0.b32.cont [14/16] 0.0, 128
        %9179 = vxpose.xlu0.b32.cont [15/16] 0.0, 128
        %9180 = vxpose.xlu0.b32.end [16/16] 0.0, 128
        %v9181 = vpop.trf.xlu0
        %v9182 = vpop.trf.xlu0
        %v9183 = vpop.trf.xlu0
        %v9184 = vpop.trf.xlu0
        %v9185 = vpop.trf.xlu0
        %v9186 = vpop.trf.xlu0
        %v9187 = vpop.trf.xlu0
        %v9188 = vpop.trf.xlu0
        %v9189 = vpop.trf.xlu0
        %v9190 = vpop.trf.xlu0
        %v9191 = vpop.trf.xlu0
        %v9192 = vpop.trf.xlu0
        %v9193 = vpop.trf.xlu0
        %v9194 = vpop.trf.xlu0
        %v9195 = vpop.trf.xlu0
        %v9196 = vpop.trf.xlu0
        %9197 = vxpose.xlu0.b32.start [1/16] %v9087, 128
        %9198 = vxpose.xlu0.b32.cont [2/16] %v9090, 128
        %9199 = vxpose.xlu0.b32.cont [3/16] %v9095, 128
        %9200 = vxpose.xlu0.b32.cont [4/16] %v9098, 128
        %9201 = vxpose.xlu0.b32.cont [5/16] 0.0, 128
        %9202 = vxpose.xlu0.b32.cont [6/16] 0.0, 128
        %9203 = vxpose.xlu0.b32.cont [7/16] 0.0, 128
        %9204 = vxpose.xlu0.b32.cont [8/16] 0.0, 128
        %9205 = vxpose.xlu0.b32.cont [9/16] 0.0, 128
        %9206 = vxpose.xlu0.b32.cont [10/16] 0.0, 128
        %9207 = vxpose.xlu0.b32.cont [11/16] 0.0, 128
        %9208 = vxpose.xlu0.b32.cont [12/16] 0.0, 128
        %9209 = vxpose.xlu0.b32.cont [13/16] 0.0, 128
        %9210 = vxpose.xlu0.b32.cont [14/16] 0.0, 128
        %9211 = vxpose.xlu0.b32.cont [15/16] 0.0, 128
        %9212 = vxpose.xlu0.b32.end [16/16] 0.0, 128
        %v9213 = vpop.trf.xlu0
        %v9214 = vpop.trf.xlu0
        %v9215 = vpop.trf.xlu0
        %v9216 = vpop.trf.xlu0
        %v9217 = vpop.trf.xlu0
        %v9218 = vpop.trf.xlu0
        %v9219 = vpop.trf.xlu0
        %v9220 = vpop.trf.xlu0
        %v9221 = vpop.trf.xlu0
        %v9222 = vpop.trf.xlu0
        %v9223 = vpop.trf.xlu0
        %v9224 = vpop.trf.xlu0
        %v9225 = vpop.trf.xlu0
        %v9226 = vpop.trf.xlu0
        %v9227 = vpop.trf.xlu0
        %v9228 = vpop.trf.xlu0
        %v9229 = vcombine.low %v9117, %v9181
        %v9230 = vcombine.high %v9117, %v9181
        %v9232 = vunpack.c.l.s4 1983009808
        %v9233 = vunpack.c.0.s8 %v9232
        %v9234 = vlaneseq
        %v9235 = vshrl.u32 %v9234, 7
        %v9236 = vsub.s32 %v9233, %v9235
        %v9237 = vrot.slane %v9229, %v9236
        %v9239 = vunpack.c.l.s4 1983009808
        %v9240 = vunpack.c.0.s8 %v9239
        %v9241 = vlaneseq
        %v9242 = vshrl.u32 %v9241, 7
        %v9243 = vsub.s32 %v9240, %v9242
        %v9244 = vrot.slane %v9230, %v9243
        %v9245 = vcombine.low %v9149, %v9213
        %v9246 = vcombine.high %v9149, %v9213
        %v9248 = vunpack.c.l.s4 1983009808
        %v9249 = vunpack.c.0.s8 %v9248
        %v9250 = vlaneseq
        %v9251 = vshrl.u32 %v9250, 7
        %v9252 = vsub.s32 %v9249, %v9251
        %v9253 = vrot.slane %v9245, %v9252
        %v9255 = vunpack.c.l.s4 1983009808
        %v9256 = vunpack.c.0.s8 %v9255
        %v9257 = vlaneseq
        %v9258 = vshrl.u32 %v9257, 7
        %v9259 = vsub.s32 %v9256, %v9258
        %v9260 = vrot.slane %v9246, %v9259
        %v9261 = vcombine.low %v9237, %v9253
        %v9262 = vcombine.high %v9237, %v9253
        %v9264 = vunpack.c.l.s4 1934713408
        %v9265 = vunpack.c.0.s8 %v9264
        %v9266 = vlaneseq
        %v9267 = vshrl.u32 %v9266, 7
        %v9268 = vsub.s32 %v9265, %v9267
        %v9269 = vrot.slane %v9261, %v9268
        %v9271 = vunpack.c.l.s4 1934713408
        %v9272 = vunpack.c.0.s8 %v9271
        %v9273 = vlaneseq
        %v9274 = vshrl.u32 %v9273, 7
        %v9275 = vsub.s32 %v9272, %v9274
        %v9276 = vrot.slane %v9262, %v9275
        %v9277 = vcombine.low %v9244, %v9260
        %v9278 = vcombine.high %v9244, %v9260
        %v9280 = vunpack.c.l.s4 1934713408
        %v9281 = vunpack.c.0.s8 %v9280
        %v9282 = vlaneseq
        %v9283 = vshrl.u32 %v9282, 7
        %v9284 = vsub.s32 %v9281, %v9283
        %v9285 = vrot.slane %v9277, %v9284
        %v9287 = vunpack.c.l.s4 1934713408
        %v9288 = vunpack.c.0.s8 %v9287
        %v9289 = vlaneseq
        %v9290 = vshrl.u32 %v9289, 7
        %v9291 = vsub.s32 %v9288, %v9290
        %v9292 = vrot.slane %v9278, %v9291
        %v9293 = vcombine.high %v9269, 0.0
        %v9294 = vcombine.high %v9276, 0.0
        %v9295 = vcombine.high %v9285, 0.0
        %v9296 = vcombine.high %v9292, 0.0
        %v9297 = vcombine.low %v9269, %v9276
        %v9299 = vunpack.c.l.s4 1983009808
        %v9300 = vunpack.c.0.s8 %v9299
        %v9301 = vlaneseq
        %v9302 = vshrl.u32 %v9301, 7
        %v9303 = vsub.s32 %v9300, %v9302
        %v9304 = vrot.slane %v9297, %v9303
        %v9305 = vcombine.low %v9293, %v9294
        %v9307 = vunpack.c.l.s4 1983009808
        %v9308 = vunpack.c.0.s8 %v9307
        %v9309 = vlaneseq
        %v9310 = vshrl.u32 %v9309, 7
        %v9311 = vsub.s32 %v9308, %v9310
        %v9312 = vrot.slane %v9305, %v9311
        %v9313 = vcombine.low %v9285, %v9292
        %v9315 = vunpack.c.l.s4 1983009808
        %v9316 = vunpack.c.0.s8 %v9315
        %v9317 = vlaneseq
        %v9318 = vshrl.u32 %v9317, 7
        %v9319 = vsub.s32 %v9316, %v9318
        %v9320 = vrot.slane %v9313, %v9319
        %v9321 = vcombine.low %v9295, %v9296
        %v9323 = vunpack.c.l.s4 1983009808
        %v9324 = vunpack.c.0.s8 %v9323
        %v9325 = vlaneseq
        %v9326 = vshrl.u32 %v9325, 7
        %v9327 = vsub.s32 %v9324, %v9326
        %v9328 = vrot.slane %v9321, %v9327
        %v9329 = vcombine.low %v9304, %v9312
        %v9330 = vcombine.high %v9304, %v9312
        %v9332 = vunpack.c.l.s4 1934713408
        %v9333 = vunpack.c.0.s8 %v9332
        %v9334 = vlaneseq
        %v9335 = vshrl.u32 %v9334, 7
        %v9336 = vsub.s32 %v9333, %v9335
        %v9337 = vrot.slane %v9329, %v9336
        %v9339 = vunpack.c.l.s4 1934713408
        %v9340 = vunpack.c.0.s8 %v9339
        %v9341 = vlaneseq
        %v9342 = vshrl.u32 %v9341, 7
        %v9343 = vsub.s32 %v9340, %v9342
        %v9344 = vrot.slane %v9330, %v9343
        %v9345 = vcombine.low %v9320, %v9328
        %v9346 = vcombine.high %v9320, %v9328
        %v9348 = vunpack.c.l.s4 1934713408
        %v9349 = vunpack.c.0.s8 %v9348
        %v9350 = vlaneseq
        %v9351 = vshrl.u32 %v9350, 7
        %v9352 = vsub.s32 %v9349, %v9351
        %v9353 = vrot.slane %v9345, %v9352
        %v9355 = vunpack.c.l.s4 1934713408
        %v9356 = vunpack.c.0.s8 %v9355
        %v9357 = vlaneseq
        %v9358 = vshrl.u32 %v9357, 7
        %v9359 = vsub.s32 %v9356, %v9358
        %v9360 = vrot.slane %v9346, %v9359
        %v9361 = vcombine.low %v9337, %v9353
        %v9362 = vcombine.high %v9337, %v9353
        %v9363 = vcombine.low %v9344, %v9360
        %v9364 = vcombine.high %v9344, %v9360
        %9366 = vrot.lane.b32.xlu0 %v9362, 32
        %v9367 = vpop.permute.xlu0 %9366
        %9370 = vrot.lane.b32.xlu0 %v9363, 64
        %v9371 = vpop.permute.xlu0 %9370
        %9374 = vrot.lane.b32.xlu0 %v9364, 96
        %v9375 = vpop.permute.xlu0 %9374
        %v9377 = vsel %vm3168, %v9361, %v9367
        %v9378 = vsel %vm1289, %v9377, %v9371
        %v9379 = vsel %vm5129, %v9378, %v9375
        %s9380 = scalar_lea.vmem [#allocation13], 64
        %v9381 = vld [vmem:[%s9380] sm:$0xf]
        %v9382 = vld [vmem:[%s9380 + $0x4] sm:$0xf]
        %v9383 = vld [vmem:[%s9380 + $0x8] sm:$0xf]
        %v9384 = vld [vmem:[%s9380 + $0xc] sm:$0xf]
        %v9385 = vld [vmem:[%s9380 + $0x10] sm:$0xf]
        %v9386 = vld [vmem:[%s9380 + $0x14] sm:$0xf]
        %v9387 = vld [vmem:[%s9380 + $0x18] sm:$0xf]
        %v9388 = vld [vmem:[%s9380 + $0x1c] sm:$0xf]
        %v9389 = vld [vmem:[%s9380 + $0x20] sm:$0xf]
        %v9390 = vld [vmem:[%s9380 + $0x24] sm:$0xf]
        %v9391 = vld [vmem:[%s9380 + $0x28] sm:$0xf]
        %v9392 = vld [vmem:[%s9380 + $0x2c] sm:$0xf]
        %v9393 = vld [vmem:[%s9380 + $0x30] sm:$0xf]
        %v9394 = vld [vmem:[%s9380 + $0x34] sm:$0xf]
        %v9395 = vld [vmem:[%s9380 + $0x38] sm:$0xf]
        %v9396 = vld [vmem:[%s9380 + $0x3c] sm:$0xf]
        %s9397 = scalar_lea.vmem [#allocation14], 1
        %v9398 = vld [vmem:[%s9397] sm:$0x1]
        %v9399 = vpack.c.bf16 %v9379, %v9379
        %v9401 = vlaneseq
        %v9402 = vshrl.u32 %v9401, 7
        %v9403 = vsub.s32 0, %v9402
        %v9404 = vrot.slane %v9398, %v9403
        %v9422 = vunpack.c.l.b16 %v9381
        %v9423 = vunpack.c.l.b16 %v9382
        %v9424 = vunpack.c.l.b16 %v9383
        %v9425 = vunpack.c.l.b16 %v9384
        %v9426 = vunpack.c.l.b16 %v9385
        %v9427 = vunpack.c.l.b16 %v9386
        %v9428 = vunpack.c.l.b16 %v9387
        %v9429 = vunpack.c.l.b16 %v9388
        %v9430 = vunpack.c.l.b16 %v9389
        %v9431 = vunpack.c.l.b16 %v9390
        %v9432 = vunpack.c.l.b16 %v9391
        %v9433 = vunpack.c.l.b16 %v9392
        %v9434 = vunpack.c.l.b16 %v9393
        %v9435 = vunpack.c.l.b16 %v9394
        %v9436 = vunpack.c.l.b16 %v9395
        %v9437 = vunpack.c.l.b16 %v9396
        %v9438 = vpack.c.b16 %v9423, %v9422
        %v9439 = vpack.c.b16 %v9425, %v9424
        %v9440 = vpack.c.b16 %v9427, %v9426
        %v9441 = vpack.c.b16 %v9429, %v9428
        %v9442 = vpack.c.b16 %v9431, %v9430
        %v9443 = vpack.c.b16 %v9433, %v9432
        %v9444 = vpack.c.b16 %v9435, %v9434
        %v9445 = vpack.c.b16 %v9437, %v9436
        %9454 = vmatprep.subr.bf16.mxu0 0
        %9455 = vmatpush1.bf16.msra.mxu0 %v9445
        %9456 = vmatprep.subr.bf16.mxu0 0
        %9457 = vmatpush1.bf16.msra.mxu0 %v9444
        %9458 = vmatprep.subr.bf16.mxu0 0
        %9459 = vmatpush1.bf16.msra.mxu0 %v9443
        %9460 = vmatprep.subr.bf16.mxu0 0
        %9461 = vmatpush1.bf16.msra.mxu0 %v9442
        %9462 = vmatprep.subr.bf16.mxu0 0
        %9463 = vmatpush1.bf16.msra.mxu0 %v9441
        %9464 = vmatprep.subr.bf16.mxu0 0
        %9465 = vmatpush1.bf16.msra.mxu0 %v9440
        %9466 = vmatprep.subr.bf16.mxu0 0
        %9467 = vmatpush1.bf16.msra.mxu0 %v9439
        %9468 = vmatprep.subr.bf16.mxu0 0
        %9469 = vmatpush1.bf16.msra.mxu0 %v9438
        %9470 = vmatprep.subr.bf16.mxu0 0
        %9471 = vmatpush2.bf16.msra.mxu0 0
        %9472 = vmatprep.subr.bf16.mxu0 0
        %9473 = vmatpush2.bf16.msra.mxu0 0
        %9474 = vmatprep.subr.bf16.mxu0 0
        %9475 = vmatpush2.bf16.msra.mxu0 0
        %9476 = vmatprep.subr.bf16.mxu0 0
        %9477 = vmatpush2.bf16.msra.mxu0 0
        %9478 = vmatprep.subr.bf16.mxu0 0
        %9479 = vmatpush2.bf16.msra.mxu0 0
        %9480 = vmatprep.subr.bf16.mxu0 0
        %9481 = vmatpush2.bf16.msra.mxu0 0
        %9482 = vmatprep.subr.bf16.mxu0 0
        %9483 = vmatpush2.bf16.msra.mxu0 0
        %9484 = vmatprep.subr.bf16.mxu0 0
        %9485 = vmatpush2.bf16.msra.mxu0 0
        %9486 = vmatprep.mubr.bf16.mxu0 0
        %9487 = vmatmul.mubr.bf16.gmra.mxu0 %v9399
        %v9488 = vpop.f32.mrf.mxu0
        %v9489 = vadd.f32 %v9404, %v9488
        %v9490 = vpop.f32.mrf.mxu0
        %v9491 = vpop.f32.mrf.mxu0
        %v9492 = vpop.f32.mrf.mxu0
        %9493 = vdwg.mxu0
        %v9494 = vadd.f32 %v9489, %v5647
        %s9495 = scalar_lea.vmem [#allocation16], 1
        %v9496 = vld [vmem:[%s9495] sm:$0x1]
        %s9497 = scalar_lea.vmem [#allocation17], 1
        %v9498 = vld [vmem:[%s9497] sm:$0x1]
        %9499 = vadd.xlane.f32.xlu0 %v9494
        %v9500 = vpop.xlane.xlu0 %9499
        %v9501 = vmul.f32 %v9500, %v1355
        %v9502 = vsub.f32 %v9494, %v9501
        %v9503 = vmul.f32 %v9502, %v9502
        %9504 = vadd.xlane.f32.xlu0 %v9503
        %v9505 = vpop.xlane.xlu0 %9504
        %v9506 = vmul.f32 %v9505, %v1355
        %v9507 = vadd.f32 %v9506, 1e-05
        %v9508 = vrsqrt.pop %v9507
        %v9509 = vmul.f32 %v9502, %v9508
        %v9511 = vlaneseq
        %v9512 = vshrl.u32 %v9511, 7
        %v9513 = vsub.s32 0, %v9512
        %v9514 = vrot.slane %v9496, %v9513
        %v9516 = vmul.f32 %v9509, %v9514
        %v9518 = vlaneseq
        %v9519 = vshrl.u32 %v9518, 7
        %v9520 = vsub.s32 0, %v9519
        %v9521 = vrot.slane %v9498, %v9520
        %v9523 = vadd.f32 %v9516, %v9521
        %s9524 = scalar_lea.vmem [#allocation19], 128
        %v9525 = vld [vmem:[%s9524] sm:$0xff]
        %v9526 = vld [vmem:[%s9524 + $0x8] sm:$0xff]
        %v9527 = vld [vmem:[%s9524 + $0x10] sm:$0xff]
        %v9528 = vld [vmem:[%s9524 + $0x18] sm:$0xff]
        %v9529 = vld [vmem:[%s9524 + $0x20] sm:$0xff]
        %v9530 = vld [vmem:[%s9524 + $0x28] sm:$0xff]
        %v9531 = vld [vmem:[%s9524 + $0x30] sm:$0xff]
        %v9532 = vld [vmem:[%s9524 + $0x38] sm:$0xff]
        %v9533 = vld [vmem:[%s9524 + $0x40] sm:$0xff]
        %v9534 = vld [vmem:[%s9524 + $0x48] sm:$0xff]
        %v9535 = vld [vmem:[%s9524 + $0x50] sm:$0xff]
        %v9536 = vld [vmem:[%s9524 + $0x58] sm:$0xff]
        %v9537 = vld [vmem:[%s9524 + $0x60] sm:$0xff]
        %v9538 = vld [vmem:[%s9524 + $0x68] sm:$0xff]
        %v9539 = vld [vmem:[%s9524 + $0x70] sm:$0xff]
        %v9540 = vld [vmem:[%s9524 + $0x78] sm:$0xff]
        %s9541 = scalar_lea.vmem %s33, 2
        %v9542 = vld [vmem:[%s9541] sm:$0x3]
        %v9543 = vpack.c.bf16 %v9523, %v9523
        %v9545 = vlaneseq
        %v9546 = vshrl.u32 %v9545, 7
        %v9547 = vsub.s32 0, %v9546
        %v9548 = vrot.slane %v9542, %v9547
        %v9549 = vlaneseq
        %v9550 = vshrl.u32 %v9549, 7
        %v9551 = vsub.s32 1, %v9550
        %v9552 = vrot.slane %v9542, %v9551
        %v9571 = vunpack.c.l.b16 %v9525
        %v9572 = vunpack.c.h.b16 %v9525
        %v9573 = vunpack.c.l.b16 %v9526
        %v9574 = vunpack.c.h.b16 %v9526
        %v9575 = vunpack.c.l.b16 %v9527
        %v9576 = vunpack.c.h.b16 %v9527
        %v9577 = vunpack.c.l.b16 %v9528
        %v9578 = vunpack.c.h.b16 %v9528
        %v9579 = vunpack.c.l.b16 %v9529
        %v9580 = vunpack.c.h.b16 %v9529
        %v9581 = vunpack.c.l.b16 %v9530
        %v9582 = vunpack.c.h.b16 %v9530
        %v9583 = vunpack.c.l.b16 %v9531
        %v9584 = vunpack.c.h.b16 %v9531
        %v9585 = vunpack.c.l.b16 %v9532
        %v9586 = vunpack.c.h.b16 %v9532
        %v9587 = vunpack.c.l.b16 %v9533
        %v9588 = vunpack.c.h.b16 %v9533
        %v9589 = vunpack.c.l.b16 %v9534
        %v9590 = vunpack.c.h.b16 %v9534
        %v9591 = vunpack.c.l.b16 %v9535
        %v9592 = vunpack.c.h.b16 %v9535
        %v9593 = vunpack.c.l.b16 %v9536
        %v9594 = vunpack.c.h.b16 %v9536
        %v9595 = vunpack.c.l.b16 %v9537
        %v9596 = vunpack.c.h.b16 %v9537
        %v9597 = vunpack.c.l.b16 %v9538
        %v9598 = vunpack.c.h.b16 %v9538
        %v9599 = vunpack.c.l.b16 %v9539
        %v9600 = vunpack.c.h.b16 %v9539
        %v9601 = vunpack.c.l.b16 %v9540
        %v9602 = vunpack.c.h.b16 %v9540
        %v9603 = vpack.c.b16 %v9573, %v9571
        %v9604 = vpack.c.b16 %v9574, %v9572
        %v9605 = vpack.c.b16 %v9577, %v9575
        %v9606 = vpack.c.b16 %v9578, %v9576
        %v9607 = vpack.c.b16 %v9581, %v9579
        %v9608 = vpack.c.b16 %v9582, %v9580
        %v9609 = vpack.c.b16 %v9585, %v9583
        %v9610 = vpack.c.b16 %v9586, %v9584
        %v9611 = vpack.c.b16 %v9589, %v9587
        %v9612 = vpack.c.b16 %v9590, %v9588
        %v9613 = vpack.c.b16 %v9593, %v9591
        %v9614 = vpack.c.b16 %v9594, %v9592
        %v9615 = vpack.c.b16 %v9597, %v9595
        %v9616 = vpack.c.b16 %v9598, %v9596
        %v9617 = vpack.c.b16 %v9601, %v9599
        %v9618 = vpack.c.b16 %v9602, %v9600
        %9635 = vmatprep.subr.bf16.mxu0 %v9618
        %9636 = vmatpush1.bf16.msra.mxu0 %v9617
        %9637 = vmatprep.subr.bf16.mxu0 %v9616
        %9638 = vmatpush1.bf16.msra.mxu0 %v9615
        %9639 = vmatprep.subr.bf16.mxu0 %v9614
        %9640 = vmatpush1.bf16.msra.mxu0 %v9613
        %9641 = vmatprep.subr.bf16.mxu0 %v9612
        %9642 = vmatpush1.bf16.msra.mxu0 %v9611
        %9643 = vmatprep.subr.bf16.mxu0 %v9610
        %9644 = vmatpush1.bf16.msra.mxu0 %v9609
        %9645 = vmatprep.subr.bf16.mxu0 %v9608
        %9646 = vmatpush1.bf16.msra.mxu0 %v9607
        %9647 = vmatprep.subr.bf16.mxu0 %v9606
        %9648 = vmatpush1.bf16.msra.mxu0 %v9605
        %9649 = vmatprep.subr.bf16.mxu0 %v9604
        %9650 = vmatpush1.bf16.msra.mxu0 %v9603
        %9651 = vmatprep.subr.bf16.mxu0 0
        %9652 = vmatpush2.bf16.msra.mxu0 0
        %9653 = vmatprep.subr.bf16.mxu0 0
        %9654 = vmatpush2.bf16.msra.mxu0 0
        %9655 = vmatprep.subr.bf16.mxu0 0
        %9656 = vmatpush2.bf16.msra.mxu0 0
        %9657 = vmatprep.subr.bf16.mxu0 0
        %9658 = vmatpush2.bf16.msra.mxu0 0
        %9659 = vmatprep.subr.bf16.mxu0 0
        %9660 = vmatpush2.bf16.msra.mxu0 0
        %9661 = vmatprep.subr.bf16.mxu0 0
        %9662 = vmatpush2.bf16.msra.mxu0 0
        %9663 = vmatprep.subr.bf16.mxu0 0
        %9664 = vmatpush2.bf16.msra.mxu0 0
        %9665 = vmatprep.subr.bf16.mxu0 0
        %9666 = vmatpush2.bf16.msra.mxu0 0
        %9667 = vmatprep.mubr.bf16.mxu0 0
        %9668 = vmatmul.mubr.bf16.gmra.mxu0 %v9543
        %v9669 = vpop.f32.mrf.mxu0
        %v9670 = vadd.f32 %v9548, %v9669
        %v9671 = vpop.f32.mrf.mxu0
        %v9672 = vadd.f32 %v9552, %v9671
        %v9673 = vpop.f32.mrf.mxu0
        %v9674 = vpop.f32.mrf.mxu0
        %9675 = vdwg.mxu0
        %v9676 = vmul.f32 %v9670, 0.5
        %v9677 = vmul.f32 %v9672, 0.5
        %v9678 = vmul.f32 %v9670, 0.70710677
        %v9679 = vmul.f32 %v9672, 0.70710677
        %vm9680 = vcmp.ge.f32.partialorder %v9678, 0.0
        %vm9681 = vcmp.ge.f32.partialorder %v9679, 0.0
        %v9682 = vsel %vm9680, 1.0, -1.0
        %v9683 = vsel %vm9681, 1.0, -1.0
        %v9684 = vand.u32 2147483647, %v9678
        %v9685 = vand.u32 2147483647, %v9679
        %v9686 = vmul.f32 %v9684, 0.3275911
        %v9687 = vmul.f32 %v9685, 0.3275911
        %v9688 = vadd.f32 %v9686, 1.0
        %v9689 = vadd.f32 %v9687, 1.0
        %v9690 = vrcp.pop %v9688
        %v9691 = vmul.f32 1.0, %v9690
        %v9692 = vrcp.pop %v9689
        %v9693 = vmul.f32 1.0, %v9692
        %v9694 = vmul.f32 %v9691, 1.0614054
        %v9695 = vmul.f32 %v9693, 1.0614054
        %v9696 = vadd.f32 %v9694, -1.4531521
        %v9697 = vadd.f32 %v9695, -1.4531521
        %v9698 = vmul.f32 %v9696, %v9691
        %v9699 = vmul.f32 %v9697, %v9693
        %v9700 = vadd.f32 %v9698, 1.4214138
        %v9701 = vadd.f32 %v9699, 1.4214138
        %v9702 = vmul.f32 %v9700, %v9691
        %v9703 = vmul.f32 %v9701, %v9693
        %v9704 = vadd.f32 %v9702, -0.28449672
        %v9705 = vadd.f32 %v9703, -0.28449672
        %v9706 = vmul.f32 %v9704, %v9691
        %v9707 = vmul.f32 %v9705, %v9693
        %v9708 = vadd.f32 %v9706, 0.2548296
        %v9709 = vadd.f32 %v9707, 0.2548296
        %v9710 = vmul.f32 %v9708, %v9691
        %v9711 = vmul.f32 %v9709, %v9693
        %v9712 = vsub.f32 0.0, %v9684
        %v9713 = vsub.f32 0.0, %v9685
        %v9714 = vmul.f32 %v9712, %v9684
        %v9715 = vmul.f32 %v9713, %v9685
        %v9716 = vmul.f32 %v9714, 1.442695
        %v9717 = vpow.pop %v9716
        %v9718 = vmul.f32 %v9715, 1.442695
        %v9719 = vpow.pop %v9718
        %v9720 = vmul.f32 %v9710, %v9717
        %v9721 = vmul.f32 %v9711, %v9719
        %v9722 = vsub.f32 1.0, %v9720
        %v9723 = vsub.f32 1.0, %v9721
        %v9724 = vmul.f32 %v9682, %v9722
        %v9725 = vmul.f32 %v9683, %v9723
        %v9726 = vadd.f32 %v9724, 1.0
        %v9727 = vadd.f32 %v9725, 1.0
        %v9728 = vmul.f32 %v9676, %v9726
        %v9729 = vmul.f32 %v9677, %v9727
        %s9730 = scalar_lea.vmem [#allocation20], 128
        %v9731 = vld [vmem:[%s9730] sm:$0xf]
        %v9732 = vld [vmem:[%s9730 + $0x4] sm:$0xf]
        %v9733 = vld [vmem:[%s9730 + $0x8] sm:$0xf]
        %v9734 = vld [vmem:[%s9730 + $0xc] sm:$0xf]
        %v9735 = vld [vmem:[%s9730 + $0x10] sm:$0xf]
        %v9736 = vld [vmem:[%s9730 + $0x14] sm:$0xf]
        %v9737 = vld [vmem:[%s9730 + $0x18] sm:$0xf]
        %v9738 = vld [vmem:[%s9730 + $0x1c] sm:$0xf]
        %v9739 = vld [vmem:[%s9730 + $0x20] sm:$0xf]
        %v9740 = vld [vmem:[%s9730 + $0x24] sm:$0xf]
        %v9741 = vld [vmem:[%s9730 + $0x28] sm:$0xf]
        %v9742 = vld [vmem:[%s9730 + $0x2c] sm:$0xf]
        %v9743 = vld [vmem:[%s9730 + $0x30] sm:$0xf]
        %v9744 = vld [vmem:[%s9730 + $0x34] sm:$0xf]
        %v9745 = vld [vmem:[%s9730 + $0x38] sm:$0xf]
        %v9746 = vld [vmem:[%s9730 + $0x3c] sm:$0xf]
        %v9747 = vld [vmem:[%s9730 + $0x40] sm:$0xf]
        %v9748 = vld [vmem:[%s9730 + $0x44] sm:$0xf]
        %v9749 = vld [vmem:[%s9730 + $0x48] sm:$0xf]
        %v9750 = vld [vmem:[%s9730 + $0x4c] sm:$0xf]
        %v9751 = vld [vmem:[%s9730 + $0x50] sm:$0xf]
        %v9752 = vld [vmem:[%s9730 + $0x54] sm:$0xf]
        %v9753 = vld [vmem:[%s9730 + $0x58] sm:$0xf]
        %v9754 = vld [vmem:[%s9730 + $0x5c] sm:$0xf]
        %v9755 = vld [vmem:[%s9730 + $0x60] sm:$0xf]
        %v9756 = vld [vmem:[%s9730 + $0x64] sm:$0xf]
        %v9757 = vld [vmem:[%s9730 + $0x68] sm:$0xf]
        %v9758 = vld [vmem:[%s9730 + $0x6c] sm:$0xf]
        %v9759 = vld [vmem:[%s9730 + $0x70] sm:$0xf]
        %v9760 = vld [vmem:[%s9730 + $0x74] sm:$0xf]
        %v9761 = vld [vmem:[%s9730 + $0x78] sm:$0xf]
        %v9762 = vld [vmem:[%s9730 + $0x7c] sm:$0xf]
        %s9763 = scalar_lea.vmem [#allocation22], 1
        %v9764 = vld [vmem:[%s9763] sm:$0x1]
        %v9765 = vpack.c.bf16 %v9728, %v9728
        %v9766 = vpack.c.bf16 %v9729, %v9729
        %v9768 = vlaneseq
        %v9769 = vshrl.u32 %v9768, 7
        %v9770 = vsub.s32 0, %v9769
        %v9771 = vrot.slane %v9764, %v9770
        %v9805 = vunpack.c.l.b16 %v9731
        %v9806 = vunpack.c.l.b16 %v9732
        %v9807 = vunpack.c.l.b16 %v9733
        %v9808 = vunpack.c.l.b16 %v9734
        %v9809 = vunpack.c.l.b16 %v9735
        %v9810 = vunpack.c.l.b16 %v9736
        %v9811 = vunpack.c.l.b16 %v9737
        %v9812 = vunpack.c.l.b16 %v9738
        %v9813 = vunpack.c.l.b16 %v9739
        %v9814 = vunpack.c.l.b16 %v9740
        %v9815 = vunpack.c.l.b16 %v9741
        %v9816 = vunpack.c.l.b16 %v9742
        %v9817 = vunpack.c.l.b16 %v9743
        %v9818 = vunpack.c.l.b16 %v9744
        %v9819 = vunpack.c.l.b16 %v9745
        %v9820 = vunpack.c.l.b16 %v9746
        %v9821 = vunpack.c.l.b16 %v9747
        %v9822 = vunpack.c.l.b16 %v9748
        %v9823 = vunpack.c.l.b16 %v9749
        %v9824 = vunpack.c.l.b16 %v9750
        %v9825 = vunpack.c.l.b16 %v9751
        %v9826 = vunpack.c.l.b16 %v9752
        %v9827 = vunpack.c.l.b16 %v9753
        %v9828 = vunpack.c.l.b16 %v9754
        %v9829 = vunpack.c.l.b16 %v9755
        %v9830 = vunpack.c.l.b16 %v9756
        %v9831 = vunpack.c.l.b16 %v9757
        %v9832 = vunpack.c.l.b16 %v9758
        %v9833 = vunpack.c.l.b16 %v9759
        %v9834 = vunpack.c.l.b16 %v9760
        %v9835 = vunpack.c.l.b16 %v9761
        %v9836 = vunpack.c.l.b16 %v9762
        %v9837 = vpack.c.b16 %v9806, %v9805
        %v9838 = vpack.c.b16 %v9808, %v9807
        %v9839 = vpack.c.b16 %v9810, %v9809
        %v9840 = vpack.c.b16 %v9812, %v9811
        %v9841 = vpack.c.b16 %v9814, %v9813
        %v9842 = vpack.c.b16 %v9816, %v9815
        %v9843 = vpack.c.b16 %v9818, %v9817
        %v9844 = vpack.c.b16 %v9820, %v9819
        %v9845 = vpack.c.b16 %v9822, %v9821
        %v9846 = vpack.c.b16 %v9824, %v9823
        %v9847 = vpack.c.b16 %v9826, %v9825
        %v9848 = vpack.c.b16 %v9828, %v9827
        %v9849 = vpack.c.b16 %v9830, %v9829
        %v9850 = vpack.c.b16 %v9832, %v9831
        %v9851 = vpack.c.b16 %v9834, %v9833
        %v9852 = vpack.c.b16 %v9836, %v9835
        %9869 = vmatprep.subr.bf16.mxu0 0
        %9870 = vmatpush1.bf16.msra.mxu0 %v9844
        %9871 = vmatprep.subr.bf16.mxu0 0
        %9872 = vmatpush1.bf16.msra.mxu0 %v9843
        %9873 = vmatprep.subr.bf16.mxu0 0
        %9874 = vmatpush1.bf16.msra.mxu0 %v9842
        %9875 = vmatprep.subr.bf16.mxu0 0
        %9876 = vmatpush1.bf16.msra.mxu0 %v9841
        %9877 = vmatprep.subr.bf16.mxu0 0
        %9878 = vmatpush1.bf16.msra.mxu0 %v9840
        %9879 = vmatprep.subr.bf16.mxu0 0
        %9880 = vmatpush1.bf16.msra.mxu0 %v9839
        %9881 = vmatprep.subr.bf16.mxu0 0
        %9882 = vmatpush1.bf16.msra.mxu0 %v9838
        %9883 = vmatprep.subr.bf16.mxu0 0
        %9884 = vmatpush1.bf16.msra.mxu0 %v9837
        %9885 = vmatprep.subr.bf16.mxu0 0
        %9886 = vmatpush2.bf16.msra.mxu0 %v9852
        %9887 = vmatprep.subr.bf16.mxu0 0
        %9888 = vmatpush2.bf16.msra.mxu0 %v9851
        %9889 = vmatprep.subr.bf16.mxu0 0
        %9890 = vmatpush2.bf16.msra.mxu0 %v9850
        %9891 = vmatprep.subr.bf16.mxu0 0
        %9892 = vmatpush2.bf16.msra.mxu0 %v9849
        %9893 = vmatprep.subr.bf16.mxu0 0
        %9894 = vmatpush2.bf16.msra.mxu0 %v9848
        %9895 = vmatprep.subr.bf16.mxu0 0
        %9896 = vmatpush2.bf16.msra.mxu0 %v9847
        %9897 = vmatprep.subr.bf16.mxu0 0
        %9898 = vmatpush2.bf16.msra.mxu0 %v9846
        %9899 = vmatprep.subr.bf16.mxu0 0
        %9900 = vmatpush2.bf16.msra.mxu0 %v9845
        %9901 = vmatprep.mubr.bf16.mxu0 %v9766
        %9902 = vmatmul.mubr.bf16.gmra.mxu0 %v9765
        %v9903 = vpop.f32.mrf.mxu0
        %v9904 = vadd.f32 %v9771, %v9903
        %v9905 = vpop.f32.mrf.mxu0
        %v9906 = vpop.f32.mrf.mxu0
        %v9907 = vpop.f32.mrf.mxu0
        %9908 = vdwg.mxu0
        %v9909 = vld [vmem:[#allocation23] sm:$0xf]
        %v9910 = vld [vmem:[#allocation23 + $0x4] sm:$0xf]
        %v9911 = vld [vmem:[#allocation23 + $0x8] sm:$0xf]
        %v9912 = vld [vmem:[#allocation23 + $0xc] sm:$0xf]
        %v9913 = vld [vmem:[#allocation23 + $0x10] sm:$0xf]
        %v9914 = vld [vmem:[#allocation23 + $0x14] sm:$0xf]
        %v9915 = vld [vmem:[#allocation23 + $0x18] sm:$0xf]
        %v9916 = vld [vmem:[#allocation23 + $0x1c] sm:$0xf]
        %v9917 = vld [vmem:[#allocation23 + $0x20] sm:$0xf]
        %v9918 = vld [vmem:[#allocation23 + $0x24] sm:$0xf]
        %v9919 = vld [vmem:[#allocation23 + $0x28] sm:$0xf]
        %v9920 = vld [vmem:[#allocation23 + $0x2c] sm:$0xf]
        %v9921 = vld [vmem:[#allocation23 + $0x30] sm:$0xf]
        %v9922 = vld [vmem:[#allocation23 + $0x34] sm:$0xf]
        %v9923 = vld [vmem:[#allocation23 + $0x38] sm:$0xf]
        %v9924 = vld [vmem:[#allocation23 + $0x3c] sm:$0xf]
        %v9925 = vld [vmem:[#allocation25] sm:$0x1]
        %v9926 = vpack.c.bf16 %v9904, %v9904
        %v9943 = vunpack.c.l.b16 %v9909
        %v9944 = vunpack.c.l.b16 %v9910
        %v9945 = vunpack.c.l.b16 %v9911
        %v9946 = vunpack.c.l.b16 %v9912
        %v9947 = vunpack.c.l.b16 %v9913
        %v9948 = vunpack.c.l.b16 %v9914
        %v9949 = vunpack.c.l.b16 %v9915
        %v9950 = vunpack.c.l.b16 %v9916
        %v9951 = vunpack.c.l.b16 %v9917
        %v9952 = vunpack.c.l.b16 %v9918
        %v9953 = vunpack.c.l.b16 %v9919
        %v9954 = vunpack.c.l.b16 %v9920
        %v9955 = vunpack.c.l.b16 %v9921
        %v9956 = vunpack.c.l.b16 %v9922
        %v9957 = vunpack.c.l.b16 %v9923
        %v9958 = vunpack.c.l.b16 %v9924
        %v9959 = vpack.c.b16 %v9944, %v9943
        %v9960 = vpack.c.b16 %v9946, %v9945
        %v9961 = vpack.c.b16 %v9948, %v9947
        %v9962 = vpack.c.b16 %v9950, %v9949
        %v9963 = vpack.c.b16 %v9952, %v9951
        %v9964 = vpack.c.b16 %v9954, %v9953
        %v9965 = vpack.c.b16 %v9956, %v9955
        %v9966 = vpack.c.b16 %v9958, %v9957
        %9975 = vmatprep.subr.bf16.mxu0 0
        %9976 = vmatpush1.bf16.msra.mxu0 %v9966
        %9977 = vmatprep.subr.bf16.mxu0 0
        %9978 = vmatpush1.bf16.msra.mxu0 %v9965
        %9979 = vmatprep.subr.bf16.mxu0 0
        %9980 = vmatpush1.bf16.msra.mxu0 %v9964
        %9981 = vmatprep.subr.bf16.mxu0 0
        %9982 = vmatpush1.bf16.msra.mxu0 %v9963
        %9983 = vmatprep.subr.bf16.mxu0 0
        %9984 = vmatpush1.bf16.msra.mxu0 %v9962
        %9985 = vmatprep.subr.bf16.mxu0 0
        %9986 = vmatpush1.bf16.msra.mxu0 %v9961
        %9987 = vmatprep.subr.bf16.mxu0 0
        %9988 = vmatpush1.bf16.msra.mxu0 %v9960
        %9989 = vmatprep.subr.bf16.mxu0 0
        %9990 = vmatpush1.bf16.msra.mxu0 %v9959
        %9991 = vmatprep.subr.bf16.mxu0 0
        %9992 = vmatpush2.bf16.msra.mxu0 0
        %9993 = vmatprep.subr.bf16.mxu0 0
        %9994 = vmatpush2.bf16.msra.mxu0 0
        %9995 = vmatprep.subr.bf16.mxu0 0
        %9996 = vmatpush2.bf16.msra.mxu0 0
        %9997 = vmatprep.subr.bf16.mxu0 0
        %9998 = vmatpush2.bf16.msra.mxu0 0
        %9999 = vmatprep.subr.bf16.mxu0 0
        %10000 = vmatpush2.bf16.msra.mxu0 0
        %10001 = vmatprep.subr.bf16.mxu0 0
        %10002 = vmatpush2.bf16.msra.mxu0 0
        %10003 = vmatprep.subr.bf16.mxu0 0
        %10004 = vmatpush2.bf16.msra.mxu0 0
        %10005 = vmatprep.subr.bf16.mxu0 0
        %10006 = vmatpush2.bf16.msra.mxu0 0
        %10007 = vmatprep.mubr.bf16.mxu0 0
        %10008 = vmatmul.mubr.bf16.gmra.mxu0 %v9926
        %v10009 = vpop.f32.mrf.mxu0
        %v10010 = vadd.f32 %v9925, %v10009
        %v10011 = vpop.f32.mrf.mxu0
        %v10012 = vpop.f32.mrf.mxu0
        %v10013 = vpop.f32.mrf.mxu0
        %10014 = vdwg.mxu0
        %v10015 = vtanh.pop %v10010
        %v10016 = vld [vmem:[#allocation26] sm:$0xf]
        %v10017 = vld [vmem:[#allocation26 + $0x4] sm:$0xf]
        %v10018 = vld [vmem:[#allocation26 + $0x8] sm:$0xf]
        %v10019 = vld [vmem:[#allocation26 + $0xc] sm:$0xf]
        %v10020 = vld [vmem:[#allocation26 + $0x10] sm:$0xf]
        %v10021 = vld [vmem:[#allocation26 + $0x14] sm:$0xf]
        %v10022 = vld [vmem:[#allocation26 + $0x18] sm:$0xf]
        %v10023 = vld [vmem:[#allocation26 + $0x1c] sm:$0xf]
        %v10024 = vld [vmem:[#allocation26 + $0x20] sm:$0xf]
        %v10025 = vld [vmem:[#allocation26 + $0x24] sm:$0xf]
        %v10026 = vld [vmem:[#allocation26 + $0x28] sm:$0xf]
        %v10027 = vld [vmem:[#allocation26 + $0x2c] sm:$0xf]
        %v10028 = vld [vmem:[#allocation26 + $0x30] sm:$0xf]
        %v10029 = vld [vmem:[#allocation26 + $0x34] sm:$0xf]
        %v10030 = vld [vmem:[#allocation26 + $0x38] sm:$0xf]
        %v10031 = vld [vmem:[#allocation26 + $0x3c] sm:$0xf]
        %v10032 = vld [vmem:[#allocation28] sm:$0x1]
        %v10033 = vpack.c.bf16 %v10015, %v10015
        %v10050 = vunpack.c.l.b16 %v10016
        %v10051 = vunpack.c.l.b16 %v10017
        %v10052 = vunpack.c.l.b16 %v10018
        %v10053 = vunpack.c.l.b16 %v10019
        %v10054 = vunpack.c.l.b16 %v10020
        %v10055 = vunpack.c.l.b16 %v10021
        %v10056 = vunpack.c.l.b16 %v10022
        %v10057 = vunpack.c.l.b16 %v10023
        %v10058 = vunpack.c.l.b16 %v10024
        %v10059 = vunpack.c.l.b16 %v10025
        %v10060 = vunpack.c.l.b16 %v10026
        %v10061 = vunpack.c.l.b16 %v10027
        %v10062 = vunpack.c.l.b16 %v10028
        %v10063 = vunpack.c.l.b16 %v10029
        %v10064 = vunpack.c.l.b16 %v10030
        %v10065 = vunpack.c.l.b16 %v10031
        %v10066 = vpack.c.b16 %v10051, %v10050
        %v10067 = vpack.c.b16 %v10053, %v10052
        %v10068 = vpack.c.b16 %v10055, %v10054
        %v10069 = vpack.c.b16 %v10057, %v10056
        %v10070 = vpack.c.b16 %v10059, %v10058
        %v10071 = vpack.c.b16 %v10061, %v10060
        %v10072 = vpack.c.b16 %v10063, %v10062
        %v10073 = vpack.c.b16 %v10065, %v10064
        %10082 = vmatprep.subr.bf16.mxu0 0
        %10083 = vmatpush1.bf16.msra.mxu0 %v10073
        %10084 = vmatprep.subr.bf16.mxu0 0
        %10085 = vmatpush1.bf16.msra.mxu0 %v10072
        %10086 = vmatprep.subr.bf16.mxu0 0
        %10087 = vmatpush1.bf16.msra.mxu0 %v10071
        %10088 = vmatprep.subr.bf16.mxu0 0
        %10089 = vmatpush1.bf16.msra.mxu0 %v10070
        %10090 = vmatprep.subr.bf16.mxu0 0
        %10091 = vmatpush1.bf16.msra.mxu0 %v10069
        %10092 = vmatprep.subr.bf16.mxu0 0
        %10093 = vmatpush1.bf16.msra.mxu0 %v10068
        %10094 = vmatprep.subr.bf16.mxu0 0
        %10095 = vmatpush1.bf16.msra.mxu0 %v10067
        %10096 = vmatprep.subr.bf16.mxu0 0
        %10097 = vmatpush1.bf16.msra.mxu0 %v10066
        %10098 = vmatprep.subr.bf16.mxu0 0
        %10099 = vmatpush2.bf16.msra.mxu0 0
        %10100 = vmatprep.subr.bf16.mxu0 0
        %10101 = vmatpush2.bf16.msra.mxu0 0
        %10102 = vmatprep.subr.bf16.mxu0 0
        %10103 = vmatpush2.bf16.msra.mxu0 0
        %10104 = vmatprep.subr.bf16.mxu0 0
        %10105 = vmatpush2.bf16.msra.mxu0 0
        %10106 = vmatprep.subr.bf16.mxu0 0
        %10107 = vmatpush2.bf16.msra.mxu0 0
        %10108 = vmatprep.subr.bf16.mxu0 0
        %10109 = vmatpush2.bf16.msra.mxu0 0
        %10110 = vmatprep.subr.bf16.mxu0 0
        %10111 = vmatpush2.bf16.msra.mxu0 0
        %10112 = vmatprep.subr.bf16.mxu0 0
        %10113 = vmatpush2.bf16.msra.mxu0 0
        %10114 = vmatprep.mubr.bf16.mxu0 0
        %10115 = vmatmul.mubr.bf16.gmra.mxu0 %v10033
        %v10116 = vpop.f32.mrf.mxu0
        %v10117 = vadd.f32 %v10032, %v10116
        %v10118 = vpop.f32.mrf.mxu0
        %v10119 = vpop.f32.mrf.mxu0
        %v10120 = vpop.f32.mrf.mxu0
        %10121 = vdwg.mxu0
        %10122 = vst [vmem:[%s1231] sm:$0x1] %v10117
        %v10123 = vld [vmem:[%s1243] sm:$0x3]
        %10124 = vset.pattern.permute.xlu0 0
        %10125 = vperm.xlu0 %10124, %v10123
        %v10126 = vpop.permute.xlu0 %10125
        %vm10127 = vcmp.eq.s32.totalorder %v10126, %v1248
        %v10128 = vsel %vm10127, 1, 0
        %v10129 = vcvt.s32.f32 %v10128
        %v10130 = vpack.c.bf16 %v10129, %v10129
        %v10132 = vsel %vm3370, %v10130, 0
        %vm10134 = vcmask 1043456
        %v10136 = vsel %vm10134, %v9926, 0
        %10138 = vmatprep.subr.bf16.mxu0 0
        %10139 = vmatpush1.bf16.msra.mxu0 0
        %10140 = vmatprep.subr.bf16.mxu0 0
        %10141 = vmatpush1.bf16.msra.mxu0 0
        %10142 = vmatprep.subr.bf16.mxu0 0
        %10143 = vmatpush1.bf16.msra.mxu0 0
        %10144 = vmatprep.subr.bf16.mxu0 0
        %10145 = vmatpush1.bf16.msra.mxu0 0
        %10146 = vmatprep.subr.bf16.mxu0 0
        %10147 = vmatpush1.bf16.msra.mxu0 0
        %10148 = vmatprep.subr.bf16.mxu0 0
        %10149 = vmatpush1.bf16.msra.mxu0 0
        %10150 = vmatprep.subr.bf16.mxu0 0
        %10151 = vmatpush1.bf16.msra.mxu0 0
        %10152 = vmatprep.subr.bf16.mxu0 0
        %10153 = vmatpush1.bf16.msra.mxu0 %v10136
        %10154 = vmatprep.subr.bf16.mxu0 0
        %10155 = vmatpush2.bf16.msra.mxu0 0
        %10156 = vmatprep.subr.bf16.mxu0 0
        %10157 = vmatpush2.bf16.msra.mxu0 0
        %10158 = vmatprep.subr.bf16.mxu0 0
        %10159 = vmatpush2.bf16.msra.mxu0 0
        %10160 = vmatprep.subr.bf16.mxu0 0
        %10161 = vmatpush2.bf16.msra.mxu0 0
        %10162 = vmatprep.subr.bf16.mxu0 0
        %10163 = vmatpush2.bf16.msra.mxu0 0
        %10164 = vmatprep.subr.bf16.mxu0 0
        %10165 = vmatpush2.bf16.msra.mxu0 0
        %10166 = vmatprep.subr.bf16.mxu0 0
        %10167 = vmatpush2.bf16.msra.mxu0 0
        %10168 = vmatprep.subr.bf16.mxu0 0
        %10169 = vmatpush2.bf16.msra.mxu0 0
        %10170 = vmatprep.mubr.bf16.mxu0 0
        %10171 = vmatmul.mubr.bf16.gmra.mxu0 %v10132
        %v10172 = vpop.f32.mrf.mxu0
        %v10173 = vadd.f32 0.0, %v10172
        %v10174 = vpop.f32.mrf.mxu0
        %v10175 = vpop.f32.mrf.mxu0
        %v10176 = vpop.f32.mrf.mxu0
        %10177 = vdwg.mxu0
        %v10178 = vld [vmem:[#allocation29] sm:$0xf]
        %v10179 = vld [vmem:[#allocation29 + $0x4] sm:$0xf]
        %v10180 = vld [vmem:[#allocation29 + $0x8] sm:$0xf]
        %v10181 = vld [vmem:[#allocation29 + $0xc] sm:$0xf]
        %v10182 = vld [vmem:[#allocation29 + $0x10] sm:$0xf]
        %v10183 = vld [vmem:[#allocation29 + $0x14] sm:$0xf]
        %v10184 = vld [vmem:[#allocation29 + $0x18] sm:$0xf]
        %v10185 = vld [vmem:[#allocation29 + $0x1c] sm:$0xf]
        %v10186 = vld [vmem:[#allocation29 + $0x20] sm:$0xf]
        %v10187 = vld [vmem:[#allocation29 + $0x24] sm:$0xf]
        %v10188 = vld [vmem:[#allocation29 + $0x28] sm:$0xf]
        %v10189 = vld [vmem:[#allocation29 + $0x2c] sm:$0xf]
        %v10190 = vld [vmem:[#allocation29 + $0x30] sm:$0xf]
        %v10191 = vld [vmem:[#allocation29 + $0x34] sm:$0xf]
        %v10192 = vld [vmem:[#allocation29 + $0x38] sm:$0xf]
        %v10193 = vld [vmem:[#allocation29 + $0x3c] sm:$0xf]
        %v10194 = vld [vmem:[#allocation31] sm:$0x1]
        %v10195 = vpack.c.bf16 %v10173, %v10173
        %v10197 = vlaneseq
        %v10198 = vshrl.u32 %v10197, 7
        %v10199 = vsub.s32 0, %v10198
        %v10200 = vrot.slane %v10194, %v10199
        %v10218 = vunpack.c.l.b16 %v10178
        %v10219 = vunpack.c.l.b16 %v10179
        %v10220 = vunpack.c.l.b16 %v10180
        %v10221 = vunpack.c.l.b16 %v10181
        %v10222 = vunpack.c.l.b16 %v10182
        %v10223 = vunpack.c.l.b16 %v10183
        %v10224 = vunpack.c.l.b16 %v10184
        %v10225 = vunpack.c.l.b16 %v10185
        %v10226 = vunpack.c.l.b16 %v10186
        %v10227 = vunpack.c.l.b16 %v10187
        %v10228 = vunpack.c.l.b16 %v10188
        %v10229 = vunpack.c.l.b16 %v10189
        %v10230 = vunpack.c.l.b16 %v10190
        %v10231 = vunpack.c.l.b16 %v10191
        %v10232 = vunpack.c.l.b16 %v10192
        %v10233 = vunpack.c.l.b16 %v10193
        %v10234 = vpack.c.b16 %v10219, %v10218
        %v10235 = vpack.c.b16 %v10221, %v10220
        %v10236 = vpack.c.b16 %v10223, %v10222
        %v10237 = vpack.c.b16 %v10225, %v10224
        %v10238 = vpack.c.b16 %v10227, %v10226
        %v10239 = vpack.c.b16 %v10229, %v10228
        %v10240 = vpack.c.b16 %v10231, %v10230
        %v10241 = vpack.c.b16 %v10233, %v10232
        %10250 = vmatprep.subr.bf16.mxu0 0
        %10251 = vmatpush1.bf16.msra.mxu0 %v10241
        %10252 = vmatprep.subr.bf16.mxu0 0
        %10253 = vmatpush1.bf16.msra.mxu0 %v10240
        %10254 = vmatprep.subr.bf16.mxu0 0
        %10255 = vmatpush1.bf16.msra.mxu0 %v10239
        %10256 = vmatprep.subr.bf16.mxu0 0
        %10257 = vmatpush1.bf16.msra.mxu0 %v10238
        %10258 = vmatprep.subr.bf16.mxu0 0
        %10259 = vmatpush1.bf16.msra.mxu0 %v10237
        %10260 = vmatprep.subr.bf16.mxu0 0
        %10261 = vmatpush1.bf16.msra.mxu0 %v10236
        %10262 = vmatprep.subr.bf16.mxu0 0
        %10263 = vmatpush1.bf16.msra.mxu0 %v10235
        %10264 = vmatprep.subr.bf16.mxu0 0
        %10265 = vmatpush1.bf16.msra.mxu0 %v10234
        %10266 = vmatprep.subr.bf16.mxu0 0
        %10267 = vmatpush2.bf16.msra.mxu0 0
        %10268 = vmatprep.subr.bf16.mxu0 0
        %10269 = vmatpush2.bf16.msra.mxu0 0
        %10270 = vmatprep.subr.bf16.mxu0 0
        %10271 = vmatpush2.bf16.msra.mxu0 0
        %10272 = vmatprep.subr.bf16.mxu0 0
        %10273 = vmatpush2.bf16.msra.mxu0 0
        %10274 = vmatprep.subr.bf16.mxu0 0
        %10275 = vmatpush2.bf16.msra.mxu0 0
        %10276 = vmatprep.subr.bf16.mxu0 0
        %10277 = vmatpush2.bf16.msra.mxu0 0
        %10278 = vmatprep.subr.bf16.mxu0 0
        %10279 = vmatpush2.bf16.msra.mxu0 0
        %10280 = vmatprep.subr.bf16.mxu0 0
        %10281 = vmatpush2.bf16.msra.mxu0 0
        %10282 = vmatprep.mubr.bf16.mxu0 0
        %10283 = vmatmul.mubr.bf16.gmra.mxu0 %v10195
        %v10284 = vpop.f32.mrf.mxu0
        %v10285 = vadd.f32 %v10200, %v10284
        %v10286 = vpop.f32.mrf.mxu0
        %v10287 = vpop.f32.mrf.mxu0
        %v10288 = vpop.f32.mrf.mxu0
        %10289 = vdwg.mxu0
        %v10290 = vmul.f32 %v10285, 0.5
        %v10291 = vmul.f32 %v10285, 0.70710677
        %vm10292 = vcmp.ge.f32.partialorder %v10291, 0.0
        %v10293 = vsel %vm10292, 1.0, -1.0
        %v10294 = vand.u32 2147483647, %v10291
        %v10295 = vmul.f32 %v10294, 0.3275911
        %v10296 = vadd.f32 %v10295, 1.0
        %v10297 = vrcp.pop %v10296
        %v10298 = vmul.f32 1.0, %v10297
        %v10299 = vmul.f32 %v10298, 1.0614054
        %v10300 = vadd.f32 %v10299, -1.4531521
        %v10301 = vmul.f32 %v10300, %v10298
        %v10302 = vadd.f32 %v10301, 1.4214138
        %v10303 = vmul.f32 %v10302, %v10298
        %v10304 = vadd.f32 %v10303, -0.28449672
        %v10305 = vmul.f32 %v10304, %v10298
        %v10306 = vadd.f32 %v10305, 0.2548296
        %v10307 = vmul.f32 %v10306, %v10298
        %v10308 = vsub.f32 0.0, %v10294
        %v10309 = vmul.f32 %v10308, %v10294
        %v10310 = vmul.f32 %v10309, 1.442695
        %v10311 = vpow.pop %v10310
        %v10312 = vmul.f32 %v10307, %v10311
        %v10313 = vsub.f32 1.0, %v10312
        %v10314 = vmul.f32 %v10293, %v10313
        %v10315 = vadd.f32 %v10314, 1.0
        %v10316 = vmul.f32 %v10290, %v10315
        %v10317 = vld [vmem:[#allocation32] sm:$0x1]
        %v10318 = vld [vmem:[#allocation34] sm:$0x1]
        %vm10319 = vcmask 1041408
        %v10320 = vsel %vm10319, %v10316, 0.0
        %10321 = vadd.xlane.f32.xlu0 %v10320
        %v10322 = vpop.xlane.xlu0 %10321
        %v10323 = vmul.f32 %v10322, %v1355
        %v10324 = vsub.f32 %v10316, %v10323
        %v10325 = vmul.f32 %v10324, %v10324
        %v10326 = vsel %vm10319, %v10325, 0.0
        %10327 = vadd.xlane.f32.xlu0 %v10326
        %v10328 = vpop.xlane.xlu0 %10327
        %v10329 = vmul.f32 %v10328, %v1355
        %v10330 = vadd.f32 %v10329, 1e-05
        %v10331 = vrsqrt.pop %v10330
        %v10332 = vmul.f32 %v10324, %v10331
        %v10334 = vlaneseq
        %v10335 = vshrl.u32 %v10334, 7
        %v10336 = vsub.s32 0, %v10335
        %v10337 = vrot.slane %v10317, %v10336
        %v10339 = vmul.f32 %v10332, %v10337
        %v10341 = vlaneseq
        %v10342 = vshrl.u32 %v10341, 7
        %v10343 = vsub.s32 0, %v10342
        %v10344 = vrot.slane %v10318, %v10343
        %v10346 = vadd.f32 %v10339, %v10344
        %v10347 = vld [vmem:[%s9] sm:$0xf]
        %v10348 = vld [vmem:[%s9 + $0x4] sm:$0xf]
        %v10349 = vld [vmem:[%s9 + $0x8] sm:$0xf]
        %v10350 = vld [vmem:[%s9 + $0xc] sm:$0xf]
        %v10351 = vld [vmem:[%s9 + $0x10] sm:$0xf]
        %v10352 = vld [vmem:[%s9 + $0x14] sm:$0xf]
        %v10353 = vld [vmem:[%s9 + $0x18] sm:$0xf]
        %v10354 = vld [vmem:[%s9 + $0x1c] sm:$0xf]
        %v10355 = vld [vmem:[%s9 + $0x20] sm:$0xf]
        %v10356 = vld [vmem:[%s9 + $0x24] sm:$0xf]
        %v10357 = vld [vmem:[%s9 + $0x28] sm:$0xf]
        %v10358 = vld [vmem:[%s9 + $0x2c] sm:$0xf]
        %v10359 = vld [vmem:[%s9 + $0x30] sm:$0xf]
        %v10360 = vld [vmem:[%s9 + $0x34] sm:$0xf]
        %v10361 = vld [vmem:[%s9 + $0x38] sm:$0xf]
        %v10362 = vld [vmem:[%s9 + $0x3c] sm:$0xf]
        %v10363 = vld [vmem:[#allocation35] sm:$0x1]
        %v10364 = vpack.c.bf16 %v10346, %v10346
        %v10366 = vlaneseq
        %v10367 = vshrl.u32 %v10366, 7
        %v10368 = vsub.s32 0, %v10367
        %v10369 = vrot.slane %v10363, %v10368
        %v10387 = vunpack.c.l.b16 %v10347
        %v10388 = vunpack.c.l.b16 %v10348
        %v10389 = vunpack.c.l.b16 %v10349
        %v10390 = vunpack.c.l.b16 %v10350
        %v10391 = vunpack.c.l.b16 %v10351
        %v10392 = vunpack.c.l.b16 %v10352
        %v10393 = vunpack.c.l.b16 %v10353
        %v10394 = vunpack.c.l.b16 %v10354
        %v10395 = vunpack.c.l.b16 %v10355
        %v10396 = vunpack.c.l.b16 %v10356
        %v10397 = vunpack.c.l.b16 %v10357
        %v10398 = vunpack.c.l.b16 %v10358
        %v10399 = vunpack.c.l.b16 %v10359
        %v10400 = vunpack.c.l.b16 %v10360
        %v10401 = vunpack.c.l.b16 %v10361
        %v10402 = vunpack.c.l.b16 %v10362
        %v10403 = vpack.c.b16 %v10388, %v10387
        %v10404 = vpack.c.b16 %v10390, %v10389
        %v10405 = vpack.c.b16 %v10392, %v10391
        %v10406 = vpack.c.b16 %v10394, %v10393
        %v10407 = vpack.c.b16 %v10396, %v10395
        %v10408 = vpack.c.b16 %v10398, %v10397
        %v10409 = vpack.c.b16 %v10400, %v10399
        %v10410 = vpack.c.b16 %v10402, %v10401
        %10419 = vmatprep.subr.bf16.mxu0 0
        %10420 = vmatpush1.bf16.msra.mxu0 %v10410
        %10421 = vmatprep.subr.bf16.mxu0 0
        %10422 = vmatpush1.bf16.msra.mxu0 %v10409
        %10423 = vmatprep.subr.bf16.mxu0 0
        %10424 = vmatpush1.bf16.msra.mxu0 %v10408
        %10425 = vmatprep.subr.bf16.mxu0 0
        %10426 = vmatpush1.bf16.msra.mxu0 %v10407
        %10427 = vmatprep.subr.bf16.mxu0 0
        %10428 = vmatpush1.bf16.msra.mxu0 %v10406
        %10429 = vmatprep.subr.bf16.mxu0 0
        %10430 = vmatpush1.bf16.msra.mxu0 %v10405
        %10431 = vmatprep.subr.bf16.mxu0 0
        %10432 = vmatpush1.bf16.msra.mxu0 %v10404
        %10433 = vmatprep.subr.bf16.mxu0 0
        %10434 = vmatpush1.bf16.msra.mxu0 %v10403
        %10435 = vmatprep.subr.bf16.mxu0 0
        %10436 = vmatpush2.bf16.msra.mxu0 0
        %10437 = vmatprep.subr.bf16.mxu0 0
        %10438 = vmatpush2.bf16.msra.mxu0 0
        %10439 = vmatprep.subr.bf16.mxu0 0
        %10440 = vmatpush2.bf16.msra.mxu0 0
        %10441 = vmatprep.subr.bf16.mxu0 0
        %10442 = vmatpush2.bf16.msra.mxu0 0
        %10443 = vmatprep.subr.bf16.mxu0 0
        %10444 = vmatpush2.bf16.msra.mxu0 0
        %10445 = vmatprep.subr.bf16.mxu0 0
        %10446 = vmatpush2.bf16.msra.mxu0 0
        %10447 = vmatprep.subr.bf16.mxu0 0
        %10448 = vmatpush2.bf16.msra.mxu0 0
        %10449 = vmatprep.subr.bf16.mxu0 0
        %10450 = vmatpush2.bf16.msra.mxu0 0
        %10451 = vmatprep.mubr.bf16.mxu0 0
        %10452 = vmatmul.mubr.bf16.gmra.mxu0 %v10364
        %v10453 = vpop.f32.mrf.mxu0
        %v10454 = vadd.f32 %v10369, %v10453
        %v10455 = vpop.f32.mrf.mxu0
        %v10456 = vpop.f32.mrf.mxu0
        %v10457 = vpop.f32.mrf.mxu0
        %10458 = vdwg.mxu0
        %10459 = vst [vmem:[%s1225] sm:$0x3] %v10454
        %s10460 = sand.u32 %s700, 1
        %s10461 = scalar_lea.sflag [#allocation4], %s10460
        %s10462 = sand.u32 %s700, 1
        %s10463 = smul.addr %s10462, 2
        %s10464 = scalar_lea.vmem [#allocation37], %s10463
        %s10465 = sand.u32 %s726, 1
        %s10466 = scalar_lea.sflag [#allocation39], %s10465
        %s10467 = sand.u32 %s726, 1
        %s10468 = scalar_lea.vmem [#allocation38], %s10467
        // Predicated region
        $region221: #{bert_forward.1} parent=131 // pred_check
          %p10469 = pneg %p710
        $region222: #{bert_forward.1} parent=131 // pred_check_branch
          %10471 = sbr.rel (%p10469) target = $region224
        $region223: #{bert_forward.1} parent=131 // pred_region
          %s10473 = ssub.s32 32, 32
          %10474 = vsyncadd %s10461, %s10473
          %s10475 = smul.addr %s89, 32
          %s10476 = scalar_lea.hbm %s57, %s10475
          %s10478 = sshll.u32 %s10464, 4
          %s10479 = int_to_ptr.vmem [resolvable:$true] %s10478
          %10481 = dma.vmem_to_hbm [thread:$0]  %s10479, 32, %s10476, %s10461
        $region224: #{bert_forward.1} parent=131 // pred_fallthru
          _
        // Predicated region
        $region225: #{bert_forward.1} parent=131 // pred_check
          %p10482 = pneg %p736
        $region226: #{bert_forward.1} parent=131 // pred_check_branch
          %10484 = sbr.rel (%p10482) target = $region228
        $region227: #{bert_forward.1} parent=131 // pred_region
          %s10486 = ssub.s32 16, 16
          %10487 = vsyncadd %s10466, %s10486
          %s10488 = smul.addr %s89, 16
          %s10489 = scalar_lea.hbm %s59, %s10488
          %s10491 = sshll.u32 %s10468, 4
          %s10492 = int_to_ptr.vmem [resolvable:$true] %s10491
          %10494 = dma.vmem_to_hbm [thread:$0]  %s10492, 16, %s10489, %s10466
        $region228: #{bert_forward.1} parent=131 // pred_fallthru
          _
      $region132: #{bert_forward.1} parent=5 // pred_fallthru
        _
      %p10495 = scmp.le.s32.totalorder 2, %s84
      // Predicated region
      $region229: #{bert_forward.1} parent=5 // pred_check
        %p10496 = pneg %p10495
      $region230: #{bert_forward.1} parent=5 // pred_check_branch
        %10498 = sbr.rel (%p10496) target = $region232
      $region231: #{bert_forward.1} parent=5 // pred_region
        %s10499 = ssub.s32 %s84, 2
        // Predicated region
        $region233: #{bert_forward.1} parent=231 // pred_check
          %p10500 = pneg %p716
        $region234: #{bert_forward.1} parent=231 // pred_check_branch
          %10502 = sbr.rel (%p10500) target = $region236
        $region235: #{bert_forward.1} parent=231 // pred_region
          %s10503 = sand.u32 %s701, 1
          %s10504 = scalar_lea.sflag [#allocation4], %s10503
          %s10505 = sand.u32 %s701, 1
          %s10506 = smul.addr %s10505, 2
          %s10507 = scalar_lea.vmem [#allocation37], %s10506
          %10508 = dma.done %s10504, 32
        $region236: #{bert_forward.1} parent=231 // pred_fallthru
          _
        // Predicated region
        $region237: #{bert_forward.1} parent=231 // pred_check
          %p10509 = pneg %p742
        $region238: #{bert_forward.1} parent=231 // pred_check_branch
          %10511 = sbr.rel (%p10509) target = $region240
        $region239: #{bert_forward.1} parent=231 // pred_region
          %s10512 = sand.u32 %s727, 1
          %s10513 = scalar_lea.sflag [#allocation39], %s10512
          %s10514 = sand.u32 %s727, 1
          %s10515 = scalar_lea.vmem [#allocation38], %s10514
          %10516 = dma.done %s10513, 16
        $region240: #{bert_forward.1} parent=231 // pred_fallthru
          _
      $region232: #{bert_forward.1} parent=5 // pred_fallthru
        _
    $region6: #{bert_forward.1} parent=1 // loop_footer
      %s88 = sadd.s32 1, %s84
    $region7: #{bert_forward.1} parent=1 // loop_footer_branch
      %83 = sbr.rel target = $region3
    $region8: #{bert_forward.1} parent=1 // loop_exit
      _
    %10517 = vsyncpa [#allocation3], 1
    %s10518 = scalar_lea.sflag [#allocation3], 1
    %10519 = vsyncpa %s10518, 1
    %10520 = vsyncpa [#allocation6], 1
    %10521 = vsyncpa [#allocation9], 1
    %10522 = vsyncpa [#allocation12], 1
    %10523 = vsyncpa [#allocation15], 1
    %10524 = vsyncpa [#allocation18], 1
    %10525 = vsyncpa [#allocation21], 1
    %10526 = vsyncpa [#allocation24], 1
    %10527 = vsyncpa [#allocation27], 1
    %10528 = vsyncpa [#allocation30], 1
    %10529 = vsyncpa [#allocation33], 1
    %10530 = vsyncpa [#allocation36], 1
    %10531 = vsyncpa [#allocation4], 1
    %s10532 = scalar_lea.sflag [#allocation4], 1
    %10533 = vsyncpa %s10532, 1
    %10534 = vsyncpa [#allocation39], 1
    %s10535 = scalar_lea.sflag [#allocation39], 1
    %10536 = vsyncpa %s10535, 1

</llo_original>
